<compile_context>
chip_gen: v5e
topology: v5e:2x2
jax: 0.10.0
libtpu: 0.0.40
codegen_flags: <defaults>
</compile_context>

<pallas_src>
import functools

import jax
import jax.numpy as jnp
from jax import lax
from jax.experimental import pallas as pl
from jax.experimental.pallas import tpu as pltpu

EPS = 1e-5
DILATIONS = (1, 2, 3)


# --------------------------------------------------------------------------
# Kernel 1: fused {3x dilated conv + bias + ECA + 1/3 combine + BN sums},
#           one grid step per sample, channel-major lane-dense output.
# --------------------------------------------------------------------------
def _fused_atrous_kernel(x_ref, w_ref, b_ref, e_ref, y_ref, st_ref,
                         *, H, W, dilations, pad):
    Cin = x_ref.shape[3]
    Cout = y_ref.shape[1]
    HW = H * W
    nd = len(dilations)

    # im2col slab built once in VMEM: columns ordered (dilation, i, j, cin).
    pieces = []
    for d in dilations:
        for i in range(3):
            for j in range(3):
                oh = pad + (i - 1) * d
                ow = pad + (j - 1) * d
                pieces.append(
                    x_ref[0, oh:oh + H, ow:ow + W, :].reshape(HW, Cin))
    slab = jnp.concatenate(pieces, axis=1)                 # (HW, nd*9*Cin) bf16

    # Single MXU contraction for all three dilations (block-diagonal packed
    # weight), contracting the minor dims of both operands so the result is
    # channel-major (nd*Cout, HW) -> lane-dense everywhere downstream.
    acc = lax.dot_general(w_ref[...], slab,
                          (((1,), (1,)), ((), ())),
                          preferred_element_type=jnp.float32)  # (nd*Cout, HW)
    acc = acc + b_ref[...]                                     # (nd*Cout, 1)

    # ECA: e_ref = blockdiag(band(w5)) / (H*W); row-summing (E @ acc) equals
    # the 5-tap conv1d of the per-(dilation, channel) average pools.
    att = jnp.sum(jnp.dot(e_ref[...], acc,
                          preferred_element_type=jnp.float32),
                  axis=1, keepdims=True)                       # (nd*Cout, 1)
    s = 1.0 / (1.0 + jnp.exp(-att))                            # sigmoid (EUP)
    scaled = acc * s                                           # (nd*Cout, HW)

    # 1/3-average over the three dilation groups (vreg-aligned row slices).
    comb = scaled[0:Cout]
    for d in range(1, nd):
        comb = comb + scaled[d * Cout:(d + 1) * Cout]
    comb = comb * (1.0 / nd)                                   # (Cout, HW) f32

    # Per-sample BN sum / sum-of-squares (finalized in the wrapper).
    st_ref[0] = jnp.concatenate(
        [jnp.sum(comb, axis=1, keepdims=True),
         jnp.sum(comb * comb, axis=1, keepdims=True)], axis=1)  # (Cout, 2)

    # Only full-size HBM write: lane-dense (Cout, HW) bf16.
    y_ref[0] = comb.astype(y_ref.dtype)


def fused_atrous_eca_combine(xp, w_packed, b_col, e_mat, H, W, Cout,
                             dilations, pad):
    N, Hp, Wp, Cin = xp.shape
    HW = H * W
    kernel = functools.partial(_fused_atrous_kernel, H=H, W=W,
                               dilations=dilations, pad=pad)
    y, st = pl.pallas_call(
        kernel,
        out_shape=(jax.ShapeDtypeStruct((N, Cout, HW), jnp.bfloat16),
                   jax.ShapeDtypeStruct((N, Cout, 2), jnp.float32)),
        grid_spec=pltpu.PrefetchScalarGridSpec(
            num_scalar_prefetch=0,
            grid=(N,),
            in_specs=[
                pl.BlockSpec((1, Hp, Wp, Cin), lambda n: (n, 0, 0, 0)),
                pl.BlockSpec(w_packed.shape, lambda n: (0, 0)),
                pl.BlockSpec(b_col.shape, lambda n: (0, 0)),
                pl.BlockSpec(e_mat.shape, lambda n: (0, 0)),
            ],
            out_specs=(
                pl.BlockSpec((1, Cout, HW), lambda n: (n, 0, 0)),
                pl.BlockSpec((1, Cout, 2), lambda n: (n, 0, 0)),
            ),
        ),
        compiler_params=pltpu.CompilerParams(
            dimension_semantics=("parallel",)),
    )(xp, w_packed, b_col, e_mat)
    return y, st


# --------------------------------------------------------------------------
# Kernel 2: BN affine + ReLU on the (N*Cout, H*W) lane-dense channel-major
#           view; output reshapes (free) straight to NCHW.
# --------------------------------------------------------------------------
def _bn_relu_kernel(z_ref, s_ref, t_ref, o_ref):
    z = z_ref[...].astype(jnp.float32)
    o_ref[...] = jnp.maximum(z * s_ref[...] + t_ref[...], 0.0)


def _pick_row_tile(rows):
    for t in (1024, 512, 256, 128, 64, 32, 16, 8):
        if rows % t == 0:
            return t
    return rows


def bn_relu(z_bf16, scale_rows, shift_rows):
    R, L = z_bf16.shape
    Rp = (R + 7) // 8 * 8
    if Rp != R:
        z_bf16 = jnp.pad(z_bf16, ((0, Rp - R), (0, 0)))
        scale_rows = jnp.pad(scale_rows, ((0, Rp - R), (0, 0)))
        shift_rows = jnp.pad(shift_rows, ((0, Rp - R), (0, 0)))
    tm = _pick_row_tile(Rp)
    out = pl.pallas_call(
        _bn_relu_kernel,
        out_shape=jax.ShapeDtypeStruct((Rp, L), jnp.float32),
        grid_spec=pltpu.PrefetchScalarGridSpec(
            num_scalar_prefetch=0,
            grid=(Rp // tm,),
            in_specs=[pl.BlockSpec((tm, L), lambda i: (i, 0)),
                      pl.BlockSpec((tm, 1), lambda i: (i, 0)),
                      pl.BlockSpec((tm, 1), lambda i: (i, 0))],
            out_specs=pl.BlockSpec((tm, L), lambda i: (i, 0)),
        ),
        compiler_params=pltpu.CompilerParams(
            dimension_semantics=("parallel",)),
    )(z_bf16, scale_rows, shift_rows)
    return out[:R] if Rp != R else out


# --------------------------------------------------------------------------
# Forward (matches AtrousConv.forward in training mode).
# --------------------------------------------------------------------------
def atrous_conv_forward(params, x_nchw, dilations=DILATIONS, eps=EPS):
    N, Cin, H, W = x_nchw.shape
    w = params["w"]                               # (3, Cout, Cin, 3, 3)
    Cout = w.shape[1]
    nd = len(dilations)
    pad = max(dilations)

    # ---- tiny host/XLA-side packing (O(C^2)) -----------------------------
    # Block-diagonal conv weight: rows = (dilation, cout), cols = (dilation, i, j, cin).
    w_packed = jnp.zeros((nd * Cout, nd * 9 * Cin), jnp.float32)
    for d in range(nd):
        blk = jnp.transpose(w[d], (0, 2, 3, 1)).reshape(Cout, 9 * Cin)
        w_packed = w_packed.at[d * Cout:(d + 1) * Cout,
                               d * 9 * Cin:(d + 1) * 9 * Cin].set(blk)
    w_packed = w_packed.astype(jnp.bfloat16)
    b_col = params["b"].reshape(nd * Cout, 1).astype(jnp.float32)

    # ECA 5-tap conv over channels as a banded matrix (shared across dilations),
    # pre-scaled by 1/(H*W) so the kernel only needs matmul + row-sum.
    eca_w = params["eca_w"]
    K = eca_w.shape[0]
    p = (K - 1) // 2
    c = jnp.arange(Cout)
    diff = c[None, :] - c[:, None] + p
    band = jnp.where((diff >= 0) & (diff < K),
                     eca_w[jnp.clip(diff, 0, K - 1)], 0.0)
    e_mat = (jnp.kron(jnp.eye(nd, dtype=jnp.float32), band)
             / float(H * W)).astype(jnp.float32)

    # ---- input: NCHW -> padded NHWC bf16 (single fused XLA glue op).
    # (In an NHWC end-to-end network this transpose disappears entirely.)
    xp = jnp.pad(jnp.transpose(x_nchw, (0, 2, 3, 1)).astype(jnp.bfloat16),
                 ((0, 0), (pad, pad), (pad, pad), (0, 0)))

    # ---- fused conv + ECA + combine + BN sums -----------------------------
    y, st = fused_atrous_eca_combine(xp, w_packed, b_col, e_mat,
                                     H, W, Cout, dilations, pad)

    # ---- BN finalize (training-mode batch stats, biased variance) ---------
    cnt = float(N * H * W)
    sums = jnp.sum(st, axis=0)                    # (Cout, 2)
    mean = sums[:, 0] / cnt
    var = jnp.maximum(sums[:, 1] / cnt - mean * mean, 0.0)
    bn_scale = params["gamma"] / jnp.sqrt(var + eps)
    bn_shift = params["beta"] - mean * bn_scale

    # ---- BN affine + ReLU on the lane-dense channel-major view ------------
    z = y.reshape(N * Cout, H * W)                # free reshape
    srows = jnp.tile(bn_scale, N)[:, None]        # row n*Cout+c -> scale[c]
    trows = jnp.tile(bn_shift, N)[:, None]
    out = bn_relu(z, srows, trows).reshape(N, Cout, H, W)   # free -> NCHW
    return out


# --------------------------------------------------------------------------
# Parameters (PyTorch-layout conv weights: (Cout, Cin, 3, 3) per dilation).
# --------------------------------------------------------------------------
def init_params(key, middle_channels, out_channels, k_size=5):
    keys = jax.random.split(key, 5)
    std = (2.0 / (9 * middle_channels)) ** 0.5
    w = std * jax.random.normal(
        keys[0], (3, out_channels, middle_channels, 3, 3), jnp.float32)
    b = 0.1 * jax.random.normal(keys[1], (3, out_channels), jnp.float32)
    eca_w = 0.3 * jax.random.normal(keys[2], (k_size,), jnp.float32)
    gamma = 1.0 + 0.1 * jax.random.normal(keys[3], (out_channels,), jnp.float32)
    beta = 0.1 * jax.random.normal(keys[4], (out_channels,), jnp.float32)
    return {"w": w, "b": b, "eca_w": eca_w, "gamma": gamma, "beta": beta}


# --------------------------------------------------------------------------
# Pure-JAX reference (mirrors the kernel's precision policy: bf16 MXU
# operands and bf16 storage of the combined pre-BN intermediate).
# --------------------------------------------------------------------------
def reference_forward(params, x_nchw, dilations=DILATIONS, eps=EPS):
    x = jnp.transpose(x_nchw, (0, 2, 3, 1)).astype(jnp.float32)
    N, H, W, _ = x.shape
    w = params["w"]
    b = params["b"]
    Cout = w.shape[1]
    xb = x.astype(jnp.bfloat16).astype(jnp.float32)
    K = params["eca_w"].shape[0]
    p = (K - 1) // 2
    outs = []
    for d_idx, d in enumerate(dilations):
        wd = jnp.transpose(w[d_idx], (2, 3, 1, 0))        # (3, 3, Cin, Cout)
        wd = wd.astype(jnp.bfloat16).astype(jnp.float32)
        xp = jnp.pad(xb, ((0, 0), (d, d), (d, d), (0, 0)))
        acc = jnp.zeros((N, H, W, Cout), jnp.float32)
        for i in range(3):
            for j in range(3):
                win = xp[:, i * d:i * d + H, j * d:j * d + W, :]
                acc = acc + jnp.einsum("nhwc,co->nhwo", win, wd[i, j],
                                       precision=jax.lax.Precision.HIGHEST)
        acc = acc + b[d_idx][None, None, None, :]
        m = jnp.mean(acc, axis=(1, 2))                    # (N, Cout)
        mp = jnp.pad(m, ((0, 0), (p, p)))
        att = sum(params["eca_w"][k] * mp[:, k:k + Cout] for k in range(K))
        s = jax.nn.sigmoid(att)
        outs.append(acc * s[:, None, None, :])
    out = sum(outs) / float(len(dilations))
    # mirror the kernel's bf16 storage of the combined intermediate
    out = out.astype(jnp.bfloat16).astype(jnp.float32)
    mean = jnp.mean(out, axis=(0, 1, 2))
    var = jnp.var(out, axis=(0, 1, 2))
    out = (out - mean) / jnp.sqrt(var + eps) * params["gamma"] + params["beta"]
    out = jnp.maximum(out, 0.0)
    return jnp.transpose(out, (0, 3, 1, 2))


if __name__ == "__main__":
    key = jax.random.PRNGKey(0)
    pkey, xkey = jax.random.split(key)
    middle_channels, out_channels = 4, 8
    params = init_params(pkey, middle_channels, out_channels)
    x = jax.random.normal(xkey, (2, middle_channels, 16, 16), jnp.float32)

    fwd = jax.jit(atrous_conv_forward)
    out = jax.block_until_ready(fwd(params, x))

    assert out.shape == (2, out_channels, 16, 16), out.shape
    assert bool(jnp.all(jnp.isfinite(out)))

    ref = jax.block_until_ready(jax.jit(reference_forward)(params, x))
    err = float(jnp.max(jnp.abs(out - ref)))
    # Tolerance covers bf16 MXU operands + bf16 storage of the combined tensor.
    assert err < 3e-2, f"max abs err vs reference: {err}"
    print("KERNEL_OK")
</pallas_src>

<mosaic_0001>
module attributes {stable_mosaic.version = 11 : i64} {
  func.func @_fused_atrous_kernel(%arg0: i32, %arg1: memref<1x22x22x4xbf16, #tpu.memory_space<vmem>>, %arg2: memref<24x108xbf16, #tpu.memory_space<vmem>>, %arg3: memref<24x1xf32, #tpu.memory_space<vmem>>, %arg4: memref<24x24xf32, #tpu.memory_space<vmem>>, %arg5: memref<1x8x256xbf16, #tpu.memory_space<vmem>>, %arg6: memref<1x8x2xf32, #tpu.memory_space<vmem>>) attributes {dimension_semantics = [#tpu.dimension_semantics<parallel>], iteration_bounds = array<i64: 2>, scalar_prefetch = 0 : i64, scratch_operands = 0 : i64, tpu.core_type = #tpu.core_type<tc>, window_params = [{transform_indices = @transform_0, window_bounds = array<i64: 1, 22, 22, 4>}, {pipeline_mode = #tpu.pipeline_mode<synchronous>, transform_indices = @transform_1, window_bounds = array<i64: 24, 108>}, {pipeline_mode = #tpu.pipeline_mode<synchronous>, transform_indices = @transform_2, window_bounds = array<i64: 24, 1>}, {pipeline_mode = #tpu.pipeline_mode<synchronous>, transform_indices = @transform_3, window_bounds = array<i64: 24, 24>}, {transform_indices = @transform_4, window_bounds = array<i64: 1, 8, 256>}, {transform_indices = @transform_5, window_bounds = array<i64: 1, 8, 2>}]} {
    %c0 = arith.constant 0 : index
    %c2 = arith.constant 2 : index
    %c2_0 = arith.constant 2 : index
    %c0_1 = arith.constant 0 : index
    %0 = vector.load %arg1[%c0, %c2, %c2_0, %c0_1] : memref<1x22x22x4xbf16, #tpu.memory_space<vmem>>, vector<1x16x16x4xbf16>
    %1 = vector.shape_cast %0 : vector<1x16x16x4xbf16> to vector<16x16x4xbf16>
    %2 = vector.shape_cast %1 : vector<16x16x4xbf16> to vector<256x4xbf16>
    %c0_2 = arith.constant 0 : index
    %c2_3 = arith.constant 2 : index
    %c3 = arith.constant 3 : index
    %c0_4 = arith.constant 0 : index
    %3 = vector.load %arg1[%c0_2, %c2_3, %c3, %c0_4] : memref<1x22x22x4xbf16, #tpu.memory_space<vmem>>, vector<1x16x16x4xbf16>
    %4 = vector.shape_cast %3 : vector<1x16x16x4xbf16> to vector<16x16x4xbf16>
    %5 = vector.shape_cast %4 : vector<16x16x4xbf16> to vector<256x4xbf16>
    %c0_5 = arith.constant 0 : index
    %c2_6 = arith.constant 2 : index
    %c4 = arith.constant 4 : index
    %c0_7 = arith.constant 0 : index
    %6 = vector.load %arg1[%c0_5, %c2_6, %c4, %c0_7] : memref<1x22x22x4xbf16, #tpu.memory_space<vmem>>, vector<1x16x16x4xbf16>
    %7 = vector.shape_cast %6 : vector<1x16x16x4xbf16> to vector<16x16x4xbf16>
    %8 = vector.shape_cast %7 : vector<16x16x4xbf16> to vector<256x4xbf16>
    %c0_8 = arith.constant 0 : index
    %c3_9 = arith.constant 3 : index
    %c2_10 = arith.constant 2 : index
    %c0_11 = arith.constant 0 : index
    %9 = vector.load %arg1[%c0_8, %c3_9, %c2_10, %c0_11] : memref<1x22x22x4xbf16, #tpu.memory_space<vmem>>, vector<1x16x16x4xbf16>
    %10 = vector.shape_cast %9 : vector<1x16x16x4xbf16> to vector<16x16x4xbf16>
    %11 = vector.shape_cast %10 : vector<16x16x4xbf16> to vector<256x4xbf16>
    %c0_12 = arith.constant 0 : index
    %c3_13 = arith.constant 3 : index
    %c3_14 = arith.constant 3 : index
    %c0_15 = arith.constant 0 : index
    %12 = vector.load %arg1[%c0_12, %c3_13, %c3_14, %c0_15] : memref<1x22x22x4xbf16, #tpu.memory_space<vmem>>, vector<1x16x16x4xbf16>
    %13 = vector.shape_cast %12 : vector<1x16x16x4xbf16> to vector<16x16x4xbf16>
    %14 = vector.shape_cast %13 : vector<16x16x4xbf16> to vector<256x4xbf16>
    %c0_16 = arith.constant 0 : index
    %c3_17 = arith.constant 3 : index
    %c4_18 = arith.constant 4 : index
    %c0_19 = arith.constant 0 : index
    %15 = vector.load %arg1[%c0_16, %c3_17, %c4_18, %c0_19] : memref<1x22x22x4xbf16, #tpu.memory_space<vmem>>, vector<1x16x16x4xbf16>
    %16 = vector.shape_cast %15 : vector<1x16x16x4xbf16> to vector<16x16x4xbf16>
    %17 = vector.shape_cast %16 : vector<16x16x4xbf16> to vector<256x4xbf16>
    %c0_20 = arith.constant 0 : index
    %c4_21 = arith.constant 4 : index
    %c2_22 = arith.constant 2 : index
    %c0_23 = arith.constant 0 : index
    %18 = vector.load %arg1[%c0_20, %c4_21, %c2_22, %c0_23] : memref<1x22x22x4xbf16, #tpu.memory_space<vmem>>, vector<1x16x16x4xbf16>
    %19 = vector.shape_cast %18 : vector<1x16x16x4xbf16> to vector<16x16x4xbf16>
    %20 = vector.shape_cast %19 : vector<16x16x4xbf16> to vector<256x4xbf16>
    %c0_24 = arith.constant 0 : index
    %c4_25 = arith.constant 4 : index
    %c3_26 = arith.constant 3 : index
    %c0_27 = arith.constant 0 : index
    %21 = vector.load %arg1[%c0_24, %c4_25, %c3_26, %c0_27] : memref<1x22x22x4xbf16, #tpu.memory_space<vmem>>, vector<1x16x16x4xbf16>
    %22 = vector.shape_cast %21 : vector<1x16x16x4xbf16> to vector<16x16x4xbf16>
    %23 = vector.shape_cast %22 : vector<16x16x4xbf16> to vector<256x4xbf16>
    %c0_28 = arith.constant 0 : index
    %c4_29 = arith.constant 4 : index
    %c4_30 = arith.constant 4 : index
    %c0_31 = arith.constant 0 : index
    %24 = vector.load %arg1[%c0_28, %c4_29, %c4_30, %c0_31] : memref<1x22x22x4xbf16, #tpu.memory_space<vmem>>, vector<1x16x16x4xbf16>
    %25 = vector.shape_cast %24 : vector<1x16x16x4xbf16> to vector<16x16x4xbf16>
    %26 = vector.shape_cast %25 : vector<16x16x4xbf16> to vector<256x4xbf16>
    %c0_32 = arith.constant 0 : index
    %c1 = arith.constant 1 : index
    %c1_33 = arith.constant 1 : index
    %c0_34 = arith.constant 0 : index
    %27 = vector.load %arg1[%c0_32, %c1, %c1_33, %c0_34] : memref<1x22x22x4xbf16, #tpu.memory_space<vmem>>, vector<1x16x16x4xbf16>
    %28 = vector.shape_cast %27 : vector<1x16x16x4xbf16> to vector<16x16x4xbf16>
    %29 = vector.shape_cast %28 : vector<16x16x4xbf16> to vector<256x4xbf16>
    %c0_35 = arith.constant 0 : index
    %c1_36 = arith.constant 1 : index
    %c3_37 = arith.constant 3 : index
    %c0_38 = arith.constant 0 : index
    %30 = vector.load %arg1[%c0_35, %c1_36, %c3_37, %c0_38] : memref<1x22x22x4xbf16, #tpu.memory_space<vmem>>, vector<1x16x16x4xbf16>
    %31 = vector.shape_cast %30 : vector<1x16x16x4xbf16> to vector<16x16x4xbf16>
    %32 = vector.shape_cast %31 : vector<16x16x4xbf16> to vector<256x4xbf16>
    %c0_39 = arith.constant 0 : index
    %c1_40 = arith.constant 1 : index
    %c5 = arith.constant 5 : index
    %c0_41 = arith.constant 0 : index
    %33 = vector.load %arg1[%c0_39, %c1_40, %c5, %c0_41] : memref<1x22x22x4xbf16, #tpu.memory_space<vmem>>, vector<1x16x16x4xbf16>
    %34 = vector.shape_cast %33 : vector<1x16x16x4xbf16> to vector<16x16x4xbf16>
    %35 = vector.shape_cast %34 : vector<16x16x4xbf16> to vector<256x4xbf16>
    %c0_42 = arith.constant 0 : index
    %c3_43 = arith.constant 3 : index
    %c1_44 = arith.constant 1 : index
    %c0_45 = arith.constant 0 : index
    %36 = vector.load %arg1[%c0_42, %c3_43, %c1_44, %c0_45] : memref<1x22x22x4xbf16, #tpu.memory_space<vmem>>, vector<1x16x16x4xbf16>
    %37 = vector.shape_cast %36 : vector<1x16x16x4xbf16> to vector<16x16x4xbf16>
    %38 = vector.shape_cast %37 : vector<16x16x4xbf16> to vector<256x4xbf16>
    %c0_46 = arith.constant 0 : index
    %c3_47 = arith.constant 3 : index
    %c3_48 = arith.constant 3 : index
    %c0_49 = arith.constant 0 : index
    %39 = vector.load %arg1[%c0_46, %c3_47, %c3_48, %c0_49] : memref<1x22x22x4xbf16, #tpu.memory_space<vmem>>, vector<1x16x16x4xbf16>
    %40 = vector.shape_cast %39 : vector<1x16x16x4xbf16> to vector<16x16x4xbf16>
    %41 = vector.shape_cast %40 : vector<16x16x4xbf16> to vector<256x4xbf16>
    %c0_50 = arith.constant 0 : index
    %c3_51 = arith.constant 3 : index
    %c5_52 = arith.constant 5 : index
    %c0_53 = arith.constant 0 : index
    %42 = vector.load %arg1[%c0_50, %c3_51, %c5_52, %c0_53] : memref<1x22x22x4xbf16, #tpu.memory_space<vmem>>, vector<1x16x16x4xbf16>
    %43 = vector.shape_cast %42 : vector<1x16x16x4xbf16> to vector<16x16x4xbf16>
    %44 = vector.shape_cast %43 : vector<16x16x4xbf16> to vector<256x4xbf16>
    %c0_54 = arith.constant 0 : index
    %c5_55 = arith.constant 5 : index
    %c1_56 = arith.constant 1 : index
    %c0_57 = arith.constant 0 : index
    %45 = vector.load %arg1[%c0_54, %c5_55, %c1_56, %c0_57] : memref<1x22x22x4xbf16, #tpu.memory_space<vmem>>, vector<1x16x16x4xbf16>
    %46 = vector.shape_cast %45 : vector<1x16x16x4xbf16> to vector<16x16x4xbf16>
    %47 = vector.shape_cast %46 : vector<16x16x4xbf16> to vector<256x4xbf16>
    %c0_58 = arith.constant 0 : index
    %c5_59 = arith.constant 5 : index
    %c3_60 = arith.constant 3 : index
    %c0_61 = arith.constant 0 : index
    %48 = vector.load %arg1[%c0_58, %c5_59, %c3_60, %c0_61] : memref<1x22x22x4xbf16, #tpu.memory_space<vmem>>, vector<1x16x16x4xbf16>
    %49 = vector.shape_cast %48 : vector<1x16x16x4xbf16> to vector<16x16x4xbf16>
    %50 = vector.shape_cast %49 : vector<16x16x4xbf16> to vector<256x4xbf16>
    %c0_62 = arith.constant 0 : index
    %c5_63 = arith.constant 5 : index
    %c5_64 = arith.constant 5 : index
    %c0_65 = arith.constant 0 : index
    %51 = vector.load %arg1[%c0_62, %c5_63, %c5_64, %c0_65] : memref<1x22x22x4xbf16, #tpu.memory_space<vmem>>, vector<1x16x16x4xbf16>
    %52 = vector.shape_cast %51 : vector<1x16x16x4xbf16> to vector<16x16x4xbf16>
    %53 = vector.shape_cast %52 : vector<16x16x4xbf16> to vector<256x4xbf16>
    %c0_66 = arith.constant 0 : index
    %c0_67 = arith.constant 0 : index
    %c0_68 = arith.constant 0 : index
    %c0_69 = arith.constant 0 : index
    %54 = vector.load %arg1[%c0_66, %c0_67, %c0_68, %c0_69] : memref<1x22x22x4xbf16, #tpu.memory_space<vmem>>, vector<1x16x16x4xbf16>
    %55 = vector.shape_cast %54 : vector<1x16x16x4xbf16> to vector<16x16x4xbf16>
    %56 = vector.shape_cast %55 : vector<16x16x4xbf16> to vector<256x4xbf16>
    %c0_70 = arith.constant 0 : index
    %c0_71 = arith.constant 0 : index
    %c3_72 = arith.constant 3 : index
    %c0_73 = arith.constant 0 : index
    %57 = vector.load %arg1[%c0_70, %c0_71, %c3_72, %c0_73] : memref<1x22x22x4xbf16, #tpu.memory_space<vmem>>, vector<1x16x16x4xbf16>
    %58 = vector.shape_cast %57 : vector<1x16x16x4xbf16> to vector<16x16x4xbf16>
    %59 = vector.shape_cast %58 : vector<16x16x4xbf16> to vector<256x4xbf16>
    %c0_74 = arith.constant 0 : index
    %c0_75 = arith.constant 0 : index
    %c6 = arith.constant 6 : index
    %c0_76 = arith.constant 0 : index
    %60 = vector.load %arg1[%c0_74, %c0_75, %c6, %c0_76] : memref<1x22x22x4xbf16, #tpu.memory_space<vmem>>, vector<1x16x16x4xbf16>
    %61 = vector.shape_cast %60 : vector<1x16x16x4xbf16> to vector<16x16x4xbf16>
    %62 = vector.shape_cast %61 : vector<16x16x4xbf16> to vector<256x4xbf16>
    %c0_77 = arith.constant 0 : index
    %c3_78 = arith.constant 3 : index
    %c0_79 = arith.constant 0 : index
    %c0_80 = arith.constant 0 : index
    %63 = vector.load %arg1[%c0_77, %c3_78, %c0_79, %c0_80] : memref<1x22x22x4xbf16, #tpu.memory_space<vmem>>, vector<1x16x16x4xbf16>
    %64 = vector.shape_cast %63 : vector<1x16x16x4xbf16> to vector<16x16x4xbf16>
    %65 = vector.shape_cast %64 : vector<16x16x4xbf16> to vector<256x4xbf16>
    %c0_81 = arith.constant 0 : index
    %c3_82 = arith.constant 3 : index
    %c3_83 = arith.constant 3 : index
    %c0_84 = arith.constant 0 : index
    %66 = vector.load %arg1[%c0_81, %c3_82, %c3_83, %c0_84] : memref<1x22x22x4xbf16, #tpu.memory_space<vmem>>, vector<1x16x16x4xbf16>
    %67 = vector.shape_cast %66 : vector<1x16x16x4xbf16> to vector<16x16x4xbf16>
    %68 = vector.shape_cast %67 : vector<16x16x4xbf16> to vector<256x4xbf16>
    %c0_85 = arith.constant 0 : index
    %c3_86 = arith.constant 3 : index
    %c6_87 = arith.constant 6 : index
    %c0_88 = arith.constant 0 : index
    %69 = vector.load %arg1[%c0_85, %c3_86, %c6_87, %c0_88] : memref<1x22x22x4xbf16, #tpu.memory_space<vmem>>, vector<1x16x16x4xbf16>
    %70 = vector.shape_cast %69 : vector<1x16x16x4xbf16> to vector<16x16x4xbf16>
    %71 = vector.shape_cast %70 : vector<16x16x4xbf16> to vector<256x4xbf16>
    %c0_89 = arith.constant 0 : index
    %c6_90 = arith.constant 6 : index
    %c0_91 = arith.constant 0 : index
    %c0_92 = arith.constant 0 : index
    %72 = vector.load %arg1[%c0_89, %c6_90, %c0_91, %c0_92] : memref<1x22x22x4xbf16, #tpu.memory_space<vmem>>, vector<1x16x16x4xbf16>
    %73 = vector.shape_cast %72 : vector<1x16x16x4xbf16> to vector<16x16x4xbf16>
    %74 = vector.shape_cast %73 : vector<16x16x4xbf16> to vector<256x4xbf16>
    %c0_93 = arith.constant 0 : index
    %c6_94 = arith.constant 6 : index
    %c3_95 = arith.constant 3 : index
    %c0_96 = arith.constant 0 : index
    %75 = vector.load %arg1[%c0_93, %c6_94, %c3_95, %c0_96] : memref<1x22x22x4xbf16, #tpu.memory_space<vmem>>, vector<1x16x16x4xbf16>
    %76 = vector.shape_cast %75 : vector<1x16x16x4xbf16> to vector<16x16x4xbf16>
    %77 = vector.shape_cast %76 : vector<16x16x4xbf16> to vector<256x4xbf16>
    %c0_97 = arith.constant 0 : index
    %c6_98 = arith.constant 6 : index
    %c6_99 = arith.constant 6 : index
    %c0_100 = arith.constant 0 : index
    %78 = vector.load %arg1[%c0_97, %c6_98, %c6_99, %c0_100] : memref<1x22x22x4xbf16, #tpu.memory_space<vmem>>, vector<1x16x16x4xbf16>
    %79 = vector.shape_cast %78 : vector<1x16x16x4xbf16> to vector<16x16x4xbf16>
    %80 = vector.shape_cast %79 : vector<16x16x4xbf16> to vector<256x4xbf16>
    %81 = tpu.concatenate %2, %5, %8, %11, %14, %17, %20, %23, %26, %29, %32, %35, %38, %41, %44, %47 in 1 : vector<256x4xbf16>, vector<256x4xbf16>, vector<256x4xbf16>, vector<256x4xbf16>, vector<256x4xbf16>, vector<256x4xbf16>, vector<256x4xbf16>, vector<256x4xbf16>, vector<256x4xbf16>, vector<256x4xbf16>, vector<256x4xbf16>, vector<256x4xbf16>, vector<256x4xbf16>, vector<256x4xbf16>, vector<256x4xbf16>, vector<256x4xbf16> -> vector<256x64xbf16>
    %82 = tpu.concatenate %50, %53, %56, %59, %62, %65, %68, %71, %74, %77, %80 in 1 : vector<256x4xbf16>, vector<256x4xbf16>, vector<256x4xbf16>, vector<256x4xbf16>, vector<256x4xbf16>, vector<256x4xbf16>, vector<256x4xbf16>, vector<256x4xbf16>, vector<256x4xbf16>, vector<256x4xbf16>, vector<256x4xbf16> -> vector<256x44xbf16>
    %83 = tpu.concatenate %81, %82 in 1 : vector<256x64xbf16>, vector<256x44xbf16> -> vector<256x108xbf16>
    %c0_101 = arith.constant 0 : index
    %c0_102 = arith.constant 0 : index
    %84 = vector.load %arg2[%c0_101, %c0_102] : memref<24x108xbf16, #tpu.memory_space<vmem>>, vector<24x108xbf16>
    %cst = arith.constant dense<0.000000e+00> : vector<24x256xf32>
    %85 = tpu.matmul %84, %83, %cst {dimension_numbers = #tpu.dot_dimension_numbers<[1], [1], [0], [0], [0, 0, 1, 0], [], []>} : vector<24x108xbf16>, vector<256x108xbf16>, vector<24x256xf32> -> vector<24x256xf32>
    %c0_103 = arith.constant 0 : index
    %c0_104 = arith.constant 0 : index
    %86 = vector.load %arg3[%c0_103, %c0_104] : memref<24x1xf32, #tpu.memory_space<vmem>>, vector<24x1xf32>
    %87 = vector.broadcast %86 : vector<24x1xf32> to vector<24x256xf32>
    %88 = arith.addf %85, %87 : vector<24x256xf32>
    %c0_105 = arith.constant 0 : index
    %c0_106 = arith.constant 0 : index
    %89 = vector.load %arg4[%c0_105, %c0_106] : memref<24x24xf32, #tpu.memory_space<vmem>>, vector<24x24xf32>
    %cst_107 = arith.constant dense<0.000000e+00> : vector<24x256xf32>
    %90 = tpu.matmul %89, %88, %cst_107 {dimension_numbers = #tpu.dot_dimension_numbers<[1], [0], [0], [1], [0, 0, 1, 1], [], []>} : vector<24x24xf32>, vector<24x256xf32>, vector<24x256xf32> -> vector<24x256xf32>
    %cst_108 = arith.constant dense<0.000000e+00> : vector<24xf32>
    %91 = vector.multi_reduction <add>, %90, %cst_108 [1] : vector<24x256xf32> to vector<24xf32>
    %92 = vector.shape_cast %91 : vector<24xf32> to vector<24x1xf32>
    %cst_109 = arith.constant 0.000000e+00 : f32
    %93 = vector.broadcast %cst_109 : f32 to vector<24x1xf32>
    %94 = arith.subf %93, %92 : vector<24x1xf32>
    %95 = math.exp %94 : vector<24x1xf32>
    %cst_110 = arith.constant 1.000000e+00 : f32
    %96 = vector.broadcast %cst_110 : f32 to vector<24x1xf32>
    %97 = arith.addf %96, %95 : vector<24x1xf32>
    %cst_111 = arith.constant 1.000000e+00 : f32
    %98 = vector.broadcast %cst_111 : f32 to vector<24x1xf32>
    %99 = arith.divf %98, %97 : vector<24x1xf32>
    %100 = vector.broadcast %99 : vector<24x1xf32> to vector<24x256xf32>
    %101 = arith.mulf %88, %100 : vector<24x256xf32>
    %102 = vector.extract_strided_slice %101 {offsets = [0, 0], sizes = [8, 256], strides = [1, 1]} : vector<24x256xf32> to vector<8x256xf32>
    %103 = vector.extract_strided_slice %101 {offsets = [8, 0], sizes = [8, 256], strides = [1, 1]} : vector<24x256xf32> to vector<8x256xf32>
    %104 = arith.addf %102, %103 : vector<8x256xf32>
    %105 = vector.extract_strided_slice %101 {offsets = [16, 0], sizes = [8, 256], strides = [1, 1]} : vector<24x256xf32> to vector<8x256xf32>
    %106 = arith.addf %104, %105 : vector<8x256xf32>
    %cst_112 = arith.constant 0.333333343 : f32
    %107 = vector.broadcast %cst_112 : f32 to vector<8x256xf32>
    %108 = arith.mulf %106, %107 : vector<8x256xf32>
    %cst_113 = arith.constant dense<0.000000e+00> : vector<8xf32>
    %109 = vector.multi_reduction <add>, %108, %cst_113 [1] : vector<8x256xf32> to vector<8xf32>
    %110 = vector.shape_cast %109 : vector<8xf32> to vector<8x1xf32>
    %111 = arith.mulf %108, %108 : vector<8x256xf32>
    %cst_114 = arith.constant dense<0.000000e+00> : vector<8xf32>
    %112 = vector.multi_reduction <add>, %111, %cst_114 [1] : vector<8x256xf32> to vector<8xf32>
    %113 = vector.shape_cast %112 : vector<8xf32> to vector<8x1xf32>
    %114 = tpu.concatenate %110, %113 in 1 : vector<8x1xf32>, vector<8x1xf32> -> vector<8x2xf32>
    %c0_115 = arith.constant 0 : index
    %c0_116 = arith.constant 0 : index
    %c0_117 = arith.constant 0 : index
    %115 = vector.load %arg6[%c0_115, %c0_116, %c0_117] : memref<1x8x2xf32, #tpu.memory_space<vmem>>, vector<1x8x2xf32>
    %116 = vector.shape_cast %115 : vector<1x8x2xf32> to vector<8x2xf32>
    %117 = vector.shape_cast %114 : vector<8x2xf32> to vector<1x8x2xf32>
    tpu.vector_store %arg6[%c0_115, %c0_116, %c0_117], %117 {strides = array<i32>} : memref<1x8x2xf32, #tpu.memory_space<vmem>>, vector<1x8x2xf32>,
    %118 = arith.truncf %108 : vector<8x256xf32> to vector<8x256xbf16>
    %c0_118 = arith.constant 0 : index
    %c0_119 = arith.constant 0 : index
    %c0_120 = arith.constant 0 : index
    %119 = vector.load %arg5[%c0_118, %c0_119, %c0_120] : memref<1x8x256xbf16, #tpu.memory_space<vmem>>, vector<1x8x256xbf16>
    %120 = vector.shape_cast %119 : vector<1x8x256xbf16> to vector<8x256xbf16>
    %121 = vector.shape_cast %118 : vector<8x256xbf16> to vector<1x8x256xbf16>
    tpu.vector_store %arg5[%c0_118, %c0_119, %c0_120], %121 {strides = array<i32>} : memref<1x8x256xbf16, #tpu.memory_space<vmem>>, vector<1x8x256xbf16>,
    return
  }
  func.func @transform_0(%arg0: i32) -> (i32, i32, i32, i32) {
    %c0_i32 = arith.constant 0 : i32
    %c0_i32_0 = arith.constant 0 : i32
    %c0_i32_1 = arith.constant 0 : i32
    %c0_i32_2 = arith.constant 0 : i32
    return %arg0, %c0_i32, %c0_i32_0, %c0_i32_1 : i32, i32, i32, i32
  }
  func.func @transform_1(%arg0: i32) -> (i32, i32) {
    %c0_i32 = arith.constant 0 : i32
    %c0_i32_0 = arith.constant 0 : i32
    %c0_i32_1 = arith.constant 0 : i32
    return %c0_i32, %c0_i32_0 : i32, i32
  }
  func.func @transform_2(%arg0: i32) -> (i32, i32) {
    %c0_i32 = arith.constant 0 : i32
    %c0_i32_0 = arith.constant 0 : i32
    %c0_i32_1 = arith.constant 0 : i32
    return %c0_i32, %c0_i32_0 : i32, i32
  }
  func.func @transform_3(%arg0: i32) -> (i32, i32) {
    %c0_i32 = arith.constant 0 : i32
    %c0_i32_0 = arith.constant 0 : i32
    %c0_i32_1 = arith.constant 0 : i32
    return %c0_i32, %c0_i32_0 : i32, i32
  }
  func.func @transform_4(%arg0: i32) -> (i32, i32, i32) {
    %c0_i32 = arith.constant 0 : i32
    %c0_i32_0 = arith.constant 0 : i32
    %c0_i32_1 = arith.constant 0 : i32
    return %arg0, %c0_i32, %c0_i32_0 : i32, i32, i32
  }
  func.func @transform_5(%arg0: i32) -> (i32, i32, i32) {
    %c0_i32 = arith.constant 0 : i32
    %c0_i32_0 = arith.constant 0 : i32
    %c0_i32_1 = arith.constant 0 : i32
    return %arg0, %c0_i32, %c0_i32_0 : i32, i32, i32
  }
}

module attributes {stable_mosaic.version = 11 : i64} {
  func.func @_bn_relu_kernel(%arg0: i32, %arg1: memref<16x256xbf16, #tpu.memory_space<vmem>>, %arg2: memref<16x1xf32, #tpu.memory_space<vmem>>, %arg3: memref<16x1xf32, #tpu.memory_space<vmem>>, %arg4: memref<16x256xf32, #tpu.memory_space<vmem>>) attributes {dimension_semantics = [#tpu.dimension_semantics<parallel>], iteration_bounds = array<i64: 1>, scalar_prefetch = 0 : i64, scratch_operands = 0 : i64, tpu.core_type = #tpu.core_type<tc>, window_params = [{transform_indices = @transform_0, window_bounds = array<i64: 16, 256>}, {transform_indices = @transform_1, window_bounds = array<i64: 16, 1>}, {transform_indices = @transform_2, window_bounds = array<i64: 16, 1>}, {transform_indices = @transform_3, window_bounds = array<i64: 16, 256>}]} {
    %c0 = arith.constant 0 : index
    %c0_0 = arith.constant 0 : index
    %0 = vector.load %arg1[%c0, %c0_0] : memref<16x256xbf16, #tpu.memory_space<vmem>>, vector<16x256xbf16>
    %1 = arith.extf %0 : vector<16x256xbf16> to vector<16x256xf32>
    %c0_1 = arith.constant 0 : index
    %c0_2 = arith.constant 0 : index
    %2 = vector.load %arg2[%c0_1, %c0_2] : memref<16x1xf32, #tpu.memory_space<vmem>>, vector<16x1xf32>
    %3 = vector.broadcast %2 : vector<16x1xf32> to vector<16x256xf32>
    %4 = arith.mulf %1, %3 : vector<16x256xf32>
    %c0_3 = arith.constant 0 : index
    %c0_4 = arith.constant 0 : index
    %5 = vector.load %arg3[%c0_3, %c0_4] : memref<16x1xf32, #tpu.memory_space<vmem>>, vector<16x1xf32>
    %6 = vector.broadcast %5 : vector<16x1xf32> to vector<16x256xf32>
    %7 = arith.addf %4, %6 : vector<16x256xf32>
    %cst = arith.constant 0.000000e+00 : f32
    %8 = vector.broadcast %cst : f32 to vector<16x256xf32>
    %9 = arith.maximumf %7, %8 : vector<16x256xf32>
    %c0_5 = arith.constant 0 : index
    %c0_6 = arith.constant 0 : index
    %10 = vector.load %arg4[%c0_5, %c0_6] : memref<16x256xf32, #tpu.memory_space<vmem>>, vector<16x256xf32>
    tpu.vector_store %arg4[%c0_5, %c0_6], %9 {strides = array<i32>} : memref<16x256xf32, #tpu.memory_space<vmem>>, vector<16x256xf32>,
    return
  }
  func.func @transform_0(%arg0: i32) -> (i32, i32) {
    %c0_i32 = arith.constant 0 : i32
    %c0_i32_0 = arith.constant 0 : i32
    return %arg0, %c0_i32 : i32, i32
  }
  func.func @transform_1(%arg0: i32) -> (i32, i32) {
    %c0_i32 = arith.constant 0 : i32
    %c0_i32_0 = arith.constant 0 : i32
    return %arg0, %c0_i32 : i32, i32
  }
  func.func @transform_2(%arg0: i32) -> (i32, i32) {
    %c0_i32 = arith.constant 0 : i32
    %c0_i32_0 = arith.constant 0 : i32
    return %arg0, %c0_i32 : i32, i32
  }
  func.func @transform_3(%arg0: i32) -> (i32, i32) {
    %c0_i32 = arith.constant 0 : i32
    %c0_i32_0 = arith.constant 0 : i32
    return %arg0, %c0_i32 : i32, i32
  }
}

</mosaic_0001>

<llo_original>
// kernel: tile.13
$region0: #{tile.13}
  #allocation0 [shape = 's32[1]{0}', space=sflag, size = 0x4, scoped, tag = 'scoped memory for tile.13']
  %s0 = inlined_call_operand.vmem [shape: f32[8], index: 0, kind: input, shape index: {}]
  %s1 = inlined_call_operand.vmem [shape: f32[2,8], index: 1, kind: output, shape index: {}]
  // Predicated region
  $region2: #{tile.13} parent=0 // pred_check
    _
  $region3: #{tile.13} parent=0 // pred_check_branch
    %3 = sbr.rel (0) target = $region5
  $region4: #{tile.13} parent=0 // pred_region
    _
  $region5: #{tile.13} parent=0 // pred_fallthru
    _
  %v4 = vld [vmem:[%s0] ss:$0 sm:$0xff]
  %5 = vst [vmem:[%s1] sm:$0x3] %v4

// kernel: tile.0
$region0: #{tile.0}
  %s0 = inlined_call_operand.vmem [shape: f32[2,8], index: 0, kind: input, shape index: {}]
  %s1 = inlined_call_operand.vmem [shape: f32[16,1], index: 1, kind: output, shape index: {}]
  $region1: #{tile.0} parent=0
    #allocation0 [shape = 'u8[4096]{0}', space=vmem, size = 0x1000, scoped, tag = 'scoped mem for input reshape']
    %s3 = ssub.s32 4, 1
    %v4 = vld [vmem:[%s0] sm:%s3]
    %5 = vst [vmem:[#allocation0] sm:%s3] %v4
    %v6 = vld [vmem:[#allocation0] sm:$0x3]
    %vm7 = vcmask 7168
    %8 = vst.msk [vmem:[%s1] ss:$8 sm:$0x3] %vm7, %v6
    %v9 = vld [vmem:[#allocation0] sm:$0x3]
    %10 = vrot.lane.b32.xlu0 %v9, 127
    %v11 = vpop.permute.xlu0 %10
    %vm12 = vcmask 7168
    %s13 = scalar_lea.vmem %s1, 1
    %14 = vst.msk [vmem:[%s13] ss:$8 sm:$0x3] %vm12, %v11
    %v15 = vld [vmem:[#allocation0] sm:$0x3]
    %16 = vrot.lane.b32.xlu0 %v15, 126
    %v17 = vpop.permute.xlu0 %16
    %vm18 = vcmask 7168
    %s19 = scalar_lea.vmem %s1, 2
    %20 = vst.msk [vmem:[%s19] ss:$8 sm:$0x3] %vm18, %v17
    %v21 = vld [vmem:[#allocation0] sm:$0x3]
    %22 = vrot.lane.b32.xlu0 %v21, 125
    %v23 = vpop.permute.xlu0 %22
    %vm24 = vcmask 7168
    %s25 = scalar_lea.vmem %s1, 3
    %26 = vst.msk [vmem:[%s25] ss:$8 sm:$0x3] %vm24, %v23
    %v27 = vld [vmem:[#allocation0] sm:$0x3]
    %28 = vrot.lane.b32.xlu0 %v27, 124
    %v29 = vpop.permute.xlu0 %28
    %vm30 = vcmask 7168
    %s31 = scalar_lea.vmem %s1, 4
    %32 = vst.msk [vmem:[%s31] ss:$8 sm:$0x3] %vm30, %v29
    %v33 = vld [vmem:[#allocation0] sm:$0x3]
    %34 = vrot.lane.b32.xlu0 %v33, 123
    %v35 = vpop.permute.xlu0 %34
    %vm36 = vcmask 7168
    %s37 = scalar_lea.vmem %s1, 5
    %38 = vst.msk [vmem:[%s37] ss:$8 sm:$0x3] %vm36, %v35
    %v39 = vld [vmem:[#allocation0] sm:$0x3]
    %40 = vrot.lane.b32.xlu0 %v39, 122
    %v41 = vpop.permute.xlu0 %40
    %vm42 = vcmask 7168
    %s43 = scalar_lea.vmem %s1, 6
    %44 = vst.msk [vmem:[%s43] ss:$8 sm:$0x3] %vm42, %v41
    %v45 = vld [vmem:[#allocation0] sm:$0x3]
    %46 = vrot.lane.b32.xlu0 %v45, 121
    %v47 = vpop.permute.xlu0 %46
    %vm48 = vcmask 7168
    %s49 = scalar_lea.vmem %s1, 7
    %50 = vst.msk [vmem:[%s49] ss:$8 sm:$0x3] %vm48, %v47

// kernel: atrous_conv_forward.3
$region0: #{atrous_conv_forward.3}
  #allocation0 [shape = 'u32[]', space=smem, size = 0x4, offset = 0x4, fixed_abs, tag = 'smem constant byte address 0x4 - core index']
  #allocation1 [shape = 'u32[72,128]{1,0:T(1,128)}', space=vmem, size = 0x9000, scoped, tag = 'internal scratch']
  %s0 = inlined_call_operand.vmem [shape: bf16[16,256], index: 0, kind: input, shape index: {}]
  %s1 = inlined_call_operand.vmem [shape: f32[16,1], index: 1, kind: input, shape index: {}]
  %s2 = inlined_call_operand.vmem [shape: f32[16,1], index: 2, kind: input, shape index: {}]
  %s3 = inlined_call_operand.vmem [shape: f32[16,256], index: 3, kind: output, shape index: {}]
  %s4 = sld [smem:[#allocation0]]
  $region22: #{atrous_conv_forward.3} parent=0
    _
  %s6 = ssub.s32 1, %s4
  %s7 = scalar_select 0, %s6, %s4
  // Predicated region
  $region2: #{atrous_conv_forward.3} parent=0 // pred_check
    _
  $region3: #{atrous_conv_forward.3} parent=0 // pred_check_branch
    %9 = sbr.rel (0) target = $region5
  $region4: #{atrous_conv_forward.3} parent=0 // pred_region
    _
  $region5: #{atrous_conv_forward.3} parent=0 // pred_fallthru
    _
  // Predicated region
  $region6: #{atrous_conv_forward.3} parent=0 // pred_check
    _
  $region7: #{atrous_conv_forward.3} parent=0 // pred_check_branch
    %11 = sbr.rel (0) target = $region9
  $region8: #{atrous_conv_forward.3} parent=0 // pred_region
    _
  $region9: #{atrous_conv_forward.3} parent=0 // pred_fallthru
    _
  // Predicated region
  $region10: #{atrous_conv_forward.3} parent=0 // pred_check
    _
  $region11: #{atrous_conv_forward.3} parent=0 // pred_check_branch
    %13 = sbr.rel (0) target = $region13
  $region12: #{atrous_conv_forward.3} parent=0 // pred_region
    _
  $region13: #{atrous_conv_forward.3} parent=0 // pred_fallthru
    _
  %v14 = vld [vmem:[%s0] sm:$0xff]
  %v15 = vld [vmem:[%s0 + $0x8] sm:$0xff]
  %v16 = vunpack.c.l.bf16 %v14
  %v17 = vunpack.c.h.bf16 %v14
  %v18 = vunpack.c.l.bf16 %v15
  %v19 = vunpack.c.h.bf16 %v15
  %v20 = vld [vmem:[%s1] sm:$0xff]
  %v21 = vld [vmem:[%s1 + $0x8] sm:$0xff]
  %23 = vset.pattern.permute.xlu0 0
  %24 = vperm.xlu0 %23, %v20
  %v25 = vpop.permute.xlu0 %24
  %28 = vset.pattern.permute.xlu0 0
  %29 = vperm.xlu0 %28, %v21
  %v30 = vpop.permute.xlu0 %29
  %v32 = vmul.f32 %v16, %v25
  %v33 = vmul.f32 %v17, %v25
  %v34 = vmul.f32 %v18, %v30
  %v35 = vmul.f32 %v19, %v30
  %v36 = vld [vmem:[%s2] sm:$0xff]
  %v37 = vld [vmem:[%s2 + $0x8] sm:$0xff]
  %39 = vset.pattern.permute.xlu0 0
  %40 = vperm.xlu0 %39, %v36
  %v41 = vpop.permute.xlu0 %40
  %44 = vset.pattern.permute.xlu0 0
  %45 = vperm.xlu0 %44, %v37
  %v46 = vpop.permute.xlu0 %45
  %v48 = vadd.f32 %v32, %v41
  %v49 = vadd.f32 %v33, %v41
  %v50 = vadd.f32 %v34, %v46
  %v51 = vadd.f32 %v35, %v46
  %v52 = vmax.f32 %v48, 0.0
  %v53 = vmax.f32 %v49, 0.0
  %v54 = vmax.f32 %v50, 0.0
  %v55 = vmax.f32 %v51, 0.0
  %56 = vst [vmem:[%s3] sm:$0xff] %v52
  %57 = vst [vmem:[%s3 + $0x8] sm:$0xff] %v53
  %58 = vst [vmem:[%s3 + $0x10] sm:$0xff] %v54
  %59 = vst [vmem:[%s3 + $0x18] sm:$0xff] %v55
  // Predicated region
  $region14: #{atrous_conv_forward.3} parent=0 // pred_check
    _
  $region15: #{atrous_conv_forward.3} parent=0 // pred_check_branch
    %61 = sbr.rel (0) target = $region17
  $region16: #{atrous_conv_forward.3} parent=0 // pred_region
    _
  $region17: #{atrous_conv_forward.3} parent=0 // pred_fallthru
    _
  // Predicated region
  $region18: #{atrous_conv_forward.3} parent=0 // pred_check
    _
  $region19: #{atrous_conv_forward.3} parent=0 // pred_check_branch
    %63 = sbr.rel (0) target = $region21
  $region20: #{atrous_conv_forward.3} parent=0 // pred_region
    _
  $region21: #{atrous_conv_forward.3} parent=0 // pred_fallthru
    _

// kernel: atrous_conv_forward.2
$region0: #{atrous_conv_forward.2}
  #allocation0 [shape = 'u32[]', space=smem, size = 0x4, offset = 0x4, fixed_abs, tag = 'smem constant byte address 0x4 - core index']
  #allocation1 [shape = 'u32[72,128]{1,0:T(1,128)}', space=vmem, size = 0x9000, scoped, tag = 'internal scratch']
  %s0 = inlined_call_operand.vmem [shape: bf16[2,22,22,4], index: 0, kind: input, shape index: {}]
  %s1 = inlined_call_operand.vmem [shape: bf16[24,108], index: 1, kind: input, shape index: {}]
  %s2 = inlined_call_operand.vmem [shape: f32[24,1], index: 2, kind: input, shape index: {}]
  %s3 = inlined_call_operand.vmem [shape: f32[24,24], index: 3, kind: input, shape index: {}]
  %s4 = inlined_call_operand.vmem [shape: bf16[2,8,256], index: 4, kind: output, shape index: {0}]
  %s5 = inlined_call_operand.vmem [shape: f32[2,8,2], index: 5, kind: output, shape index: {1}]
  %6 = xla_tuple %s4, %s5
  %s7 = sld [smem:[#allocation0]]
  $region57: #{atrous_conv_forward.2} parent=0
    _
  %s9 = ssub.s32 1, %s7
  %s10 = scalar_select 0, %s9, %s7
  loop: start=0, step=1, limit=4
  $region2: #{atrous_conv_forward.2} parent=0 // loop_pre_header
    _
  $region3: #{atrous_conv_forward.2} parent=0 // loop_header
    %s12 = sphi 0, %s16
    %p13 = scmp.ge.s32.totalorder %s12, 4
    %s22 = sphi 0, %s24
    %s25 = sphi 0, %s22
    %s26 = sphi 0, %s25
    %s42 = sphi 0, %s26
    %s46 = sphi 0, %s46
    %s48 = sphi 0, %s46
    %s49 = sphi 0, %s48
    %s63 = sphi 0, %s49
    %s67 = sphi 0, %s67
    %s69 = sphi 0, %s67
    %s70 = sphi 0, %s69
    %s84 = sphi 0, %s70
    %s88 = sphi 0, %s88
    %s90 = sphi 0, %s88
    %s91 = sphi 0, %s90
    %s105 = sphi 0, %s91
    %s111 = sphi 0, %s113
    %s114 = sphi 0, %s111
    %s115 = sphi 0, %s114
    %s131 = sphi 0, %s115
    %s137 = sphi 0, %s139
    %s140 = sphi 0, %s137
    %s141 = sphi 0, %s140
    %s157 = sphi 0, %s141
  $region4: #{atrous_conv_forward.2} parent=0 // loop_header_branch
    %15 = sbr.rel (%p13) target = $region8
  $region5: #{atrous_conv_forward.2} parent=0 // loop_body
    %s17 = ssub.s32 %s12, 1
    %s18 = ssub.s32 %s12, 2
    %s19 = sadd.s32 %s12, 1
    %s20 = ssub.s32 %s12, %s19
    %p21 = scmp.eq.s32.totalorder %s20, 0
    %s23 = sadd.s32 %s22, 1
    %s24 = scalar_select %p21, %s22, %s23
    %p27 = pneg %p21
    %p28 = scmp.eq.s32.totalorder %s12, 1
    %p29 = por %p27, %p28
    %p30 = scmp.ne.s32.totalorder %s22, %s25
    %p31 = scmp.eq.s32.totalorder %s12, 0
    %p32 = por %p30, %p31
    %p33 = scmp.ne.s32.totalorder %s22, %s25
    %p34 = scmp.eq.s32.totalorder %s17, 1
    %p35 = por %p33, %p34
    %p36 = scmp.ne.s32.totalorder %s25, %s26
    %p37 = scmp.eq.s32.totalorder %s17, 0
    %p38 = por %p36, %p37
    %p39 = scmp.ne.s32.totalorder %s25, %s26
    %p40 = scmp.eq.s32.totalorder %s18, 1
    %p41 = por %p39, %p40
    %p43 = scmp.ne.s32.totalorder %s26, %s42
    %p44 = scmp.eq.s32.totalorder %s18, 0
    %p45 = por %p43, %p44
    %s47 = sadd.s32 %s46, 1
    %p50 = scmp.eq.s32.totalorder %s12, 1
    %p51 = scmp.ne.s32.totalorder %s46, %s48
    %p52 = scmp.eq.s32.totalorder %s12, 0
    %p53 = por %p51, %p52
    %p54 = scmp.ne.s32.totalorder %s46, %s48
    %p55 = scmp.eq.s32.totalorder %s17, 1
    %p56 = por %p54, %p55
    %p57 = scmp.ne.s32.totalorder %s48, %s49
    %p58 = scmp.eq.s32.totalorder %s17, 0
    %p59 = por %p57, %p58
    %p60 = scmp.ne.s32.totalorder %s48, %s49
    %p61 = scmp.eq.s32.totalorder %s18, 1
    %p62 = por %p60, %p61
    %p64 = scmp.ne.s32.totalorder %s49, %s63
    %p65 = scmp.eq.s32.totalorder %s18, 0
    %p66 = por %p64, %p65
    %s68 = sadd.s32 %s67, 1
    %p71 = scmp.eq.s32.totalorder %s12, 1
    %p72 = scmp.ne.s32.totalorder %s67, %s69
    %p73 = scmp.eq.s32.totalorder %s12, 0
    %p74 = por %p72, %p73
    %p75 = scmp.ne.s32.totalorder %s67, %s69
    %p76 = scmp.eq.s32.totalorder %s17, 1
    %p77 = por %p75, %p76
    %p78 = scmp.ne.s32.totalorder %s69, %s70
    %p79 = scmp.eq.s32.totalorder %s17, 0
    %p80 = por %p78, %p79
    %p81 = scmp.ne.s32.totalorder %s69, %s70
    %p82 = scmp.eq.s32.totalorder %s18, 1
    %p83 = por %p81, %p82
    %p85 = scmp.ne.s32.totalorder %s70, %s84
    %p86 = scmp.eq.s32.totalorder %s18, 0
    %p87 = por %p85, %p86
    %s89 = sadd.s32 %s88, 1
    %p92 = scmp.eq.s32.totalorder %s12, 1
    %p93 = scmp.ne.s32.totalorder %s88, %s90
    %p94 = scmp.eq.s32.totalorder %s12, 0
    %p95 = por %p93, %p94
    %p96 = scmp.ne.s32.totalorder %s88, %s90
    %p97 = scmp.eq.s32.totalorder %s17, 1
    %p98 = por %p96, %p97
    %p99 = scmp.ne.s32.totalorder %s90, %s91
    %p100 = scmp.eq.s32.totalorder %s17, 0
    %p101 = por %p99, %p100
    %p102 = scmp.ne.s32.totalorder %s90, %s91
    %p103 = scmp.eq.s32.totalorder %s18, 1
    %p104 = por %p102, %p103
    %p106 = scmp.ne.s32.totalorder %s91, %s105
    %p107 = scmp.eq.s32.totalorder %s18, 0
    %p108 = por %p106, %p107
    %s109 = ssub.s32 %s12, %s19
    %p110 = scmp.eq.s32.totalorder %s109, 0
    %s112 = sadd.s32 %s111, 1
    %s113 = scalar_select %p110, %s111, %s112
    %p116 = pneg %p110
    %p117 = scmp.eq.s32.totalorder %s12, 1
    %p118 = por %p116, %p117
    %p119 = scmp.ne.s32.totalorder %s111, %s114
    %p120 = scmp.eq.s32.totalorder %s12, 0
    %p121 = por %p119, %p120
    %p122 = scmp.ne.s32.totalorder %s111, %s114
    %p123 = scmp.eq.s32.totalorder %s17, 1
    %p124 = por %p122, %p123
    %p125 = scmp.ne.s32.totalorder %s114, %s115
    %p126 = scmp.eq.s32.totalorder %s17, 0
    %p127 = por %p125, %p126
    %p128 = scmp.ne.s32.totalorder %s114, %s115
    %p129 = scmp.eq.s32.totalorder %s18, 1
    %p130 = por %p128, %p129
    %p132 = scmp.ne.s32.totalorder %s115, %s131
    %p133 = scmp.eq.s32.totalorder %s18, 0
    %p134 = por %p132, %p133
    %s135 = ssub.s32 %s12, %s19
    %p136 = scmp.eq.s32.totalorder %s135, 0
    %s138 = sadd.s32 %s137, 1
    %s139 = scalar_select %p136, %s137, %s138
    %p142 = pneg %p136
    %p143 = scmp.eq.s32.totalorder %s12, 1
    %p144 = por %p142, %p143
    %p145 = scmp.ne.s32.totalorder %s137, %s140
    %p146 = scmp.eq.s32.totalorder %s12, 0
    %p147 = por %p145, %p146
    %p148 = scmp.ne.s32.totalorder %s137, %s140
    %p149 = scmp.eq.s32.totalorder %s17, 1
    %p150 = por %p148, %p149
    %p151 = scmp.ne.s32.totalorder %s140, %s141
    %p152 = scmp.eq.s32.totalorder %s17, 0
    %p153 = por %p151, %p152
    %p154 = scmp.ne.s32.totalorder %s140, %s141
    %p155 = scmp.eq.s32.totalorder %s18, 1
    %p156 = por %p154, %p155
    %p158 = scmp.ne.s32.totalorder %s141, %s157
    %p159 = scmp.eq.s32.totalorder %s18, 0
    %p160 = por %p158, %p159
    %p161 = scmp.le.s32.totalorder 1, %s12
    %p162 = scmp.lt.s32.totalorder %s12, 3
    %p163 = pnand %p161, %p162
    %p164 = pneg %p163
    // Predicated region
    $region9: #{atrous_conv_forward.2} parent=5 // pred_check
      _
    $region10: #{atrous_conv_forward.2} parent=5 // pred_check_branch
      %166 = sbr.rel (%p163) target = $region12
    $region11: #{atrous_conv_forward.2} parent=5 // pred_region
      %s167 = ssub.s32 %s12, 1
      // Predicated region
      $region13: #{atrous_conv_forward.2} parent=11 // pred_check
        %p168 = pneg %p59
      $region14: #{atrous_conv_forward.2} parent=11 // pred_check_branch
        %170 = sbr.rel (%p168) target = $region16
      $region15: #{atrous_conv_forward.2} parent=11 // pred_region
        _
      $region16: #{atrous_conv_forward.2} parent=11 // pred_fallthru
        _
      // Predicated region
      $region17: #{atrous_conv_forward.2} parent=11 // pred_check
        %p171 = pneg %p80
      $region18: #{atrous_conv_forward.2} parent=11 // pred_check_branch
        %173 = sbr.rel (%p171) target = $region20
      $region19: #{atrous_conv_forward.2} parent=11 // pred_region
        _
      $region20: #{atrous_conv_forward.2} parent=11 // pred_fallthru
        _
      // Predicated region
      $region21: #{atrous_conv_forward.2} parent=11 // pred_check
        %p174 = pneg %p101
      $region22: #{atrous_conv_forward.2} parent=11 // pred_check_branch
        %176 = sbr.rel (%p174) target = $region24
      $region23: #{atrous_conv_forward.2} parent=11 // pred_region
        _
      $region24: #{atrous_conv_forward.2} parent=11 // pred_fallthru
        _
    $region12: #{atrous_conv_forward.2} parent=5 // pred_fallthru
      _
    %p177 = scmp.lt.s32.totalorder %s12, 2
    // Predicated region
    $region25: #{atrous_conv_forward.2} parent=5 // pred_check
      %p178 = pneg %p177
    $region26: #{atrous_conv_forward.2} parent=5 // pred_check_branch
      %180 = sbr.rel (%p178) target = $region28
    $region27: #{atrous_conv_forward.2} parent=5 // pred_region
      // Predicated region
      $region29: #{atrous_conv_forward.2} parent=27 // pred_check
        %p181 = pneg %p32
      $region30: #{atrous_conv_forward.2} parent=27 // pred_check_branch
        %183 = sbr.rel (%p181) target = $region32
      $region31: #{atrous_conv_forward.2} parent=27 // pred_region
        %p184 = scmp.lt.s32.totalorder %s12, 1
        %s185 = scalar_select %p184, %s12, 1
        %s186 = smul.addr %s185, 66
        %s187 = smul.addr %s186, 4
        %s188 = scalar_lea.vmem %s0, %s187
      $region32: #{atrous_conv_forward.2} parent=27 // pred_fallthru
        _
    $region28: #{atrous_conv_forward.2} parent=5 // pred_fallthru
      _
    %p189 = scmp.le.s32.totalorder 1, %s12
    %p190 = scmp.lt.s32.totalorder %s12, 3
    %p191 = pnand %p189, %p190
    %p192 = pneg %p191
    // Predicated region
    $region33: #{atrous_conv_forward.2} parent=5 // pred_check
      _
    $region34: #{atrous_conv_forward.2} parent=5 // pred_check_branch
      %194 = sbr.rel (%p191) target = $region36
    $region35: #{atrous_conv_forward.2} parent=5 // pred_region
      %s195 = ssub.s32 %s12, 1
      %p196 = scmp.lt.s32.totalorder %s17, 1
      %s197 = scalar_select %p196, %s17, 1
      %s198 = smul.addr %s197, 66
      %s199 = smul.addr %s198, 4
      %s200 = scalar_lea.vmem %s0, %s199
      %p201 = pneg %p38
      %p202 = pneg %p35
      %p203 = pneg %p59
      %p204 = pneg %p56
      %p205 = pneg %p80
      %p206 = pneg %p77
      %p207 = pneg %p101
      %p208 = pneg %p98
      %p209 = pneg %p127
      %p210 = pneg %p124
      %p211 = scmp.lt.s32.totalorder %s17, 1
      %s212 = scalar_select %p211, %s17, 1
      %s213 = smul.addr %s212, 2
      %s214 = smul.addr %s213, 4
      %s215 = scalar_lea.vmem %s4, %s214
      %p216 = pneg %p153
      %p217 = pneg %p150
      %p218 = scmp.lt.s32.totalorder %s17, 1
      %s219 = scalar_select %p218, %s17, 1
      %s220 = smul.addr %s219, 8
      %s221 = scalar_lea.vmem %s5, %s220
      %p222 = scmp.lt.s32.totalorder %s17, 1
      %s223 = scalar_select %p222, %s17, 1
      %s224 = smul.addr %s223, 66
      %s225 = smul.addr %s224, 4
      %s226 = scalar_lea.vmem %s0, %s225
      %p227 = scmp.lt.s32.totalorder %s17, 1
      %s228 = scalar_select %p227, %s17, 1
      %s229 = smul.addr %s228, 2
      %s230 = smul.addr %s229, 4
      %s231 = scalar_lea.vmem %s4, %s230
      %p232 = scmp.lt.s32.totalorder %s17, 1
      %s233 = scalar_select %p232, %s17, 1
      %s234 = smul.addr %s233, 8
      %s235 = scalar_lea.vmem %s5, %s234
      %s236 = scalar_lea.vmem %s226, 24
      %v237 = vld [vmem:[%s236] sm:$0xe]
      %v238 = vld [vmem:[%s236 + $0x4] sm:$0xf]
      %v239 = vld [vmem:[%s236 + $0x8] sm:$0x1]
      %v240 = vld [vmem:[%s236 + $0xc] sm:$0xe]
      %v241 = vld [vmem:[%s236 + $0x10] sm:$0xf]
      %v242 = vld [vmem:[%s236 + $0x14] sm:$0x1]
      %v243 = vld [vmem:[%s236 + $0x18] sm:$0xe]
      %v244 = vld [vmem:[%s236 + $0x1c] sm:$0xf]
      %v245 = vld [vmem:[%s236 + $0x20] sm:$0x1]
      %v246 = vld [vmem:[%s236 + $0x24] sm:$0xe]
      %v247 = vld [vmem:[%s236 + $0x28] sm:$0xf]
      %v248 = vld [vmem:[%s236 + $0x2c] sm:$0x1]
      %v249 = vld [vmem:[%s236 + $0x30] sm:$0xe]
      %v250 = vld [vmem:[%s236 + $0x34] sm:$0xf]
      %v251 = vld [vmem:[%s236 + $0x38] sm:$0x1]
      %v252 = vld [vmem:[%s236 + $0x3c] sm:$0xe]
      %v253 = vld [vmem:[%s236 + $0x40] sm:$0xf]
      %v254 = vld [vmem:[%s236 + $0x44] sm:$0x1]
      %v255 = vld [vmem:[%s236 + $0x48] sm:$0xe]
      %v256 = vld [vmem:[%s236 + $0x4c] sm:$0xf]
      %v257 = vld [vmem:[%s236 + $0x50] sm:$0x1]
      %v258 = vld [vmem:[%s236 + $0x54] sm:$0xe]
      %v259 = vld [vmem:[%s236 + $0x58] sm:$0xf]
      %v260 = vld [vmem:[%s236 + $0x5c] sm:$0x1]
      %v261 = vld [vmem:[%s236 + $0x60] sm:$0xe]
      %v262 = vld [vmem:[%s236 + $0x64] sm:$0xf]
      %v263 = vld [vmem:[%s236 + $0x68] sm:$0x1]
      %v264 = vld [vmem:[%s236 + $0x6c] sm:$0xe]
      %v265 = vld [vmem:[%s236 + $0x70] sm:$0xf]
      %v266 = vld [vmem:[%s236 + $0x74] sm:$0x1]
      %v267 = vld [vmem:[%s236 + $0x78] sm:$0xe]
      %v268 = vld [vmem:[%s236 + $0x7c] sm:$0xf]
      %v269 = vld [vmem:[%s236 + $0x80] sm:$0x1]
      %v270 = vld [vmem:[%s236 + $0x84] sm:$0xe]
      %v271 = vld [vmem:[%s236 + $0x88] sm:$0xf]
      %v272 = vld [vmem:[%s236 + $0x8c] sm:$0x1]
      %v273 = vld [vmem:[%s236 + $0x90] sm:$0xe]
      %v274 = vld [vmem:[%s236 + $0x94] sm:$0xf]
      %v275 = vld [vmem:[%s236 + $0x98] sm:$0x1]
      %v276 = vld [vmem:[%s236 + $0x9c] sm:$0xe]
      %v277 = vld [vmem:[%s236 + $0xa0] sm:$0xf]
      %v278 = vld [vmem:[%s236 + $0xa4] sm:$0x1]
      %v279 = vld [vmem:[%s236 + $0xa8] sm:$0xe]
      %v280 = vld [vmem:[%s236 + $0xac] sm:$0xf]
      %v281 = vld [vmem:[%s236 + $0xb0] sm:$0x1]
      %v282 = vld [vmem:[%s236 + $0xb4] sm:$0xe]
      %v283 = vld [vmem:[%s236 + $0xb8] sm:$0xf]
      %v284 = vld [vmem:[%s236 + $0xbc] sm:$0x1]
      %vm333 = vcmask 1042432
      %vm334 = vcmask 1046532
      %vm335 = vmor %vm333, %vm334
      %v336 = vrot.slane %v237, 5
      %v337 = vrot.slane %v336, 4
      %v338 = vrot.slane %v238, 5
      %v339 = vsel %vm335, %v337, %v338
      %v340 = vrot.slane %v338, 4
      %v341 = vrot.slane %v239, 5
      %v342 = vsel %vm335, %v340, %v341
      %v343 = vrot.slane %v240, 5
      %v344 = vrot.slane %v343, 4
      %v345 = vrot.slane %v241, 5
      %v346 = vsel %vm335, %v344, %v345
      %v347 = vrot.slane %v345, 4
      %v348 = vrot.slane %v242, 5
      %v349 = vsel %vm335, %v347, %v348
      %v350 = vrot.slane %v243, 5
      %v351 = vrot.slane %v350, 4
      %v352 = vrot.slane %v244, 5
      %v353 = vsel %vm335, %v351, %v352
      %v354 = vrot.slane %v352, 4
      %v355 = vrot.slane %v245, 5
      %v356 = vsel %vm335, %v354, %v355
      %v357 = vrot.slane %v246, 5
      %v358 = vrot.slane %v357, 4
      %v359 = vrot.slane %v247, 5
      %v360 = vsel %vm335, %v358, %v359
      %v361 = vrot.slane %v359, 4
      %v362 = vrot.slane %v248, 5
      %v363 = vsel %vm335, %v361, %v362
      %v364 = vrot.slane %v249, 5
      %v365 = vrot.slane %v364, 4
      %v366 = vrot.slane %v250, 5
      %v367 = vsel %vm335, %v365, %v366
      %v368 = vrot.slane %v366, 4
      %v369 = vrot.slane %v251, 5
      %v370 = vsel %vm335, %v368, %v369
      %v371 = vrot.slane %v252, 5
      %v372 = vrot.slane %v371, 4
      %v373 = vrot.slane %v253, 5
      %v374 = vsel %vm335, %v372, %v373
      %v375 = vrot.slane %v373, 4
      %v376 = vrot.slane %v254, 5
      %v377 = vsel %vm335, %v375, %v376
      %v378 = vrot.slane %v255, 5
      %v379 = vrot.slane %v378, 4
      %v380 = vrot.slane %v256, 5
      %v381 = vsel %vm335, %v379, %v380
      %v382 = vrot.slane %v380, 4
      %v383 = vrot.slane %v257, 5
      %v384 = vsel %vm335, %v382, %v383
      %v385 = vrot.slane %v258, 5
      %v386 = vrot.slane %v385, 4
      %v387 = vrot.slane %v259, 5
      %v388 = vsel %vm335, %v386, %v387
      %v389 = vrot.slane %v387, 4
      %v390 = vrot.slane %v260, 5
      %v391 = vsel %vm335, %v389, %v390
      %v392 = vrot.slane %v261, 5
      %v393 = vrot.slane %v392, 4
      %v394 = vrot.slane %v262, 5
      %v395 = vsel %vm335, %v393, %v394
      %v396 = vrot.slane %v394, 4
      %v397 = vrot.slane %v263, 5
      %v398 = vsel %vm335, %v396, %v397
      %v399 = vrot.slane %v264, 5
      %v400 = vrot.slane %v399, 4
      %v401 = vrot.slane %v265, 5
      %v402 = vsel %vm335, %v400, %v401
      %v403 = vrot.slane %v401, 4
      %v404 = vrot.slane %v266, 5
      %v405 = vsel %vm335, %v403, %v404
      %v406 = vrot.slane %v267, 5
      %v407 = vrot.slane %v406, 4
      %v408 = vrot.slane %v268, 5
      %v409 = vsel %vm335, %v407, %v408
      %v410 = vrot.slane %v408, 4
      %v411 = vrot.slane %v269, 5
      %v412 = vsel %vm335, %v410, %v411
      %v413 = vrot.slane %v270, 5
      %v414 = vrot.slane %v413, 4
      %v415 = vrot.slane %v271, 5
      %v416 = vsel %vm335, %v414, %v415
      %v417 = vrot.slane %v415, 4
      %v418 = vrot.slane %v272, 5
      %v419 = vsel %vm335, %v417, %v418
      %v420 = vrot.slane %v273, 5
      %v421 = vrot.slane %v420, 4
      %v422 = vrot.slane %v274, 5
      %v423 = vsel %vm335, %v421, %v422
      %v424 = vrot.slane %v422, 4
      %v425 = vrot.slane %v275, 5
      %v426 = vsel %vm335, %v424, %v425
      %v427 = vrot.slane %v276, 5
      %v428 = vrot.slane %v427, 4
      %v429 = vrot.slane %v277, 5
      %v430 = vsel %vm335, %v428, %v429
      %v431 = vrot.slane %v429, 4
      %v432 = vrot.slane %v278, 5
      %v433 = vsel %vm335, %v431, %v432
      %v434 = vrot.slane %v279, 5
      %v435 = vrot.slane %v434, 4
      %v436 = vrot.slane %v280, 5
      %v437 = vsel %vm335, %v435, %v436
      %v438 = vrot.slane %v436, 4
      %v439 = vrot.slane %v281, 5
      %v440 = vsel %vm335, %v438, %v439
      %v441 = vrot.slane %v282, 5
      %v442 = vrot.slane %v441, 4
      %v443 = vrot.slane %v283, 5
      %v444 = vsel %vm335, %v442, %v443
      %v445 = vrot.slane %v443, 4
      %v446 = vrot.slane %v284, 5
      %v447 = vsel %vm335, %v445, %v446
      %v448 = vld [vmem:[%s236 + $0x8] sm:$0x3]
      %v449 = vld [vmem:[%s236 + $0x14] sm:$0x3]
      %v450 = vld [vmem:[%s236 + $0x20] sm:$0x3]
      %v451 = vld [vmem:[%s236 + $0x2c] sm:$0x3]
      %v452 = vld [vmem:[%s236 + $0x38] sm:$0x3]
      %v453 = vld [vmem:[%s236 + $0x44] sm:$0x3]
      %v454 = vld [vmem:[%s236 + $0x50] sm:$0x3]
      %v455 = vld [vmem:[%s236 + $0x5c] sm:$0x3]
      %v456 = vld [vmem:[%s236 + $0x68] sm:$0x3]
      %v457 = vld [vmem:[%s236 + $0x74] sm:$0x3]
      %v458 = vld [vmem:[%s236 + $0x80] sm:$0x3]
      %v459 = vld [vmem:[%s236 + $0x8c] sm:$0x3]
      %v460 = vld [vmem:[%s236 + $0x98] sm:$0x3]
      %v461 = vld [vmem:[%s236 + $0xa4] sm:$0x3]
      %v462 = vld [vmem:[%s236 + $0xb0] sm:$0x3]
      %v463 = vld [vmem:[%s236 + $0xbc] sm:$0x3]
      %vm464 = vsmask.f32 2304
      %vm465 = vsmask.f32 6416
      %vm466 = vmor %vm464, %vm465
      %v468 = vshrl.u32 %v237, 16
      %v470 = vrot.slane %v468, 5
      %v471 = vshll.u32 %v237, 16
      %v473 = vrot.slane %v471, 6
      %v474 = vor.u32 %v470, %v473
      %v475 = vrot.slane %v474, 4
      %v477 = vshrl.u32 %v238, 16
      %v479 = vrot.slane %v477, 5
      %v480 = vshll.u32 %v238, 16
      %v482 = vrot.slane %v480, 6
      %v483 = vor.u32 %v479, %v482
      %v484 = vsel %vm466, %v475, %v483
      %v485 = vrot.slane %v483, 4
      %v487 = vshrl.u32 %v448, 16
      %v489 = vrot.slane %v487, 5
      %v490 = vshll.u32 %v448, 16
      %v492 = vrot.slane %v490, 6
      %v493 = vor.u32 %v489, %v492
      %v494 = vsel %vm466, %v485, %v493
      %v496 = vshrl.u32 %v240, 16
      %v498 = vrot.slane %v496, 5
      %v499 = vshll.u32 %v240, 16
      %v501 = vrot.slane %v499, 6
      %v502 = vor.u32 %v498, %v501
      %v503 = vrot.slane %v502, 4
      %v505 = vshrl.u32 %v241, 16
      %v507 = vrot.slane %v505, 5
      %v508 = vshll.u32 %v241, 16
      %v510 = vrot.slane %v508, 6
      %v511 = vor.u32 %v507, %v510
      %v512 = vsel %vm466, %v503, %v511
      %v513 = vrot.slane %v511, 4
      %v515 = vshrl.u32 %v449, 16
      %v517 = vrot.slane %v515, 5
      %v518 = vshll.u32 %v449, 16
      %v520 = vrot.slane %v518, 6
      %v521 = vor.u32 %v517, %v520
      %v522 = vsel %vm466, %v513, %v521
      %v524 = vshrl.u32 %v243, 16
      %v526 = vrot.slane %v524, 5
      %v527 = vshll.u32 %v243, 16
      %v529 = vrot.slane %v527, 6
      %v530 = vor.u32 %v526, %v529
      %v531 = vrot.slane %v530, 4
      %v533 = vshrl.u32 %v244, 16
      %v535 = vrot.slane %v533, 5
      %v536 = vshll.u32 %v244, 16
      %v538 = vrot.slane %v536, 6
      %v539 = vor.u32 %v535, %v538
      %v540 = vsel %vm466, %v531, %v539
      %v541 = vrot.slane %v539, 4
      %v543 = vshrl.u32 %v450, 16
      %v545 = vrot.slane %v543, 5
      %v546 = vshll.u32 %v450, 16
      %v548 = vrot.slane %v546, 6
      %v549 = vor.u32 %v545, %v548
      %v550 = vsel %vm466, %v541, %v549
      %v552 = vshrl.u32 %v246, 16
      %v554 = vrot.slane %v552, 5
      %v555 = vshll.u32 %v246, 16
      %v557 = vrot.slane %v555, 6
      %v558 = vor.u32 %v554, %v557
      %v559 = vrot.slane %v558, 4
      %v561 = vshrl.u32 %v247, 16
      %v563 = vrot.slane %v561, 5
      %v564 = vshll.u32 %v247, 16
      %v566 = vrot.slane %v564, 6
      %v567 = vor.u32 %v563, %v566
      %v568 = vsel %vm466, %v559, %v567
      %v569 = vrot.slane %v567, 4
      %v571 = vshrl.u32 %v451, 16
      %v573 = vrot.slane %v571, 5
      %v574 = vshll.u32 %v451, 16
      %v576 = vrot.slane %v574, 6
      %v577 = vor.u32 %v573, %v576
      %v578 = vsel %vm466, %v569, %v577
      %v580 = vshrl.u32 %v249, 16
      %v582 = vrot.slane %v580, 5
      %v583 = vshll.u32 %v249, 16
      %v585 = vrot.slane %v583, 6
      %v586 = vor.u32 %v582, %v585
      %v587 = vrot.slane %v586, 4
      %v589 = vshrl.u32 %v250, 16
      %v591 = vrot.slane %v589, 5
      %v592 = vshll.u32 %v250, 16
      %v594 = vrot.slane %v592, 6
      %v595 = vor.u32 %v591, %v594
      %v596 = vsel %vm466, %v587, %v595
      %v597 = vrot.slane %v595, 4
      %v599 = vshrl.u32 %v452, 16
      %v601 = vrot.slane %v599, 5
      %v602 = vshll.u32 %v452, 16
      %v604 = vrot.slane %v602, 6
      %v605 = vor.u32 %v601, %v604
      %v606 = vsel %vm466, %v597, %v605
      %v608 = vshrl.u32 %v252, 16
      %v610 = vrot.slane %v608, 5
      %v611 = vshll.u32 %v252, 16
      %v613 = vrot.slane %v611, 6
      %v614 = vor.u32 %v610, %v613
      %v615 = vrot.slane %v614, 4
      %v617 = vshrl.u32 %v253, 16
      %v619 = vrot.slane %v617, 5
      %v620 = vshll.u32 %v253, 16
      %v622 = vrot.slane %v620, 6
      %v623 = vor.u32 %v619, %v622
      %v624 = vsel %vm466, %v615, %v623
      %v625 = vrot.slane %v623, 4
      %v627 = vshrl.u32 %v453, 16
      %v629 = vrot.slane %v627, 5
      %v630 = vshll.u32 %v453, 16
      %v632 = vrot.slane %v630, 6
      %v633 = vor.u32 %v629, %v632
      %v634 = vsel %vm466, %v625, %v633
      %v636 = vshrl.u32 %v255, 16
      %v638 = vrot.slane %v636, 5
      %v639 = vshll.u32 %v255, 16
      %v641 = vrot.slane %v639, 6
      %v642 = vor.u32 %v638, %v641
      %v643 = vrot.slane %v642, 4
      %v645 = vshrl.u32 %v256, 16
      %v647 = vrot.slane %v645, 5
      %v648 = vshll.u32 %v256, 16
      %v650 = vrot.slane %v648, 6
      %v651 = vor.u32 %v647, %v650
      %v652 = vsel %vm466, %v643, %v651
      %v653 = vrot.slane %v651, 4
      %v655 = vshrl.u32 %v454, 16
      %v657 = vrot.slane %v655, 5
      %v658 = vshll.u32 %v454, 16
      %v660 = vrot.slane %v658, 6
      %v661 = vor.u32 %v657, %v660
      %v662 = vsel %vm466, %v653, %v661
      %v664 = vshrl.u32 %v258, 16
      %v666 = vrot.slane %v664, 5
      %v667 = vshll.u32 %v258, 16
      %v669 = vrot.slane %v667, 6
      %v670 = vor.u32 %v666, %v669
      %v671 = vrot.slane %v670, 4
      %v673 = vshrl.u32 %v259, 16
      %v675 = vrot.slane %v673, 5
      %v676 = vshll.u32 %v259, 16
      %v678 = vrot.slane %v676, 6
      %v679 = vor.u32 %v675, %v678
      %v680 = vsel %vm466, %v671, %v679
      %v681 = vrot.slane %v679, 4
      %v683 = vshrl.u32 %v455, 16
      %v685 = vrot.slane %v683, 5
      %v686 = vshll.u32 %v455, 16
      %v688 = vrot.slane %v686, 6
      %v689 = vor.u32 %v685, %v688
      %v690 = vsel %vm466, %v681, %v689
      %v692 = vshrl.u32 %v261, 16
      %v694 = vrot.slane %v692, 5
      %v695 = vshll.u32 %v261, 16
      %v697 = vrot.slane %v695, 6
      %v698 = vor.u32 %v694, %v697
      %v699 = vrot.slane %v698, 4
      %v701 = vshrl.u32 %v262, 16
      %v703 = vrot.slane %v701, 5
      %v704 = vshll.u32 %v262, 16
      %v706 = vrot.slane %v704, 6
      %v707 = vor.u32 %v703, %v706
      %v708 = vsel %vm466, %v699, %v707
      %v709 = vrot.slane %v707, 4
      %v711 = vshrl.u32 %v456, 16
      %v713 = vrot.slane %v711, 5
      %v714 = vshll.u32 %v456, 16
      %v716 = vrot.slane %v714, 6
      %v717 = vor.u32 %v713, %v716
      %v718 = vsel %vm466, %v709, %v717
      %v720 = vshrl.u32 %v264, 16
      %v722 = vrot.slane %v720, 5
      %v723 = vshll.u32 %v264, 16
      %v725 = vrot.slane %v723, 6
      %v726 = vor.u32 %v722, %v725
      %v727 = vrot.slane %v726, 4
      %v729 = vshrl.u32 %v265, 16
      %v731 = vrot.slane %v729, 5
      %v732 = vshll.u32 %v265, 16
      %v734 = vrot.slane %v732, 6
      %v735 = vor.u32 %v731, %v734
      %v736 = vsel %vm466, %v727, %v735
      %v737 = vrot.slane %v735, 4
      %v739 = vshrl.u32 %v457, 16
      %v741 = vrot.slane %v739, 5
      %v742 = vshll.u32 %v457, 16
      %v744 = vrot.slane %v742, 6
      %v745 = vor.u32 %v741, %v744
      %v746 = vsel %vm466, %v737, %v745
      %v748 = vshrl.u32 %v267, 16
      %v750 = vrot.slane %v748, 5
      %v751 = vshll.u32 %v267, 16
      %v753 = vrot.slane %v751, 6
      %v754 = vor.u32 %v750, %v753
      %v755 = vrot.slane %v754, 4
      %v757 = vshrl.u32 %v268, 16
      %v759 = vrot.slane %v757, 5
      %v760 = vshll.u32 %v268, 16
      %v762 = vrot.slane %v760, 6
      %v763 = vor.u32 %v759, %v762
      %v764 = vsel %vm466, %v755, %v763
      %v765 = vrot.slane %v763, 4
      %v767 = vshrl.u32 %v458, 16
      %v769 = vrot.slane %v767, 5
      %v770 = vshll.u32 %v458, 16
      %v772 = vrot.slane %v770, 6
      %v773 = vor.u32 %v769, %v772
      %v774 = vsel %vm466, %v765, %v773
      %v776 = vshrl.u32 %v270, 16
      %v778 = vrot.slane %v776, 5
      %v779 = vshll.u32 %v270, 16
      %v781 = vrot.slane %v779, 6
      %v782 = vor.u32 %v778, %v781
      %v783 = vrot.slane %v782, 4
      %v785 = vshrl.u32 %v271, 16
      %v787 = vrot.slane %v785, 5
      %v788 = vshll.u32 %v271, 16
      %v790 = vrot.slane %v788, 6
      %v791 = vor.u32 %v787, %v790
      %v792 = vsel %vm466, %v783, %v791
      %v793 = vrot.slane %v791, 4
      %v795 = vshrl.u32 %v459, 16
      %v797 = vrot.slane %v795, 5
      %v798 = vshll.u32 %v459, 16
      %v800 = vrot.slane %v798, 6
      %v801 = vor.u32 %v797, %v800
      %v802 = vsel %vm466, %v793, %v801
      %v804 = vshrl.u32 %v273, 16
      %v806 = vrot.slane %v804, 5
      %v807 = vshll.u32 %v273, 16
      %v809 = vrot.slane %v807, 6
      %v810 = vor.u32 %v806, %v809
      %v811 = vrot.slane %v810, 4
      %v813 = vshrl.u32 %v274, 16
      %v815 = vrot.slane %v813, 5
      %v816 = vshll.u32 %v274, 16
      %v818 = vrot.slane %v816, 6
      %v819 = vor.u32 %v815, %v818
      %v820 = vsel %vm466, %v811, %v819
      %v821 = vrot.slane %v819, 4
      %v823 = vshrl.u32 %v460, 16
      %v825 = vrot.slane %v823, 5
      %v826 = vshll.u32 %v460, 16
      %v828 = vrot.slane %v826, 6
      %v829 = vor.u32 %v825, %v828
      %v830 = vsel %vm466, %v821, %v829
      %v832 = vshrl.u32 %v276, 16
      %v834 = vrot.slane %v832, 5
      %v835 = vshll.u32 %v276, 16
      %v837 = vrot.slane %v835, 6
      %v838 = vor.u32 %v834, %v837
      %v839 = vrot.slane %v838, 4
      %v841 = vshrl.u32 %v277, 16
      %v843 = vrot.slane %v841, 5
      %v844 = vshll.u32 %v277, 16
      %v846 = vrot.slane %v844, 6
      %v847 = vor.u32 %v843, %v846
      %v848 = vsel %vm466, %v839, %v847
      %v849 = vrot.slane %v847, 4
      %v851 = vshrl.u32 %v461, 16
      %v853 = vrot.slane %v851, 5
      %v854 = vshll.u32 %v461, 16
      %v856 = vrot.slane %v854, 6
      %v857 = vor.u32 %v853, %v856
      %v858 = vsel %vm466, %v849, %v857
      %v860 = vshrl.u32 %v279, 16
      %v862 = vrot.slane %v860, 5
      %v863 = vshll.u32 %v279, 16
      %v865 = vrot.slane %v863, 6
      %v866 = vor.u32 %v862, %v865
      %v867 = vrot.slane %v866, 4
      %v869 = vshrl.u32 %v280, 16
      %v871 = vrot.slane %v869, 5
      %v872 = vshll.u32 %v280, 16
      %v874 = vrot.slane %v872, 6
      %v875 = vor.u32 %v871, %v874
      %v876 = vsel %vm466, %v867, %v875
      %v877 = vrot.slane %v875, 4
      %v879 = vshrl.u32 %v462, 16
      %v881 = vrot.slane %v879, 5
      %v882 = vshll.u32 %v462, 16
      %v884 = vrot.slane %v882, 6
      %v885 = vor.u32 %v881, %v884
      %v886 = vsel %vm466, %v877, %v885
      %v888 = vshrl.u32 %v282, 16
      %v890 = vrot.slane %v888, 5
      %v891 = vshll.u32 %v282, 16
      %v893 = vrot.slane %v891, 6
      %v894 = vor.u32 %v890, %v893
      %v895 = vrot.slane %v894, 4
      %v897 = vshrl.u32 %v283, 16
      %v899 = vrot.slane %v897, 5
      %v900 = vshll.u32 %v283, 16
      %v902 = vrot.slane %v900, 6
      %v903 = vor.u32 %v899, %v902
      %v904 = vsel %vm466, %v895, %v903
      %v905 = vrot.slane %v903, 4
      %v907 = vshrl.u32 %v463, 16
      %v909 = vrot.slane %v907, 5
      %v910 = vshll.u32 %v463, 16
      %v912 = vrot.slane %v910, 6
      %v913 = vor.u32 %v909, %v912
      %v914 = vsel %vm466, %v905, %v913
      %v915 = vld [vmem:[%s236] sm:$0xc]
      %v916 = vld [vmem:[%s236 + $0xc] sm:$0xc]
      %v917 = vld [vmem:[%s236 + $0x18] sm:$0xc]
      %v918 = vld [vmem:[%s236 + $0x24] sm:$0xc]
      %v919 = vld [vmem:[%s236 + $0x30] sm:$0xc]
      %v920 = vld [vmem:[%s236 + $0x3c] sm:$0xc]
      %v921 = vld [vmem:[%s236 + $0x48] sm:$0xc]
      %v922 = vld [vmem:[%s236 + $0x54] sm:$0xc]
      %v923 = vld [vmem:[%s236 + $0x60] sm:$0xc]
      %v924 = vld [vmem:[%s236 + $0x6c] sm:$0xc]
      %v925 = vld [vmem:[%s236 + $0x78] sm:$0xc]
      %v926 = vld [vmem:[%s236 + $0x84] sm:$0xc]
      %v927 = vld [vmem:[%s236 + $0x90] sm:$0xc]
      %v928 = vld [vmem:[%s236 + $0x9c] sm:$0xc]
      %v929 = vld [vmem:[%s236 + $0xa8] sm:$0xc]
      %v930 = vld [vmem:[%s236 + $0xb4] sm:$0xc]
      %vm963 = vcmask 1041408
      %vm964 = vcmask 1045508
      %vm965 = vmor %vm963, %vm964
      %v966 = vrot.slane %v915, 6
      %v967 = vrot.slane %v966, 4
      %v968 = vrot.slane %v238, 6
      %v969 = vsel %vm965, %v967, %v968
      %v970 = vrot.slane %v968, 4
      %v971 = vrot.slane %v448, 6
      %v972 = vsel %vm965, %v970, %v971
      %v973 = vrot.slane %v916, 6
      %v974 = vrot.slane %v973, 4
      %v975 = vrot.slane %v241, 6
      %v976 = vsel %vm965, %v974, %v975
      %v977 = vrot.slane %v975, 4
      %v978 = vrot.slane %v449, 6
      %v979 = vsel %vm965, %v977, %v978
      %v980 = vrot.slane %v917, 6
      %v981 = vrot.slane %v980, 4
      %v982 = vrot.slane %v244, 6
      %v983 = vsel %vm965, %v981, %v982
      %v984 = vrot.slane %v982, 4
      %v985 = vrot.slane %v450, 6
      %v986 = vsel %vm965, %v984, %v985
      %v987 = vrot.slane %v918, 6
      %v988 = vrot.slane %v987, 4
      %v989 = vrot.slane %v247, 6
      %v990 = vsel %vm965, %v988, %v989
      %v991 = vrot.slane %v989, 4
      %v992 = vrot.slane %v451, 6
      %v993 = vsel %vm965, %v991, %v992
      %v994 = vrot.slane %v919, 6
      %v995 = vrot.slane %v994, 4
      %v996 = vrot.slane %v250, 6
      %v997 = vsel %vm965, %v995, %v996
      %v998 = vrot.slane %v996, 4
      %v999 = vrot.slane %v452, 6
      %v1000 = vsel %vm965, %v998, %v999
      %v1001 = vrot.slane %v920, 6
      %v1002 = vrot.slane %v1001, 4
      %v1003 = vrot.slane %v253, 6
      %v1004 = vsel %vm965, %v1002, %v1003
      %v1005 = vrot.slane %v1003, 4
      %v1006 = vrot.slane %v453, 6
      %v1007 = vsel %vm965, %v1005, %v1006
      %v1008 = vrot.slane %v921, 6
      %v1009 = vrot.slane %v1008, 4
      %v1010 = vrot.slane %v256, 6
      %v1011 = vsel %vm965, %v1009, %v1010
      %v1012 = vrot.slane %v1010, 4
      %v1013 = vrot.slane %v454, 6
      %v1014 = vsel %vm965, %v1012, %v1013
      %v1015 = vrot.slane %v922, 6
      %v1016 = vrot.slane %v1015, 4
      %v1017 = vrot.slane %v259, 6
      %v1018 = vsel %vm965, %v1016, %v1017
      %v1019 = vrot.slane %v1017, 4
      %v1020 = vrot.slane %v455, 6
      %v1021 = vsel %vm965, %v1019, %v1020
      %v1022 = vrot.slane %v923, 6
      %v1023 = vrot.slane %v1022, 4
      %v1024 = vrot.slane %v262, 6
      %v1025 = vsel %vm965, %v1023, %v1024
      %v1026 = vrot.slane %v1024, 4
      %v1027 = vrot.slane %v456, 6
      %v1028 = vsel %vm965, %v1026, %v1027
      %v1029 = vrot.slane %v924, 6
      %v1030 = vrot.slane %v1029, 4
      %v1031 = vrot.slane %v265, 6
      %v1032 = vsel %vm965, %v1030, %v1031
      %v1033 = vrot.slane %v1031, 4
      %v1034 = vrot.slane %v457, 6
      %v1035 = vsel %vm965, %v1033, %v1034
      %v1036 = vrot.slane %v925, 6
      %v1037 = vrot.slane %v1036, 4
      %v1038 = vrot.slane %v268, 6
      %v1039 = vsel %vm965, %v1037, %v1038
      %v1040 = vrot.slane %v1038, 4
      %v1041 = vrot.slane %v458, 6
      %v1042 = vsel %vm965, %v1040, %v1041
      %v1043 = vrot.slane %v926, 6
      %v1044 = vrot.slane %v1043, 4
      %v1045 = vrot.slane %v271, 6
      %v1046 = vsel %vm965, %v1044, %v1045
      %v1047 = vrot.slane %v1045, 4
      %v1048 = vrot.slane %v459, 6
      %v1049 = vsel %vm965, %v1047, %v1048
      %v1050 = vrot.slane %v927, 6
      %v1051 = vrot.slane %v1050, 4
      %v1052 = vrot.slane %v274, 6
      %v1053 = vsel %vm965, %v1051, %v1052
      %v1054 = vrot.slane %v1052, 4
      %v1055 = vrot.slane %v460, 6
      %v1056 = vsel %vm965, %v1054, %v1055
      %v1057 = vrot.slane %v928, 6
      %v1058 = vrot.slane %v1057, 4
      %v1059 = vrot.slane %v277, 6
      %v1060 = vsel %vm965, %v1058, %v1059
      %v1061 = vrot.slane %v1059, 4
      %v1062 = vrot.slane %v461, 6
      %v1063 = vsel %vm965, %v1061, %v1062
      %v1064 = vrot.slane %v929, 6
      %v1065 = vrot.slane %v1064, 4
      %v1066 = vrot.slane %v280, 6
      %v1067 = vsel %vm965, %v1065, %v1066
      %v1068 = vrot.slane %v1066, 4
      %v1069 = vrot.slane %v462, 6
      %v1070 = vsel %vm965, %v1068, %v1069
      %v1071 = vrot.slane %v930, 6
      %v1072 = vrot.slane %v1071, 4
      %v1073 = vrot.slane %v283, 6
      %v1074 = vsel %vm965, %v1072, %v1073
      %v1075 = vrot.slane %v1073, 4
      %v1076 = vrot.slane %v463, 6
      %v1077 = vsel %vm965, %v1075, %v1076
      %s1078 = scalar_lea.vmem %s226, 36
      %v1079 = vld [vmem:[%s1078] sm:$0xe]
      %v1080 = vld [vmem:[%s1078 + $0x4] sm:$0xf]
      %v1081 = vld [vmem:[%s1078 + $0x8] sm:$0x1]
      %v1082 = vld [vmem:[%s1078 + $0xc] sm:$0xe]
      %v1083 = vld [vmem:[%s1078 + $0x10] sm:$0xf]
      %v1084 = vld [vmem:[%s1078 + $0x14] sm:$0x1]
      %v1085 = vld [vmem:[%s1078 + $0x18] sm:$0xe]
      %v1086 = vld [vmem:[%s1078 + $0x1c] sm:$0xf]
      %v1087 = vld [vmem:[%s1078 + $0x20] sm:$0x1]
      %v1088 = vld [vmem:[%s1078 + $0x24] sm:$0xe]
      %v1089 = vld [vmem:[%s1078 + $0x28] sm:$0xf]
      %v1090 = vld [vmem:[%s1078 + $0x2c] sm:$0x1]
      %v1091 = vld [vmem:[%s1078 + $0x30] sm:$0xe]
      %v1092 = vld [vmem:[%s1078 + $0x34] sm:$0xf]
      %v1093 = vld [vmem:[%s1078 + $0x38] sm:$0x1]
      %v1094 = vld [vmem:[%s1078 + $0x3c] sm:$0xe]
      %v1095 = vld [vmem:[%s1078 + $0x40] sm:$0xf]
      %v1096 = vld [vmem:[%s1078 + $0x44] sm:$0x1]
      %v1097 = vld [vmem:[%s1078 + $0x48] sm:$0xe]
      %v1098 = vld [vmem:[%s1078 + $0x4c] sm:$0xf]
      %v1099 = vld [vmem:[%s1078 + $0x50] sm:$0x1]
      %v1100 = vld [vmem:[%s1078 + $0x54] sm:$0xe]
      %v1101 = vld [vmem:[%s1078 + $0x58] sm:$0xf]
      %v1102 = vld [vmem:[%s1078 + $0x5c] sm:$0x1]
      %v1103 = vld [vmem:[%s1078 + $0x60] sm:$0xe]
      %v1104 = vld [vmem:[%s1078 + $0x64] sm:$0xf]
      %v1105 = vld [vmem:[%s1078 + $0x68] sm:$0x1]
      %v1106 = vld [vmem:[%s1078 + $0x6c] sm:$0xe]
      %v1107 = vld [vmem:[%s1078 + $0x70] sm:$0xf]
      %v1108 = vld [vmem:[%s1078 + $0x74] sm:$0x1]
      %v1109 = vld [vmem:[%s1078 + $0x78] sm:$0xe]
      %v1110 = vld [vmem:[%s1078 + $0x7c] sm:$0xf]
      %v1111 = vld [vmem:[%s1078 + $0x80] sm:$0x1]
      %v1112 = vld [vmem:[%s1078 + $0x84] sm:$0xe]
      %v1113 = vld [vmem:[%s1078 + $0x88] sm:$0xf]
      %v1114 = vld [vmem:[%s1078 + $0x8c] sm:$0x1]
      %v1115 = vld [vmem:[%s1078 + $0x90] sm:$0xe]
      %v1116 = vld [vmem:[%s1078 + $0x94] sm:$0xf]
      %v1117 = vld [vmem:[%s1078 + $0x98] sm:$0x1]
      %v1118 = vld [vmem:[%s1078 + $0x9c] sm:$0xe]
      %v1119 = vld [vmem:[%s1078 + $0xa0] sm:$0xf]
      %v1120 = vld [vmem:[%s1078 + $0xa4] sm:$0x1]
      %v1121 = vld [vmem:[%s1078 + $0xa8] sm:$0xe]
      %v1122 = vld [vmem:[%s1078 + $0xac] sm:$0xf]
      %v1123 = vld [vmem:[%s1078 + $0xb0] sm:$0x1]
      %v1124 = vld [vmem:[%s1078 + $0xb4] sm:$0xe]
      %v1125 = vld [vmem:[%s1078 + $0xb8] sm:$0xf]
      %v1126 = vld [vmem:[%s1078 + $0xbc] sm:$0x1]
      %v1175 = vrot.slane %v1079, 5
      %v1176 = vrot.slane %v1175, 4
      %v1177 = vrot.slane %v1080, 5
      %v1178 = vsel %vm335, %v1176, %v1177
      %v1179 = vrot.slane %v1177, 4
      %v1180 = vrot.slane %v1081, 5
      %v1181 = vsel %vm335, %v1179, %v1180
      %v1182 = vrot.slane %v1082, 5
      %v1183 = vrot.slane %v1182, 4
      %v1184 = vrot.slane %v1083, 5
      %v1185 = vsel %vm335, %v1183, %v1184
      %v1186 = vrot.slane %v1184, 4
      %v1187 = vrot.slane %v1084, 5
      %v1188 = vsel %vm335, %v1186, %v1187
      %v1189 = vrot.slane %v1085, 5
      %v1190 = vrot.slane %v1189, 4
      %v1191 = vrot.slane %v1086, 5
      %v1192 = vsel %vm335, %v1190, %v1191
      %v1193 = vrot.slane %v1191, 4
      %v1194 = vrot.slane %v1087, 5
      %v1195 = vsel %vm335, %v1193, %v1194
      %v1196 = vrot.slane %v1088, 5
      %v1197 = vrot.slane %v1196, 4
      %v1198 = vrot.slane %v1089, 5
      %v1199 = vsel %vm335, %v1197, %v1198
      %v1200 = vrot.slane %v1198, 4
      %v1201 = vrot.slane %v1090, 5
      %v1202 = vsel %vm335, %v1200, %v1201
      %v1203 = vrot.slane %v1091, 5
      %v1204 = vrot.slane %v1203, 4
      %v1205 = vrot.slane %v1092, 5
      %v1206 = vsel %vm335, %v1204, %v1205
      %v1207 = vrot.slane %v1205, 4
      %v1208 = vrot.slane %v1093, 5
      %v1209 = vsel %vm335, %v1207, %v1208
      %v1210 = vrot.slane %v1094, 5
      %v1211 = vrot.slane %v1210, 4
      %v1212 = vrot.slane %v1095, 5
      %v1213 = vsel %vm335, %v1211, %v1212
      %v1214 = vrot.slane %v1212, 4
      %v1215 = vrot.slane %v1096, 5
      %v1216 = vsel %vm335, %v1214, %v1215
      %v1217 = vrot.slane %v1097, 5
      %v1218 = vrot.slane %v1217, 4
      %v1219 = vrot.slane %v1098, 5
      %v1220 = vsel %vm335, %v1218, %v1219
      %v1221 = vrot.slane %v1219, 4
      %v1222 = vrot.slane %v1099, 5
      %v1223 = vsel %vm335, %v1221, %v1222
      %v1224 = vrot.slane %v1100, 5
      %v1225 = vrot.slane %v1224, 4
      %v1226 = vrot.slane %v1101, 5
      %v1227 = vsel %vm335, %v1225, %v1226
      %v1228 = vrot.slane %v1226, 4
      %v1229 = vrot.slane %v1102, 5
      %v1230 = vsel %vm335, %v1228, %v1229
      %v1231 = vrot.slane %v1103, 5
      %v1232 = vrot.slane %v1231, 4
      %v1233 = vrot.slane %v1104, 5
      %v1234 = vsel %vm335, %v1232, %v1233
      %v1235 = vrot.slane %v1233, 4
      %v1236 = vrot.slane %v1105, 5
      %v1237 = vsel %vm335, %v1235, %v1236
      %v1238 = vrot.slane %v1106, 5
      %v1239 = vrot.slane %v1238, 4
      %v1240 = vrot.slane %v1107, 5
      %v1241 = vsel %vm335, %v1239, %v1240
      %v1242 = vrot.slane %v1240, 4
      %v1243 = vrot.slane %v1108, 5
      %v1244 = vsel %vm335, %v1242, %v1243
      %v1245 = vrot.slane %v1109, 5
      %v1246 = vrot.slane %v1245, 4
      %v1247 = vrot.slane %v1110, 5
      %v1248 = vsel %vm335, %v1246, %v1247
      %v1249 = vrot.slane %v1247, 4
      %v1250 = vrot.slane %v1111, 5
      %v1251 = vsel %vm335, %v1249, %v1250
      %v1252 = vrot.slane %v1112, 5
      %v1253 = vrot.slane %v1252, 4
      %v1254 = vrot.slane %v1113, 5
      %v1255 = vsel %vm335, %v1253, %v1254
      %v1256 = vrot.slane %v1254, 4
      %v1257 = vrot.slane %v1114, 5
      %v1258 = vsel %vm335, %v1256, %v1257
      %v1259 = vrot.slane %v1115, 5
      %v1260 = vrot.slane %v1259, 4
      %v1261 = vrot.slane %v1116, 5
      %v1262 = vsel %vm335, %v1260, %v1261
      %v1263 = vrot.slane %v1261, 4
      %v1264 = vrot.slane %v1117, 5
      %v1265 = vsel %vm335, %v1263, %v1264
      %v1266 = vrot.slane %v1118, 5
      %v1267 = vrot.slane %v1266, 4
      %v1268 = vrot.slane %v1119, 5
      %v1269 = vsel %vm335, %v1267, %v1268
      %v1270 = vrot.slane %v1268, 4
      %v1271 = vrot.slane %v1120, 5
      %v1272 = vsel %vm335, %v1270, %v1271
      %v1273 = vrot.slane %v1121, 5
      %v1274 = vrot.slane %v1273, 4
      %v1275 = vrot.slane %v1122, 5
      %v1276 = vsel %vm335, %v1274, %v1275
      %v1277 = vrot.slane %v1275, 4
      %v1278 = vrot.slane %v1123, 5
      %v1279 = vsel %vm335, %v1277, %v1278
      %v1280 = vrot.slane %v1124, 5
      %v1281 = vrot.slane %v1280, 4
      %v1282 = vrot.slane %v1125, 5
      %v1283 = vsel %vm335, %v1281, %v1282
      %v1284 = vrot.slane %v1282, 4
      %v1285 = vrot.slane %v1126, 5
      %v1286 = vsel %vm335, %v1284, %v1285
      %v1287 = vld [vmem:[%s1078 + $0x8] sm:$0x3]
      %v1288 = vld [vmem:[%s1078 + $0x14] sm:$0x3]
      %v1289 = vld [vmem:[%s1078 + $0x20] sm:$0x3]
      %v1290 = vld [vmem:[%s1078 + $0x2c] sm:$0x3]
      %v1291 = vld [vmem:[%s1078 + $0x38] sm:$0x3]
      %v1292 = vld [vmem:[%s1078 + $0x44] sm:$0x3]
      %v1293 = vld [vmem:[%s1078 + $0x50] sm:$0x3]
      %v1294 = vld [vmem:[%s1078 + $0x5c] sm:$0x3]
      %v1295 = vld [vmem:[%s1078 + $0x68] sm:$0x3]
      %v1296 = vld [vmem:[%s1078 + $0x74] sm:$0x3]
      %v1297 = vld [vmem:[%s1078 + $0x80] sm:$0x3]
      %v1298 = vld [vmem:[%s1078 + $0x8c] sm:$0x3]
      %v1299 = vld [vmem:[%s1078 + $0x98] sm:$0x3]
      %v1300 = vld [vmem:[%s1078 + $0xa4] sm:$0x3]
      %v1301 = vld [vmem:[%s1078 + $0xb0] sm:$0x3]
      %v1302 = vld [vmem:[%s1078 + $0xbc] sm:$0x3]
      %v1304 = vshrl.u32 %v1079, 16
      %v1306 = vrot.slane %v1304, 5
      %v1307 = vshll.u32 %v1079, 16
      %v1309 = vrot.slane %v1307, 6
      %v1310 = vor.u32 %v1306, %v1309
      %v1311 = vrot.slane %v1310, 4
      %v1313 = vshrl.u32 %v1080, 16
      %v1315 = vrot.slane %v1313, 5
      %v1316 = vshll.u32 %v1080, 16
      %v1318 = vrot.slane %v1316, 6
      %v1319 = vor.u32 %v1315, %v1318
      %v1320 = vsel %vm466, %v1311, %v1319
      %v1321 = vrot.slane %v1319, 4
      %v1323 = vshrl.u32 %v1287, 16
      %v1325 = vrot.slane %v1323, 5
      %v1326 = vshll.u32 %v1287, 16
      %v1328 = vrot.slane %v1326, 6
      %v1329 = vor.u32 %v1325, %v1328
      %v1330 = vsel %vm466, %v1321, %v1329
      %v1332 = vshrl.u32 %v1082, 16
      %v1334 = vrot.slane %v1332, 5
      %v1335 = vshll.u32 %v1082, 16
      %v1337 = vrot.slane %v1335, 6
      %v1338 = vor.u32 %v1334, %v1337
      %v1339 = vrot.slane %v1338, 4
      %v1341 = vshrl.u32 %v1083, 16
      %v1343 = vrot.slane %v1341, 5
      %v1344 = vshll.u32 %v1083, 16
      %v1346 = vrot.slane %v1344, 6
      %v1347 = vor.u32 %v1343, %v1346
      %v1348 = vsel %vm466, %v1339, %v1347
      %v1349 = vrot.slane %v1347, 4
      %v1351 = vshrl.u32 %v1288, 16
      %v1353 = vrot.slane %v1351, 5
      %v1354 = vshll.u32 %v1288, 16
      %v1356 = vrot.slane %v1354, 6
      %v1357 = vor.u32 %v1353, %v1356
      %v1358 = vsel %vm466, %v1349, %v1357
      %v1360 = vshrl.u32 %v1085, 16
      %v1362 = vrot.slane %v1360, 5
      %v1363 = vshll.u32 %v1085, 16
      %v1365 = vrot.slane %v1363, 6
      %v1366 = vor.u32 %v1362, %v1365
      %v1367 = vrot.slane %v1366, 4
      %v1369 = vshrl.u32 %v1086, 16
      %v1371 = vrot.slane %v1369, 5
      %v1372 = vshll.u32 %v1086, 16
      %v1374 = vrot.slane %v1372, 6
      %v1375 = vor.u32 %v1371, %v1374
      %v1376 = vsel %vm466, %v1367, %v1375
      %v1377 = vrot.slane %v1375, 4
      %v1379 = vshrl.u32 %v1289, 16
      %v1381 = vrot.slane %v1379, 5
      %v1382 = vshll.u32 %v1289, 16
      %v1384 = vrot.slane %v1382, 6
      %v1385 = vor.u32 %v1381, %v1384
      %v1386 = vsel %vm466, %v1377, %v1385
      %v1388 = vshrl.u32 %v1088, 16
      %v1390 = vrot.slane %v1388, 5
      %v1391 = vshll.u32 %v1088, 16
      %v1393 = vrot.slane %v1391, 6
      %v1394 = vor.u32 %v1390, %v1393
      %v1395 = vrot.slane %v1394, 4
      %v1397 = vshrl.u32 %v1089, 16
      %v1399 = vrot.slane %v1397, 5
      %v1400 = vshll.u32 %v1089, 16
      %v1402 = vrot.slane %v1400, 6
      %v1403 = vor.u32 %v1399, %v1402
      %v1404 = vsel %vm466, %v1395, %v1403
      %v1405 = vrot.slane %v1403, 4
      %v1407 = vshrl.u32 %v1290, 16
      %v1409 = vrot.slane %v1407, 5
      %v1410 = vshll.u32 %v1290, 16
      %v1412 = vrot.slane %v1410, 6
      %v1413 = vor.u32 %v1409, %v1412
      %v1414 = vsel %vm466, %v1405, %v1413
      %v1416 = vshrl.u32 %v1091, 16
      %v1418 = vrot.slane %v1416, 5
      %v1419 = vshll.u32 %v1091, 16
      %v1421 = vrot.slane %v1419, 6
      %v1422 = vor.u32 %v1418, %v1421
      %v1423 = vrot.slane %v1422, 4
      %v1425 = vshrl.u32 %v1092, 16
      %v1427 = vrot.slane %v1425, 5
      %v1428 = vshll.u32 %v1092, 16
      %v1430 = vrot.slane %v1428, 6
      %v1431 = vor.u32 %v1427, %v1430
      %v1432 = vsel %vm466, %v1423, %v1431
      %v1433 = vrot.slane %v1431, 4
      %v1435 = vshrl.u32 %v1291, 16
      %v1437 = vrot.slane %v1435, 5
      %v1438 = vshll.u32 %v1291, 16
      %v1440 = vrot.slane %v1438, 6
      %v1441 = vor.u32 %v1437, %v1440
      %v1442 = vsel %vm466, %v1433, %v1441
      %v1444 = vshrl.u32 %v1094, 16
      %v1446 = vrot.slane %v1444, 5
      %v1447 = vshll.u32 %v1094, 16
      %v1449 = vrot.slane %v1447, 6
      %v1450 = vor.u32 %v1446, %v1449
      %v1451 = vrot.slane %v1450, 4
      %v1453 = vshrl.u32 %v1095, 16
      %v1455 = vrot.slane %v1453, 5
      %v1456 = vshll.u32 %v1095, 16
      %v1458 = vrot.slane %v1456, 6
      %v1459 = vor.u32 %v1455, %v1458
      %v1460 = vsel %vm466, %v1451, %v1459
      %v1461 = vrot.slane %v1459, 4
      %v1463 = vshrl.u32 %v1292, 16
      %v1465 = vrot.slane %v1463, 5
      %v1466 = vshll.u32 %v1292, 16
      %v1468 = vrot.slane %v1466, 6
      %v1469 = vor.u32 %v1465, %v1468
      %v1470 = vsel %vm466, %v1461, %v1469
      %v1472 = vshrl.u32 %v1097, 16
      %v1474 = vrot.slane %v1472, 5
      %v1475 = vshll.u32 %v1097, 16
      %v1477 = vrot.slane %v1475, 6
      %v1478 = vor.u32 %v1474, %v1477
      %v1479 = vrot.slane %v1478, 4
      %v1481 = vshrl.u32 %v1098, 16
      %v1483 = vrot.slane %v1481, 5
      %v1484 = vshll.u32 %v1098, 16
      %v1486 = vrot.slane %v1484, 6
      %v1487 = vor.u32 %v1483, %v1486
      %v1488 = vsel %vm466, %v1479, %v1487
      %v1489 = vrot.slane %v1487, 4
      %v1491 = vshrl.u32 %v1293, 16
      %v1493 = vrot.slane %v1491, 5
      %v1494 = vshll.u32 %v1293, 16
      %v1496 = vrot.slane %v1494, 6
      %v1497 = vor.u32 %v1493, %v1496
      %v1498 = vsel %vm466, %v1489, %v1497
      %v1500 = vshrl.u32 %v1100, 16
      %v1502 = vrot.slane %v1500, 5
      %v1503 = vshll.u32 %v1100, 16
      %v1505 = vrot.slane %v1503, 6
      %v1506 = vor.u32 %v1502, %v1505
      %v1507 = vrot.slane %v1506, 4
      %v1509 = vshrl.u32 %v1101, 16
      %v1511 = vrot.slane %v1509, 5
      %v1512 = vshll.u32 %v1101, 16
      %v1514 = vrot.slane %v1512, 6
      %v1515 = vor.u32 %v1511, %v1514
      %v1516 = vsel %vm466, %v1507, %v1515
      %v1517 = vrot.slane %v1515, 4
      %v1519 = vshrl.u32 %v1294, 16
      %v1521 = vrot.slane %v1519, 5
      %v1522 = vshll.u32 %v1294, 16
      %v1524 = vrot.slane %v1522, 6
      %v1525 = vor.u32 %v1521, %v1524
      %v1526 = vsel %vm466, %v1517, %v1525
      %v1528 = vshrl.u32 %v1103, 16
      %v1530 = vrot.slane %v1528, 5
      %v1531 = vshll.u32 %v1103, 16
      %v1533 = vrot.slane %v1531, 6
      %v1534 = vor.u32 %v1530, %v1533
      %v1535 = vrot.slane %v1534, 4
      %v1537 = vshrl.u32 %v1104, 16
      %v1539 = vrot.slane %v1537, 5
      %v1540 = vshll.u32 %v1104, 16
      %v1542 = vrot.slane %v1540, 6
      %v1543 = vor.u32 %v1539, %v1542
      %v1544 = vsel %vm466, %v1535, %v1543
      %v1545 = vrot.slane %v1543, 4
      %v1547 = vshrl.u32 %v1295, 16
      %v1549 = vrot.slane %v1547, 5
      %v1550 = vshll.u32 %v1295, 16
      %v1552 = vrot.slane %v1550, 6
      %v1553 = vor.u32 %v1549, %v1552
      %v1554 = vsel %vm466, %v1545, %v1553
      %v1556 = vshrl.u32 %v1106, 16
      %v1558 = vrot.slane %v1556, 5
      %v1559 = vshll.u32 %v1106, 16
      %v1561 = vrot.slane %v1559, 6
      %v1562 = vor.u32 %v1558, %v1561
      %v1563 = vrot.slane %v1562, 4
      %v1565 = vshrl.u32 %v1107, 16
      %v1567 = vrot.slane %v1565, 5
      %v1568 = vshll.u32 %v1107, 16
      %v1570 = vrot.slane %v1568, 6
      %v1571 = vor.u32 %v1567, %v1570
      %v1572 = vsel %vm466, %v1563, %v1571
      %v1573 = vrot.slane %v1571, 4
      %v1575 = vshrl.u32 %v1296, 16
      %v1577 = vrot.slane %v1575, 5
      %v1578 = vshll.u32 %v1296, 16
      %v1580 = vrot.slane %v1578, 6
      %v1581 = vor.u32 %v1577, %v1580
      %v1582 = vsel %vm466, %v1573, %v1581
      %v1584 = vshrl.u32 %v1109, 16
      %v1586 = vrot.slane %v1584, 5
      %v1587 = vshll.u32 %v1109, 16
      %v1589 = vrot.slane %v1587, 6
      %v1590 = vor.u32 %v1586, %v1589
      %v1591 = vrot.slane %v1590, 4
      %v1593 = vshrl.u32 %v1110, 16
      %v1595 = vrot.slane %v1593, 5
      %v1596 = vshll.u32 %v1110, 16
      %v1598 = vrot.slane %v1596, 6
      %v1599 = vor.u32 %v1595, %v1598
      %v1600 = vsel %vm466, %v1591, %v1599
      %v1601 = vrot.slane %v1599, 4
      %v1603 = vshrl.u32 %v1297, 16
      %v1605 = vrot.slane %v1603, 5
      %v1606 = vshll.u32 %v1297, 16
      %v1608 = vrot.slane %v1606, 6
      %v1609 = vor.u32 %v1605, %v1608
      %v1610 = vsel %vm466, %v1601, %v1609
      %v1612 = vshrl.u32 %v1112, 16
      %v1614 = vrot.slane %v1612, 5
      %v1615 = vshll.u32 %v1112, 16
      %v1617 = vrot.slane %v1615, 6
      %v1618 = vor.u32 %v1614, %v1617
      %v1619 = vrot.slane %v1618, 4
      %v1621 = vshrl.u32 %v1113, 16
      %v1623 = vrot.slane %v1621, 5
      %v1624 = vshll.u32 %v1113, 16
      %v1626 = vrot.slane %v1624, 6
      %v1627 = vor.u32 %v1623, %v1626
      %v1628 = vsel %vm466, %v1619, %v1627
      %v1629 = vrot.slane %v1627, 4
      %v1631 = vshrl.u32 %v1298, 16
      %v1633 = vrot.slane %v1631, 5
      %v1634 = vshll.u32 %v1298, 16
      %v1636 = vrot.slane %v1634, 6
      %v1637 = vor.u32 %v1633, %v1636
      %v1638 = vsel %vm466, %v1629, %v1637
      %v1640 = vshrl.u32 %v1115, 16
      %v1642 = vrot.slane %v1640, 5
      %v1643 = vshll.u32 %v1115, 16
      %v1645 = vrot.slane %v1643, 6
      %v1646 = vor.u32 %v1642, %v1645
      %v1647 = vrot.slane %v1646, 4
      %v1649 = vshrl.u32 %v1116, 16
      %v1651 = vrot.slane %v1649, 5
      %v1652 = vshll.u32 %v1116, 16
      %v1654 = vrot.slane %v1652, 6
      %v1655 = vor.u32 %v1651, %v1654
      %v1656 = vsel %vm466, %v1647, %v1655
      %v1657 = vrot.slane %v1655, 4
      %v1659 = vshrl.u32 %v1299, 16
      %v1661 = vrot.slane %v1659, 5
      %v1662 = vshll.u32 %v1299, 16
      %v1664 = vrot.slane %v1662, 6
      %v1665 = vor.u32 %v1661, %v1664
      %v1666 = vsel %vm466, %v1657, %v1665
      %v1668 = vshrl.u32 %v1118, 16
      %v1670 = vrot.slane %v1668, 5
      %v1671 = vshll.u32 %v1118, 16
      %v1673 = vrot.slane %v1671, 6
      %v1674 = vor.u32 %v1670, %v1673
      %v1675 = vrot.slane %v1674, 4
      %v1677 = vshrl.u32 %v1119, 16
      %v1679 = vrot.slane %v1677, 5
      %v1680 = vshll.u32 %v1119, 16
      %v1682 = vrot.slane %v1680, 6
      %v1683 = vor.u32 %v1679, %v1682
      %v1684 = vsel %vm466, %v1675, %v1683
      %v1685 = vrot.slane %v1683, 4
      %v1687 = vshrl.u32 %v1300, 16
      %v1689 = vrot.slane %v1687, 5
      %v1690 = vshll.u32 %v1300, 16
      %v1692 = vrot.slane %v1690, 6
      %v1693 = vor.u32 %v1689, %v1692
      %v1694 = vsel %vm466, %v1685, %v1693
      %v1696 = vshrl.u32 %v1121, 16
      %v1698 = vrot.slane %v1696, 5
      %v1699 = vshll.u32 %v1121, 16
      %v1701 = vrot.slane %v1699, 6
      %v1702 = vor.u32 %v1698, %v1701
      %v1703 = vrot.slane %v1702, 4
      %v1705 = vshrl.u32 %v1122, 16
      %v1707 = vrot.slane %v1705, 5
      %v1708 = vshll.u32 %v1122, 16
      %v1710 = vrot.slane %v1708, 6
      %v1711 = vor.u32 %v1707, %v1710
      %v1712 = vsel %vm466, %v1703, %v1711
      %v1713 = vrot.slane %v1711, 4
      %v1715 = vshrl.u32 %v1301, 16
      %v1717 = vrot.slane %v1715, 5
      %v1718 = vshll.u32 %v1301, 16
      %v1720 = vrot.slane %v1718, 6
      %v1721 = vor.u32 %v1717, %v1720
      %v1722 = vsel %vm466, %v1713, %v1721
      %v1724 = vshrl.u32 %v1124, 16
      %v1726 = vrot.slane %v1724, 5
      %v1727 = vshll.u32 %v1124, 16
      %v1729 = vrot.slane %v1727, 6
      %v1730 = vor.u32 %v1726, %v1729
      %v1731 = vrot.slane %v1730, 4
      %v1733 = vshrl.u32 %v1125, 16
      %v1735 = vrot.slane %v1733, 5
      %v1736 = vshll.u32 %v1125, 16
      %v1738 = vrot.slane %v1736, 6
      %v1739 = vor.u32 %v1735, %v1738
      %v1740 = vsel %vm466, %v1731, %v1739
      %v1741 = vrot.slane %v1739, 4
      %v1743 = vshrl.u32 %v1302, 16
      %v1745 = vrot.slane %v1743, 5
      %v1746 = vshll.u32 %v1302, 16
      %v1748 = vrot.slane %v1746, 6
      %v1749 = vor.u32 %v1745, %v1748
      %v1750 = vsel %vm466, %v1741, %v1749
      %v1751 = vld [vmem:[%s1078] sm:$0xc]
      %v1752 = vld [vmem:[%s1078 + $0xc] sm:$0xc]
      %v1753 = vld [vmem:[%s1078 + $0x18] sm:$0xc]
      %v1754 = vld [vmem:[%s1078 + $0x24] sm:$0xc]
      %v1755 = vld [vmem:[%s1078 + $0x30] sm:$0xc]
      %v1756 = vld [vmem:[%s1078 + $0x3c] sm:$0xc]
      %v1757 = vld [vmem:[%s1078 + $0x48] sm:$0xc]
      %v1758 = vld [vmem:[%s1078 + $0x54] sm:$0xc]
      %v1759 = vld [vmem:[%s1078 + $0x60] sm:$0xc]
      %v1760 = vld [vmem:[%s1078 + $0x6c] sm:$0xc]
      %v1761 = vld [vmem:[%s1078 + $0x78] sm:$0xc]
      %v1762 = vld [vmem:[%s1078 + $0x84] sm:$0xc]
      %v1763 = vld [vmem:[%s1078 + $0x90] sm:$0xc]
      %v1764 = vld [vmem:[%s1078 + $0x9c] sm:$0xc]
      %v1765 = vld [vmem:[%s1078 + $0xa8] sm:$0xc]
      %v1766 = vld [vmem:[%s1078 + $0xb4] sm:$0xc]
      %v1799 = vrot.slane %v1751, 6
      %v1800 = vrot.slane %v1799, 4
      %v1801 = vrot.slane %v1080, 6
      %v1802 = vsel %vm965, %v1800, %v1801
      %v1803 = vrot.slane %v1801, 4
      %v1804 = vrot.slane %v1287, 6
      %v1805 = vsel %vm965, %v1803, %v1804
      %v1806 = vrot.slane %v1752, 6
      %v1807 = vrot.slane %v1806, 4
      %v1808 = vrot.slane %v1083, 6
      %v1809 = vsel %vm965, %v1807, %v1808
      %v1810 = vrot.slane %v1808, 4
      %v1811 = vrot.slane %v1288, 6
      %v1812 = vsel %vm965, %v1810, %v1811
      %v1813 = vrot.slane %v1753, 6
      %v1814 = vrot.slane %v1813, 4
      %v1815 = vrot.slane %v1086, 6
      %v1816 = vsel %vm965, %v1814, %v1815
      %v1817 = vrot.slane %v1815, 4
      %v1818 = vrot.slane %v1289, 6
      %v1819 = vsel %vm965, %v1817, %v1818
      %v1820 = vrot.slane %v1754, 6
      %v1821 = vrot.slane %v1820, 4
      %v1822 = vrot.slane %v1089, 6
      %v1823 = vsel %vm965, %v1821, %v1822
      %v1824 = vrot.slane %v1822, 4
      %v1825 = vrot.slane %v1290, 6
      %v1826 = vsel %vm965, %v1824, %v1825
      %v1827 = vrot.slane %v1755, 6
      %v1828 = vrot.slane %v1827, 4
      %v1829 = vrot.slane %v1092, 6
      %v1830 = vsel %vm965, %v1828, %v1829
      %v1831 = vrot.slane %v1829, 4
      %v1832 = vrot.slane %v1291, 6
      %v1833 = vsel %vm965, %v1831, %v1832
      %v1834 = vrot.slane %v1756, 6
      %v1835 = vrot.slane %v1834, 4
      %v1836 = vrot.slane %v1095, 6
      %v1837 = vsel %vm965, %v1835, %v1836
      %v1838 = vrot.slane %v1836, 4
      %v1839 = vrot.slane %v1292, 6
      %v1840 = vsel %vm965, %v1838, %v1839
      %v1841 = vrot.slane %v1757, 6
      %v1842 = vrot.slane %v1841, 4
      %v1843 = vrot.slane %v1098, 6
      %v1844 = vsel %vm965, %v1842, %v1843
      %v1845 = vrot.slane %v1843, 4
      %v1846 = vrot.slane %v1293, 6
      %v1847 = vsel %vm965, %v1845, %v1846
      %v1848 = vrot.slane %v1758, 6
      %v1849 = vrot.slane %v1848, 4
      %v1850 = vrot.slane %v1101, 6
      %v1851 = vsel %vm965, %v1849, %v1850
      %v1852 = vrot.slane %v1850, 4
      %v1853 = vrot.slane %v1294, 6
      %v1854 = vsel %vm965, %v1852, %v1853
      %v1855 = vrot.slane %v1759, 6
      %v1856 = vrot.slane %v1855, 4
      %v1857 = vrot.slane %v1104, 6
      %v1858 = vsel %vm965, %v1856, %v1857
      %v1859 = vrot.slane %v1857, 4
      %v1860 = vrot.slane %v1295, 6
      %v1861 = vsel %vm965, %v1859, %v1860
      %v1862 = vrot.slane %v1760, 6
      %v1863 = vrot.slane %v1862, 4
      %v1864 = vrot.slane %v1107, 6
      %v1865 = vsel %vm965, %v1863, %v1864
      %v1866 = vrot.slane %v1864, 4
      %v1867 = vrot.slane %v1296, 6
      %v1868 = vsel %vm965, %v1866, %v1867
      %v1869 = vrot.slane %v1761, 6
      %v1870 = vrot.slane %v1869, 4
      %v1871 = vrot.slane %v1110, 6
      %v1872 = vsel %vm965, %v1870, %v1871
      %v1873 = vrot.slane %v1871, 4
      %v1874 = vrot.slane %v1297, 6
      %v1875 = vsel %vm965, %v1873, %v1874
      %v1876 = vrot.slane %v1762, 6
      %v1877 = vrot.slane %v1876, 4
      %v1878 = vrot.slane %v1113, 6
      %v1879 = vsel %vm965, %v1877, %v1878
      %v1880 = vrot.slane %v1878, 4
      %v1881 = vrot.slane %v1298, 6
      %v1882 = vsel %vm965, %v1880, %v1881
      %v1883 = vrot.slane %v1763, 6
      %v1884 = vrot.slane %v1883, 4
      %v1885 = vrot.slane %v1116, 6
      %v1886 = vsel %vm965, %v1884, %v1885
      %v1887 = vrot.slane %v1885, 4
      %v1888 = vrot.slane %v1299, 6
      %v1889 = vsel %vm965, %v1887, %v1888
      %v1890 = vrot.slane %v1764, 6
      %v1891 = vrot.slane %v1890, 4
      %v1892 = vrot.slane %v1119, 6
      %v1893 = vsel %vm965, %v1891, %v1892
      %v1894 = vrot.slane %v1892, 4
      %v1895 = vrot.slane %v1300, 6
      %v1896 = vsel %vm965, %v1894, %v1895
      %v1897 = vrot.slane %v1765, 6
      %v1898 = vrot.slane %v1897, 4
      %v1899 = vrot.slane %v1122, 6
      %v1900 = vsel %vm965, %v1898, %v1899
      %v1901 = vrot.slane %v1899, 4
      %v1902 = vrot.slane %v1301, 6
      %v1903 = vsel %vm965, %v1901, %v1902
      %v1904 = vrot.slane %v1766, 6
      %v1905 = vrot.slane %v1904, 4
      %v1906 = vrot.slane %v1125, 6
      %v1907 = vsel %vm965, %v1905, %v1906
      %v1908 = vrot.slane %v1906, 4
      %v1909 = vrot.slane %v1302, 6
      %v1910 = vsel %vm965, %v1908, %v1909
      %s1911 = scalar_lea.vmem %s226, 48
      %v1912 = vld [vmem:[%s1911] sm:$0xe]
      %v1913 = vld [vmem:[%s1911 + $0x4] sm:$0xf]
      %v1914 = vld [vmem:[%s1911 + $0x8] sm:$0x1]
      %v1915 = vld [vmem:[%s1911 + $0xc] sm:$0xe]
      %v1916 = vld [vmem:[%s1911 + $0x10] sm:$0xf]
      %v1917 = vld [vmem:[%s1911 + $0x14] sm:$0x1]
      %v1918 = vld [vmem:[%s1911 + $0x18] sm:$0xe]
      %v1919 = vld [vmem:[%s1911 + $0x1c] sm:$0xf]
      %v1920 = vld [vmem:[%s1911 + $0x20] sm:$0x1]
      %v1921 = vld [vmem:[%s1911 + $0x24] sm:$0xe]
      %v1922 = vld [vmem:[%s1911 + $0x28] sm:$0xf]
      %v1923 = vld [vmem:[%s1911 + $0x2c] sm:$0x1]
      %v1924 = vld [vmem:[%s1911 + $0x30] sm:$0xe]
      %v1925 = vld [vmem:[%s1911 + $0x34] sm:$0xf]
      %v1926 = vld [vmem:[%s1911 + $0x38] sm:$0x1]
      %v1927 = vld [vmem:[%s1911 + $0x3c] sm:$0xe]
      %v1928 = vld [vmem:[%s1911 + $0x40] sm:$0xf]
      %v1929 = vld [vmem:[%s1911 + $0x44] sm:$0x1]
      %v1930 = vld [vmem:[%s1911 + $0x48] sm:$0xe]
      %v1931 = vld [vmem:[%s1911 + $0x4c] sm:$0xf]
      %v1932 = vld [vmem:[%s1911 + $0x50] sm:$0x1]
      %v1933 = vld [vmem:[%s1911 + $0x54] sm:$0xe]
      %v1934 = vld [vmem:[%s1911 + $0x58] sm:$0xf]
      %v1935 = vld [vmem:[%s1911 + $0x5c] sm:$0x1]
      %v1936 = vld [vmem:[%s1911 + $0x60] sm:$0xe]
      %v1937 = vld [vmem:[%s1911 + $0x64] sm:$0xf]
      %v1938 = vld [vmem:[%s1911 + $0x68] sm:$0x1]
      %v1939 = vld [vmem:[%s1911 + $0x6c] sm:$0xe]
      %v1940 = vld [vmem:[%s1911 + $0x70] sm:$0xf]
      %v1941 = vld [vmem:[%s1911 + $0x74] sm:$0x1]
      %v1942 = vld [vmem:[%s1911 + $0x78] sm:$0xe]
      %v1943 = vld [vmem:[%s1911 + $0x7c] sm:$0xf]
      %v1944 = vld [vmem:[%s1911 + $0x80] sm:$0x1]
      %v1945 = vld [vmem:[%s1911 + $0x84] sm:$0xe]
      %v1946 = vld [vmem:[%s1911 + $0x88] sm:$0xf]
      %v1947 = vld [vmem:[%s1911 + $0x8c] sm:$0x1]
      %v1948 = vld [vmem:[%s1911 + $0x90] sm:$0xe]
      %v1949 = vld [vmem:[%s1911 + $0x94] sm:$0xf]
      %v1950 = vld [vmem:[%s1911 + $0x98] sm:$0x1]
      %v1951 = vld [vmem:[%s1911 + $0x9c] sm:$0xe]
      %v1952 = vld [vmem:[%s1911 + $0xa0] sm:$0xf]
      %v1953 = vld [vmem:[%s1911 + $0xa4] sm:$0x1]
      %v1954 = vld [vmem:[%s1911 + $0xa8] sm:$0xe]
      %v1955 = vld [vmem:[%s1911 + $0xac] sm:$0xf]
      %v1956 = vld [vmem:[%s1911 + $0xb0] sm:$0x1]
      %v1957 = vld [vmem:[%s1911 + $0xb4] sm:$0xe]
      %v1958 = vld [vmem:[%s1911 + $0xb8] sm:$0xf]
      %v1959 = vld [vmem:[%s1911 + $0xbc] sm:$0x1]
      %v2008 = vrot.slane %v1912, 5
      %v2009 = vrot.slane %v2008, 4
      %v2010 = vrot.slane %v1913, 5
      %v2011 = vsel %vm335, %v2009, %v2010
      %v2012 = vrot.slane %v2010, 4
      %v2013 = vrot.slane %v1914, 5
      %v2014 = vsel %vm335, %v2012, %v2013
      %v2015 = vrot.slane %v1915, 5
      %v2016 = vrot.slane %v2015, 4
      %v2017 = vrot.slane %v1916, 5
      %v2018 = vsel %vm335, %v2016, %v2017
      %v2019 = vrot.slane %v2017, 4
      %v2020 = vrot.slane %v1917, 5
      %v2021 = vsel %vm335, %v2019, %v2020
      %v2022 = vrot.slane %v1918, 5
      %v2023 = vrot.slane %v2022, 4
      %v2024 = vrot.slane %v1919, 5
      %v2025 = vsel %vm335, %v2023, %v2024
      %v2026 = vrot.slane %v2024, 4
      %v2027 = vrot.slane %v1920, 5
      %v2028 = vsel %vm335, %v2026, %v2027
      %v2029 = vrot.slane %v1921, 5
      %v2030 = vrot.slane %v2029, 4
      %v2031 = vrot.slane %v1922, 5
      %v2032 = vsel %vm335, %v2030, %v2031
      %v2033 = vrot.slane %v2031, 4
      %v2034 = vrot.slane %v1923, 5
      %v2035 = vsel %vm335, %v2033, %v2034
      %v2036 = vrot.slane %v1924, 5
      %v2037 = vrot.slane %v2036, 4
      %v2038 = vrot.slane %v1925, 5
      %v2039 = vsel %vm335, %v2037, %v2038
      %v2040 = vrot.slane %v2038, 4
      %v2041 = vrot.slane %v1926, 5
      %v2042 = vsel %vm335, %v2040, %v2041
      %v2043 = vrot.slane %v1927, 5
      %v2044 = vrot.slane %v2043, 4
      %v2045 = vrot.slane %v1928, 5
      %v2046 = vsel %vm335, %v2044, %v2045
      %v2047 = vrot.slane %v2045, 4
      %v2048 = vrot.slane %v1929, 5
      %v2049 = vsel %vm335, %v2047, %v2048
      %v2050 = vrot.slane %v1930, 5
      %v2051 = vrot.slane %v2050, 4
      %v2052 = vrot.slane %v1931, 5
      %v2053 = vsel %vm335, %v2051, %v2052
      %v2054 = vrot.slane %v2052, 4
      %v2055 = vrot.slane %v1932, 5
      %v2056 = vsel %vm335, %v2054, %v2055
      %v2057 = vrot.slane %v1933, 5
      %v2058 = vrot.slane %v2057, 4
      %v2059 = vrot.slane %v1934, 5
      %v2060 = vsel %vm335, %v2058, %v2059
      %v2061 = vrot.slane %v2059, 4
      %v2062 = vrot.slane %v1935, 5
      %v2063 = vsel %vm335, %v2061, %v2062
      %v2064 = vrot.slane %v1936, 5
      %v2065 = vrot.slane %v2064, 4
      %v2066 = vrot.slane %v1937, 5
      %v2067 = vsel %vm335, %v2065, %v2066
      %v2068 = vrot.slane %v2066, 4
      %v2069 = vrot.slane %v1938, 5
      %v2070 = vsel %vm335, %v2068, %v2069
      %v2071 = vrot.slane %v1939, 5
      %v2072 = vrot.slane %v2071, 4
      %v2073 = vrot.slane %v1940, 5
      %v2074 = vsel %vm335, %v2072, %v2073
      %v2075 = vrot.slane %v2073, 4
      %v2076 = vrot.slane %v1941, 5
      %v2077 = vsel %vm335, %v2075, %v2076
      %v2078 = vrot.slane %v1942, 5
      %v2079 = vrot.slane %v2078, 4
      %v2080 = vrot.slane %v1943, 5
      %v2081 = vsel %vm335, %v2079, %v2080
      %v2082 = vrot.slane %v2080, 4
      %v2083 = vrot.slane %v1944, 5
      %v2084 = vsel %vm335, %v2082, %v2083
      %v2085 = vrot.slane %v1945, 5
      %v2086 = vrot.slane %v2085, 4
      %v2087 = vrot.slane %v1946, 5
      %v2088 = vsel %vm335, %v2086, %v2087
      %v2089 = vrot.slane %v2087, 4
      %v2090 = vrot.slane %v1947, 5
      %v2091 = vsel %vm335, %v2089, %v2090
      %v2092 = vrot.slane %v1948, 5
      %v2093 = vrot.slane %v2092, 4
      %v2094 = vrot.slane %v1949, 5
      %v2095 = vsel %vm335, %v2093, %v2094
      %v2096 = vrot.slane %v2094, 4
      %v2097 = vrot.slane %v1950, 5
      %v2098 = vsel %vm335, %v2096, %v2097
      %v2099 = vrot.slane %v1951, 5
      %v2100 = vrot.slane %v2099, 4
      %v2101 = vrot.slane %v1952, 5
      %v2102 = vsel %vm335, %v2100, %v2101
      %v2103 = vrot.slane %v2101, 4
      %v2104 = vrot.slane %v1953, 5
      %v2105 = vsel %vm335, %v2103, %v2104
      %v2106 = vrot.slane %v1954, 5
      %v2107 = vrot.slane %v2106, 4
      %v2108 = vrot.slane %v1955, 5
      %v2109 = vsel %vm335, %v2107, %v2108
      %v2110 = vrot.slane %v2108, 4
      %v2111 = vrot.slane %v1956, 5
      %v2112 = vsel %vm335, %v2110, %v2111
      %v2113 = vrot.slane %v1957, 5
      %v2114 = vrot.slane %v2113, 4
      %v2115 = vrot.slane %v1958, 5
      %v2116 = vsel %vm335, %v2114, %v2115
      %v2117 = vrot.slane %v2115, 4
      %v2118 = vrot.slane %v1959, 5
      %v2119 = vsel %vm335, %v2117, %v2118
      %v2120 = vld [vmem:[%s1911 + $0x8] sm:$0x3]
      %v2121 = vld [vmem:[%s1911 + $0x14] sm:$0x3]
      %v2122 = vld [vmem:[%s1911 + $0x20] sm:$0x3]
      %v2123 = vld [vmem:[%s1911 + $0x2c] sm:$0x3]
      %v2124 = vld [vmem:[%s1911 + $0x38] sm:$0x3]
      %v2125 = vld [vmem:[%s1911 + $0x44] sm:$0x3]
      %v2126 = vld [vmem:[%s1911 + $0x50] sm:$0x3]
      %v2127 = vld [vmem:[%s1911 + $0x5c] sm:$0x3]
      %v2128 = vld [vmem:[%s1911 + $0x68] sm:$0x3]
      %v2129 = vld [vmem:[%s1911 + $0x74] sm:$0x3]
      %v2130 = vld [vmem:[%s1911 + $0x80] sm:$0x3]
      %v2131 = vld [vmem:[%s1911 + $0x8c] sm:$0x3]
      %v2132 = vld [vmem:[%s1911 + $0x98] sm:$0x3]
      %v2133 = vld [vmem:[%s1911 + $0xa4] sm:$0x3]
      %v2134 = vld [vmem:[%s1911 + $0xb0] sm:$0x3]
      %v2135 = vld [vmem:[%s1911 + $0xbc] sm:$0x3]
      %v2137 = vshrl.u32 %v1912, 16
      %v2139 = vrot.slane %v2137, 5
      %v2140 = vshll.u32 %v1912, 16
      %v2142 = vrot.slane %v2140, 6
      %v2143 = vor.u32 %v2139, %v2142
      %v2144 = vrot.slane %v2143, 4
      %v2146 = vshrl.u32 %v1913, 16
      %v2148 = vrot.slane %v2146, 5
      %v2149 = vshll.u32 %v1913, 16
      %v2151 = vrot.slane %v2149, 6
      %v2152 = vor.u32 %v2148, %v2151
      %v2153 = vsel %vm466, %v2144, %v2152
      %v2154 = vrot.slane %v2152, 4
      %v2156 = vshrl.u32 %v2120, 16
      %v2158 = vrot.slane %v2156, 5
      %v2159 = vshll.u32 %v2120, 16
      %v2161 = vrot.slane %v2159, 6
      %v2162 = vor.u32 %v2158, %v2161
      %v2163 = vsel %vm466, %v2154, %v2162
      %v2165 = vshrl.u32 %v1915, 16
      %v2167 = vrot.slane %v2165, 5
      %v2168 = vshll.u32 %v1915, 16
      %v2170 = vrot.slane %v2168, 6
      %v2171 = vor.u32 %v2167, %v2170
      %v2172 = vrot.slane %v2171, 4
      %v2174 = vshrl.u32 %v1916, 16
      %v2176 = vrot.slane %v2174, 5
      %v2177 = vshll.u32 %v1916, 16
      %v2179 = vrot.slane %v2177, 6
      %v2180 = vor.u32 %v2176, %v2179
      %v2181 = vsel %vm466, %v2172, %v2180
      %v2182 = vrot.slane %v2180, 4
      %v2184 = vshrl.u32 %v2121, 16
      %v2186 = vrot.slane %v2184, 5
      %v2187 = vshll.u32 %v2121, 16
      %v2189 = vrot.slane %v2187, 6
      %v2190 = vor.u32 %v2186, %v2189
      %v2191 = vsel %vm466, %v2182, %v2190
      %v2193 = vshrl.u32 %v1918, 16
      %v2195 = vrot.slane %v2193, 5
      %v2196 = vshll.u32 %v1918, 16
      %v2198 = vrot.slane %v2196, 6
      %v2199 = vor.u32 %v2195, %v2198
      %v2200 = vrot.slane %v2199, 4
      %v2202 = vshrl.u32 %v1919, 16
      %v2204 = vrot.slane %v2202, 5
      %v2205 = vshll.u32 %v1919, 16
      %v2207 = vrot.slane %v2205, 6
      %v2208 = vor.u32 %v2204, %v2207
      %v2209 = vsel %vm466, %v2200, %v2208
      %v2210 = vrot.slane %v2208, 4
      %v2212 = vshrl.u32 %v2122, 16
      %v2214 = vrot.slane %v2212, 5
      %v2215 = vshll.u32 %v2122, 16
      %v2217 = vrot.slane %v2215, 6
      %v2218 = vor.u32 %v2214, %v2217
      %v2219 = vsel %vm466, %v2210, %v2218
      %v2221 = vshrl.u32 %v1921, 16
      %v2223 = vrot.slane %v2221, 5
      %v2224 = vshll.u32 %v1921, 16
      %v2226 = vrot.slane %v2224, 6
      %v2227 = vor.u32 %v2223, %v2226
      %v2228 = vrot.slane %v2227, 4
      %v2230 = vshrl.u32 %v1922, 16
      %v2232 = vrot.slane %v2230, 5
      %v2233 = vshll.u32 %v1922, 16
      %v2235 = vrot.slane %v2233, 6
      %v2236 = vor.u32 %v2232, %v2235
      %v2237 = vsel %vm466, %v2228, %v2236
      %v2238 = vrot.slane %v2236, 4
      %v2240 = vshrl.u32 %v2123, 16
      %v2242 = vrot.slane %v2240, 5
      %v2243 = vshll.u32 %v2123, 16
      %v2245 = vrot.slane %v2243, 6
      %v2246 = vor.u32 %v2242, %v2245
      %v2247 = vsel %vm466, %v2238, %v2246
      %v2249 = vshrl.u32 %v1924, 16
      %v2251 = vrot.slane %v2249, 5
      %v2252 = vshll.u32 %v1924, 16
      %v2254 = vrot.slane %v2252, 6
      %v2255 = vor.u32 %v2251, %v2254
      %v2256 = vrot.slane %v2255, 4
      %v2258 = vshrl.u32 %v1925, 16
      %v2260 = vrot.slane %v2258, 5
      %v2261 = vshll.u32 %v1925, 16
      %v2263 = vrot.slane %v2261, 6
      %v2264 = vor.u32 %v2260, %v2263
      %v2265 = vsel %vm466, %v2256, %v2264
      %v2266 = vrot.slane %v2264, 4
      %v2268 = vshrl.u32 %v2124, 16
      %v2270 = vrot.slane %v2268, 5
      %v2271 = vshll.u32 %v2124, 16
      %v2273 = vrot.slane %v2271, 6
      %v2274 = vor.u32 %v2270, %v2273
      %v2275 = vsel %vm466, %v2266, %v2274
      %v2277 = vshrl.u32 %v1927, 16
      %v2279 = vrot.slane %v2277, 5
      %v2280 = vshll.u32 %v1927, 16
      %v2282 = vrot.slane %v2280, 6
      %v2283 = vor.u32 %v2279, %v2282
      %v2284 = vrot.slane %v2283, 4
      %v2286 = vshrl.u32 %v1928, 16
      %v2288 = vrot.slane %v2286, 5
      %v2289 = vshll.u32 %v1928, 16
      %v2291 = vrot.slane %v2289, 6
      %v2292 = vor.u32 %v2288, %v2291
      %v2293 = vsel %vm466, %v2284, %v2292
      %v2294 = vrot.slane %v2292, 4
      %v2296 = vshrl.u32 %v2125, 16
      %v2298 = vrot.slane %v2296, 5
      %v2299 = vshll.u32 %v2125, 16
      %v2301 = vrot.slane %v2299, 6
      %v2302 = vor.u32 %v2298, %v2301
      %v2303 = vsel %vm466, %v2294, %v2302
      %v2305 = vshrl.u32 %v1930, 16
      %v2307 = vrot.slane %v2305, 5
      %v2308 = vshll.u32 %v1930, 16
      %v2310 = vrot.slane %v2308, 6
      %v2311 = vor.u32 %v2307, %v2310
      %v2312 = vrot.slane %v2311, 4
      %v2314 = vshrl.u32 %v1931, 16
      %v2316 = vrot.slane %v2314, 5
      %v2317 = vshll.u32 %v1931, 16
      %v2319 = vrot.slane %v2317, 6
      %v2320 = vor.u32 %v2316, %v2319
      %v2321 = vsel %vm466, %v2312, %v2320
      %v2322 = vrot.slane %v2320, 4
      %v2324 = vshrl.u32 %v2126, 16
      %v2326 = vrot.slane %v2324, 5
      %v2327 = vshll.u32 %v2126, 16
      %v2329 = vrot.slane %v2327, 6
      %v2330 = vor.u32 %v2326, %v2329
      %v2331 = vsel %vm466, %v2322, %v2330
      %v2333 = vshrl.u32 %v1933, 16
      %v2335 = vrot.slane %v2333, 5
      %v2336 = vshll.u32 %v1933, 16
      %v2338 = vrot.slane %v2336, 6
      %v2339 = vor.u32 %v2335, %v2338
      %v2340 = vrot.slane %v2339, 4
      %v2342 = vshrl.u32 %v1934, 16
      %v2344 = vrot.slane %v2342, 5
      %v2345 = vshll.u32 %v1934, 16
      %v2347 = vrot.slane %v2345, 6
      %v2348 = vor.u32 %v2344, %v2347
      %v2349 = vsel %vm466, %v2340, %v2348
      %v2350 = vrot.slane %v2348, 4
      %v2352 = vshrl.u32 %v2127, 16
      %v2354 = vrot.slane %v2352, 5
      %v2355 = vshll.u32 %v2127, 16
      %v2357 = vrot.slane %v2355, 6
      %v2358 = vor.u32 %v2354, %v2357
      %v2359 = vsel %vm466, %v2350, %v2358
      %v2361 = vshrl.u32 %v1936, 16
      %v2363 = vrot.slane %v2361, 5
      %v2364 = vshll.u32 %v1936, 16
      %v2366 = vrot.slane %v2364, 6
      %v2367 = vor.u32 %v2363, %v2366
      %v2368 = vrot.slane %v2367, 4
      %v2370 = vshrl.u32 %v1937, 16
      %v2372 = vrot.slane %v2370, 5
      %v2373 = vshll.u32 %v1937, 16
      %v2375 = vrot.slane %v2373, 6
      %v2376 = vor.u32 %v2372, %v2375
      %v2377 = vsel %vm466, %v2368, %v2376
      %v2378 = vrot.slane %v2376, 4
      %v2380 = vshrl.u32 %v2128, 16
      %v2382 = vrot.slane %v2380, 5
      %v2383 = vshll.u32 %v2128, 16
      %v2385 = vrot.slane %v2383, 6
      %v2386 = vor.u32 %v2382, %v2385
      %v2387 = vsel %vm466, %v2378, %v2386
      %v2389 = vshrl.u32 %v1939, 16
      %v2391 = vrot.slane %v2389, 5
      %v2392 = vshll.u32 %v1939, 16
      %v2394 = vrot.slane %v2392, 6
      %v2395 = vor.u32 %v2391, %v2394
      %v2396 = vrot.slane %v2395, 4
      %v2398 = vshrl.u32 %v1940, 16
      %v2400 = vrot.slane %v2398, 5
      %v2401 = vshll.u32 %v1940, 16
      %v2403 = vrot.slane %v2401, 6
      %v2404 = vor.u32 %v2400, %v2403
      %v2405 = vsel %vm466, %v2396, %v2404
      %v2406 = vrot.slane %v2404, 4
      %v2408 = vshrl.u32 %v2129, 16
      %v2410 = vrot.slane %v2408, 5
      %v2411 = vshll.u32 %v2129, 16
      %v2413 = vrot.slane %v2411, 6
      %v2414 = vor.u32 %v2410, %v2413
      %v2415 = vsel %vm466, %v2406, %v2414
      %v2417 = vshrl.u32 %v1942, 16
      %v2419 = vrot.slane %v2417, 5
      %v2420 = vshll.u32 %v1942, 16
      %v2422 = vrot.slane %v2420, 6
      %v2423 = vor.u32 %v2419, %v2422
      %v2424 = vrot.slane %v2423, 4
      %v2426 = vshrl.u32 %v1943, 16
      %v2428 = vrot.slane %v2426, 5
      %v2429 = vshll.u32 %v1943, 16
      %v2431 = vrot.slane %v2429, 6
      %v2432 = vor.u32 %v2428, %v2431
      %v2433 = vsel %vm466, %v2424, %v2432
      %v2434 = vrot.slane %v2432, 4
      %v2436 = vshrl.u32 %v2130, 16
      %v2438 = vrot.slane %v2436, 5
      %v2439 = vshll.u32 %v2130, 16
      %v2441 = vrot.slane %v2439, 6
      %v2442 = vor.u32 %v2438, %v2441
      %v2443 = vsel %vm466, %v2434, %v2442
      %v2445 = vshrl.u32 %v1945, 16
      %v2447 = vrot.slane %v2445, 5
      %v2448 = vshll.u32 %v1945, 16
      %v2450 = vrot.slane %v2448, 6
      %v2451 = vor.u32 %v2447, %v2450
      %v2452 = vrot.slane %v2451, 4
      %v2454 = vshrl.u32 %v1946, 16
      %v2456 = vrot.slane %v2454, 5
      %v2457 = vshll.u32 %v1946, 16
      %v2459 = vrot.slane %v2457, 6
      %v2460 = vor.u32 %v2456, %v2459
      %v2461 = vsel %vm466, %v2452, %v2460
      %v2462 = vrot.slane %v2460, 4
      %v2464 = vshrl.u32 %v2131, 16
      %v2466 = vrot.slane %v2464, 5
      %v2467 = vshll.u32 %v2131, 16
      %v2469 = vrot.slane %v2467, 6
      %v2470 = vor.u32 %v2466, %v2469
      %v2471 = vsel %vm466, %v2462, %v2470
      %v2473 = vshrl.u32 %v1948, 16
      %v2475 = vrot.slane %v2473, 5
      %v2476 = vshll.u32 %v1948, 16
      %v2478 = vrot.slane %v2476, 6
      %v2479 = vor.u32 %v2475, %v2478
      %v2480 = vrot.slane %v2479, 4
      %v2482 = vshrl.u32 %v1949, 16
      %v2484 = vrot.slane %v2482, 5
      %v2485 = vshll.u32 %v1949, 16
      %v2487 = vrot.slane %v2485, 6
      %v2488 = vor.u32 %v2484, %v2487
      %v2489 = vsel %vm466, %v2480, %v2488
      %v2490 = vrot.slane %v2488, 4
      %v2492 = vshrl.u32 %v2132, 16
      %v2494 = vrot.slane %v2492, 5
      %v2495 = vshll.u32 %v2132, 16
      %v2497 = vrot.slane %v2495, 6
      %v2498 = vor.u32 %v2494, %v2497
      %v2499 = vsel %vm466, %v2490, %v2498
      %v2501 = vshrl.u32 %v1951, 16
      %v2503 = vrot.slane %v2501, 5
      %v2504 = vshll.u32 %v1951, 16
      %v2506 = vrot.slane %v2504, 6
      %v2507 = vor.u32 %v2503, %v2506
      %v2508 = vrot.slane %v2507, 4
      %v2510 = vshrl.u32 %v1952, 16
      %v2512 = vrot.slane %v2510, 5
      %v2513 = vshll.u32 %v1952, 16
      %v2515 = vrot.slane %v2513, 6
      %v2516 = vor.u32 %v2512, %v2515
      %v2517 = vsel %vm466, %v2508, %v2516
      %v2518 = vrot.slane %v2516, 4
      %v2520 = vshrl.u32 %v2133, 16
      %v2522 = vrot.slane %v2520, 5
      %v2523 = vshll.u32 %v2133, 16
      %v2525 = vrot.slane %v2523, 6
      %v2526 = vor.u32 %v2522, %v2525
      %v2527 = vsel %vm466, %v2518, %v2526
      %v2529 = vshrl.u32 %v1954, 16
      %v2531 = vrot.slane %v2529, 5
      %v2532 = vshll.u32 %v1954, 16
      %v2534 = vrot.slane %v2532, 6
      %v2535 = vor.u32 %v2531, %v2534
      %v2536 = vrot.slane %v2535, 4
      %v2538 = vshrl.u32 %v1955, 16
      %v2540 = vrot.slane %v2538, 5
      %v2541 = vshll.u32 %v1955, 16
      %v2543 = vrot.slane %v2541, 6
      %v2544 = vor.u32 %v2540, %v2543
      %v2545 = vsel %vm466, %v2536, %v2544
      %v2546 = vrot.slane %v2544, 4
      %v2548 = vshrl.u32 %v2134, 16
      %v2550 = vrot.slane %v2548, 5
      %v2551 = vshll.u32 %v2134, 16
      %v2553 = vrot.slane %v2551, 6
      %v2554 = vor.u32 %v2550, %v2553
      %v2555 = vsel %vm466, %v2546, %v2554
      %v2557 = vshrl.u32 %v1957, 16
      %v2559 = vrot.slane %v2557, 5
      %v2560 = vshll.u32 %v1957, 16
      %v2562 = vrot.slane %v2560, 6
      %v2563 = vor.u32 %v2559, %v2562
      %v2564 = vrot.slane %v2563, 4
      %v2566 = vshrl.u32 %v1958, 16
      %v2568 = vrot.slane %v2566, 5
      %v2569 = vshll.u32 %v1958, 16
      %v2571 = vrot.slane %v2569, 6
      %v2572 = vor.u32 %v2568, %v2571
      %v2573 = vsel %vm466, %v2564, %v2572
      %v2574 = vrot.slane %v2572, 4
      %v2576 = vshrl.u32 %v2135, 16
      %v2578 = vrot.slane %v2576, 5
      %v2579 = vshll.u32 %v2135, 16
      %v2581 = vrot.slane %v2579, 6
      %v2582 = vor.u32 %v2578, %v2581
      %v2583 = vsel %vm466, %v2574, %v2582
      %v2584 = vld [vmem:[%s1911] sm:$0xc]
      %v2585 = vld [vmem:[%s1911 + $0xc] sm:$0xc]
      %v2586 = vld [vmem:[%s1911 + $0x18] sm:$0xc]
      %v2587 = vld [vmem:[%s1911 + $0x24] sm:$0xc]
      %v2588 = vld [vmem:[%s1911 + $0x30] sm:$0xc]
      %v2589 = vld [vmem:[%s1911 + $0x3c] sm:$0xc]
      %v2590 = vld [vmem:[%s1911 + $0x48] sm:$0xc]
      %v2591 = vld [vmem:[%s1911 + $0x54] sm:$0xc]
      %v2592 = vld [vmem:[%s1911 + $0x60] sm:$0xc]
      %v2593 = vld [vmem:[%s1911 + $0x6c] sm:$0xc]
      %v2594 = vld [vmem:[%s1911 + $0x78] sm:$0xc]
      %v2595 = vld [vmem:[%s1911 + $0x84] sm:$0xc]
      %v2596 = vld [vmem:[%s1911 + $0x90] sm:$0xc]
      %v2597 = vld [vmem:[%s1911 + $0x9c] sm:$0xc]
      %v2598 = vld [vmem:[%s1911 + $0xa8] sm:$0xc]
      %v2599 = vld [vmem:[%s1911 + $0xb4] sm:$0xc]
      %v2632 = vrot.slane %v2584, 6
      %v2633 = vrot.slane %v2632, 4
      %v2634 = vrot.slane %v1913, 6
      %v2635 = vsel %vm965, %v2633, %v2634
      %v2636 = vrot.slane %v2634, 4
      %v2637 = vrot.slane %v2120, 6
      %v2638 = vsel %vm965, %v2636, %v2637
      %v2639 = vrot.slane %v2585, 6
      %v2640 = vrot.slane %v2639, 4
      %v2641 = vrot.slane %v1916, 6
      %v2642 = vsel %vm965, %v2640, %v2641
      %v2643 = vrot.slane %v2641, 4
      %v2644 = vrot.slane %v2121, 6
      %v2645 = vsel %vm965, %v2643, %v2644
      %v2646 = vrot.slane %v2586, 6
      %v2647 = vrot.slane %v2646, 4
      %v2648 = vrot.slane %v1919, 6
      %v2649 = vsel %vm965, %v2647, %v2648
      %v2650 = vrot.slane %v2648, 4
      %v2651 = vrot.slane %v2122, 6
      %v2652 = vsel %vm965, %v2650, %v2651
      %v2653 = vrot.slane %v2587, 6
      %v2654 = vrot.slane %v2653, 4
      %v2655 = vrot.slane %v1922, 6
      %v2656 = vsel %vm965, %v2654, %v2655
      %v2657 = vrot.slane %v2655, 4
      %v2658 = vrot.slane %v2123, 6
      %v2659 = vsel %vm965, %v2657, %v2658
      %v2660 = vrot.slane %v2588, 6
      %v2661 = vrot.slane %v2660, 4
      %v2662 = vrot.slane %v1925, 6
      %v2663 = vsel %vm965, %v2661, %v2662
      %v2664 = vrot.slane %v2662, 4
      %v2665 = vrot.slane %v2124, 6
      %v2666 = vsel %vm965, %v2664, %v2665
      %v2667 = vrot.slane %v2589, 6
      %v2668 = vrot.slane %v2667, 4
      %v2669 = vrot.slane %v1928, 6
      %v2670 = vsel %vm965, %v2668, %v2669
      %v2671 = vrot.slane %v2669, 4
      %v2672 = vrot.slane %v2125, 6
      %v2673 = vsel %vm965, %v2671, %v2672
      %v2674 = vrot.slane %v2590, 6
      %v2675 = vrot.slane %v2674, 4
      %v2676 = vrot.slane %v1931, 6
      %v2677 = vsel %vm965, %v2675, %v2676
      %v2678 = vrot.slane %v2676, 4
      %v2679 = vrot.slane %v2126, 6
      %v2680 = vsel %vm965, %v2678, %v2679
      %v2681 = vrot.slane %v2591, 6
      %v2682 = vrot.slane %v2681, 4
      %v2683 = vrot.slane %v1934, 6
      %v2684 = vsel %vm965, %v2682, %v2683
      %v2685 = vrot.slane %v2683, 4
      %v2686 = vrot.slane %v2127, 6
      %v2687 = vsel %vm965, %v2685, %v2686
      %v2688 = vrot.slane %v2592, 6
      %v2689 = vrot.slane %v2688, 4
      %v2690 = vrot.slane %v1937, 6
      %v2691 = vsel %vm965, %v2689, %v2690
      %v2692 = vrot.slane %v2690, 4
      %v2693 = vrot.slane %v2128, 6
      %v2694 = vsel %vm965, %v2692, %v2693
      %v2695 = vrot.slane %v2593, 6
      %v2696 = vrot.slane %v2695, 4
      %v2697 = vrot.slane %v1940, 6
      %v2698 = vsel %vm965, %v2696, %v2697
      %v2699 = vrot.slane %v2697, 4
      %v2700 = vrot.slane %v2129, 6
      %v2701 = vsel %vm965, %v2699, %v2700
      %v2702 = vrot.slane %v2594, 6
      %v2703 = vrot.slane %v2702, 4
      %v2704 = vrot.slane %v1943, 6
      %v2705 = vsel %vm965, %v2703, %v2704
      %v2706 = vrot.slane %v2704, 4
      %v2707 = vrot.slane %v2130, 6
      %v2708 = vsel %vm965, %v2706, %v2707
      %v2709 = vrot.slane %v2595, 6
      %v2710 = vrot.slane %v2709, 4
      %v2711 = vrot.slane %v1946, 6
      %v2712 = vsel %vm965, %v2710, %v2711
      %v2713 = vrot.slane %v2711, 4
      %v2714 = vrot.slane %v2131, 6
      %v2715 = vsel %vm965, %v2713, %v2714
      %v2716 = vrot.slane %v2596, 6
      %v2717 = vrot.slane %v2716, 4
      %v2718 = vrot.slane %v1949, 6
      %v2719 = vsel %vm965, %v2717, %v2718
      %v2720 = vrot.slane %v2718, 4
      %v2721 = vrot.slane %v2132, 6
      %v2722 = vsel %vm965, %v2720, %v2721
      %v2723 = vrot.slane %v2597, 6
      %v2724 = vrot.slane %v2723, 4
      %v2725 = vrot.slane %v1952, 6
      %v2726 = vsel %vm965, %v2724, %v2725
      %v2727 = vrot.slane %v2725, 4
      %v2728 = vrot.slane %v2133, 6
      %v2729 = vsel %vm965, %v2727, %v2728
      %v2730 = vrot.slane %v2598, 6
      %v2731 = vrot.slane %v2730, 4
      %v2732 = vrot.slane %v1955, 6
      %v2733 = vsel %vm965, %v2731, %v2732
      %v2734 = vrot.slane %v2732, 4
      %v2735 = vrot.slane %v2134, 6
      %v2736 = vsel %vm965, %v2734, %v2735
      %v2737 = vrot.slane %v2599, 6
      %v2738 = vrot.slane %v2737, 4
      %v2739 = vrot.slane %v1958, 6
      %v2740 = vsel %vm965, %v2738, %v2739
      %v2741 = vrot.slane %v2739, 4
      %v2742 = vrot.slane %v2135, 6
      %v2743 = vsel %vm965, %v2741, %v2742
      %s2744 = scalar_lea.vmem %s226, 12
      %v2745 = vld [vmem:[%s2744] sm:$0xf]
      %v2746 = vld [vmem:[%s2744 + $0x4] sm:$0xf]
      %v2747 = vld [vmem:[%s2744 + $0x8] sm:$0x1]
      %v2748 = vld [vmem:[%s2744 + $0xc] sm:$0xf]
      %v2749 = vld [vmem:[%s2744 + $0x10] sm:$0xf]
      %v2750 = vld [vmem:[%s2744 + $0x14] sm:$0x1]
      %v2751 = vld [vmem:[%s2744 + $0x18] sm:$0xf]
      %v2752 = vld [vmem:[%s2744 + $0x1c] sm:$0xf]
      %v2753 = vld [vmem:[%s2744 + $0x20] sm:$0x1]
      %v2754 = vld [vmem:[%s2744 + $0x24] sm:$0xf]
      %v2755 = vld [vmem:[%s2744 + $0x28] sm:$0xf]
      %v2756 = vld [vmem:[%s2744 + $0x2c] sm:$0x1]
      %v2757 = vld [vmem:[%s2744 + $0x30] sm:$0xf]
      %v2758 = vld [vmem:[%s2744 + $0x34] sm:$0xf]
      %v2759 = vld [vmem:[%s2744 + $0x38] sm:$0x1]
      %v2760 = vld [vmem:[%s2744 + $0x3c] sm:$0xf]
      %v2761 = vld [vmem:[%s2744 + $0x40] sm:$0xf]
      %v2762 = vld [vmem:[%s2744 + $0x44] sm:$0x1]
      %v2763 = vld [vmem:[%s2744 + $0x48] sm:$0xf]
      %v2764 = vld [vmem:[%s2744 + $0x4c] sm:$0xf]
      %v2765 = vld [vmem:[%s2744 + $0x50] sm:$0x1]
      %v2766 = vld [vmem:[%s2744 + $0x54] sm:$0xf]
      %v2767 = vld [vmem:[%s2744 + $0x58] sm:$0xf]
      %v2768 = vld [vmem:[%s2744 + $0x5c] sm:$0x1]
      %v2769 = vld [vmem:[%s2744 + $0x60] sm:$0xf]
      %v2770 = vld [vmem:[%s2744 + $0x64] sm:$0xf]
      %v2771 = vld [vmem:[%s2744 + $0x68] sm:$0x1]
      %v2772 = vld [vmem:[%s2744 + $0x6c] sm:$0xf]
      %v2773 = vld [vmem:[%s2744 + $0x70] sm:$0xf]
      %v2774 = vld [vmem:[%s2744 + $0x74] sm:$0x1]
      %v2775 = vld [vmem:[%s2744 + $0x78] sm:$0xf]
      %v2776 = vld [vmem:[%s2744 + $0x7c] sm:$0xf]
      %v2777 = vld [vmem:[%s2744 + $0x80] sm:$0x1]
      %v2778 = vld [vmem:[%s2744 + $0x84] sm:$0xf]
      %v2779 = vld [vmem:[%s2744 + $0x88] sm:$0xf]
      %v2780 = vld [vmem:[%s2744 + $0x8c] sm:$0x1]
      %v2781 = vld [vmem:[%s2744 + $0x90] sm:$0xf]
      %v2782 = vld [vmem:[%s2744 + $0x94] sm:$0xf]
      %v2783 = vld [vmem:[%s2744 + $0x98] sm:$0x1]
      %v2784 = vld [vmem:[%s2744 + $0x9c] sm:$0xf]
      %v2785 = vld [vmem:[%s2744 + $0xa0] sm:$0xf]
      %v2786 = vld [vmem:[%s2744 + $0xa4] sm:$0x1]
      %v2787 = vld [vmem:[%s2744 + $0xa8] sm:$0xf]
      %v2788 = vld [vmem:[%s2744 + $0xac] sm:$0xf]
      %v2789 = vld [vmem:[%s2744 + $0xb0] sm:$0x1]
      %v2790 = vld [vmem:[%s2744 + $0xb4] sm:$0xf]
      %v2791 = vld [vmem:[%s2744 + $0xb8] sm:$0xf]
      %v2792 = vld [vmem:[%s2744 + $0xbc] sm:$0x1]
      %vm2793 = vsmask.f32 3328
      %vm2794 = vsmask.f32 7440
      %vm2795 = vmor %vm2793, %vm2794
      %v2797 = vshrl.u32 %v2745, 16
      %v2799 = vrot.slane %v2797, 4
      %v2800 = vshll.u32 %v2745, 16
      %v2802 = vrot.slane %v2800, 5
      %v2803 = vor.u32 %v2799, %v2802
      %v2804 = vrot.slane %v2803, 4
      %v2806 = vshll.u32 %v2746, 16
      %v2808 = vrot.slane %v2806, 5
      %v2809 = vsel %vm2795, %v2804, %v2808
      %v2810 = vshrl.u32 %v2746, 16
      %v2812 = vrot.slane %v2810, 4
      %v2813 = vor.u32 %v2812, %v2808
      %v2814 = vrot.slane %v2813, 4
      %v2816 = vshll.u32 %v2747, 16
      %v2818 = vrot.slane %v2816, 5
      %v2819 = vsel %vm2795, %v2814, %v2818
      %v2821 = vshrl.u32 %v2748, 16
      %v2823 = vrot.slane %v2821, 4
      %v2824 = vshll.u32 %v2748, 16
      %v2826 = vrot.slane %v2824, 5
      %v2827 = vor.u32 %v2823, %v2826
      %v2828 = vrot.slane %v2827, 4
      %v2830 = vshll.u32 %v2749, 16
      %v2832 = vrot.slane %v2830, 5
      %v2833 = vsel %vm2795, %v2828, %v2832
      %v2834 = vshrl.u32 %v2749, 16
      %v2836 = vrot.slane %v2834, 4
      %v2837 = vor.u32 %v2836, %v2832
      %v2838 = vrot.slane %v2837, 4
      %v2840 = vshll.u32 %v2750, 16
      %v2842 = vrot.slane %v2840, 5
      %v2843 = vsel %vm2795, %v2838, %v2842
      %v2845 = vshrl.u32 %v2751, 16
      %v2847 = vrot.slane %v2845, 4
      %v2848 = vshll.u32 %v2751, 16
      %v2850 = vrot.slane %v2848, 5
      %v2851 = vor.u32 %v2847, %v2850
      %v2852 = vrot.slane %v2851, 4
      %v2854 = vshll.u32 %v2752, 16
      %v2856 = vrot.slane %v2854, 5
      %v2857 = vsel %vm2795, %v2852, %v2856
      %v2858 = vshrl.u32 %v2752, 16
      %v2860 = vrot.slane %v2858, 4
      %v2861 = vor.u32 %v2860, %v2856
      %v2862 = vrot.slane %v2861, 4
      %v2864 = vshll.u32 %v2753, 16
      %v2866 = vrot.slane %v2864, 5
      %v2867 = vsel %vm2795, %v2862, %v2866
      %v2869 = vshrl.u32 %v2754, 16
      %v2871 = vrot.slane %v2869, 4
      %v2872 = vshll.u32 %v2754, 16
      %v2874 = vrot.slane %v2872, 5
      %v2875 = vor.u32 %v2871, %v2874
      %v2876 = vrot.slane %v2875, 4
      %v2878 = vshll.u32 %v2755, 16
      %v2880 = vrot.slane %v2878, 5
      %v2881 = vsel %vm2795, %v2876, %v2880
      %v2882 = vshrl.u32 %v2755, 16
      %v2884 = vrot.slane %v2882, 4
      %v2885 = vor.u32 %v2884, %v2880
      %v2886 = vrot.slane %v2885, 4
      %v2888 = vshll.u32 %v2756, 16
      %v2890 = vrot.slane %v2888, 5
      %v2891 = vsel %vm2795, %v2886, %v2890
      %v2893 = vshrl.u32 %v2757, 16
      %v2895 = vrot.slane %v2893, 4
      %v2896 = vshll.u32 %v2757, 16
      %v2898 = vrot.slane %v2896, 5
      %v2899 = vor.u32 %v2895, %v2898
      %v2900 = vrot.slane %v2899, 4
      %v2902 = vshll.u32 %v2758, 16
      %v2904 = vrot.slane %v2902, 5
      %v2905 = vsel %vm2795, %v2900, %v2904
      %v2906 = vshrl.u32 %v2758, 16
      %v2908 = vrot.slane %v2906, 4
      %v2909 = vor.u32 %v2908, %v2904
      %v2910 = vrot.slane %v2909, 4
      %v2912 = vshll.u32 %v2759, 16
      %v2914 = vrot.slane %v2912, 5
      %v2915 = vsel %vm2795, %v2910, %v2914
      %v2917 = vshrl.u32 %v2760, 16
      %v2919 = vrot.slane %v2917, 4
      %v2920 = vshll.u32 %v2760, 16
      %v2922 = vrot.slane %v2920, 5
      %v2923 = vor.u32 %v2919, %v2922
      %v2924 = vrot.slane %v2923, 4
      %v2926 = vshll.u32 %v2761, 16
      %v2928 = vrot.slane %v2926, 5
      %v2929 = vsel %vm2795, %v2924, %v2928
      %v2930 = vshrl.u32 %v2761, 16
      %v2932 = vrot.slane %v2930, 4
      %v2933 = vor.u32 %v2932, %v2928
      %v2934 = vrot.slane %v2933, 4
      %v2936 = vshll.u32 %v2762, 16
      %v2938 = vrot.slane %v2936, 5
      %v2939 = vsel %vm2795, %v2934, %v2938
      %v2941 = vshrl.u32 %v2763, 16
      %v2943 = vrot.slane %v2941, 4
      %v2944 = vshll.u32 %v2763, 16
      %v2946 = vrot.slane %v2944, 5
      %v2947 = vor.u32 %v2943, %v2946
      %v2948 = vrot.slane %v2947, 4
      %v2950 = vshll.u32 %v2764, 16
      %v2952 = vrot.slane %v2950, 5
      %v2953 = vsel %vm2795, %v2948, %v2952
      %v2954 = vshrl.u32 %v2764, 16
      %v2956 = vrot.slane %v2954, 4
      %v2957 = vor.u32 %v2956, %v2952
      %v2958 = vrot.slane %v2957, 4
      %v2960 = vshll.u32 %v2765, 16
      %v2962 = vrot.slane %v2960, 5
      %v2963 = vsel %vm2795, %v2958, %v2962
      %v2965 = vshrl.u32 %v2766, 16
      %v2967 = vrot.slane %v2965, 4
      %v2968 = vshll.u32 %v2766, 16
      %v2970 = vrot.slane %v2968, 5
      %v2971 = vor.u32 %v2967, %v2970
      %v2972 = vrot.slane %v2971, 4
      %v2974 = vshll.u32 %v2767, 16
      %v2976 = vrot.slane %v2974, 5
      %v2977 = vsel %vm2795, %v2972, %v2976
      %v2978 = vshrl.u32 %v2767, 16
      %v2980 = vrot.slane %v2978, 4
      %v2981 = vor.u32 %v2980, %v2976
      %v2982 = vrot.slane %v2981, 4
      %v2984 = vshll.u32 %v2768, 16
      %v2986 = vrot.slane %v2984, 5
      %v2987 = vsel %vm2795, %v2982, %v2986
      %v2989 = vshrl.u32 %v2769, 16
      %v2991 = vrot.slane %v2989, 4
      %v2992 = vshll.u32 %v2769, 16
      %v2994 = vrot.slane %v2992, 5
      %v2995 = vor.u32 %v2991, %v2994
      %v2996 = vrot.slane %v2995, 4
      %v2998 = vshll.u32 %v2770, 16
      %v3000 = vrot.slane %v2998, 5
      %v3001 = vsel %vm2795, %v2996, %v3000
      %v3002 = vshrl.u32 %v2770, 16
      %v3004 = vrot.slane %v3002, 4
      %v3005 = vor.u32 %v3004, %v3000
      %v3006 = vrot.slane %v3005, 4
      %v3008 = vshll.u32 %v2771, 16
      %v3010 = vrot.slane %v3008, 5
      %v3011 = vsel %vm2795, %v3006, %v3010
      %v3013 = vshrl.u32 %v2772, 16
      %v3015 = vrot.slane %v3013, 4
      %v3016 = vshll.u32 %v2772, 16
      %v3018 = vrot.slane %v3016, 5
      %v3019 = vor.u32 %v3015, %v3018
      %v3020 = vrot.slane %v3019, 4
      %v3022 = vshll.u32 %v2773, 16
      %v3024 = vrot.slane %v3022, 5
      %v3025 = vsel %vm2795, %v3020, %v3024
      %v3026 = vshrl.u32 %v2773, 16
      %v3028 = vrot.slane %v3026, 4
      %v3029 = vor.u32 %v3028, %v3024
      %v3030 = vrot.slane %v3029, 4
      %v3032 = vshll.u32 %v2774, 16
      %v3034 = vrot.slane %v3032, 5
      %v3035 = vsel %vm2795, %v3030, %v3034
      %v3037 = vshrl.u32 %v2775, 16
      %v3039 = vrot.slane %v3037, 4
      %v3040 = vshll.u32 %v2775, 16
      %v3042 = vrot.slane %v3040, 5
      %v3043 = vor.u32 %v3039, %v3042
      %v3044 = vrot.slane %v3043, 4
      %v3046 = vshll.u32 %v2776, 16
      %v3048 = vrot.slane %v3046, 5
      %v3049 = vsel %vm2795, %v3044, %v3048
      %v3050 = vshrl.u32 %v2776, 16
      %v3052 = vrot.slane %v3050, 4
      %v3053 = vor.u32 %v3052, %v3048
      %v3054 = vrot.slane %v3053, 4
      %v3056 = vshll.u32 %v2777, 16
      %v3058 = vrot.slane %v3056, 5
      %v3059 = vsel %vm2795, %v3054, %v3058
      %v3061 = vshrl.u32 %v2778, 16
      %v3063 = vrot.slane %v3061, 4
      %v3064 = vshll.u32 %v2778, 16
      %v3066 = vrot.slane %v3064, 5
      %v3067 = vor.u32 %v3063, %v3066
      %v3068 = vrot.slane %v3067, 4
      %v3070 = vshll.u32 %v2779, 16
      %v3072 = vrot.slane %v3070, 5
      %v3073 = vsel %vm2795, %v3068, %v3072
      %v3074 = vshrl.u32 %v2779, 16
      %v3076 = vrot.slane %v3074, 4
      %v3077 = vor.u32 %v3076, %v3072
      %v3078 = vrot.slane %v3077, 4
      %v3080 = vshll.u32 %v2780, 16
      %v3082 = vrot.slane %v3080, 5
      %v3083 = vsel %vm2795, %v3078, %v3082
      %v3085 = vshrl.u32 %v2781, 16
      %v3087 = vrot.slane %v3085, 4
      %v3088 = vshll.u32 %v2781, 16
      %v3090 = vrot.slane %v3088, 5
      %v3091 = vor.u32 %v3087, %v3090
      %v3092 = vrot.slane %v3091, 4
      %v3094 = vshll.u32 %v2782, 16
      %v3096 = vrot.slane %v3094, 5
      %v3097 = vsel %vm2795, %v3092, %v3096
      %v3098 = vshrl.u32 %v2782, 16
      %v3100 = vrot.slane %v3098, 4
      %v3101 = vor.u32 %v3100, %v3096
      %v3102 = vrot.slane %v3101, 4
      %v3104 = vshll.u32 %v2783, 16
      %v3106 = vrot.slane %v3104, 5
      %v3107 = vsel %vm2795, %v3102, %v3106
      %v3109 = vshrl.u32 %v2784, 16
      %v3111 = vrot.slane %v3109, 4
      %v3112 = vshll.u32 %v2784, 16
      %v3114 = vrot.slane %v3112, 5
      %v3115 = vor.u32 %v3111, %v3114
      %v3116 = vrot.slane %v3115, 4
      %v3118 = vshll.u32 %v2785, 16
      %v3120 = vrot.slane %v3118, 5
      %v3121 = vsel %vm2795, %v3116, %v3120
      %v3122 = vshrl.u32 %v2785, 16
      %v3124 = vrot.slane %v3122, 4
      %v3125 = vor.u32 %v3124, %v3120
      %v3126 = vrot.slane %v3125, 4
      %v3128 = vshll.u32 %v2786, 16
      %v3130 = vrot.slane %v3128, 5
      %v3131 = vsel %vm2795, %v3126, %v3130
      %v3133 = vshrl.u32 %v2787, 16
      %v3135 = vrot.slane %v3133, 4
      %v3136 = vshll.u32 %v2787, 16
      %v3138 = vrot.slane %v3136, 5
      %v3139 = vor.u32 %v3135, %v3138
      %v3140 = vrot.slane %v3139, 4
      %v3142 = vshll.u32 %v2788, 16
      %v3144 = vrot.slane %v3142, 5
      %v3145 = vsel %vm2795, %v3140, %v3144
      %v3146 = vshrl.u32 %v2788, 16
      %v3148 = vrot.slane %v3146, 4
      %v3149 = vor.u32 %v3148, %v3144
      %v3150 = vrot.slane %v3149, 4
      %v3152 = vshll.u32 %v2789, 16
      %v3154 = vrot.slane %v3152, 5
      %v3155 = vsel %vm2795, %v3150, %v3154
      %v3157 = vshrl.u32 %v2790, 16
      %v3159 = vrot.slane %v3157, 4
      %v3160 = vshll.u32 %v2790, 16
      %v3162 = vrot.slane %v3160, 5
      %v3163 = vor.u32 %v3159, %v3162
      %v3164 = vrot.slane %v3163, 4
      %v3166 = vshll.u32 %v2791, 16
      %v3168 = vrot.slane %v3166, 5
      %v3169 = vsel %vm2795, %v3164, %v3168
      %v3170 = vshrl.u32 %v2791, 16
      %v3172 = vrot.slane %v3170, 4
      %v3173 = vor.u32 %v3172, %v3168
      %v3174 = vrot.slane %v3173, 4
      %v3176 = vshll.u32 %v2792, 16
      %v3178 = vrot.slane %v3176, 5
      %v3179 = vsel %vm2795, %v3174, %v3178
      %v3180 = vld [vmem:[%s2744] sm:$0xe]
      %v3181 = vld [vmem:[%s2744 + $0x8] sm:$0x3]
      %v3182 = vld [vmem:[%s2744 + $0xc] sm:$0xe]
      %v3183 = vld [vmem:[%s2744 + $0x14] sm:$0x3]
      %v3184 = vld [vmem:[%s2744 + $0x18] sm:$0xe]
      %v3185 = vld [vmem:[%s2744 + $0x20] sm:$0x3]
      %v3186 = vld [vmem:[%s2744 + $0x24] sm:$0xe]
      %v3187 = vld [vmem:[%s2744 + $0x2c] sm:$0x3]
      %v3188 = vld [vmem:[%s2744 + $0x30] sm:$0xe]
      %v3189 = vld [vmem:[%s2744 + $0x38] sm:$0x3]
      %v3190 = vld [vmem:[%s2744 + $0x3c] sm:$0xe]
      %v3191 = vld [vmem:[%s2744 + $0x44] sm:$0x3]
      %v3192 = vld [vmem:[%s2744 + $0x48] sm:$0xe]
      %v3193 = vld [vmem:[%s2744 + $0x50] sm:$0x3]
      %v3194 = vld [vmem:[%s2744 + $0x54] sm:$0xe]
      %v3195 = vld [vmem:[%s2744 + $0x5c] sm:$0x3]
      %v3196 = vld [vmem:[%s2744 + $0x60] sm:$0xe]
      %v3197 = vld [vmem:[%s2744 + $0x68] sm:$0x3]
      %v3198 = vld [vmem:[%s2744 + $0x6c] sm:$0xe]
      %v3199 = vld [vmem:[%s2744 + $0x74] sm:$0x3]
      %v3200 = vld [vmem:[%s2744 + $0x78] sm:$0xe]
      %v3201 = vld [vmem:[%s2744 + $0x80] sm:$0x3]
      %v3202 = vld [vmem:[%s2744 + $0x84] sm:$0xe]
      %v3203 = vld [vmem:[%s2744 + $0x8c] sm:$0x3]
      %v3204 = vld [vmem:[%s2744 + $0x90] sm:$0xe]
      %v3205 = vld [vmem:[%s2744 + $0x98] sm:$0x3]
      %v3206 = vld [vmem:[%s2744 + $0x9c] sm:$0xe]
      %v3207 = vld [vmem:[%s2744 + $0xa4] sm:$0x3]
      %v3208 = vld [vmem:[%s2744 + $0xa8] sm:$0xe]
      %v3209 = vld [vmem:[%s2744 + $0xb0] sm:$0x3]
      %v3210 = vld [vmem:[%s2744 + $0xb4] sm:$0xe]
      %v3211 = vld [vmem:[%s2744 + $0xbc] sm:$0x3]
      %v3213 = vshrl.u32 %v3180, 16
      %v3215 = vrot.slane %v3213, 5
      %v3216 = vshll.u32 %v3180, 16
      %v3218 = vrot.slane %v3216, 6
      %v3219 = vor.u32 %v3215, %v3218
      %v3220 = vrot.slane %v3219, 4
      %v3221 = vrot.slane %v2810, 5
      %v3222 = vrot.slane %v2806, 6
      %v3223 = vor.u32 %v3221, %v3222
      %v3224 = vsel %vm466, %v3220, %v3223
      %v3225 = vrot.slane %v3223, 4
      %v3227 = vshrl.u32 %v3181, 16
      %v3229 = vrot.slane %v3227, 5
      %v3230 = vshll.u32 %v3181, 16
      %v3232 = vrot.slane %v3230, 6
      %v3233 = vor.u32 %v3229, %v3232
      %v3234 = vsel %vm466, %v3225, %v3233
      %v3236 = vshrl.u32 %v3182, 16
      %v3238 = vrot.slane %v3236, 5
      %v3239 = vshll.u32 %v3182, 16
      %v3241 = vrot.slane %v3239, 6
      %v3242 = vor.u32 %v3238, %v3241
      %v3243 = vrot.slane %v3242, 4
      %v3244 = vrot.slane %v2834, 5
      %v3245 = vrot.slane %v2830, 6
      %v3246 = vor.u32 %v3244, %v3245
      %v3247 = vsel %vm466, %v3243, %v3246
      %v3248 = vrot.slane %v3246, 4
      %v3250 = vshrl.u32 %v3183, 16
      %v3252 = vrot.slane %v3250, 5
      %v3253 = vshll.u32 %v3183, 16
      %v3255 = vrot.slane %v3253, 6
      %v3256 = vor.u32 %v3252, %v3255
      %v3257 = vsel %vm466, %v3248, %v3256
      %v3259 = vshrl.u32 %v3184, 16
      %v3261 = vrot.slane %v3259, 5
      %v3262 = vshll.u32 %v3184, 16
      %v3264 = vrot.slane %v3262, 6
      %v3265 = vor.u32 %v3261, %v3264
      %v3266 = vrot.slane %v3265, 4
      %v3267 = vrot.slane %v2858, 5
      %v3268 = vrot.slane %v2854, 6
      %v3269 = vor.u32 %v3267, %v3268
      %v3270 = vsel %vm466, %v3266, %v3269
      %v3271 = vrot.slane %v3269, 4
      %v3273 = vshrl.u32 %v3185, 16
      %v3275 = vrot.slane %v3273, 5
      %v3276 = vshll.u32 %v3185, 16
      %v3278 = vrot.slane %v3276, 6
      %v3279 = vor.u32 %v3275, %v3278
      %v3280 = vsel %vm466, %v3271, %v3279
      %v3282 = vshrl.u32 %v3186, 16
      %v3284 = vrot.slane %v3282, 5
      %v3285 = vshll.u32 %v3186, 16
      %v3287 = vrot.slane %v3285, 6
      %v3288 = vor.u32 %v3284, %v3287
      %v3289 = vrot.slane %v3288, 4
      %v3290 = vrot.slane %v2882, 5
      %v3291 = vrot.slane %v2878, 6
      %v3292 = vor.u32 %v3290, %v3291
      %v3293 = vsel %vm466, %v3289, %v3292
      %v3294 = vrot.slane %v3292, 4
      %v3296 = vshrl.u32 %v3187, 16
      %v3298 = vrot.slane %v3296, 5
      %v3299 = vshll.u32 %v3187, 16
      %v3301 = vrot.slane %v3299, 6
      %v3302 = vor.u32 %v3298, %v3301
      %v3303 = vsel %vm466, %v3294, %v3302
      %v3305 = vshrl.u32 %v3188, 16
      %v3307 = vrot.slane %v3305, 5
      %v3308 = vshll.u32 %v3188, 16
      %v3310 = vrot.slane %v3308, 6
      %v3311 = vor.u32 %v3307, %v3310
      %v3312 = vrot.slane %v3311, 4
      %v3313 = vrot.slane %v2906, 5
      %v3314 = vrot.slane %v2902, 6
      %v3315 = vor.u32 %v3313, %v3314
      %v3316 = vsel %vm466, %v3312, %v3315
      %v3317 = vrot.slane %v3315, 4
      %v3319 = vshrl.u32 %v3189, 16
      %v3321 = vrot.slane %v3319, 5
      %v3322 = vshll.u32 %v3189, 16
      %v3324 = vrot.slane %v3322, 6
      %v3325 = vor.u32 %v3321, %v3324
      %v3326 = vsel %vm466, %v3317, %v3325
      %v3328 = vshrl.u32 %v3190, 16
      %v3330 = vrot.slane %v3328, 5
      %v3331 = vshll.u32 %v3190, 16
      %v3333 = vrot.slane %v3331, 6
      %v3334 = vor.u32 %v3330, %v3333
      %v3335 = vrot.slane %v3334, 4
      %v3336 = vrot.slane %v2930, 5
      %v3337 = vrot.slane %v2926, 6
      %v3338 = vor.u32 %v3336, %v3337
      %v3339 = vsel %vm466, %v3335, %v3338
      %v3340 = vrot.slane %v3338, 4
      %v3342 = vshrl.u32 %v3191, 16
      %v3344 = vrot.slane %v3342, 5
      %v3345 = vshll.u32 %v3191, 16
      %v3347 = vrot.slane %v3345, 6
      %v3348 = vor.u32 %v3344, %v3347
      %v3349 = vsel %vm466, %v3340, %v3348
      %v3351 = vshrl.u32 %v3192, 16
      %v3353 = vrot.slane %v3351, 5
      %v3354 = vshll.u32 %v3192, 16
      %v3356 = vrot.slane %v3354, 6
      %v3357 = vor.u32 %v3353, %v3356
      %v3358 = vrot.slane %v3357, 4
      %v3359 = vrot.slane %v2954, 5
      %v3360 = vrot.slane %v2950, 6
      %v3361 = vor.u32 %v3359, %v3360
      %v3362 = vsel %vm466, %v3358, %v3361
      %v3363 = vrot.slane %v3361, 4
      %v3365 = vshrl.u32 %v3193, 16
      %v3367 = vrot.slane %v3365, 5
      %v3368 = vshll.u32 %v3193, 16
      %v3370 = vrot.slane %v3368, 6
      %v3371 = vor.u32 %v3367, %v3370
      %v3372 = vsel %vm466, %v3363, %v3371
      %v3374 = vshrl.u32 %v3194, 16
      %v3376 = vrot.slane %v3374, 5
      %v3377 = vshll.u32 %v3194, 16
      %v3379 = vrot.slane %v3377, 6
      %v3380 = vor.u32 %v3376, %v3379
      %v3381 = vrot.slane %v3380, 4
      %v3382 = vrot.slane %v2978, 5
      %v3383 = vrot.slane %v2974, 6
      %v3384 = vor.u32 %v3382, %v3383
      %v3385 = vsel %vm466, %v3381, %v3384
      %v3386 = vrot.slane %v3384, 4
      %v3388 = vshrl.u32 %v3195, 16
      %v3390 = vrot.slane %v3388, 5
      %v3391 = vshll.u32 %v3195, 16
      %v3393 = vrot.slane %v3391, 6
      %v3394 = vor.u32 %v3390, %v3393
      %v3395 = vsel %vm466, %v3386, %v3394
      %v3397 = vshrl.u32 %v3196, 16
      %v3399 = vrot.slane %v3397, 5
      %v3400 = vshll.u32 %v3196, 16
      %v3402 = vrot.slane %v3400, 6
      %v3403 = vor.u32 %v3399, %v3402
      %v3404 = vrot.slane %v3403, 4
      %v3405 = vrot.slane %v3002, 5
      %v3406 = vrot.slane %v2998, 6
      %v3407 = vor.u32 %v3405, %v3406
      %v3408 = vsel %vm466, %v3404, %v3407
      %v3409 = vrot.slane %v3407, 4
      %v3411 = vshrl.u32 %v3197, 16
      %v3413 = vrot.slane %v3411, 5
      %v3414 = vshll.u32 %v3197, 16
      %v3416 = vrot.slane %v3414, 6
      %v3417 = vor.u32 %v3413, %v3416
      %v3418 = vsel %vm466, %v3409, %v3417
      %v3420 = vshrl.u32 %v3198, 16
      %v3422 = vrot.slane %v3420, 5
      %v3423 = vshll.u32 %v3198, 16
      %v3425 = vrot.slane %v3423, 6
      %v3426 = vor.u32 %v3422, %v3425
      %v3427 = vrot.slane %v3426, 4
      %v3428 = vrot.slane %v3026, 5
      %v3429 = vrot.slane %v3022, 6
      %v3430 = vor.u32 %v3428, %v3429
      %v3431 = vsel %vm466, %v3427, %v3430
      %v3432 = vrot.slane %v3430, 4
      %v3434 = vshrl.u32 %v3199, 16
      %v3436 = vrot.slane %v3434, 5
      %v3437 = vshll.u32 %v3199, 16
      %v3439 = vrot.slane %v3437, 6
      %v3440 = vor.u32 %v3436, %v3439
      %v3441 = vsel %vm466, %v3432, %v3440
      %v3443 = vshrl.u32 %v3200, 16
      %v3445 = vrot.slane %v3443, 5
      %v3446 = vshll.u32 %v3200, 16
      %v3448 = vrot.slane %v3446, 6
      %v3449 = vor.u32 %v3445, %v3448
      %v3450 = vrot.slane %v3449, 4
      %v3451 = vrot.slane %v3050, 5
      %v3452 = vrot.slane %v3046, 6
      %v3453 = vor.u32 %v3451, %v3452
      %v3454 = vsel %vm466, %v3450, %v3453
      %v3455 = vrot.slane %v3453, 4
      %v3457 = vshrl.u32 %v3201, 16
      %v3459 = vrot.slane %v3457, 5
      %v3460 = vshll.u32 %v3201, 16
      %v3462 = vrot.slane %v3460, 6
      %v3463 = vor.u32 %v3459, %v3462
      %v3464 = vsel %vm466, %v3455, %v3463
      %v3466 = vshrl.u32 %v3202, 16
      %v3468 = vrot.slane %v3466, 5
      %v3469 = vshll.u32 %v3202, 16
      %v3471 = vrot.slane %v3469, 6
      %v3472 = vor.u32 %v3468, %v3471
      %v3473 = vrot.slane %v3472, 4
      %v3474 = vrot.slane %v3074, 5
      %v3475 = vrot.slane %v3070, 6
      %v3476 = vor.u32 %v3474, %v3475
      %v3477 = vsel %vm466, %v3473, %v3476
      %v3478 = vrot.slane %v3476, 4
      %v3480 = vshrl.u32 %v3203, 16
      %v3482 = vrot.slane %v3480, 5
      %v3483 = vshll.u32 %v3203, 16
      %v3485 = vrot.slane %v3483, 6
      %v3486 = vor.u32 %v3482, %v3485
      %v3487 = vsel %vm466, %v3478, %v3486
      %v3489 = vshrl.u32 %v3204, 16
      %v3491 = vrot.slane %v3489, 5
      %v3492 = vshll.u32 %v3204, 16
      %v3494 = vrot.slane %v3492, 6
      %v3495 = vor.u32 %v3491, %v3494
      %v3496 = vrot.slane %v3495, 4
      %v3497 = vrot.slane %v3098, 5
      %v3498 = vrot.slane %v3094, 6
      %v3499 = vor.u32 %v3497, %v3498
      %v3500 = vsel %vm466, %v3496, %v3499
      %v3501 = vrot.slane %v3499, 4
      %v3503 = vshrl.u32 %v3205, 16
      %v3505 = vrot.slane %v3503, 5
      %v3506 = vshll.u32 %v3205, 16
      %v3508 = vrot.slane %v3506, 6
      %v3509 = vor.u32 %v3505, %v3508
      %v3510 = vsel %vm466, %v3501, %v3509
      %v3512 = vshrl.u32 %v3206, 16
      %v3514 = vrot.slane %v3512, 5
      %v3515 = vshll.u32 %v3206, 16
      %v3517 = vrot.slane %v3515, 6
      %v3518 = vor.u32 %v3514, %v3517
      %v3519 = vrot.slane %v3518, 4
      %v3520 = vrot.slane %v3122, 5
      %v3521 = vrot.slane %v3118, 6
      %v3522 = vor.u32 %v3520, %v3521
      %v3523 = vsel %vm466, %v3519, %v3522
      %v3524 = vrot.slane %v3522, 4
      %v3526 = vshrl.u32 %v3207, 16
      %v3528 = vrot.slane %v3526, 5
      %v3529 = vshll.u32 %v3207, 16
      %v3531 = vrot.slane %v3529, 6
      %v3532 = vor.u32 %v3528, %v3531
      %v3533 = vsel %vm466, %v3524, %v3532
      %v3535 = vshrl.u32 %v3208, 16
      %v3537 = vrot.slane %v3535, 5
      %v3538 = vshll.u32 %v3208, 16
      %v3540 = vrot.slane %v3538, 6
      %v3541 = vor.u32 %v3537, %v3540
      %v3542 = vrot.slane %v3541, 4
      %v3543 = vrot.slane %v3146, 5
      %v3544 = vrot.slane %v3142, 6
      %v3545 = vor.u32 %v3543, %v3544
      %v3546 = vsel %vm466, %v3542, %v3545
      %v3547 = vrot.slane %v3545, 4
      %v3549 = vshrl.u32 %v3209, 16
      %v3551 = vrot.slane %v3549, 5
      %v3552 = vshll.u32 %v3209, 16
      %v3554 = vrot.slane %v3552, 6
      %v3555 = vor.u32 %v3551, %v3554
      %v3556 = vsel %vm466, %v3547, %v3555
      %v3558 = vshrl.u32 %v3210, 16
      %v3560 = vrot.slane %v3558, 5
      %v3561 = vshll.u32 %v3210, 16
      %v3563 = vrot.slane %v3561, 6
      %v3564 = vor.u32 %v3560, %v3563
      %v3565 = vrot.slane %v3564, 4
      %v3566 = vrot.slane %v3170, 5
      %v3567 = vrot.slane %v3166, 6
      %v3568 = vor.u32 %v3566, %v3567
      %v3569 = vsel %vm466, %v3565, %v3568
      %v3570 = vrot.slane %v3568, 4
      %v3572 = vshrl.u32 %v3211, 16
      %v3574 = vrot.slane %v3572, 5
      %v3575 = vshll.u32 %v3211, 16
      %v3577 = vrot.slane %v3575, 6
      %v3578 = vor.u32 %v3574, %v3577
      %v3579 = vsel %vm466, %v3570, %v3578
      %v3580 = vld [vmem:[%s2744] sm:$0xc]
      %v3581 = vld [vmem:[%s2744 + $0x8] sm:$0x7]
      %v3582 = vld [vmem:[%s2744 + $0xc] sm:$0xc]
      %v3583 = vld [vmem:[%s2744 + $0x14] sm:$0x7]
      %v3584 = vld [vmem:[%s2744 + $0x18] sm:$0xc]
      %v3585 = vld [vmem:[%s2744 + $0x20] sm:$0x7]
      %v3586 = vld [vmem:[%s2744 + $0x24] sm:$0xc]
      %v3587 = vld [vmem:[%s2744 + $0x2c] sm:$0x7]
      %v3588 = vld [vmem:[%s2744 + $0x30] sm:$0xc]
      %v3589 = vld [vmem:[%s2744 + $0x38] sm:$0x7]
      %v3590 = vld [vmem:[%s2744 + $0x3c] sm:$0xc]
      %v3591 = vld [vmem:[%s2744 + $0x44] sm:$0x7]
      %v3592 = vld [vmem:[%s2744 + $0x48] sm:$0xc]
      %v3593 = vld [vmem:[%s2744 + $0x50] sm:$0x7]
      %v3594 = vld [vmem:[%s2744 + $0x54] sm:$0xc]
      %v3595 = vld [vmem:[%s2744 + $0x5c] sm:$0x7]
      %v3596 = vld [vmem:[%s2744 + $0x60] sm:$0xc]
      %v3597 = vld [vmem:[%s2744 + $0x68] sm:$0x7]
      %v3598 = vld [vmem:[%s2744 + $0x6c] sm:$0xc]
      %v3599 = vld [vmem:[%s2744 + $0x74] sm:$0x7]
      %v3600 = vld [vmem:[%s2744 + $0x78] sm:$0xc]
      %v3601 = vld [vmem:[%s2744 + $0x80] sm:$0x7]
      %v3602 = vld [vmem:[%s2744 + $0x84] sm:$0xc]
      %v3603 = vld [vmem:[%s2744 + $0x8c] sm:$0x7]
      %v3604 = vld [vmem:[%s2744 + $0x90] sm:$0xc]
      %v3605 = vld [vmem:[%s2744 + $0x98] sm:$0x7]
      %v3606 = vld [vmem:[%s2744 + $0x9c] sm:$0xc]
      %v3607 = vld [vmem:[%s2744 + $0xa4] sm:$0x7]
      %v3608 = vld [vmem:[%s2744 + $0xa8] sm:$0xc]
      %v3609 = vld [vmem:[%s2744 + $0xb0] sm:$0x7]
      %v3610 = vld [vmem:[%s2744 + $0xb4] sm:$0xc]
      %v3611 = vld [vmem:[%s2744 + $0xbc] sm:$0x7]
      %vm3612 = vsmask.f32 1280
      %vm3613 = vsmask.f32 5392
      %vm3614 = vmor %vm3612, %vm3613
      %v3616 = vshrl.u32 %v3580, 16
      %v3618 = vrot.slane %v3616, 6
      %v3619 = vshll.u32 %v3580, 16
      %v3621 = vrot.slane %v3619, 7
      %v3622 = vor.u32 %v3618, %v3621
      %v3623 = vrot.slane %v3622, 4
      %v3624 = vrot.slane %v2810, 6
      %v3625 = vrot.slane %v2806, 7
      %v3626 = vor.u32 %v3624, %v3625
      %v3627 = vsel %vm3614, %v3623, %v3626
      %v3628 = vrot.slane %v3626, 4
      %v3630 = vshrl.u32 %v3581, 16
      %v3632 = vrot.slane %v3630, 6
      %v3633 = vshll.u32 %v3581, 16
      %v3635 = vrot.slane %v3633, 7
      %v3636 = vor.u32 %v3632, %v3635
      %v3637 = vsel %vm3614, %v3628, %v3636
      %v3639 = vshrl.u32 %v3582, 16
      %v3641 = vrot.slane %v3639, 6
      %v3642 = vshll.u32 %v3582, 16
      %v3644 = vrot.slane %v3642, 7
      %v3645 = vor.u32 %v3641, %v3644
      %v3646 = vrot.slane %v3645, 4
      %v3647 = vrot.slane %v2834, 6
      %v3648 = vrot.slane %v2830, 7
      %v3649 = vor.u32 %v3647, %v3648
      %v3650 = vsel %vm3614, %v3646, %v3649
      %v3651 = vrot.slane %v3649, 4
      %v3653 = vshrl.u32 %v3583, 16
      %v3655 = vrot.slane %v3653, 6
      %v3656 = vshll.u32 %v3583, 16
      %v3658 = vrot.slane %v3656, 7
      %v3659 = vor.u32 %v3655, %v3658
      %v3660 = vsel %vm3614, %v3651, %v3659
      %v3662 = vshrl.u32 %v3584, 16
      %v3664 = vrot.slane %v3662, 6
      %v3665 = vshll.u32 %v3584, 16
      %v3667 = vrot.slane %v3665, 7
      %v3668 = vor.u32 %v3664, %v3667
      %v3669 = vrot.slane %v3668, 4
      %v3670 = vrot.slane %v2858, 6
      %v3671 = vrot.slane %v2854, 7
      %v3672 = vor.u32 %v3670, %v3671
      %v3673 = vsel %vm3614, %v3669, %v3672
      %v3674 = vrot.slane %v3672, 4
      %v3676 = vshrl.u32 %v3585, 16
      %v3678 = vrot.slane %v3676, 6
      %v3679 = vshll.u32 %v3585, 16
      %v3681 = vrot.slane %v3679, 7
      %v3682 = vor.u32 %v3678, %v3681
      %v3683 = vsel %vm3614, %v3674, %v3682
      %v3685 = vshrl.u32 %v3586, 16
      %v3687 = vrot.slane %v3685, 6
      %v3688 = vshll.u32 %v3586, 16
      %v3690 = vrot.slane %v3688, 7
      %v3691 = vor.u32 %v3687, %v3690
      %v3692 = vrot.slane %v3691, 4
      %v3693 = vrot.slane %v2882, 6
      %v3694 = vrot.slane %v2878, 7
      %v3695 = vor.u32 %v3693, %v3694
      %v3696 = vsel %vm3614, %v3692, %v3695
      %v3697 = vrot.slane %v3695, 4
      %v3699 = vshrl.u32 %v3587, 16
      %v3701 = vrot.slane %v3699, 6
      %v3702 = vshll.u32 %v3587, 16
      %v3704 = vrot.slane %v3702, 7
      %v3705 = vor.u32 %v3701, %v3704
      %v3706 = vsel %vm3614, %v3697, %v3705
      %v3708 = vshrl.u32 %v3588, 16
      %v3710 = vrot.slane %v3708, 6
      %v3711 = vshll.u32 %v3588, 16
      %v3713 = vrot.slane %v3711, 7
      %v3714 = vor.u32 %v3710, %v3713
      %v3715 = vrot.slane %v3714, 4
      %v3716 = vrot.slane %v2906, 6
      %v3717 = vrot.slane %v2902, 7
      %v3718 = vor.u32 %v3716, %v3717
      %v3719 = vsel %vm3614, %v3715, %v3718
      %v3720 = vrot.slane %v3718, 4
      %v3722 = vshrl.u32 %v3589, 16
      %v3724 = vrot.slane %v3722, 6
      %v3725 = vshll.u32 %v3589, 16
      %v3727 = vrot.slane %v3725, 7
      %v3728 = vor.u32 %v3724, %v3727
      %v3729 = vsel %vm3614, %v3720, %v3728
      %v3731 = vshrl.u32 %v3590, 16
      %v3733 = vrot.slane %v3731, 6
      %v3734 = vshll.u32 %v3590, 16
      %v3736 = vrot.slane %v3734, 7
      %v3737 = vor.u32 %v3733, %v3736
      %v3738 = vrot.slane %v3737, 4
      %v3739 = vrot.slane %v2930, 6
      %v3740 = vrot.slane %v2926, 7
      %v3741 = vor.u32 %v3739, %v3740
      %v3742 = vsel %vm3614, %v3738, %v3741
      %v3743 = vrot.slane %v3741, 4
      %v3745 = vshrl.u32 %v3591, 16
      %v3747 = vrot.slane %v3745, 6
      %v3748 = vshll.u32 %v3591, 16
      %v3750 = vrot.slane %v3748, 7
      %v3751 = vor.u32 %v3747, %v3750
      %v3752 = vsel %vm3614, %v3743, %v3751
      %v3754 = vshrl.u32 %v3592, 16
      %v3756 = vrot.slane %v3754, 6
      %v3757 = vshll.u32 %v3592, 16
      %v3759 = vrot.slane %v3757, 7
      %v3760 = vor.u32 %v3756, %v3759
      %v3761 = vrot.slane %v3760, 4
      %v3762 = vrot.slane %v2954, 6
      %v3763 = vrot.slane %v2950, 7
      %v3764 = vor.u32 %v3762, %v3763
      %v3765 = vsel %vm3614, %v3761, %v3764
      %v3766 = vrot.slane %v3764, 4
      %v3768 = vshrl.u32 %v3593, 16
      %v3770 = vrot.slane %v3768, 6
      %v3771 = vshll.u32 %v3593, 16
      %v3773 = vrot.slane %v3771, 7
      %v3774 = vor.u32 %v3770, %v3773
      %v3775 = vsel %vm3614, %v3766, %v3774
      %v3777 = vshrl.u32 %v3594, 16
      %v3779 = vrot.slane %v3777, 6
      %v3780 = vshll.u32 %v3594, 16
      %v3782 = vrot.slane %v3780, 7
      %v3783 = vor.u32 %v3779, %v3782
      %v3784 = vrot.slane %v3783, 4
      %v3785 = vrot.slane %v2978, 6
      %v3786 = vrot.slane %v2974, 7
      %v3787 = vor.u32 %v3785, %v3786
      %v3788 = vsel %vm3614, %v3784, %v3787
      %v3789 = vrot.slane %v3787, 4
      %v3791 = vshrl.u32 %v3595, 16
      %v3793 = vrot.slane %v3791, 6
      %v3794 = vshll.u32 %v3595, 16
      %v3796 = vrot.slane %v3794, 7
      %v3797 = vor.u32 %v3793, %v3796
      %v3798 = vsel %vm3614, %v3789, %v3797
      %v3800 = vshrl.u32 %v3596, 16
      %v3802 = vrot.slane %v3800, 6
      %v3803 = vshll.u32 %v3596, 16
      %v3805 = vrot.slane %v3803, 7
      %v3806 = vor.u32 %v3802, %v3805
      %v3807 = vrot.slane %v3806, 4
      %v3808 = vrot.slane %v3002, 6
      %v3809 = vrot.slane %v2998, 7
      %v3810 = vor.u32 %v3808, %v3809
      %v3811 = vsel %vm3614, %v3807, %v3810
      %v3812 = vrot.slane %v3810, 4
      %v3814 = vshrl.u32 %v3597, 16
      %v3816 = vrot.slane %v3814, 6
      %v3817 = vshll.u32 %v3597, 16
      %v3819 = vrot.slane %v3817, 7
      %v3820 = vor.u32 %v3816, %v3819
      %v3821 = vsel %vm3614, %v3812, %v3820
      %v3823 = vshrl.u32 %v3598, 16
      %v3825 = vrot.slane %v3823, 6
      %v3826 = vshll.u32 %v3598, 16
      %v3828 = vrot.slane %v3826, 7
      %v3829 = vor.u32 %v3825, %v3828
      %v3830 = vrot.slane %v3829, 4
      %v3831 = vrot.slane %v3026, 6
      %v3832 = vrot.slane %v3022, 7
      %v3833 = vor.u32 %v3831, %v3832
      %v3834 = vsel %vm3614, %v3830, %v3833
      %v3835 = vrot.slane %v3833, 4
      %v3837 = vshrl.u32 %v3599, 16
      %v3839 = vrot.slane %v3837, 6
      %v3840 = vshll.u32 %v3599, 16
      %v3842 = vrot.slane %v3840, 7
      %v3843 = vor.u32 %v3839, %v3842
      %v3844 = vsel %vm3614, %v3835, %v3843
      %v3846 = vshrl.u32 %v3600, 16
      %v3848 = vrot.slane %v3846, 6
      %v3849 = vshll.u32 %v3600, 16
      %v3851 = vrot.slane %v3849, 7
      %v3852 = vor.u32 %v3848, %v3851
      %v3853 = vrot.slane %v3852, 4
      %v3854 = vrot.slane %v3050, 6
      %v3855 = vrot.slane %v3046, 7
      %v3856 = vor.u32 %v3854, %v3855
      %v3857 = vsel %vm3614, %v3853, %v3856
      %v3858 = vrot.slane %v3856, 4
      %v3860 = vshrl.u32 %v3601, 16
      %v3862 = vrot.slane %v3860, 6
      %v3863 = vshll.u32 %v3601, 16
      %v3865 = vrot.slane %v3863, 7
      %v3866 = vor.u32 %v3862, %v3865
      %v3867 = vsel %vm3614, %v3858, %v3866
      %v3869 = vshrl.u32 %v3602, 16
      %v3871 = vrot.slane %v3869, 6
      %v3872 = vshll.u32 %v3602, 16
      %v3874 = vrot.slane %v3872, 7
      %v3875 = vor.u32 %v3871, %v3874
      %v3876 = vrot.slane %v3875, 4
      %v3877 = vrot.slane %v3074, 6
      %v3878 = vrot.slane %v3070, 7
      %v3879 = vor.u32 %v3877, %v3878
      %v3880 = vsel %vm3614, %v3876, %v3879
      %v3881 = vrot.slane %v3879, 4
      %v3883 = vshrl.u32 %v3603, 16
      %v3885 = vrot.slane %v3883, 6
      %v3886 = vshll.u32 %v3603, 16
      %v3888 = vrot.slane %v3886, 7
      %v3889 = vor.u32 %v3885, %v3888
      %v3890 = vsel %vm3614, %v3881, %v3889
      %v3892 = vshrl.u32 %v3604, 16
      %v3894 = vrot.slane %v3892, 6
      %v3895 = vshll.u32 %v3604, 16
      %v3897 = vrot.slane %v3895, 7
      %v3898 = vor.u32 %v3894, %v3897
      %v3899 = vrot.slane %v3898, 4
      %v3900 = vrot.slane %v3098, 6
      %v3901 = vrot.slane %v3094, 7
      %v3902 = vor.u32 %v3900, %v3901
      %v3903 = vsel %vm3614, %v3899, %v3902
      %v3904 = vrot.slane %v3902, 4
      %v3906 = vshrl.u32 %v3605, 16
      %v3908 = vrot.slane %v3906, 6
      %v3909 = vshll.u32 %v3605, 16
      %v3911 = vrot.slane %v3909, 7
      %v3912 = vor.u32 %v3908, %v3911
      %v3913 = vsel %vm3614, %v3904, %v3912
      %v3915 = vshrl.u32 %v3606, 16
      %v3917 = vrot.slane %v3915, 6
      %v3918 = vshll.u32 %v3606, 16
      %v3920 = vrot.slane %v3918, 7
      %v3921 = vor.u32 %v3917, %v3920
      %v3922 = vrot.slane %v3921, 4
      %v3923 = vrot.slane %v3122, 6
      %v3924 = vrot.slane %v3118, 7
      %v3925 = vor.u32 %v3923, %v3924
      %v3926 = vsel %vm3614, %v3922, %v3925
      %v3927 = vrot.slane %v3925, 4
      %v3929 = vshrl.u32 %v3607, 16
      %v3931 = vrot.slane %v3929, 6
      %v3932 = vshll.u32 %v3607, 16
      %v3934 = vrot.slane %v3932, 7
      %v3935 = vor.u32 %v3931, %v3934
      %v3936 = vsel %vm3614, %v3927, %v3935
      %v3938 = vshrl.u32 %v3608, 16
      %v3940 = vrot.slane %v3938, 6
      %v3941 = vshll.u32 %v3608, 16
      %v3943 = vrot.slane %v3941, 7
      %v3944 = vor.u32 %v3940, %v3943
      %v3945 = vrot.slane %v3944, 4
      %v3946 = vrot.slane %v3146, 6
      %v3947 = vrot.slane %v3142, 7
      %v3948 = vor.u32 %v3946, %v3947
      %v3949 = vsel %vm3614, %v3945, %v3948
      %v3950 = vrot.slane %v3948, 4
      %v3952 = vshrl.u32 %v3609, 16
      %v3954 = vrot.slane %v3952, 6
      %v3955 = vshll.u32 %v3609, 16
      %v3957 = vrot.slane %v3955, 7
      %v3958 = vor.u32 %v3954, %v3957
      %v3959 = vsel %vm3614, %v3950, %v3958
      %v3961 = vshrl.u32 %v3610, 16
      %v3963 = vrot.slane %v3961, 6
      %v3964 = vshll.u32 %v3610, 16
      %v3966 = vrot.slane %v3964, 7
      %v3967 = vor.u32 %v3963, %v3966
      %v3968 = vrot.slane %v3967, 4
      %v3969 = vrot.slane %v3170, 6
      %v3970 = vrot.slane %v3166, 7
      %v3971 = vor.u32 %v3969, %v3970
      %v3972 = vsel %vm3614, %v3968, %v3971
      %v3973 = vrot.slane %v3971, 4
      %v3975 = vshrl.u32 %v3611, 16
      %v3977 = vrot.slane %v3975, 6
      %v3978 = vshll.u32 %v3611, 16
      %v3980 = vrot.slane %v3978, 7
      %v3981 = vor.u32 %v3977, %v3980
      %v3982 = vsel %vm3614, %v3973, %v3981
      %v3983 = vld [vmem:[%s1078] sm:$0xf]
      %v3984 = vld [vmem:[%s1078 + $0xc] sm:$0xf]
      %v3985 = vld [vmem:[%s1078 + $0x18] sm:$0xf]
      %v3986 = vld [vmem:[%s1078 + $0x24] sm:$0xf]
      %v3987 = vld [vmem:[%s1078 + $0x30] sm:$0xf]
      %v3988 = vld [vmem:[%s1078 + $0x3c] sm:$0xf]
      %v3989 = vld [vmem:[%s1078 + $0x48] sm:$0xf]
      %v3990 = vld [vmem:[%s1078 + $0x54] sm:$0xf]
      %v3991 = vld [vmem:[%s1078 + $0x60] sm:$0xf]
      %v3992 = vld [vmem:[%s1078 + $0x6c] sm:$0xf]
      %v3993 = vld [vmem:[%s1078 + $0x78] sm:$0xf]
      %v3994 = vld [vmem:[%s1078 + $0x84] sm:$0xf]
      %v3995 = vld [vmem:[%s1078 + $0x90] sm:$0xf]
      %v3996 = vld [vmem:[%s1078 + $0x9c] sm:$0xf]
      %v3997 = vld [vmem:[%s1078 + $0xa8] sm:$0xf]
      %v3998 = vld [vmem:[%s1078 + $0xb4] sm:$0xf]
      %v4000 = vshrl.u32 %v3983, 16
      %v4002 = vrot.slane %v4000, 4
      %v4003 = vshll.u32 %v3983, 16
      %v4005 = vrot.slane %v4003, 5
      %v4006 = vor.u32 %v4002, %v4005
      %v4007 = vrot.slane %v4006, 4
      %v4008 = vrot.slane %v1316, 5
      %v4009 = vsel %vm2795, %v4007, %v4008
      %v4010 = vrot.slane %v1313, 4
      %v4011 = vor.u32 %v4010, %v4008
      %v4012 = vrot.slane %v4011, 4
      %v4014 = vshll.u32 %v1081, 16
      %v4016 = vrot.slane %v4014, 5
      %v4017 = vsel %vm2795, %v4012, %v4016
      %v4019 = vshrl.u32 %v3984, 16
      %v4021 = vrot.slane %v4019, 4
      %v4022 = vshll.u32 %v3984, 16
      %v4024 = vrot.slane %v4022, 5
      %v4025 = vor.u32 %v4021, %v4024
      %v4026 = vrot.slane %v4025, 4
      %v4027 = vrot.slane %v1344, 5
      %v4028 = vsel %vm2795, %v4026, %v4027
      %v4029 = vrot.slane %v1341, 4
      %v4030 = vor.u32 %v4029, %v4027
      %v4031 = vrot.slane %v4030, 4
      %v4033 = vshll.u32 %v1084, 16
      %v4035 = vrot.slane %v4033, 5
      %v4036 = vsel %vm2795, %v4031, %v4035
      %v4038 = vshrl.u32 %v3985, 16
      %v4040 = vrot.slane %v4038, 4
      %v4041 = vshll.u32 %v3985, 16
      %v4043 = vrot.slane %v4041, 5
      %v4044 = vor.u32 %v4040, %v4043
      %v4045 = vrot.slane %v4044, 4
      %v4046 = vrot.slane %v1372, 5
      %v4047 = vsel %vm2795, %v4045, %v4046
      %v4048 = vrot.slane %v1369, 4
      %v4049 = vor.u32 %v4048, %v4046
      %v4050 = vrot.slane %v4049, 4
      %v4052 = vshll.u32 %v1087, 16
      %v4054 = vrot.slane %v4052, 5
      %v4055 = vsel %vm2795, %v4050, %v4054
      %v4057 = vshrl.u32 %v3986, 16
      %v4059 = vrot.slane %v4057, 4
      %v4060 = vshll.u32 %v3986, 16
      %v4062 = vrot.slane %v4060, 5
      %v4063 = vor.u32 %v4059, %v4062
      %v4064 = vrot.slane %v4063, 4
      %v4065 = vrot.slane %v1400, 5
      %v4066 = vsel %vm2795, %v4064, %v4065
      %v4067 = vrot.slane %v1397, 4
      %v4068 = vor.u32 %v4067, %v4065
      %v4069 = vrot.slane %v4068, 4
      %v4071 = vshll.u32 %v1090, 16
      %v4073 = vrot.slane %v4071, 5
      %v4074 = vsel %vm2795, %v4069, %v4073
      %v4076 = vshrl.u32 %v3987, 16
      %v4078 = vrot.slane %v4076, 4
      %v4079 = vshll.u32 %v3987, 16
      %v4081 = vrot.slane %v4079, 5
      %v4082 = vor.u32 %v4078, %v4081
      %v4083 = vrot.slane %v4082, 4
      %v4084 = vrot.slane %v1428, 5
      %v4085 = vsel %vm2795, %v4083, %v4084
      %v4086 = vrot.slane %v1425, 4
      %v4087 = vor.u32 %v4086, %v4084
      %v4088 = vrot.slane %v4087, 4
      %v4090 = vshll.u32 %v1093, 16
      %v4092 = vrot.slane %v4090, 5
      %v4093 = vsel %vm2795, %v4088, %v4092
      %v4095 = vshrl.u32 %v3988, 16
      %v4097 = vrot.slane %v4095, 4
      %v4098 = vshll.u32 %v3988, 16
      %v4100 = vrot.slane %v4098, 5
      %v4101 = vor.u32 %v4097, %v4100
      %v4102 = vrot.slane %v4101, 4
      %v4103 = vrot.slane %v1456, 5
      %v4104 = vsel %vm2795, %v4102, %v4103
      %v4105 = vrot.slane %v1453, 4
      %v4106 = vor.u32 %v4105, %v4103
      %v4107 = vrot.slane %v4106, 4
      %v4109 = vshll.u32 %v1096, 16
      %v4111 = vrot.slane %v4109, 5
      %v4112 = vsel %vm2795, %v4107, %v4111
      %v4114 = vshrl.u32 %v3989, 16
      %v4116 = vrot.slane %v4114, 4
      %v4117 = vshll.u32 %v3989, 16
      %v4119 = vrot.slane %v4117, 5
      %v4120 = vor.u32 %v4116, %v4119
      %v4121 = vrot.slane %v4120, 4
      %v4122 = vrot.slane %v1484, 5
      %v4123 = vsel %vm2795, %v4121, %v4122
      %v4124 = vrot.slane %v1481, 4
      %v4125 = vor.u32 %v4124, %v4122
      %v4126 = vrot.slane %v4125, 4
      %v4128 = vshll.u32 %v1099, 16
      %v4130 = vrot.slane %v4128, 5
      %v4131 = vsel %vm2795, %v4126, %v4130
      %v4133 = vshrl.u32 %v3990, 16
      %v4135 = vrot.slane %v4133, 4
      %v4136 = vshll.u32 %v3990, 16
      %v4138 = vrot.slane %v4136, 5
      %v4139 = vor.u32 %v4135, %v4138
      %v4140 = vrot.slane %v4139, 4
      %v4141 = vrot.slane %v1512, 5
      %v4142 = vsel %vm2795, %v4140, %v4141
      %v4143 = vrot.slane %v1509, 4
      %v4144 = vor.u32 %v4143, %v4141
      %v4145 = vrot.slane %v4144, 4
      %v4147 = vshll.u32 %v1102, 16
      %v4149 = vrot.slane %v4147, 5
      %v4150 = vsel %vm2795, %v4145, %v4149
      %v4152 = vshrl.u32 %v3991, 16
      %v4154 = vrot.slane %v4152, 4
      %v4155 = vshll.u32 %v3991, 16
      %v4157 = vrot.slane %v4155, 5
      %v4158 = vor.u32 %v4154, %v4157
      %v4159 = vrot.slane %v4158, 4
      %v4160 = vrot.slane %v1540, 5
      %v4161 = vsel %vm2795, %v4159, %v4160
      %v4162 = vrot.slane %v1537, 4
      %v4163 = vor.u32 %v4162, %v4160
      %v4164 = vrot.slane %v4163, 4
      %v4166 = vshll.u32 %v1105, 16
      %v4168 = vrot.slane %v4166, 5
      %v4169 = vsel %vm2795, %v4164, %v4168
      %v4171 = vshrl.u32 %v3992, 16
      %v4173 = vrot.slane %v4171, 4
      %v4174 = vshll.u32 %v3992, 16
      %v4176 = vrot.slane %v4174, 5
      %v4177 = vor.u32 %v4173, %v4176
      %v4178 = vrot.slane %v4177, 4
      %v4179 = vrot.slane %v1568, 5
      %v4180 = vsel %vm2795, %v4178, %v4179
      %v4181 = vrot.slane %v1565, 4
      %v4182 = vor.u32 %v4181, %v4179
      %v4183 = vrot.slane %v4182, 4
      %v4185 = vshll.u32 %v1108, 16
      %v4187 = vrot.slane %v4185, 5
      %v4188 = vsel %vm2795, %v4183, %v4187
      %v4190 = vshrl.u32 %v3993, 16
      %v4192 = vrot.slane %v4190, 4
      %v4193 = vshll.u32 %v3993, 16
      %v4195 = vrot.slane %v4193, 5
      %v4196 = vor.u32 %v4192, %v4195
      %v4197 = vrot.slane %v4196, 4
      %v4198 = vrot.slane %v1596, 5
      %v4199 = vsel %vm2795, %v4197, %v4198
      %v4200 = vrot.slane %v1593, 4
      %v4201 = vor.u32 %v4200, %v4198
      %v4202 = vrot.slane %v4201, 4
      %v4204 = vshll.u32 %v1111, 16
      %v4206 = vrot.slane %v4204, 5
      %v4207 = vsel %vm2795, %v4202, %v4206
      %v4209 = vshrl.u32 %v3994, 16
      %v4211 = vrot.slane %v4209, 4
      %v4212 = vshll.u32 %v3994, 16
      %v4214 = vrot.slane %v4212, 5
      %v4215 = vor.u32 %v4211, %v4214
      %v4216 = vrot.slane %v4215, 4
      %v4217 = vrot.slane %v1624, 5
      %v4218 = vsel %vm2795, %v4216, %v4217
      %v4219 = vrot.slane %v1621, 4
      %v4220 = vor.u32 %v4219, %v4217
      %v4221 = vrot.slane %v4220, 4
      %v4223 = vshll.u32 %v1114, 16
      %v4225 = vrot.slane %v4223, 5
      %v4226 = vsel %vm2795, %v4221, %v4225
      %v4228 = vshrl.u32 %v3995, 16
      %v4230 = vrot.slane %v4228, 4
      %v4231 = vshll.u32 %v3995, 16
      %v4233 = vrot.slane %v4231, 5
      %v4234 = vor.u32 %v4230, %v4233
      %v4235 = vrot.slane %v4234, 4
      %v4236 = vrot.slane %v1652, 5
      %v4237 = vsel %vm2795, %v4235, %v4236
      %v4238 = vrot.slane %v1649, 4
      %v4239 = vor.u32 %v4238, %v4236
      %v4240 = vrot.slane %v4239, 4
      %v4242 = vshll.u32 %v1117, 16
      %v4244 = vrot.slane %v4242, 5
      %v4245 = vsel %vm2795, %v4240, %v4244
      %v4247 = vshrl.u32 %v3996, 16
      %v4249 = vrot.slane %v4247, 4
      %v4250 = vshll.u32 %v3996, 16
      %v4252 = vrot.slane %v4250, 5
      %v4253 = vor.u32 %v4249, %v4252
      %v4254 = vrot.slane %v4253, 4
      %v4255 = vrot.slane %v1680, 5
      %v4256 = vsel %vm2795, %v4254, %v4255
      %v4257 = vrot.slane %v1677, 4
      %v4258 = vor.u32 %v4257, %v4255
      %v4259 = vrot.slane %v4258, 4
      %v4261 = vshll.u32 %v1120, 16
      %v4263 = vrot.slane %v4261, 5
      %v4264 = vsel %vm2795, %v4259, %v4263
      %v4266 = vshrl.u32 %v3997, 16
      %v4268 = vrot.slane %v4266, 4
      %v4269 = vshll.u32 %v3997, 16
      %v4271 = vrot.slane %v4269, 5
      %v4272 = vor.u32 %v4268, %v4271
      %v4273 = vrot.slane %v4272, 4
      %v4274 = vrot.slane %v1708, 5
      %v4275 = vsel %vm2795, %v4273, %v4274
      %v4276 = vrot.slane %v1705, 4
      %v4277 = vor.u32 %v4276, %v4274
      %v4278 = vrot.slane %v4277, 4
      %v4280 = vshll.u32 %v1123, 16
      %v4282 = vrot.slane %v4280, 5
      %v4283 = vsel %vm2795, %v4278, %v4282
      %v4285 = vshrl.u32 %v3998, 16
      %v4287 = vrot.slane %v4285, 4
      %v4288 = vshll.u32 %v3998, 16
      %v4290 = vrot.slane %v4288, 5
      %v4291 = vor.u32 %v4287, %v4290
      %v4292 = vrot.slane %v4291, 4
      %v4293 = vrot.slane %v1736, 5
      %v4294 = vsel %vm2795, %v4292, %v4293
      %v4295 = vrot.slane %v1733, 4
      %v4296 = vor.u32 %v4295, %v4293
      %v4297 = vrot.slane %v4296, 4
      %v4299 = vshll.u32 %v1126, 16
      %v4301 = vrot.slane %v4299, 5
      %v4302 = vsel %vm2795, %v4297, %v4301
      %v4303 = vld [vmem:[%s1078 + $0x8] sm:$0x7]
      %v4304 = vld [vmem:[%s1078 + $0x14] sm:$0x7]
      %v4305 = vld [vmem:[%s1078 + $0x20] sm:$0x7]
      %v4306 = vld [vmem:[%s1078 + $0x2c] sm:$0x7]
      %v4307 = vld [vmem:[%s1078 + $0x38] sm:$0x7]
      %v4308 = vld [vmem:[%s1078 + $0x44] sm:$0x7]
      %v4309 = vld [vmem:[%s1078 + $0x50] sm:$0x7]
      %v4310 = vld [vmem:[%s1078 + $0x5c] sm:$0x7]
      %v4311 = vld [vmem:[%s1078 + $0x68] sm:$0x7]
      %v4312 = vld [vmem:[%s1078 + $0x74] sm:$0x7]
      %v4313 = vld [vmem:[%s1078 + $0x80] sm:$0x7]
      %v4314 = vld [vmem:[%s1078 + $0x8c] sm:$0x7]
      %v4315 = vld [vmem:[%s1078 + $0x98] sm:$0x7]
      %v4316 = vld [vmem:[%s1078 + $0xa4] sm:$0x7]
      %v4317 = vld [vmem:[%s1078 + $0xb0] sm:$0x7]
      %v4318 = vld [vmem:[%s1078 + $0xbc] sm:$0x7]
      %v4320 = vshrl.u32 %v1751, 16
      %v4322 = vrot.slane %v4320, 6
      %v4323 = vshll.u32 %v1751, 16
      %v4325 = vrot.slane %v4323, 7
      %v4326 = vor.u32 %v4322, %v4325
      %v4327 = vrot.slane %v4326, 4
      %v4328 = vrot.slane %v1313, 6
      %v4329 = vrot.slane %v1316, 7
      %v4330 = vor.u32 %v4328, %v4329
      %v4331 = vsel %vm3614, %v4327, %v4330
      %v4332 = vrot.slane %v4330, 4
      %v4334 = vshrl.u32 %v4303, 16
      %v4336 = vrot.slane %v4334, 6
      %v4337 = vshll.u32 %v4303, 16
      %v4339 = vrot.slane %v4337, 7
      %v4340 = vor.u32 %v4336, %v4339
      %v4341 = vsel %vm3614, %v4332, %v4340
      %v4343 = vshrl.u32 %v1752, 16
      %v4345 = vrot.slane %v4343, 6
      %v4346 = vshll.u32 %v1752, 16
      %v4348 = vrot.slane %v4346, 7
      %v4349 = vor.u32 %v4345, %v4348
      %v4350 = vrot.slane %v4349, 4
      %v4351 = vrot.slane %v1341, 6
      %v4352 = vrot.slane %v1344, 7
      %v4353 = vor.u32 %v4351, %v4352
      %v4354 = vsel %vm3614, %v4350, %v4353
      %v4355 = vrot.slane %v4353, 4
      %v4357 = vshrl.u32 %v4304, 16
      %v4359 = vrot.slane %v4357, 6
      %v4360 = vshll.u32 %v4304, 16
      %v4362 = vrot.slane %v4360, 7
      %v4363 = vor.u32 %v4359, %v4362
      %v4364 = vsel %vm3614, %v4355, %v4363
      %v4366 = vshrl.u32 %v1753, 16
      %v4368 = vrot.slane %v4366, 6
      %v4369 = vshll.u32 %v1753, 16
      %v4371 = vrot.slane %v4369, 7
      %v4372 = vor.u32 %v4368, %v4371
      %v4373 = vrot.slane %v4372, 4
      %v4374 = vrot.slane %v1369, 6
      %v4375 = vrot.slane %v1372, 7
      %v4376 = vor.u32 %v4374, %v4375
      %v4377 = vsel %vm3614, %v4373, %v4376
      %v4378 = vrot.slane %v4376, 4
      %v4380 = vshrl.u32 %v4305, 16
      %v4382 = vrot.slane %v4380, 6
      %v4383 = vshll.u32 %v4305, 16
      %v4385 = vrot.slane %v4383, 7
      %v4386 = vor.u32 %v4382, %v4385
      %v4387 = vsel %vm3614, %v4378, %v4386
      %v4389 = vshrl.u32 %v1754, 16
      %v4391 = vrot.slane %v4389, 6
      %v4392 = vshll.u32 %v1754, 16
      %v4394 = vrot.slane %v4392, 7
      %v4395 = vor.u32 %v4391, %v4394
      %v4396 = vrot.slane %v4395, 4
      %v4397 = vrot.slane %v1397, 6
      %v4398 = vrot.slane %v1400, 7
      %v4399 = vor.u32 %v4397, %v4398
      %v4400 = vsel %vm3614, %v4396, %v4399
      %v4401 = vrot.slane %v4399, 4
      %v4403 = vshrl.u32 %v4306, 16
      %v4405 = vrot.slane %v4403, 6
      %v4406 = vshll.u32 %v4306, 16
      %v4408 = vrot.slane %v4406, 7
      %v4409 = vor.u32 %v4405, %v4408
      %v4410 = vsel %vm3614, %v4401, %v4409
      %v4412 = vshrl.u32 %v1755, 16
      %v4414 = vrot.slane %v4412, 6
      %v4415 = vshll.u32 %v1755, 16
      %v4417 = vrot.slane %v4415, 7
      %v4418 = vor.u32 %v4414, %v4417
      %v4419 = vrot.slane %v4418, 4
      %v4420 = vrot.slane %v1425, 6
      %v4421 = vrot.slane %v1428, 7
      %v4422 = vor.u32 %v4420, %v4421
      %v4423 = vsel %vm3614, %v4419, %v4422
      %v4424 = vrot.slane %v4422, 4
      %v4426 = vshrl.u32 %v4307, 16
      %v4428 = vrot.slane %v4426, 6
      %v4429 = vshll.u32 %v4307, 16
      %v4431 = vrot.slane %v4429, 7
      %v4432 = vor.u32 %v4428, %v4431
      %v4433 = vsel %vm3614, %v4424, %v4432
      %v4435 = vshrl.u32 %v1756, 16
      %v4437 = vrot.slane %v4435, 6
      %v4438 = vshll.u32 %v1756, 16
      %v4440 = vrot.slane %v4438, 7
      %v4441 = vor.u32 %v4437, %v4440
      %v4442 = vrot.slane %v4441, 4
      %v4443 = vrot.slane %v1453, 6
      %v4444 = vrot.slane %v1456, 7
      %v4445 = vor.u32 %v4443, %v4444
      %v4446 = vsel %vm3614, %v4442, %v4445
      %v4447 = vrot.slane %v4445, 4
      %v4449 = vshrl.u32 %v4308, 16
      %v4451 = vrot.slane %v4449, 6
      %v4452 = vshll.u32 %v4308, 16
      %v4454 = vrot.slane %v4452, 7
      %v4455 = vor.u32 %v4451, %v4454
      %v4456 = vsel %vm3614, %v4447, %v4455
      %v4458 = vshrl.u32 %v1757, 16
      %v4460 = vrot.slane %v4458, 6
      %v4461 = vshll.u32 %v1757, 16
      %v4463 = vrot.slane %v4461, 7
      %v4464 = vor.u32 %v4460, %v4463
      %v4465 = vrot.slane %v4464, 4
      %v4466 = vrot.slane %v1481, 6
      %v4467 = vrot.slane %v1484, 7
      %v4468 = vor.u32 %v4466, %v4467
      %v4469 = vsel %vm3614, %v4465, %v4468
      %v4470 = vrot.slane %v4468, 4
      %v4472 = vshrl.u32 %v4309, 16
      %v4474 = vrot.slane %v4472, 6
      %v4475 = vshll.u32 %v4309, 16
      %v4477 = vrot.slane %v4475, 7
      %v4478 = vor.u32 %v4474, %v4477
      %v4479 = vsel %vm3614, %v4470, %v4478
      %v4481 = vshrl.u32 %v1758, 16
      %v4483 = vrot.slane %v4481, 6
      %v4484 = vshll.u32 %v1758, 16
      %v4486 = vrot.slane %v4484, 7
      %v4487 = vor.u32 %v4483, %v4486
      %v4488 = vrot.slane %v4487, 4
      %v4489 = vrot.slane %v1509, 6
      %v4490 = vrot.slane %v1512, 7
      %v4491 = vor.u32 %v4489, %v4490
      %v4492 = vsel %vm3614, %v4488, %v4491
      %v4493 = vrot.slane %v4491, 4
      %v4495 = vshrl.u32 %v4310, 16
      %v4497 = vrot.slane %v4495, 6
      %v4498 = vshll.u32 %v4310, 16
      %v4500 = vrot.slane %v4498, 7
      %v4501 = vor.u32 %v4497, %v4500
      %v4502 = vsel %vm3614, %v4493, %v4501
      %v4504 = vshrl.u32 %v1759, 16
      %v4506 = vrot.slane %v4504, 6
      %v4507 = vshll.u32 %v1759, 16
      %v4509 = vrot.slane %v4507, 7
      %v4510 = vor.u32 %v4506, %v4509
      %v4511 = vrot.slane %v4510, 4
      %v4512 = vrot.slane %v1537, 6
      %v4513 = vrot.slane %v1540, 7
      %v4514 = vor.u32 %v4512, %v4513
      %v4515 = vsel %vm3614, %v4511, %v4514
      %v4516 = vrot.slane %v4514, 4
      %v4518 = vshrl.u32 %v4311, 16
      %v4520 = vrot.slane %v4518, 6
      %v4521 = vshll.u32 %v4311, 16
      %v4523 = vrot.slane %v4521, 7
      %v4524 = vor.u32 %v4520, %v4523
      %v4525 = vsel %vm3614, %v4516, %v4524
      %v4527 = vshrl.u32 %v1760, 16
      %v4529 = vrot.slane %v4527, 6
      %v4530 = vshll.u32 %v1760, 16
      %v4532 = vrot.slane %v4530, 7
      %v4533 = vor.u32 %v4529, %v4532
      %v4534 = vrot.slane %v4533, 4
      %v4535 = vrot.slane %v1565, 6
      %v4536 = vrot.slane %v1568, 7
      %v4537 = vor.u32 %v4535, %v4536
      %v4538 = vsel %vm3614, %v4534, %v4537
      %v4539 = vrot.slane %v4537, 4
      %v4541 = vshrl.u32 %v4312, 16
      %v4543 = vrot.slane %v4541, 6
      %v4544 = vshll.u32 %v4312, 16
      %v4546 = vrot.slane %v4544, 7
      %v4547 = vor.u32 %v4543, %v4546
      %v4548 = vsel %vm3614, %v4539, %v4547
      %v4550 = vshrl.u32 %v1761, 16
      %v4552 = vrot.slane %v4550, 6
      %v4553 = vshll.u32 %v1761, 16
      %v4555 = vrot.slane %v4553, 7
      %v4556 = vor.u32 %v4552, %v4555
      %v4557 = vrot.slane %v4556, 4
      %v4558 = vrot.slane %v1593, 6
      %v4559 = vrot.slane %v1596, 7
      %v4560 = vor.u32 %v4558, %v4559
      %v4561 = vsel %vm3614, %v4557, %v4560
      %v4562 = vrot.slane %v4560, 4
      %v4564 = vshrl.u32 %v4313, 16
      %v4566 = vrot.slane %v4564, 6
      %v4567 = vshll.u32 %v4313, 16
      %v4569 = vrot.slane %v4567, 7
      %v4570 = vor.u32 %v4566, %v4569
      %v4571 = vsel %vm3614, %v4562, %v4570
      %v4573 = vshrl.u32 %v1762, 16
      %v4575 = vrot.slane %v4573, 6
      %v4576 = vshll.u32 %v1762, 16
      %v4578 = vrot.slane %v4576, 7
      %v4579 = vor.u32 %v4575, %v4578
      %v4580 = vrot.slane %v4579, 4
      %v4581 = vrot.slane %v1621, 6
      %v4582 = vrot.slane %v1624, 7
      %v4583 = vor.u32 %v4581, %v4582
      %v4584 = vsel %vm3614, %v4580, %v4583
      %v4585 = vrot.slane %v4583, 4
      %v4587 = vshrl.u32 %v4314, 16
      %v4589 = vrot.slane %v4587, 6
      %v4590 = vshll.u32 %v4314, 16
      %v4592 = vrot.slane %v4590, 7
      %v4593 = vor.u32 %v4589, %v4592
      %v4594 = vsel %vm3614, %v4585, %v4593
      %v4596 = vshrl.u32 %v1763, 16
      %v4598 = vrot.slane %v4596, 6
      %v4599 = vshll.u32 %v1763, 16
      %v4601 = vrot.slane %v4599, 7
      %v4602 = vor.u32 %v4598, %v4601
      %v4603 = vrot.slane %v4602, 4
      %v4604 = vrot.slane %v1649, 6
      %v4605 = vrot.slane %v1652, 7
      %v4606 = vor.u32 %v4604, %v4605
      %v4607 = vsel %vm3614, %v4603, %v4606
      %v4608 = vrot.slane %v4606, 4
      %v4610 = vshrl.u32 %v4315, 16
      %v4612 = vrot.slane %v4610, 6
      %v4613 = vshll.u32 %v4315, 16
      %v4615 = vrot.slane %v4613, 7
      %v4616 = vor.u32 %v4612, %v4615
      %v4617 = vsel %vm3614, %v4608, %v4616
      %v4619 = vshrl.u32 %v1764, 16
      %v4621 = vrot.slane %v4619, 6
      %v4622 = vshll.u32 %v1764, 16
      %v4624 = vrot.slane %v4622, 7
      %v4625 = vor.u32 %v4621, %v4624
      %v4626 = vrot.slane %v4625, 4
      %v4627 = vrot.slane %v1677, 6
      %v4628 = vrot.slane %v1680, 7
      %v4629 = vor.u32 %v4627, %v4628
      %v4630 = vsel %vm3614, %v4626, %v4629
      %v4631 = vrot.slane %v4629, 4
      %v4633 = vshrl.u32 %v4316, 16
      %v4635 = vrot.slane %v4633, 6
      %v4636 = vshll.u32 %v4316, 16
      %v4638 = vrot.slane %v4636, 7
      %v4639 = vor.u32 %v4635, %v4638
      %v4640 = vsel %vm3614, %v4631, %v4639
      %v4642 = vshrl.u32 %v1765, 16
      %v4644 = vrot.slane %v4642, 6
      %v4645 = vshll.u32 %v1765, 16
      %v4647 = vrot.slane %v4645, 7
      %v4648 = vor.u32 %v4644, %v4647
      %v4649 = vrot.slane %v4648, 4
      %v4650 = vrot.slane %v1705, 6
      %v4651 = vrot.slane %v1708, 7
      %v4652 = vor.u32 %v4650, %v4651
      %v4653 = vsel %vm3614, %v4649, %v4652
      %v4654 = vrot.slane %v4652, 4
      %v4656 = vshrl.u32 %v4317, 16
      %v4658 = vrot.slane %v4656, 6
      %v4659 = vshll.u32 %v4317, 16
      %v4661 = vrot.slane %v4659, 7
      %v4662 = vor.u32 %v4658, %v4661
      %v4663 = vsel %vm3614, %v4654, %v4662
      %v4665 = vshrl.u32 %v1766, 16
      %v4667 = vrot.slane %v4665, 6
      %v4668 = vshll.u32 %v1766, 16
      %v4670 = vrot.slane %v4668, 7
      %v4671 = vor.u32 %v4667, %v4670
      %v4672 = vrot.slane %v4671, 4
      %v4673 = vrot.slane %v1733, 6
      %v4674 = vrot.slane %v1736, 7
      %v4675 = vor.u32 %v4673, %v4674
      %v4676 = vsel %vm3614, %v4672, %v4675
      %v4677 = vrot.slane %v4675, 4
      %v4679 = vshrl.u32 %v4318, 16
      %v4681 = vrot.slane %v4679, 6
      %v4682 = vshll.u32 %v4318, 16
      %v4684 = vrot.slane %v4682, 7
      %v4685 = vor.u32 %v4681, %v4684
      %v4686 = vsel %vm3614, %v4677, %v4685
      %s4687 = scalar_lea.vmem %s226, 60
      %v4688 = vld [vmem:[%s4687] sm:$0xf]
      %v4689 = vld [vmem:[%s4687 + $0x4] sm:$0xf]
      %v4690 = vld [vmem:[%s4687 + $0x8] sm:$0x1]
      %v4691 = vld [vmem:[%s4687 + $0xc] sm:$0xf]
      %v4692 = vld [vmem:[%s4687 + $0x10] sm:$0xf]
      %v4693 = vld [vmem:[%s4687 + $0x14] sm:$0x1]
      %v4694 = vld [vmem:[%s4687 + $0x18] sm:$0xf]
      %v4695 = vld [vmem:[%s4687 + $0x1c] sm:$0xf]
      %v4696 = vld [vmem:[%s4687 + $0x20] sm:$0x1]
      %v4697 = vld [vmem:[%s4687 + $0x24] sm:$0xf]
      %v4698 = vld [vmem:[%s4687 + $0x28] sm:$0xf]
      %v4699 = vld [vmem:[%s4687 + $0x2c] sm:$0x1]
      %v4700 = vld [vmem:[%s4687 + $0x30] sm:$0xf]
      %v4701 = vld [vmem:[%s4687 + $0x34] sm:$0xf]
      %v4702 = vld [vmem:[%s4687 + $0x38] sm:$0x1]
      %v4703 = vld [vmem:[%s4687 + $0x3c] sm:$0xf]
      %v4704 = vld [vmem:[%s4687 + $0x40] sm:$0xf]
      %v4705 = vld [vmem:[%s4687 + $0x44] sm:$0x1]
      %v4706 = vld [vmem:[%s4687 + $0x48] sm:$0xf]
      %v4707 = vld [vmem:[%s4687 + $0x4c] sm:$0xf]
      %v4708 = vld [vmem:[%s4687 + $0x50] sm:$0x1]
      %v4709 = vld [vmem:[%s4687 + $0x54] sm:$0xf]
      %v4710 = vld [vmem:[%s4687 + $0x58] sm:$0xf]
      %v4711 = vld [vmem:[%s4687 + $0x5c] sm:$0x1]
      %v4712 = vld [vmem:[%s4687 + $0x60] sm:$0xf]
      %v4713 = vld [vmem:[%s4687 + $0x64] sm:$0xf]
      %v4714 = vld [vmem:[%s4687 + $0x68] sm:$0x1]
      %v4715 = vld [vmem:[%s4687 + $0x6c] sm:$0xf]
      %v4716 = vld [vmem:[%s4687 + $0x70] sm:$0xf]
      %v4717 = vld [vmem:[%s4687 + $0x74] sm:$0x1]
      %v4718 = vld [vmem:[%s4687 + $0x78] sm:$0xf]
      %v4719 = vld [vmem:[%s4687 + $0x7c] sm:$0xf]
      %v4720 = vld [vmem:[%s4687 + $0x80] sm:$0x1]
      %v4721 = vld [vmem:[%s4687 + $0x84] sm:$0xf]
      %v4722 = vld [vmem:[%s4687 + $0x88] sm:$0xf]
      %v4723 = vld [vmem:[%s4687 + $0x8c] sm:$0x1]
      %v4724 = vld [vmem:[%s4687 + $0x90] sm:$0xf]
      %v4725 = vld [vmem:[%s4687 + $0x94] sm:$0xf]
      %v4726 = vld [vmem:[%s4687 + $0x98] sm:$0x1]
      %v4727 = vld [vmem:[%s4687 + $0x9c] sm:$0xf]
      %v4728 = vld [vmem:[%s4687 + $0xa0] sm:$0xf]
      %v4729 = vld [vmem:[%s4687 + $0xa4] sm:$0x1]
      %v4730 = vld [vmem:[%s4687 + $0xa8] sm:$0xf]
      %v4731 = vld [vmem:[%s4687 + $0xac] sm:$0xf]
      %v4732 = vld [vmem:[%s4687 + $0xb0] sm:$0x1]
      %v4733 = vld [vmem:[%s4687 + $0xb4] sm:$0xf]
      %v4734 = vld [vmem:[%s4687 + $0xb8] sm:$0xf]
      %v4735 = vld [vmem:[%s4687 + $0xbc] sm:$0x1]
      %v4737 = vshrl.u32 %v4688, 16
      %v4739 = vrot.slane %v4737, 4
      %v4740 = vshll.u32 %v4688, 16
      %v4742 = vrot.slane %v4740, 5
      %v4743 = vor.u32 %v4739, %v4742
      %v4744 = vrot.slane %v4743, 4
      %v4746 = vshll.u32 %v4689, 16
      %v4748 = vrot.slane %v4746, 5
      %v4749 = vsel %vm2795, %v4744, %v4748
      %v4750 = vshrl.u32 %v4689, 16
      %v4752 = vrot.slane %v4750, 4
      %v4753 = vor.u32 %v4752, %v4748
      %v4754 = vrot.slane %v4753, 4
      %v4756 = vshll.u32 %v4690, 16
      %v4758 = vrot.slane %v4756, 5
      %v4759 = vsel %vm2795, %v4754, %v4758
      %v4761 = vshrl.u32 %v4691, 16
      %v4763 = vrot.slane %v4761, 4
      %v4764 = vshll.u32 %v4691, 16
      %v4766 = vrot.slane %v4764, 5
      %v4767 = vor.u32 %v4763, %v4766
      %v4768 = vrot.slane %v4767, 4
      %v4770 = vshll.u32 %v4692, 16
      %v4772 = vrot.slane %v4770, 5
      %v4773 = vsel %vm2795, %v4768, %v4772
      %v4774 = vshrl.u32 %v4692, 16
      %v4776 = vrot.slane %v4774, 4
      %v4777 = vor.u32 %v4776, %v4772
      %v4778 = vrot.slane %v4777, 4
      %v4780 = vshll.u32 %v4693, 16
      %v4782 = vrot.slane %v4780, 5
      %v4783 = vsel %vm2795, %v4778, %v4782
      %v4785 = vshrl.u32 %v4694, 16
      %v4787 = vrot.slane %v4785, 4
      %v4788 = vshll.u32 %v4694, 16
      %v4790 = vrot.slane %v4788, 5
      %v4791 = vor.u32 %v4787, %v4790
      %v4792 = vrot.slane %v4791, 4
      %v4794 = vshll.u32 %v4695, 16
      %v4796 = vrot.slane %v4794, 5
      %v4797 = vsel %vm2795, %v4792, %v4796
      %v4798 = vshrl.u32 %v4695, 16
      %v4800 = vrot.slane %v4798, 4
      %v4801 = vor.u32 %v4800, %v4796
      %v4802 = vrot.slane %v4801, 4
      %v4804 = vshll.u32 %v4696, 16
      %v4806 = vrot.slane %v4804, 5
      %v4807 = vsel %vm2795, %v4802, %v4806
      %v4809 = vshrl.u32 %v4697, 16
      %v4811 = vrot.slane %v4809, 4
      %v4812 = vshll.u32 %v4697, 16
      %v4814 = vrot.slane %v4812, 5
      %v4815 = vor.u32 %v4811, %v4814
      %v4816 = vrot.slane %v4815, 4
      %v4818 = vshll.u32 %v4698, 16
      %v4820 = vrot.slane %v4818, 5
      %v4821 = vsel %vm2795, %v4816, %v4820
      %v4822 = vshrl.u32 %v4698, 16
      %v4824 = vrot.slane %v4822, 4
      %v4825 = vor.u32 %v4824, %v4820
      %v4826 = vrot.slane %v4825, 4
      %v4828 = vshll.u32 %v4699, 16
      %v4830 = vrot.slane %v4828, 5
      %v4831 = vsel %vm2795, %v4826, %v4830
      %v4833 = vshrl.u32 %v4700, 16
      %v4835 = vrot.slane %v4833, 4
      %v4836 = vshll.u32 %v4700, 16
      %v4838 = vrot.slane %v4836, 5
      %v4839 = vor.u32 %v4835, %v4838
      %v4840 = vrot.slane %v4839, 4
      %v4842 = vshll.u32 %v4701, 16
      %v4844 = vrot.slane %v4842, 5
      %v4845 = vsel %vm2795, %v4840, %v4844
      %v4846 = vshrl.u32 %v4701, 16
      %v4848 = vrot.slane %v4846, 4
      %v4849 = vor.u32 %v4848, %v4844
      %v4850 = vrot.slane %v4849, 4
      %v4852 = vshll.u32 %v4702, 16
      %v4854 = vrot.slane %v4852, 5
      %v4855 = vsel %vm2795, %v4850, %v4854
      %v4857 = vshrl.u32 %v4703, 16
      %v4859 = vrot.slane %v4857, 4
      %v4860 = vshll.u32 %v4703, 16
      %v4862 = vrot.slane %v4860, 5
      %v4863 = vor.u32 %v4859, %v4862
      %v4864 = vrot.slane %v4863, 4
      %v4866 = vshll.u32 %v4704, 16
      %v4868 = vrot.slane %v4866, 5
      %v4869 = vsel %vm2795, %v4864, %v4868
      %v4870 = vshrl.u32 %v4704, 16
      %v4872 = vrot.slane %v4870, 4
      %v4873 = vor.u32 %v4872, %v4868
      %v4874 = vrot.slane %v4873, 4
      %v4876 = vshll.u32 %v4705, 16
      %v4878 = vrot.slane %v4876, 5
      %v4879 = vsel %vm2795, %v4874, %v4878
      %v4881 = vshrl.u32 %v4706, 16
      %v4883 = vrot.slane %v4881, 4
      %v4884 = vshll.u32 %v4706, 16
      %v4886 = vrot.slane %v4884, 5
      %v4887 = vor.u32 %v4883, %v4886
      %v4888 = vrot.slane %v4887, 4
      %v4890 = vshll.u32 %v4707, 16
      %v4892 = vrot.slane %v4890, 5
      %v4893 = vsel %vm2795, %v4888, %v4892
      %v4894 = vshrl.u32 %v4707, 16
      %v4896 = vrot.slane %v4894, 4
      %v4897 = vor.u32 %v4896, %v4892
      %v4898 = vrot.slane %v4897, 4
      %v4900 = vshll.u32 %v4708, 16
      %v4902 = vrot.slane %v4900, 5
      %v4903 = vsel %vm2795, %v4898, %v4902
      %v4905 = vshrl.u32 %v4709, 16
      %v4907 = vrot.slane %v4905, 4
      %v4908 = vshll.u32 %v4709, 16
      %v4910 = vrot.slane %v4908, 5
      %v4911 = vor.u32 %v4907, %v4910
      %v4912 = vrot.slane %v4911, 4
      %v4914 = vshll.u32 %v4710, 16
      %v4916 = vrot.slane %v4914, 5
      %v4917 = vsel %vm2795, %v4912, %v4916
      %v4918 = vshrl.u32 %v4710, 16
      %v4920 = vrot.slane %v4918, 4
      %v4921 = vor.u32 %v4920, %v4916
      %v4922 = vrot.slane %v4921, 4
      %v4924 = vshll.u32 %v4711, 16
      %v4926 = vrot.slane %v4924, 5
      %v4927 = vsel %vm2795, %v4922, %v4926
      %v4929 = vshrl.u32 %v4712, 16
      %v4931 = vrot.slane %v4929, 4
      %v4932 = vshll.u32 %v4712, 16
      %v4934 = vrot.slane %v4932, 5
      %v4935 = vor.u32 %v4931, %v4934
      %v4936 = vrot.slane %v4935, 4
      %v4938 = vshll.u32 %v4713, 16
      %v4940 = vrot.slane %v4938, 5
      %v4941 = vsel %vm2795, %v4936, %v4940
      %v4942 = vshrl.u32 %v4713, 16
      %v4944 = vrot.slane %v4942, 4
      %v4945 = vor.u32 %v4944, %v4940
      %v4946 = vrot.slane %v4945, 4
      %v4948 = vshll.u32 %v4714, 16
      %v4950 = vrot.slane %v4948, 5
      %v4951 = vsel %vm2795, %v4946, %v4950
      %v4953 = vshrl.u32 %v4715, 16
      %v4955 = vrot.slane %v4953, 4
      %v4956 = vshll.u32 %v4715, 16
      %v4958 = vrot.slane %v4956, 5
      %v4959 = vor.u32 %v4955, %v4958
      %v4960 = vrot.slane %v4959, 4
      %v4962 = vshll.u32 %v4716, 16
      %v4964 = vrot.slane %v4962, 5
      %v4965 = vsel %vm2795, %v4960, %v4964
      %v4966 = vshrl.u32 %v4716, 16
      %v4968 = vrot.slane %v4966, 4
      %v4969 = vor.u32 %v4968, %v4964
      %v4970 = vrot.slane %v4969, 4
      %v4972 = vshll.u32 %v4717, 16
      %v4974 = vrot.slane %v4972, 5
      %v4975 = vsel %vm2795, %v4970, %v4974
      %v4977 = vshrl.u32 %v4718, 16
      %v4979 = vrot.slane %v4977, 4
      %v4980 = vshll.u32 %v4718, 16
      %v4982 = vrot.slane %v4980, 5
      %v4983 = vor.u32 %v4979, %v4982
      %v4984 = vrot.slane %v4983, 4
      %v4986 = vshll.u32 %v4719, 16
      %v4988 = vrot.slane %v4986, 5
      %v4989 = vsel %vm2795, %v4984, %v4988
      %v4990 = vshrl.u32 %v4719, 16
      %v4992 = vrot.slane %v4990, 4
      %v4993 = vor.u32 %v4992, %v4988
      %v4994 = vrot.slane %v4993, 4
      %v4996 = vshll.u32 %v4720, 16
      %v4998 = vrot.slane %v4996, 5
      %v4999 = vsel %vm2795, %v4994, %v4998
      %v5001 = vshrl.u32 %v4721, 16
      %v5003 = vrot.slane %v5001, 4
      %v5004 = vshll.u32 %v4721, 16
      %v5006 = vrot.slane %v5004, 5
      %v5007 = vor.u32 %v5003, %v5006
      %v5008 = vrot.slane %v5007, 4
      %v5010 = vshll.u32 %v4722, 16
      %v5012 = vrot.slane %v5010, 5
      %v5013 = vsel %vm2795, %v5008, %v5012
      %v5014 = vshrl.u32 %v4722, 16
      %v5016 = vrot.slane %v5014, 4
      %v5017 = vor.u32 %v5016, %v5012
      %v5018 = vrot.slane %v5017, 4
      %v5020 = vshll.u32 %v4723, 16
      %v5022 = vrot.slane %v5020, 5
      %v5023 = vsel %vm2795, %v5018, %v5022
      %v5025 = vshrl.u32 %v4724, 16
      %v5027 = vrot.slane %v5025, 4
      %v5028 = vshll.u32 %v4724, 16
      %v5030 = vrot.slane %v5028, 5
      %v5031 = vor.u32 %v5027, %v5030
      %v5032 = vrot.slane %v5031, 4
      %v5034 = vshll.u32 %v4725, 16
      %v5036 = vrot.slane %v5034, 5
      %v5037 = vsel %vm2795, %v5032, %v5036
      %v5038 = vshrl.u32 %v4725, 16
      %v5040 = vrot.slane %v5038, 4
      %v5041 = vor.u32 %v5040, %v5036
      %v5042 = vrot.slane %v5041, 4
      %v5044 = vshll.u32 %v4726, 16
      %v5046 = vrot.slane %v5044, 5
      %v5047 = vsel %vm2795, %v5042, %v5046
      %v5049 = vshrl.u32 %v4727, 16
      %v5051 = vrot.slane %v5049, 4
      %v5052 = vshll.u32 %v4727, 16
      %v5054 = vrot.slane %v5052, 5
      %v5055 = vor.u32 %v5051, %v5054
      %v5056 = vrot.slane %v5055, 4
      %v5058 = vshll.u32 %v4728, 16
      %v5060 = vrot.slane %v5058, 5
      %v5061 = vsel %vm2795, %v5056, %v5060
      %v5062 = vshrl.u32 %v4728, 16
      %v5064 = vrot.slane %v5062, 4
      %v5065 = vor.u32 %v5064, %v5060
      %v5066 = vrot.slane %v5065, 4
      %v5068 = vshll.u32 %v4729, 16
      %v5070 = vrot.slane %v5068, 5
      %v5071 = vsel %vm2795, %v5066, %v5070
      %v5073 = vshrl.u32 %v4730, 16
      %v5075 = vrot.slane %v5073, 4
      %v5076 = vshll.u32 %v4730, 16
      %v5078 = vrot.slane %v5076, 5
      %v5079 = vor.u32 %v5075, %v5078
      %v5080 = vrot.slane %v5079, 4
      %v5082 = vshll.u32 %v4731, 16
      %v5084 = vrot.slane %v5082, 5
      %v5085 = vsel %vm2795, %v5080, %v5084
      %v5086 = vshrl.u32 %v4731, 16
      %v5088 = vrot.slane %v5086, 4
      %v5089 = vor.u32 %v5088, %v5084
      %v5090 = vrot.slane %v5089, 4
      %v5092 = vshll.u32 %v4732, 16
      %v5094 = vrot.slane %v5092, 5
      %v5095 = vsel %vm2795, %v5090, %v5094
      %v5097 = vshrl.u32 %v4733, 16
      %v5099 = vrot.slane %v5097, 4
      %v5100 = vshll.u32 %v4733, 16
      %v5102 = vrot.slane %v5100, 5
      %v5103 = vor.u32 %v5099, %v5102
      %v5104 = vrot.slane %v5103, 4
      %v5106 = vshll.u32 %v4734, 16
      %v5108 = vrot.slane %v5106, 5
      %v5109 = vsel %vm2795, %v5104, %v5108
      %v5110 = vshrl.u32 %v4734, 16
      %v5112 = vrot.slane %v5110, 4
      %v5113 = vor.u32 %v5112, %v5108
      %v5114 = vrot.slane %v5113, 4
      %v5116 = vshll.u32 %v4735, 16
      %v5118 = vrot.slane %v5116, 5
      %v5119 = vsel %vm2795, %v5114, %v5118
      %v5120 = vld [vmem:[%s4687] sm:$0xe]
      %v5121 = vld [vmem:[%s4687 + $0x8] sm:$0x3]
      %v5122 = vld [vmem:[%s4687 + $0xc] sm:$0xe]
      %v5123 = vld [vmem:[%s4687 + $0x14] sm:$0x3]
      %v5124 = vld [vmem:[%s4687 + $0x18] sm:$0xe]
      %v5125 = vld [vmem:[%s4687 + $0x20] sm:$0x3]
      %v5126 = vld [vmem:[%s4687 + $0x24] sm:$0xe]
      %v5127 = vld [vmem:[%s4687 + $0x2c] sm:$0x3]
      %v5128 = vld [vmem:[%s4687 + $0x30] sm:$0xe]
      %v5129 = vld [vmem:[%s4687 + $0x38] sm:$0x3]
      %v5130 = vld [vmem:[%s4687 + $0x3c] sm:$0xe]
      %v5131 = vld [vmem:[%s4687 + $0x44] sm:$0x3]
      %v5132 = vld [vmem:[%s4687 + $0x48] sm:$0xe]
      %v5133 = vld [vmem:[%s4687 + $0x50] sm:$0x3]
      %v5134 = vld [vmem:[%s4687 + $0x54] sm:$0xe]
      %v5135 = vld [vmem:[%s4687 + $0x5c] sm:$0x3]
      %v5136 = vld [vmem:[%s4687 + $0x60] sm:$0xe]
      %v5137 = vld [vmem:[%s4687 + $0x68] sm:$0x3]
      %v5138 = vld [vmem:[%s4687 + $0x6c] sm:$0xe]
      %v5139 = vld [vmem:[%s4687 + $0x74] sm:$0x3]
      %v5140 = vld [vmem:[%s4687 + $0x78] sm:$0xe]
      %v5141 = vld [vmem:[%s4687 + $0x80] sm:$0x3]
      %v5142 = vld [vmem:[%s4687 + $0x84] sm:$0xe]
      %v5143 = vld [vmem:[%s4687 + $0x8c] sm:$0x3]
      %v5144 = vld [vmem:[%s4687 + $0x90] sm:$0xe]
      %v5145 = vld [vmem:[%s4687 + $0x98] sm:$0x3]
      %v5146 = vld [vmem:[%s4687 + $0x9c] sm:$0xe]
      %v5147 = vld [vmem:[%s4687 + $0xa4] sm:$0x3]
      %v5148 = vld [vmem:[%s4687 + $0xa8] sm:$0xe]
      %v5149 = vld [vmem:[%s4687 + $0xb0] sm:$0x3]
      %v5150 = vld [vmem:[%s4687 + $0xb4] sm:$0xe]
      %v5151 = vld [vmem:[%s4687 + $0xbc] sm:$0x3]
      %v5153 = vshrl.u32 %v5120, 16
      %v5155 = vrot.slane %v5153, 5
      %v5156 = vshll.u32 %v5120, 16
      %v5158 = vrot.slane %v5156, 6
      %v5159 = vor.u32 %v5155, %v5158
      %v5160 = vrot.slane %v5159, 4
      %v5161 = vrot.slane %v4750, 5
      %v5162 = vrot.slane %v4746, 6
      %v5163 = vor.u32 %v5161, %v5162
      %v5164 = vsel %vm466, %v5160, %v5163
      %v5165 = vrot.slane %v5163, 4
      %v5167 = vshrl.u32 %v5121, 16
      %v5169 = vrot.slane %v5167, 5
      %v5170 = vshll.u32 %v5121, 16
      %v5172 = vrot.slane %v5170, 6
      %v5173 = vor.u32 %v5169, %v5172
      %v5174 = vsel %vm466, %v5165, %v5173
      %v5176 = vshrl.u32 %v5122, 16
      %v5178 = vrot.slane %v5176, 5
      %v5179 = vshll.u32 %v5122, 16
      %v5181 = vrot.slane %v5179, 6
      %v5182 = vor.u32 %v5178, %v5181
      %v5183 = vrot.slane %v5182, 4
      %v5184 = vrot.slane %v4774, 5
      %v5185 = vrot.slane %v4770, 6
      %v5186 = vor.u32 %v5184, %v5185
      %v5187 = vsel %vm466, %v5183, %v5186
      %v5188 = vrot.slane %v5186, 4
      %v5190 = vshrl.u32 %v5123, 16
      %v5192 = vrot.slane %v5190, 5
      %v5193 = vshll.u32 %v5123, 16
      %v5195 = vrot.slane %v5193, 6
      %v5196 = vor.u32 %v5192, %v5195
      %v5197 = vsel %vm466, %v5188, %v5196
      %v5199 = vshrl.u32 %v5124, 16
      %v5201 = vrot.slane %v5199, 5
      %v5202 = vshll.u32 %v5124, 16
      %v5204 = vrot.slane %v5202, 6
      %v5205 = vor.u32 %v5201, %v5204
      %v5206 = vrot.slane %v5205, 4
      %v5207 = vrot.slane %v4798, 5
      %v5208 = vrot.slane %v4794, 6
      %v5209 = vor.u32 %v5207, %v5208
      %v5210 = vsel %vm466, %v5206, %v5209
      %v5211 = vrot.slane %v5209, 4
      %v5213 = vshrl.u32 %v5125, 16
      %v5215 = vrot.slane %v5213, 5
      %v5216 = vshll.u32 %v5125, 16
      %v5218 = vrot.slane %v5216, 6
      %v5219 = vor.u32 %v5215, %v5218
      %v5220 = vsel %vm466, %v5211, %v5219
      %v5222 = vshrl.u32 %v5126, 16
      %v5224 = vrot.slane %v5222, 5
      %v5225 = vshll.u32 %v5126, 16
      %v5227 = vrot.slane %v5225, 6
      %v5228 = vor.u32 %v5224, %v5227
      %v5229 = vrot.slane %v5228, 4
      %v5230 = vrot.slane %v4822, 5
      %v5231 = vrot.slane %v4818, 6
      %v5232 = vor.u32 %v5230, %v5231
      %v5233 = vsel %vm466, %v5229, %v5232
      %v5234 = vrot.slane %v5232, 4
      %v5236 = vshrl.u32 %v5127, 16
      %v5238 = vrot.slane %v5236, 5
      %v5239 = vshll.u32 %v5127, 16
      %v5241 = vrot.slane %v5239, 6
      %v5242 = vor.u32 %v5238, %v5241
      %v5243 = vsel %vm466, %v5234, %v5242
      %v5245 = vshrl.u32 %v5128, 16
      %v5247 = vrot.slane %v5245, 5
      %v5248 = vshll.u32 %v5128, 16
      %v5250 = vrot.slane %v5248, 6
      %v5251 = vor.u32 %v5247, %v5250
      %v5252 = vrot.slane %v5251, 4
      %v5253 = vrot.slane %v4846, 5
      %v5254 = vrot.slane %v4842, 6
      %v5255 = vor.u32 %v5253, %v5254
      %v5256 = vsel %vm466, %v5252, %v5255
      %v5257 = vrot.slane %v5255, 4
      %v5259 = vshrl.u32 %v5129, 16
      %v5261 = vrot.slane %v5259, 5
      %v5262 = vshll.u32 %v5129, 16
      %v5264 = vrot.slane %v5262, 6
      %v5265 = vor.u32 %v5261, %v5264
      %v5266 = vsel %vm466, %v5257, %v5265
      %v5268 = vshrl.u32 %v5130, 16
      %v5270 = vrot.slane %v5268, 5
      %v5271 = vshll.u32 %v5130, 16
      %v5273 = vrot.slane %v5271, 6
      %v5274 = vor.u32 %v5270, %v5273
      %v5275 = vrot.slane %v5274, 4
      %v5276 = vrot.slane %v4870, 5
      %v5277 = vrot.slane %v4866, 6
      %v5278 = vor.u32 %v5276, %v5277
      %v5279 = vsel %vm466, %v5275, %v5278
      %v5280 = vrot.slane %v5278, 4
      %v5282 = vshrl.u32 %v5131, 16
      %v5284 = vrot.slane %v5282, 5
      %v5285 = vshll.u32 %v5131, 16
      %v5287 = vrot.slane %v5285, 6
      %v5288 = vor.u32 %v5284, %v5287
      %v5289 = vsel %vm466, %v5280, %v5288
      %v5291 = vshrl.u32 %v5132, 16
      %v5293 = vrot.slane %v5291, 5
      %v5294 = vshll.u32 %v5132, 16
      %v5296 = vrot.slane %v5294, 6
      %v5297 = vor.u32 %v5293, %v5296
      %v5298 = vrot.slane %v5297, 4
      %v5299 = vrot.slane %v4894, 5
      %v5300 = vrot.slane %v4890, 6
      %v5301 = vor.u32 %v5299, %v5300
      %v5302 = vsel %vm466, %v5298, %v5301
      %v5303 = vrot.slane %v5301, 4
      %v5305 = vshrl.u32 %v5133, 16
      %v5307 = vrot.slane %v5305, 5
      %v5308 = vshll.u32 %v5133, 16
      %v5310 = vrot.slane %v5308, 6
      %v5311 = vor.u32 %v5307, %v5310
      %v5312 = vsel %vm466, %v5303, %v5311
      %v5314 = vshrl.u32 %v5134, 16
      %v5316 = vrot.slane %v5314, 5
      %v5317 = vshll.u32 %v5134, 16
      %v5319 = vrot.slane %v5317, 6
      %v5320 = vor.u32 %v5316, %v5319
      %v5321 = vrot.slane %v5320, 4
      %v5322 = vrot.slane %v4918, 5
      %v5323 = vrot.slane %v4914, 6
      %v5324 = vor.u32 %v5322, %v5323
      %v5325 = vsel %vm466, %v5321, %v5324
      %v5326 = vrot.slane %v5324, 4
      %v5328 = vshrl.u32 %v5135, 16
      %v5330 = vrot.slane %v5328, 5
      %v5331 = vshll.u32 %v5135, 16
      %v5333 = vrot.slane %v5331, 6
      %v5334 = vor.u32 %v5330, %v5333
      %v5335 = vsel %vm466, %v5326, %v5334
      %v5337 = vshrl.u32 %v5136, 16
      %v5339 = vrot.slane %v5337, 5
      %v5340 = vshll.u32 %v5136, 16
      %v5342 = vrot.slane %v5340, 6
      %v5343 = vor.u32 %v5339, %v5342
      %v5344 = vrot.slane %v5343, 4
      %v5345 = vrot.slane %v4942, 5
      %v5346 = vrot.slane %v4938, 6
      %v5347 = vor.u32 %v5345, %v5346
      %v5348 = vsel %vm466, %v5344, %v5347
      %v5349 = vrot.slane %v5347, 4
      %v5351 = vshrl.u32 %v5137, 16
      %v5353 = vrot.slane %v5351, 5
      %v5354 = vshll.u32 %v5137, 16
      %v5356 = vrot.slane %v5354, 6
      %v5357 = vor.u32 %v5353, %v5356
      %v5358 = vsel %vm466, %v5349, %v5357
      %v5360 = vshrl.u32 %v5138, 16
      %v5362 = vrot.slane %v5360, 5
      %v5363 = vshll.u32 %v5138, 16
      %v5365 = vrot.slane %v5363, 6
      %v5366 = vor.u32 %v5362, %v5365
      %v5367 = vrot.slane %v5366, 4
      %v5368 = vrot.slane %v4966, 5
      %v5369 = vrot.slane %v4962, 6
      %v5370 = vor.u32 %v5368, %v5369
      %v5371 = vsel %vm466, %v5367, %v5370
      %v5372 = vrot.slane %v5370, 4
      %v5374 = vshrl.u32 %v5139, 16
      %v5376 = vrot.slane %v5374, 5
      %v5377 = vshll.u32 %v5139, 16
      %v5379 = vrot.slane %v5377, 6
      %v5380 = vor.u32 %v5376, %v5379
      %v5381 = vsel %vm466, %v5372, %v5380
      %v5383 = vshrl.u32 %v5140, 16
      %v5385 = vrot.slane %v5383, 5
      %v5386 = vshll.u32 %v5140, 16
      %v5388 = vrot.slane %v5386, 6
      %v5389 = vor.u32 %v5385, %v5388
      %v5390 = vrot.slane %v5389, 4
      %v5391 = vrot.slane %v4990, 5
      %v5392 = vrot.slane %v4986, 6
      %v5393 = vor.u32 %v5391, %v5392
      %v5394 = vsel %vm466, %v5390, %v5393
      %v5395 = vrot.slane %v5393, 4
      %v5397 = vshrl.u32 %v5141, 16
      %v5399 = vrot.slane %v5397, 5
      %v5400 = vshll.u32 %v5141, 16
      %v5402 = vrot.slane %v5400, 6
      %v5403 = vor.u32 %v5399, %v5402
      %v5404 = vsel %vm466, %v5395, %v5403
      %v5406 = vshrl.u32 %v5142, 16
      %v5408 = vrot.slane %v5406, 5
      %v5409 = vshll.u32 %v5142, 16
      %v5411 = vrot.slane %v5409, 6
      %v5412 = vor.u32 %v5408, %v5411
      %v5413 = vrot.slane %v5412, 4
      %v5414 = vrot.slane %v5014, 5
      %v5415 = vrot.slane %v5010, 6
      %v5416 = vor.u32 %v5414, %v5415
      %v5417 = vsel %vm466, %v5413, %v5416
      %v5418 = vrot.slane %v5416, 4
      %v5420 = vshrl.u32 %v5143, 16
      %v5422 = vrot.slane %v5420, 5
      %v5423 = vshll.u32 %v5143, 16
      %v5425 = vrot.slane %v5423, 6
      %v5426 = vor.u32 %v5422, %v5425
      %v5427 = vsel %vm466, %v5418, %v5426
      %v5429 = vshrl.u32 %v5144, 16
      %v5431 = vrot.slane %v5429, 5
      %v5432 = vshll.u32 %v5144, 16
      %v5434 = vrot.slane %v5432, 6
      %v5435 = vor.u32 %v5431, %v5434
      %v5436 = vrot.slane %v5435, 4
      %v5437 = vrot.slane %v5038, 5
      %v5438 = vrot.slane %v5034, 6
      %v5439 = vor.u32 %v5437, %v5438
      %v5440 = vsel %vm466, %v5436, %v5439
      %v5441 = vrot.slane %v5439, 4
      %v5443 = vshrl.u32 %v5145, 16
      %v5445 = vrot.slane %v5443, 5
      %v5446 = vshll.u32 %v5145, 16
      %v5448 = vrot.slane %v5446, 6
      %v5449 = vor.u32 %v5445, %v5448
      %v5450 = vsel %vm466, %v5441, %v5449
      %v5452 = vshrl.u32 %v5146, 16
      %v5454 = vrot.slane %v5452, 5
      %v5455 = vshll.u32 %v5146, 16
      %v5457 = vrot.slane %v5455, 6
      %v5458 = vor.u32 %v5454, %v5457
      %v5459 = vrot.slane %v5458, 4
      %v5460 = vrot.slane %v5062, 5
      %v5461 = vrot.slane %v5058, 6
      %v5462 = vor.u32 %v5460, %v5461
      %v5463 = vsel %vm466, %v5459, %v5462
      %v5464 = vrot.slane %v5462, 4
      %v5466 = vshrl.u32 %v5147, 16
      %v5468 = vrot.slane %v5466, 5
      %v5469 = vshll.u32 %v5147, 16
      %v5471 = vrot.slane %v5469, 6
      %v5472 = vor.u32 %v5468, %v5471
      %v5473 = vsel %vm466, %v5464, %v5472
      %v5475 = vshrl.u32 %v5148, 16
      %v5477 = vrot.slane %v5475, 5
      %v5478 = vshll.u32 %v5148, 16
      %v5480 = vrot.slane %v5478, 6
      %v5481 = vor.u32 %v5477, %v5480
      %v5482 = vrot.slane %v5481, 4
      %v5483 = vrot.slane %v5086, 5
      %v5484 = vrot.slane %v5082, 6
      %v5485 = vor.u32 %v5483, %v5484
      %v5486 = vsel %vm466, %v5482, %v5485
      %v5487 = vrot.slane %v5485, 4
      %v5489 = vshrl.u32 %v5149, 16
      %v5491 = vrot.slane %v5489, 5
      %v5492 = vshll.u32 %v5149, 16
      %v5494 = vrot.slane %v5492, 6
      %v5495 = vor.u32 %v5491, %v5494
      %v5496 = vsel %vm466, %v5487, %v5495
      %v5498 = vshrl.u32 %v5150, 16
      %v5500 = vrot.slane %v5498, 5
      %v5501 = vshll.u32 %v5150, 16
      %v5503 = vrot.slane %v5501, 6
      %v5504 = vor.u32 %v5500, %v5503
      %v5505 = vrot.slane %v5504, 4
      %v5506 = vrot.slane %v5110, 5
      %v5507 = vrot.slane %v5106, 6
      %v5508 = vor.u32 %v5506, %v5507
      %v5509 = vsel %vm466, %v5505, %v5508
      %v5510 = vrot.slane %v5508, 4
      %v5512 = vshrl.u32 %v5151, 16
      %v5514 = vrot.slane %v5512, 5
      %v5515 = vshll.u32 %v5151, 16
      %v5517 = vrot.slane %v5515, 6
      %v5518 = vor.u32 %v5514, %v5517
      %v5519 = vsel %vm466, %v5510, %v5518
      %v5520 = vld [vmem:[%s4687] sm:$0xc]
      %v5521 = vld [vmem:[%s4687 + $0x8] sm:$0x7]
      %v5522 = vld [vmem:[%s4687 + $0xc] sm:$0xc]
      %v5523 = vld [vmem:[%s4687 + $0x14] sm:$0x7]
      %v5524 = vld [vmem:[%s4687 + $0x18] sm:$0xc]
      %v5525 = vld [vmem:[%s4687 + $0x20] sm:$0x7]
      %v5526 = vld [vmem:[%s4687 + $0x24] sm:$0xc]
      %v5527 = vld [vmem:[%s4687 + $0x2c] sm:$0x7]
      %v5528 = vld [vmem:[%s4687 + $0x30] sm:$0xc]
      %v5529 = vld [vmem:[%s4687 + $0x38] sm:$0x7]
      %v5530 = vld [vmem:[%s4687 + $0x3c] sm:$0xc]
      %v5531 = vld [vmem:[%s4687 + $0x44] sm:$0x7]
      %v5532 = vld [vmem:[%s4687 + $0x48] sm:$0xc]
      %v5533 = vld [vmem:[%s4687 + $0x50] sm:$0x7]
      %v5534 = vld [vmem:[%s4687 + $0x54] sm:$0xc]
      %v5535 = vld [vmem:[%s4687 + $0x5c] sm:$0x7]
      %v5536 = vld [vmem:[%s4687 + $0x60] sm:$0xc]
      %v5537 = vld [vmem:[%s4687 + $0x68] sm:$0x7]
      %v5538 = vld [vmem:[%s4687 + $0x6c] sm:$0xc]
      %v5539 = vld [vmem:[%s4687 + $0x74] sm:$0x7]
      %v5540 = vld [vmem:[%s4687 + $0x78] sm:$0xc]
      %v5541 = vld [vmem:[%s4687 + $0x80] sm:$0x7]
      %v5542 = vld [vmem:[%s4687 + $0x84] sm:$0xc]
      %v5543 = vld [vmem:[%s4687 + $0x8c] sm:$0x7]
      %v5544 = vld [vmem:[%s4687 + $0x90] sm:$0xc]
      %v5545 = vld [vmem:[%s4687 + $0x98] sm:$0x7]
      %v5546 = vld [vmem:[%s4687 + $0x9c] sm:$0xc]
      %v5547 = vld [vmem:[%s4687 + $0xa4] sm:$0x7]
      %v5548 = vld [vmem:[%s4687 + $0xa8] sm:$0xc]
      %v5549 = vld [vmem:[%s4687 + $0xb0] sm:$0x7]
      %v5550 = vld [vmem:[%s4687 + $0xb4] sm:$0xc]
      %v5551 = vld [vmem:[%s4687 + $0xbc] sm:$0x7]
      %v5553 = vshrl.u32 %v5520, 16
      %v5555 = vrot.slane %v5553, 6
      %v5556 = vshll.u32 %v5520, 16
      %v5558 = vrot.slane %v5556, 7
      %v5559 = vor.u32 %v5555, %v5558
      %v5560 = vrot.slane %v5559, 4
      %v5561 = vrot.slane %v4750, 6
      %v5562 = vrot.slane %v4746, 7
      %v5563 = vor.u32 %v5561, %v5562
      %v5564 = vsel %vm3614, %v5560, %v5563
      %v5565 = vrot.slane %v5563, 4
      %v5567 = vshrl.u32 %v5521, 16
      %v5569 = vrot.slane %v5567, 6
      %v5570 = vshll.u32 %v5521, 16
      %v5572 = vrot.slane %v5570, 7
      %v5573 = vor.u32 %v5569, %v5572
      %v5574 = vsel %vm3614, %v5565, %v5573
      %v5576 = vshrl.u32 %v5522, 16
      %v5578 = vrot.slane %v5576, 6
      %v5579 = vshll.u32 %v5522, 16
      %v5581 = vrot.slane %v5579, 7
      %v5582 = vor.u32 %v5578, %v5581
      %v5583 = vrot.slane %v5582, 4
      %v5584 = vrot.slane %v4774, 6
      %v5585 = vrot.slane %v4770, 7
      %v5586 = vor.u32 %v5584, %v5585
      %v5587 = vsel %vm3614, %v5583, %v5586
      %v5588 = vrot.slane %v5586, 4
      %v5590 = vshrl.u32 %v5523, 16
      %v5592 = vrot.slane %v5590, 6
      %v5593 = vshll.u32 %v5523, 16
      %v5595 = vrot.slane %v5593, 7
      %v5596 = vor.u32 %v5592, %v5595
      %v5597 = vsel %vm3614, %v5588, %v5596
      %v5599 = vshrl.u32 %v5524, 16
      %v5601 = vrot.slane %v5599, 6
      %v5602 = vshll.u32 %v5524, 16
      %v5604 = vrot.slane %v5602, 7
      %v5605 = vor.u32 %v5601, %v5604
      %v5606 = vrot.slane %v5605, 4
      %v5607 = vrot.slane %v4798, 6
      %v5608 = vrot.slane %v4794, 7
      %v5609 = vor.u32 %v5607, %v5608
      %v5610 = vsel %vm3614, %v5606, %v5609
      %v5611 = vrot.slane %v5609, 4
      %v5613 = vshrl.u32 %v5525, 16
      %v5615 = vrot.slane %v5613, 6
      %v5616 = vshll.u32 %v5525, 16
      %v5618 = vrot.slane %v5616, 7
      %v5619 = vor.u32 %v5615, %v5618
      %v5620 = vsel %vm3614, %v5611, %v5619
      %v5622 = vshrl.u32 %v5526, 16
      %v5624 = vrot.slane %v5622, 6
      %v5625 = vshll.u32 %v5526, 16
      %v5627 = vrot.slane %v5625, 7
      %v5628 = vor.u32 %v5624, %v5627
      %v5629 = vrot.slane %v5628, 4
      %v5630 = vrot.slane %v4822, 6
      %v5631 = vrot.slane %v4818, 7
      %v5632 = vor.u32 %v5630, %v5631
      %v5633 = vsel %vm3614, %v5629, %v5632
      %v5634 = vrot.slane %v5632, 4
      %v5636 = vshrl.u32 %v5527, 16
      %v5638 = vrot.slane %v5636, 6
      %v5639 = vshll.u32 %v5527, 16
      %v5641 = vrot.slane %v5639, 7
      %v5642 = vor.u32 %v5638, %v5641
      %v5643 = vsel %vm3614, %v5634, %v5642
      %v5645 = vshrl.u32 %v5528, 16
      %v5647 = vrot.slane %v5645, 6
      %v5648 = vshll.u32 %v5528, 16
      %v5650 = vrot.slane %v5648, 7
      %v5651 = vor.u32 %v5647, %v5650
      %v5652 = vrot.slane %v5651, 4
      %v5653 = vrot.slane %v4846, 6
      %v5654 = vrot.slane %v4842, 7
      %v5655 = vor.u32 %v5653, %v5654
      %v5656 = vsel %vm3614, %v5652, %v5655
      %v5657 = vrot.slane %v5655, 4
      %v5659 = vshrl.u32 %v5529, 16
      %v5661 = vrot.slane %v5659, 6
      %v5662 = vshll.u32 %v5529, 16
      %v5664 = vrot.slane %v5662, 7
      %v5665 = vor.u32 %v5661, %v5664
      %v5666 = vsel %vm3614, %v5657, %v5665
      %v5668 = vshrl.u32 %v5530, 16
      %v5670 = vrot.slane %v5668, 6
      %v5671 = vshll.u32 %v5530, 16
      %v5673 = vrot.slane %v5671, 7
      %v5674 = vor.u32 %v5670, %v5673
      %v5675 = vrot.slane %v5674, 4
      %v5676 = vrot.slane %v4870, 6
      %v5677 = vrot.slane %v4866, 7
      %v5678 = vor.u32 %v5676, %v5677
      %v5679 = vsel %vm3614, %v5675, %v5678
      %v5680 = vrot.slane %v5678, 4
      %v5682 = vshrl.u32 %v5531, 16
      %v5684 = vrot.slane %v5682, 6
      %v5685 = vshll.u32 %v5531, 16
      %v5687 = vrot.slane %v5685, 7
      %v5688 = vor.u32 %v5684, %v5687
      %v5689 = vsel %vm3614, %v5680, %v5688
      %v5691 = vshrl.u32 %v5532, 16
      %v5693 = vrot.slane %v5691, 6
      %v5694 = vshll.u32 %v5532, 16
      %v5696 = vrot.slane %v5694, 7
      %v5697 = vor.u32 %v5693, %v5696
      %v5698 = vrot.slane %v5697, 4
      %v5699 = vrot.slane %v4894, 6
      %v5700 = vrot.slane %v4890, 7
      %v5701 = vor.u32 %v5699, %v5700
      %v5702 = vsel %vm3614, %v5698, %v5701
      %v5703 = vrot.slane %v5701, 4
      %v5705 = vshrl.u32 %v5533, 16
      %v5707 = vrot.slane %v5705, 6
      %v5708 = vshll.u32 %v5533, 16
      %v5710 = vrot.slane %v5708, 7
      %v5711 = vor.u32 %v5707, %v5710
      %v5712 = vsel %vm3614, %v5703, %v5711
      %v5714 = vshrl.u32 %v5534, 16
      %v5716 = vrot.slane %v5714, 6
      %v5717 = vshll.u32 %v5534, 16
      %v5719 = vrot.slane %v5717, 7
      %v5720 = vor.u32 %v5716, %v5719
      %v5721 = vrot.slane %v5720, 4
      %v5722 = vrot.slane %v4918, 6
      %v5723 = vrot.slane %v4914, 7
      %v5724 = vor.u32 %v5722, %v5723
      %v5725 = vsel %vm3614, %v5721, %v5724
      %v5726 = vrot.slane %v5724, 4
      %v5728 = vshrl.u32 %v5535, 16
      %v5730 = vrot.slane %v5728, 6
      %v5731 = vshll.u32 %v5535, 16
      %v5733 = vrot.slane %v5731, 7
      %v5734 = vor.u32 %v5730, %v5733
      %v5735 = vsel %vm3614, %v5726, %v5734
      %v5737 = vshrl.u32 %v5536, 16
      %v5739 = vrot.slane %v5737, 6
      %v5740 = vshll.u32 %v5536, 16
      %v5742 = vrot.slane %v5740, 7
      %v5743 = vor.u32 %v5739, %v5742
      %v5744 = vrot.slane %v5743, 4
      %v5745 = vrot.slane %v4942, 6
      %v5746 = vrot.slane %v4938, 7
      %v5747 = vor.u32 %v5745, %v5746
      %v5748 = vsel %vm3614, %v5744, %v5747
      %v5749 = vrot.slane %v5747, 4
      %v5751 = vshrl.u32 %v5537, 16
      %v5753 = vrot.slane %v5751, 6
      %v5754 = vshll.u32 %v5537, 16
      %v5756 = vrot.slane %v5754, 7
      %v5757 = vor.u32 %v5753, %v5756
      %v5758 = vsel %vm3614, %v5749, %v5757
      %v5760 = vshrl.u32 %v5538, 16
      %v5762 = vrot.slane %v5760, 6
      %v5763 = vshll.u32 %v5538, 16
      %v5765 = vrot.slane %v5763, 7
      %v5766 = vor.u32 %v5762, %v5765
      %v5767 = vrot.slane %v5766, 4
      %v5768 = vrot.slane %v4966, 6
      %v5769 = vrot.slane %v4962, 7
      %v5770 = vor.u32 %v5768, %v5769
      %v5771 = vsel %vm3614, %v5767, %v5770
      %v5772 = vrot.slane %v5770, 4
      %v5774 = vshrl.u32 %v5539, 16
      %v5776 = vrot.slane %v5774, 6
      %v5777 = vshll.u32 %v5539, 16
      %v5779 = vrot.slane %v5777, 7
      %v5780 = vor.u32 %v5776, %v5779
      %v5781 = vsel %vm3614, %v5772, %v5780
      %v5783 = vshrl.u32 %v5540, 16
      %v5785 = vrot.slane %v5783, 6
      %v5786 = vshll.u32 %v5540, 16
      %v5788 = vrot.slane %v5786, 7
      %v5789 = vor.u32 %v5785, %v5788
      %v5790 = vrot.slane %v5789, 4
      %v5791 = vrot.slane %v4990, 6
      %v5792 = vrot.slane %v4986, 7
      %v5793 = vor.u32 %v5791, %v5792
      %v5794 = vsel %vm3614, %v5790, %v5793
      %v5795 = vrot.slane %v5793, 4
      %v5797 = vshrl.u32 %v5541, 16
      %v5799 = vrot.slane %v5797, 6
      %v5800 = vshll.u32 %v5541, 16
      %v5802 = vrot.slane %v5800, 7
      %v5803 = vor.u32 %v5799, %v5802
      %v5804 = vsel %vm3614, %v5795, %v5803
      %v5806 = vshrl.u32 %v5542, 16
      %v5808 = vrot.slane %v5806, 6
      %v5809 = vshll.u32 %v5542, 16
      %v5811 = vrot.slane %v5809, 7
      %v5812 = vor.u32 %v5808, %v5811
      %v5813 = vrot.slane %v5812, 4
      %v5814 = vrot.slane %v5014, 6
      %v5815 = vrot.slane %v5010, 7
      %v5816 = vor.u32 %v5814, %v5815
      %v5817 = vsel %vm3614, %v5813, %v5816
      %v5818 = vrot.slane %v5816, 4
      %v5820 = vshrl.u32 %v5543, 16
      %v5822 = vrot.slane %v5820, 6
      %v5823 = vshll.u32 %v5543, 16
      %v5825 = vrot.slane %v5823, 7
      %v5826 = vor.u32 %v5822, %v5825
      %v5827 = vsel %vm3614, %v5818, %v5826
      %v5829 = vshrl.u32 %v5544, 16
      %v5831 = vrot.slane %v5829, 6
      %v5832 = vshll.u32 %v5544, 16
      %v5834 = vrot.slane %v5832, 7
      %v5835 = vor.u32 %v5831, %v5834
      %v5836 = vrot.slane %v5835, 4
      %v5837 = vrot.slane %v5038, 6
      %v5838 = vrot.slane %v5034, 7
      %v5839 = vor.u32 %v5837, %v5838
      %v5840 = vsel %vm3614, %v5836, %v5839
      %v5841 = vrot.slane %v5839, 4
      %v5843 = vshrl.u32 %v5545, 16
      %v5845 = vrot.slane %v5843, 6
      %v5846 = vshll.u32 %v5545, 16
      %v5848 = vrot.slane %v5846, 7
      %v5849 = vor.u32 %v5845, %v5848
      %v5850 = vsel %vm3614, %v5841, %v5849
      %v5852 = vshrl.u32 %v5546, 16
      %v5854 = vrot.slane %v5852, 6
      %v5855 = vshll.u32 %v5546, 16
      %v5857 = vrot.slane %v5855, 7
      %v5858 = vor.u32 %v5854, %v5857
      %v5859 = vrot.slane %v5858, 4
      %v5860 = vrot.slane %v5062, 6
      %v5861 = vrot.slane %v5058, 7
      %v5862 = vor.u32 %v5860, %v5861
      %v5863 = vsel %vm3614, %v5859, %v5862
      %v5864 = vrot.slane %v5862, 4
      %v5866 = vshrl.u32 %v5547, 16
      %v5868 = vrot.slane %v5866, 6
      %v5869 = vshll.u32 %v5547, 16
      %v5871 = vrot.slane %v5869, 7
      %v5872 = vor.u32 %v5868, %v5871
      %v5873 = vsel %vm3614, %v5864, %v5872
      %v5875 = vshrl.u32 %v5548, 16
      %v5877 = vrot.slane %v5875, 6
      %v5878 = vshll.u32 %v5548, 16
      %v5880 = vrot.slane %v5878, 7
      %v5881 = vor.u32 %v5877, %v5880
      %v5882 = vrot.slane %v5881, 4
      %v5883 = vrot.slane %v5086, 6
      %v5884 = vrot.slane %v5082, 7
      %v5885 = vor.u32 %v5883, %v5884
      %v5886 = vsel %vm3614, %v5882, %v5885
      %v5887 = vrot.slane %v5885, 4
      %v5889 = vshrl.u32 %v5549, 16
      %v5891 = vrot.slane %v5889, 6
      %v5892 = vshll.u32 %v5549, 16
      %v5894 = vrot.slane %v5892, 7
      %v5895 = vor.u32 %v5891, %v5894
      %v5896 = vsel %vm3614, %v5887, %v5895
      %v5898 = vshrl.u32 %v5550, 16
      %v5900 = vrot.slane %v5898, 6
      %v5901 = vshll.u32 %v5550, 16
      %v5903 = vrot.slane %v5901, 7
      %v5904 = vor.u32 %v5900, %v5903
      %v5905 = vrot.slane %v5904, 4
      %v5906 = vrot.slane %v5110, 6
      %v5907 = vrot.slane %v5106, 7
      %v5908 = vor.u32 %v5906, %v5907
      %v5909 = vsel %vm3614, %v5905, %v5908
      %v5910 = vrot.slane %v5908, 4
      %v5912 = vshrl.u32 %v5551, 16
      %v5914 = vrot.slane %v5912, 6
      %v5915 = vshll.u32 %v5551, 16
      %v5917 = vrot.slane %v5915, 7
      %v5918 = vor.u32 %v5914, %v5917
      %v5919 = vsel %vm3614, %v5910, %v5918
      %v5920 = vld [vmem:[%s226] sm:$0xf]
      %v5921 = vld [vmem:[%s226 + $0x4] sm:$0xf]
      %v5922 = vld [vmem:[%s226 + $0xc] sm:$0xf]
      %v5923 = vld [vmem:[%s226 + $0x10] sm:$0xf]
      %v5924 = vld [vmem:[%s226 + $0x18] sm:$0xf]
      %v5925 = vld [vmem:[%s226 + $0x1c] sm:$0xf]
      %v5926 = vld [vmem:[%s226 + $0x24] sm:$0xf]
      %v5927 = vld [vmem:[%s226 + $0x28] sm:$0xf]
      %v5928 = vld [vmem:[%s226 + $0x30] sm:$0xf]
      %v5929 = vld [vmem:[%s226 + $0x34] sm:$0xf]
      %v5930 = vld [vmem:[%s226 + $0x3c] sm:$0xf]
      %v5931 = vld [vmem:[%s226 + $0x40] sm:$0xf]
      %v5932 = vld [vmem:[%s226 + $0x48] sm:$0xf]
      %v5933 = vld [vmem:[%s226 + $0x4c] sm:$0xf]
      %v5934 = vld [vmem:[%s226 + $0x54] sm:$0xf]
      %v5935 = vld [vmem:[%s226 + $0x58] sm:$0xf]
      %v5936 = vld [vmem:[%s226 + $0x60] sm:$0xf]
      %v5937 = vld [vmem:[%s226 + $0x64] sm:$0xf]
      %v5938 = vld [vmem:[%s226 + $0x6c] sm:$0xf]
      %v5939 = vld [vmem:[%s226 + $0x70] sm:$0xf]
      %v5940 = vld [vmem:[%s226 + $0x78] sm:$0xf]
      %v5941 = vld [vmem:[%s226 + $0x7c] sm:$0xf]
      %v5942 = vld [vmem:[%s226 + $0x84] sm:$0xf]
      %v5943 = vld [vmem:[%s226 + $0x88] sm:$0xf]
      %v5944 = vld [vmem:[%s226 + $0x90] sm:$0xf]
      %v5945 = vld [vmem:[%s226 + $0x94] sm:$0xf]
      %v5946 = vld [vmem:[%s226 + $0x9c] sm:$0xf]
      %v5947 = vld [vmem:[%s226 + $0xa0] sm:$0xf]
      %v5948 = vld [vmem:[%s226 + $0xa8] sm:$0xf]
      %v5949 = vld [vmem:[%s226 + $0xac] sm:$0xf]
      %v5950 = vld [vmem:[%s226 + $0xb4] sm:$0xf]
      %v5951 = vld [vmem:[%s226 + $0xb8] sm:$0xf]
      %v5952 = vld [vmem:[%s226] sm:$0xe]
      %v5953 = vld [vmem:[%s226 + $0x8] sm:$0x3]
      %v5954 = vld [vmem:[%s226 + $0xc] sm:$0xe]
      %v5955 = vld [vmem:[%s226 + $0x14] sm:$0x3]
      %v5956 = vld [vmem:[%s226 + $0x18] sm:$0xe]
      %v5957 = vld [vmem:[%s226 + $0x20] sm:$0x3]
      %v5958 = vld [vmem:[%s226 + $0x24] sm:$0xe]
      %v5959 = vld [vmem:[%s226 + $0x2c] sm:$0x3]
      %v5960 = vld [vmem:[%s226 + $0x30] sm:$0xe]
      %v5961 = vld [vmem:[%s226 + $0x38] sm:$0x3]
      %v5962 = vld [vmem:[%s226 + $0x3c] sm:$0xe]
      %v5963 = vld [vmem:[%s226 + $0x44] sm:$0x3]
      %v5964 = vld [vmem:[%s226 + $0x48] sm:$0xe]
      %v5965 = vld [vmem:[%s226 + $0x50] sm:$0x3]
      %v5966 = vld [vmem:[%s226 + $0x54] sm:$0xe]
      %v5967 = vld [vmem:[%s226 + $0x5c] sm:$0x3]
      %v5968 = vld [vmem:[%s226 + $0x60] sm:$0xe]
      %v5969 = vld [vmem:[%s226 + $0x68] sm:$0x3]
      %v5970 = vld [vmem:[%s226 + $0x6c] sm:$0xe]
      %v5971 = vld [vmem:[%s226 + $0x74] sm:$0x3]
      %v5972 = vld [vmem:[%s226 + $0x78] sm:$0xe]
      %v5973 = vld [vmem:[%s226 + $0x80] sm:$0x3]
      %v5974 = vld [vmem:[%s226 + $0x84] sm:$0xe]
      %v5975 = vld [vmem:[%s226 + $0x8c] sm:$0x3]
      %v5976 = vld [vmem:[%s226 + $0x90] sm:$0xe]
      %v5977 = vld [vmem:[%s226 + $0x98] sm:$0x3]
      %v5978 = vld [vmem:[%s226 + $0x9c] sm:$0xe]
      %v5979 = vld [vmem:[%s226 + $0xa4] sm:$0x3]
      %v5980 = vld [vmem:[%s226 + $0xa8] sm:$0xe]
      %v5981 = vld [vmem:[%s226 + $0xb0] sm:$0x3]
      %v5982 = vld [vmem:[%s226 + $0xb4] sm:$0xe]
      %v5983 = vld [vmem:[%s226 + $0xbc] sm:$0x3]
      %v5985 = vshrl.u32 %v5952, 16
      %v5987 = vrot.slane %v5985, 5
      %v5988 = vshll.u32 %v5952, 16
      %v5990 = vrot.slane %v5988, 6
      %v5991 = vor.u32 %v5987, %v5990
      %v5992 = vrot.slane %v5991, 4
      %v5994 = vshrl.u32 %v5921, 16
      %v5996 = vrot.slane %v5994, 5
      %v5997 = vshll.u32 %v5921, 16
      %v5999 = vrot.slane %v5997, 6
      %v6000 = vor.u32 %v5996, %v5999
      %v6001 = vsel %vm466, %v5992, %v6000
      %v6002 = vrot.slane %v6000, 4
      %v6004 = vshrl.u32 %v5953, 16
      %v6006 = vrot.slane %v6004, 5
      %v6007 = vshll.u32 %v5953, 16
      %v6009 = vrot.slane %v6007, 6
      %v6010 = vor.u32 %v6006, %v6009
      %v6011 = vsel %vm466, %v6002, %v6010
      %v6013 = vshrl.u32 %v5954, 16
      %v6015 = vrot.slane %v6013, 5
      %v6016 = vshll.u32 %v5954, 16
      %v6018 = vrot.slane %v6016, 6
      %v6019 = vor.u32 %v6015, %v6018
      %v6020 = vrot.slane %v6019, 4
      %v6022 = vshrl.u32 %v5923, 16
      %v6024 = vrot.slane %v6022, 5
      %v6025 = vshll.u32 %v5923, 16
      %v6027 = vrot.slane %v6025, 6
      %v6028 = vor.u32 %v6024, %v6027
      %v6029 = vsel %vm466, %v6020, %v6028
      %v6030 = vrot.slane %v6028, 4
      %v6032 = vshrl.u32 %v5955, 16
      %v6034 = vrot.slane %v6032, 5
      %v6035 = vshll.u32 %v5955, 16
      %v6037 = vrot.slane %v6035, 6
      %v6038 = vor.u32 %v6034, %v6037
      %v6039 = vsel %vm466, %v6030, %v6038
      %v6041 = vshrl.u32 %v5956, 16
      %v6043 = vrot.slane %v6041, 5
      %v6044 = vshll.u32 %v5956, 16
      %v6046 = vrot.slane %v6044, 6
      %v6047 = vor.u32 %v6043, %v6046
      %v6048 = vrot.slane %v6047, 4
      %v6050 = vshrl.u32 %v5925, 16
      %v6052 = vrot.slane %v6050, 5
      %v6053 = vshll.u32 %v5925, 16
      %v6055 = vrot.slane %v6053, 6
      %v6056 = vor.u32 %v6052, %v6055
      %v6057 = vsel %vm466, %v6048, %v6056
      %v6058 = vrot.slane %v6056, 4
      %v6060 = vshrl.u32 %v5957, 16
      %v6062 = vrot.slane %v6060, 5
      %v6063 = vshll.u32 %v5957, 16
      %v6065 = vrot.slane %v6063, 6
      %v6066 = vor.u32 %v6062, %v6065
      %v6067 = vsel %vm466, %v6058, %v6066
      %v6069 = vshrl.u32 %v5958, 16
      %v6071 = vrot.slane %v6069, 5
      %v6072 = vshll.u32 %v5958, 16
      %v6074 = vrot.slane %v6072, 6
      %v6075 = vor.u32 %v6071, %v6074
      %v6076 = vrot.slane %v6075, 4
      %v6078 = vshrl.u32 %v5927, 16
      %v6080 = vrot.slane %v6078, 5
      %v6081 = vshll.u32 %v5927, 16
      %v6083 = vrot.slane %v6081, 6
      %v6084 = vor.u32 %v6080, %v6083
      %v6085 = vsel %vm466, %v6076, %v6084
      %v6086 = vrot.slane %v6084, 4
      %v6088 = vshrl.u32 %v5959, 16
      %v6090 = vrot.slane %v6088, 5
      %v6091 = vshll.u32 %v5959, 16
      %v6093 = vrot.slane %v6091, 6
      %v6094 = vor.u32 %v6090, %v6093
      %v6095 = vsel %vm466, %v6086, %v6094
      %v6097 = vshrl.u32 %v5960, 16
      %v6099 = vrot.slane %v6097, 5
      %v6100 = vshll.u32 %v5960, 16
      %v6102 = vrot.slane %v6100, 6
      %v6103 = vor.u32 %v6099, %v6102
      %v6104 = vrot.slane %v6103, 4
      %v6106 = vshrl.u32 %v5929, 16
      %v6108 = vrot.slane %v6106, 5
      %v6109 = vshll.u32 %v5929, 16
      %v6111 = vrot.slane %v6109, 6
      %v6112 = vor.u32 %v6108, %v6111
      %v6113 = vsel %vm466, %v6104, %v6112
      %v6114 = vrot.slane %v6112, 4
      %v6116 = vshrl.u32 %v5961, 16
      %v6118 = vrot.slane %v6116, 5
      %v6119 = vshll.u32 %v5961, 16
      %v6121 = vrot.slane %v6119, 6
      %v6122 = vor.u32 %v6118, %v6121
      %v6123 = vsel %vm466, %v6114, %v6122
      %v6125 = vshrl.u32 %v5962, 16
      %v6127 = vrot.slane %v6125, 5
      %v6128 = vshll.u32 %v5962, 16
      %v6130 = vrot.slane %v6128, 6
      %v6131 = vor.u32 %v6127, %v6130
      %v6132 = vrot.slane %v6131, 4
      %v6134 = vshrl.u32 %v5931, 16
      %v6136 = vrot.slane %v6134, 5
      %v6137 = vshll.u32 %v5931, 16
      %v6139 = vrot.slane %v6137, 6
      %v6140 = vor.u32 %v6136, %v6139
      %v6141 = vsel %vm466, %v6132, %v6140
      %v6142 = vrot.slane %v6140, 4
      %v6144 = vshrl.u32 %v5963, 16
      %v6146 = vrot.slane %v6144, 5
      %v6147 = vshll.u32 %v5963, 16
      %v6149 = vrot.slane %v6147, 6
      %v6150 = vor.u32 %v6146, %v6149
      %v6151 = vsel %vm466, %v6142, %v6150
      %v6153 = vshrl.u32 %v5964, 16
      %v6155 = vrot.slane %v6153, 5
      %v6156 = vshll.u32 %v5964, 16
      %v6158 = vrot.slane %v6156, 6
      %v6159 = vor.u32 %v6155, %v6158
      %v6160 = vrot.slane %v6159, 4
      %v6162 = vshrl.u32 %v5933, 16
      %v6164 = vrot.slane %v6162, 5
      %v6165 = vshll.u32 %v5933, 16
      %v6167 = vrot.slane %v6165, 6
      %v6168 = vor.u32 %v6164, %v6167
      %v6169 = vsel %vm466, %v6160, %v6168
      %v6170 = vrot.slane %v6168, 4
      %v6172 = vshrl.u32 %v5965, 16
      %v6174 = vrot.slane %v6172, 5
      %v6175 = vshll.u32 %v5965, 16
      %v6177 = vrot.slane %v6175, 6
      %v6178 = vor.u32 %v6174, %v6177
      %v6179 = vsel %vm466, %v6170, %v6178
      %v6181 = vshrl.u32 %v5966, 16
      %v6183 = vrot.slane %v6181, 5
      %v6184 = vshll.u32 %v5966, 16
      %v6186 = vrot.slane %v6184, 6
      %v6187 = vor.u32 %v6183, %v6186
      %v6188 = vrot.slane %v6187, 4
      %v6190 = vshrl.u32 %v5935, 16
      %v6192 = vrot.slane %v6190, 5
      %v6193 = vshll.u32 %v5935, 16
      %v6195 = vrot.slane %v6193, 6
      %v6196 = vor.u32 %v6192, %v6195
      %v6197 = vsel %vm466, %v6188, %v6196
      %v6198 = vrot.slane %v6196, 4
      %v6200 = vshrl.u32 %v5967, 16
      %v6202 = vrot.slane %v6200, 5
      %v6203 = vshll.u32 %v5967, 16
      %v6205 = vrot.slane %v6203, 6
      %v6206 = vor.u32 %v6202, %v6205
      %v6207 = vsel %vm466, %v6198, %v6206
      %v6209 = vshrl.u32 %v5968, 16
      %v6211 = vrot.slane %v6209, 5
      %v6212 = vshll.u32 %v5968, 16
      %v6214 = vrot.slane %v6212, 6
      %v6215 = vor.u32 %v6211, %v6214
      %v6216 = vrot.slane %v6215, 4
      %v6218 = vshrl.u32 %v5937, 16
      %v6220 = vrot.slane %v6218, 5
      %v6221 = vshll.u32 %v5937, 16
      %v6223 = vrot.slane %v6221, 6
      %v6224 = vor.u32 %v6220, %v6223
      %v6225 = vsel %vm466, %v6216, %v6224
      %v6226 = vrot.slane %v6224, 4
      %v6228 = vshrl.u32 %v5969, 16
      %v6230 = vrot.slane %v6228, 5
      %v6231 = vshll.u32 %v5969, 16
      %v6233 = vrot.slane %v6231, 6
      %v6234 = vor.u32 %v6230, %v6233
      %v6235 = vsel %vm466, %v6226, %v6234
      %v6237 = vshrl.u32 %v5970, 16
      %v6239 = vrot.slane %v6237, 5
      %v6240 = vshll.u32 %v5970, 16
      %v6242 = vrot.slane %v6240, 6
      %v6243 = vor.u32 %v6239, %v6242
      %v6244 = vrot.slane %v6243, 4
      %v6246 = vshrl.u32 %v5939, 16
      %v6248 = vrot.slane %v6246, 5
      %v6249 = vshll.u32 %v5939, 16
      %v6251 = vrot.slane %v6249, 6
      %v6252 = vor.u32 %v6248, %v6251
      %v6253 = vsel %vm466, %v6244, %v6252
      %v6254 = vrot.slane %v6252, 4
      %v6256 = vshrl.u32 %v5971, 16
      %v6258 = vrot.slane %v6256, 5
      %v6259 = vshll.u32 %v5971, 16
      %v6261 = vrot.slane %v6259, 6
      %v6262 = vor.u32 %v6258, %v6261
      %v6263 = vsel %vm466, %v6254, %v6262
      %v6265 = vshrl.u32 %v5972, 16
      %v6267 = vrot.slane %v6265, 5
      %v6268 = vshll.u32 %v5972, 16
      %v6270 = vrot.slane %v6268, 6
      %v6271 = vor.u32 %v6267, %v6270
      %v6272 = vrot.slane %v6271, 4
      %v6274 = vshrl.u32 %v5941, 16
      %v6276 = vrot.slane %v6274, 5
      %v6277 = vshll.u32 %v5941, 16
      %v6279 = vrot.slane %v6277, 6
      %v6280 = vor.u32 %v6276, %v6279
      %v6281 = vsel %vm466, %v6272, %v6280
      %v6282 = vrot.slane %v6280, 4
      %v6284 = vshrl.u32 %v5973, 16
      %v6286 = vrot.slane %v6284, 5
      %v6287 = vshll.u32 %v5973, 16
      %v6289 = vrot.slane %v6287, 6
      %v6290 = vor.u32 %v6286, %v6289
      %v6291 = vsel %vm466, %v6282, %v6290
      %v6293 = vshrl.u32 %v5974, 16
      %v6295 = vrot.slane %v6293, 5
      %v6296 = vshll.u32 %v5974, 16
      %v6298 = vrot.slane %v6296, 6
      %v6299 = vor.u32 %v6295, %v6298
      %v6300 = vrot.slane %v6299, 4
      %v6302 = vshrl.u32 %v5943, 16
      %v6304 = vrot.slane %v6302, 5
      %v6305 = vshll.u32 %v5943, 16
      %v6307 = vrot.slane %v6305, 6
      %v6308 = vor.u32 %v6304, %v6307
      %v6309 = vsel %vm466, %v6300, %v6308
      %v6310 = vrot.slane %v6308, 4
      %v6312 = vshrl.u32 %v5975, 16
      %v6314 = vrot.slane %v6312, 5
      %v6315 = vshll.u32 %v5975, 16
      %v6317 = vrot.slane %v6315, 6
      %v6318 = vor.u32 %v6314, %v6317
      %v6319 = vsel %vm466, %v6310, %v6318
      %v6321 = vshrl.u32 %v5976, 16
      %v6323 = vrot.slane %v6321, 5
      %v6324 = vshll.u32 %v5976, 16
      %v6326 = vrot.slane %v6324, 6
      %v6327 = vor.u32 %v6323, %v6326
      %v6328 = vrot.slane %v6327, 4
      %v6330 = vshrl.u32 %v5945, 16
      %v6332 = vrot.slane %v6330, 5
      %v6333 = vshll.u32 %v5945, 16
      %v6335 = vrot.slane %v6333, 6
      %v6336 = vor.u32 %v6332, %v6335
      %v6337 = vsel %vm466, %v6328, %v6336
      %v6338 = vrot.slane %v6336, 4
      %v6340 = vshrl.u32 %v5977, 16
      %v6342 = vrot.slane %v6340, 5
      %v6343 = vshll.u32 %v5977, 16
      %v6345 = vrot.slane %v6343, 6
      %v6346 = vor.u32 %v6342, %v6345
      %v6347 = vsel %vm466, %v6338, %v6346
      %v6349 = vshrl.u32 %v5978, 16
      %v6351 = vrot.slane %v6349, 5
      %v6352 = vshll.u32 %v5978, 16
      %v6354 = vrot.slane %v6352, 6
      %v6355 = vor.u32 %v6351, %v6354
      %v6356 = vrot.slane %v6355, 4
      %v6358 = vshrl.u32 %v5947, 16
      %v6360 = vrot.slane %v6358, 5
      %v6361 = vshll.u32 %v5947, 16
      %v6363 = vrot.slane %v6361, 6
      %v6364 = vor.u32 %v6360, %v6363
      %v6365 = vsel %vm466, %v6356, %v6364
      %v6366 = vrot.slane %v6364, 4
      %v6368 = vshrl.u32 %v5979, 16
      %v6370 = vrot.slane %v6368, 5
      %v6371 = vshll.u32 %v5979, 16
      %v6373 = vrot.slane %v6371, 6
      %v6374 = vor.u32 %v6370, %v6373
      %v6375 = vsel %vm466, %v6366, %v6374
      %v6377 = vshrl.u32 %v5980, 16
      %v6379 = vrot.slane %v6377, 5
      %v6380 = vshll.u32 %v5980, 16
      %v6382 = vrot.slane %v6380, 6
      %v6383 = vor.u32 %v6379, %v6382
      %v6384 = vrot.slane %v6383, 4
      %v6386 = vshrl.u32 %v5949, 16
      %v6388 = vrot.slane %v6386, 5
      %v6389 = vshll.u32 %v5949, 16
      %v6391 = vrot.slane %v6389, 6
      %v6392 = vor.u32 %v6388, %v6391
      %v6393 = vsel %vm466, %v6384, %v6392
      %v6394 = vrot.slane %v6392, 4
      %v6396 = vshrl.u32 %v5981, 16
      %v6398 = vrot.slane %v6396, 5
      %v6399 = vshll.u32 %v5981, 16
      %v6401 = vrot.slane %v6399, 6
      %v6402 = vor.u32 %v6398, %v6401
      %v6403 = vsel %vm466, %v6394, %v6402
      %v6405 = vshrl.u32 %v5982, 16
      %v6407 = vrot.slane %v6405, 5
      %v6408 = vshll.u32 %v5982, 16
      %v6410 = vrot.slane %v6408, 6
      %v6411 = vor.u32 %v6407, %v6410
      %v6412 = vrot.slane %v6411, 4
      %v6414 = vshrl.u32 %v5951, 16
      %v6416 = vrot.slane %v6414, 5
      %v6417 = vshll.u32 %v5951, 16
      %v6419 = vrot.slane %v6417, 6
      %v6420 = vor.u32 %v6416, %v6419
      %v6421 = vsel %vm466, %v6412, %v6420
      %v6422 = vrot.slane %v6420, 4
      %v6424 = vshrl.u32 %v5983, 16
      %v6426 = vrot.slane %v6424, 5
      %v6427 = vshll.u32 %v5983, 16
      %v6429 = vrot.slane %v6427, 6
      %v6430 = vor.u32 %v6426, %v6429
      %v6431 = vsel %vm466, %v6422, %v6430
      %v6432 = vld [vmem:[%s226] sm:$0x8]
      %v6433 = vld [vmem:[%s226 + $0x8] sm:$0x7]
      %v6434 = vld [vmem:[%s226 + $0xc] sm:$0x8]
      %v6435 = vld [vmem:[%s226 + $0x14] sm:$0x7]
      %v6436 = vld [vmem:[%s226 + $0x18] sm:$0x8]
      %v6437 = vld [vmem:[%s226 + $0x20] sm:$0x7]
      %v6438 = vld [vmem:[%s226 + $0x24] sm:$0x8]
      %v6439 = vld [vmem:[%s226 + $0x2c] sm:$0x7]
      %v6440 = vld [vmem:[%s226 + $0x30] sm:$0x8]
      %v6441 = vld [vmem:[%s226 + $0x38] sm:$0x7]
      %v6442 = vld [vmem:[%s226 + $0x3c] sm:$0x8]
      %v6443 = vld [vmem:[%s226 + $0x44] sm:$0x7]
      %v6444 = vld [vmem:[%s226 + $0x48] sm:$0x8]
      %v6445 = vld [vmem:[%s226 + $0x50] sm:$0x7]
      %v6446 = vld [vmem:[%s226 + $0x54] sm:$0x8]
      %v6447 = vld [vmem:[%s226 + $0x5c] sm:$0x7]
      %v6448 = vld [vmem:[%s226 + $0x60] sm:$0x8]
      %v6449 = vld [vmem:[%s226 + $0x68] sm:$0x7]
      %v6450 = vld [vmem:[%s226 + $0x6c] sm:$0x8]
      %v6451 = vld [vmem:[%s226 + $0x74] sm:$0x7]
      %v6452 = vld [vmem:[%s226 + $0x78] sm:$0x8]
      %v6453 = vld [vmem:[%s226 + $0x80] sm:$0x7]
      %v6454 = vld [vmem:[%s226 + $0x84] sm:$0x8]
      %v6455 = vld [vmem:[%s226 + $0x8c] sm:$0x7]
      %v6456 = vld [vmem:[%s226 + $0x90] sm:$0x8]
      %v6457 = vld [vmem:[%s226 + $0x98] sm:$0x7]
      %v6458 = vld [vmem:[%s226 + $0x9c] sm:$0x8]
      %v6459 = vld [vmem:[%s226 + $0xa4] sm:$0x7]
      %v6460 = vld [vmem:[%s226 + $0xa8] sm:$0x8]
      %v6461 = vld [vmem:[%s226 + $0xb0] sm:$0x7]
      %v6462 = vld [vmem:[%s226 + $0xb4] sm:$0x8]
      %v6463 = vld [vmem:[%s226 + $0xbc] sm:$0x7]
      %vm6512 = vcmask 1040384
      %vm6513 = vcmask 1044484
      %vm6514 = vmor %vm6512, %vm6513
      %v6515 = vrot.slane %v6432, 7
      %v6516 = vrot.slane %v6515, 4
      %v6517 = vrot.slane %v5921, 7
      %v6518 = vsel %vm6514, %v6516, %v6517
      %v6519 = vrot.slane %v6517, 4
      %v6520 = vrot.slane %v6433, 7
      %v6521 = vsel %vm6514, %v6519, %v6520
      %v6522 = vrot.slane %v6434, 7
      %v6523 = vrot.slane %v6522, 4
      %v6524 = vrot.slane %v5923, 7
      %v6525 = vsel %vm6514, %v6523, %v6524
      %v6526 = vrot.slane %v6524, 4
      %v6527 = vrot.slane %v6435, 7
      %v6528 = vsel %vm6514, %v6526, %v6527
      %v6529 = vrot.slane %v6436, 7
      %v6530 = vrot.slane %v6529, 4
      %v6531 = vrot.slane %v5925, 7
      %v6532 = vsel %vm6514, %v6530, %v6531
      %v6533 = vrot.slane %v6531, 4
      %v6534 = vrot.slane %v6437, 7
      %v6535 = vsel %vm6514, %v6533, %v6534
      %v6536 = vrot.slane %v6438, 7
      %v6537 = vrot.slane %v6536, 4
      %v6538 = vrot.slane %v5927, 7
      %v6539 = vsel %vm6514, %v6537, %v6538
      %v6540 = vrot.slane %v6538, 4
      %v6541 = vrot.slane %v6439, 7
      %v6542 = vsel %vm6514, %v6540, %v6541
      %v6543 = vrot.slane %v6440, 7
      %v6544 = vrot.slane %v6543, 4
      %v6545 = vrot.slane %v5929, 7
      %v6546 = vsel %vm6514, %v6544, %v6545
      %v6547 = vrot.slane %v6545, 4
      %v6548 = vrot.slane %v6441, 7
      %v6549 = vsel %vm6514, %v6547, %v6548
      %v6550 = vrot.slane %v6442, 7
      %v6551 = vrot.slane %v6550, 4
      %v6552 = vrot.slane %v5931, 7
      %v6553 = vsel %vm6514, %v6551, %v6552
      %v6554 = vrot.slane %v6552, 4
      %v6555 = vrot.slane %v6443, 7
      %v6556 = vsel %vm6514, %v6554, %v6555
      %v6557 = vrot.slane %v6444, 7
      %v6558 = vrot.slane %v6557, 4
      %v6559 = vrot.slane %v5933, 7
      %v6560 = vsel %vm6514, %v6558, %v6559
      %v6561 = vrot.slane %v6559, 4
      %v6562 = vrot.slane %v6445, 7
      %v6563 = vsel %vm6514, %v6561, %v6562
      %v6564 = vrot.slane %v6446, 7
      %v6565 = vrot.slane %v6564, 4
      %v6566 = vrot.slane %v5935, 7
      %v6567 = vsel %vm6514, %v6565, %v6566
      %v6568 = vrot.slane %v6566, 4
      %v6569 = vrot.slane %v6447, 7
      %v6570 = vsel %vm6514, %v6568, %v6569
      %v6571 = vrot.slane %v6448, 7
      %v6572 = vrot.slane %v6571, 4
      %v6573 = vrot.slane %v5937, 7
      %v6574 = vsel %vm6514, %v6572, %v6573
      %v6575 = vrot.slane %v6573, 4
      %v6576 = vrot.slane %v6449, 7
      %v6577 = vsel %vm6514, %v6575, %v6576
      %v6578 = vrot.slane %v6450, 7
      %v6579 = vrot.slane %v6578, 4
      %v6580 = vrot.slane %v5939, 7
      %v6581 = vsel %vm6514, %v6579, %v6580
      %v6582 = vrot.slane %v6580, 4
      %v6583 = vrot.slane %v6451, 7
      %v6584 = vsel %vm6514, %v6582, %v6583
      %v6585 = vrot.slane %v6452, 7
      %v6586 = vrot.slane %v6585, 4
      %v6587 = vrot.slane %v5941, 7
      %v6588 = vsel %vm6514, %v6586, %v6587
      %v6589 = vrot.slane %v6587, 4
      %v6590 = vrot.slane %v6453, 7
      %v6591 = vsel %vm6514, %v6589, %v6590
      %v6592 = vrot.slane %v6454, 7
      %v6593 = vrot.slane %v6592, 4
      %v6594 = vrot.slane %v5943, 7
      %v6595 = vsel %vm6514, %v6593, %v6594
      %v6596 = vrot.slane %v6594, 4
      %v6597 = vrot.slane %v6455, 7
      %v6598 = vsel %vm6514, %v6596, %v6597
      %v6599 = vrot.slane %v6456, 7
      %v6600 = vrot.slane %v6599, 4
      %v6601 = vrot.slane %v5945, 7
      %v6602 = vsel %vm6514, %v6600, %v6601
      %v6603 = vrot.slane %v6601, 4
      %v6604 = vrot.slane %v6457, 7
      %v6605 = vsel %vm6514, %v6603, %v6604
      %v6606 = vrot.slane %v6458, 7
      %v6607 = vrot.slane %v6606, 4
      %v6608 = vrot.slane %v5947, 7
      %v6609 = vsel %vm6514, %v6607, %v6608
      %v6610 = vrot.slane %v6608, 4
      %v6611 = vrot.slane %v6459, 7
      %v6612 = vsel %vm6514, %v6610, %v6611
      %v6613 = vrot.slane %v6460, 7
      %v6614 = vrot.slane %v6613, 4
      %v6615 = vrot.slane %v5949, 7
      %v6616 = vsel %vm6514, %v6614, %v6615
      %v6617 = vrot.slane %v6615, 4
      %v6618 = vrot.slane %v6461, 7
      %v6619 = vsel %vm6514, %v6617, %v6618
      %v6620 = vrot.slane %v6462, 7
      %v6621 = vrot.slane %v6620, 4
      %v6622 = vrot.slane %v5951, 7
      %v6623 = vsel %vm6514, %v6621, %v6622
      %v6624 = vrot.slane %v6622, 4
      %v6625 = vrot.slane %v6463, 7
      %v6626 = vsel %vm6514, %v6624, %v6625
      %v6627 = vld [vmem:[%s1078] sm:$0x8]
      %v6628 = vld [vmem:[%s1078 + $0xc] sm:$0x8]
      %v6629 = vld [vmem:[%s1078 + $0x18] sm:$0x8]
      %v6630 = vld [vmem:[%s1078 + $0x24] sm:$0x8]
      %v6631 = vld [vmem:[%s1078 + $0x30] sm:$0x8]
      %v6632 = vld [vmem:[%s1078 + $0x3c] sm:$0x8]
      %v6633 = vld [vmem:[%s1078 + $0x48] sm:$0x8]
      %v6634 = vld [vmem:[%s1078 + $0x54] sm:$0x8]
      %v6635 = vld [vmem:[%s1078 + $0x60] sm:$0x8]
      %v6636 = vld [vmem:[%s1078 + $0x6c] sm:$0x8]
      %v6637 = vld [vmem:[%s1078 + $0x78] sm:$0x8]
      %v6638 = vld [vmem:[%s1078 + $0x84] sm:$0x8]
      %v6639 = vld [vmem:[%s1078 + $0x90] sm:$0x8]
      %v6640 = vld [vmem:[%s1078 + $0x9c] sm:$0x8]
      %v6641 = vld [vmem:[%s1078 + $0xa8] sm:$0x8]
      %v6642 = vld [vmem:[%s1078 + $0xb4] sm:$0x8]
      %v6675 = vrot.slane %v6627, 7
      %v6676 = vrot.slane %v6675, 4
      %v6677 = vrot.slane %v1080, 7
      %v6678 = vsel %vm6514, %v6676, %v6677
      %v6679 = vrot.slane %v6677, 4
      %v6680 = vrot.slane %v4303, 7
      %v6681 = vsel %vm6514, %v6679, %v6680
      %v6682 = vrot.slane %v6628, 7
      %v6683 = vrot.slane %v6682, 4
      %v6684 = vrot.slane %v1083, 7
      %v6685 = vsel %vm6514, %v6683, %v6684
      %v6686 = vrot.slane %v6684, 4
      %v6687 = vrot.slane %v4304, 7
      %v6688 = vsel %vm6514, %v6686, %v6687
      %v6689 = vrot.slane %v6629, 7
      %v6690 = vrot.slane %v6689, 4
      %v6691 = vrot.slane %v1086, 7
      %v6692 = vsel %vm6514, %v6690, %v6691
      %v6693 = vrot.slane %v6691, 4
      %v6694 = vrot.slane %v4305, 7
      %v6695 = vsel %vm6514, %v6693, %v6694
      %v6696 = vrot.slane %v6630, 7
      %v6697 = vrot.slane %v6696, 4
      %v6698 = vrot.slane %v1089, 7
      %v6699 = vsel %vm6514, %v6697, %v6698
      %v6700 = vrot.slane %v6698, 4
      %v6701 = vrot.slane %v4306, 7
      %v6702 = vsel %vm6514, %v6700, %v6701
      %v6703 = vrot.slane %v6631, 7
      %v6704 = vrot.slane %v6703, 4
      %v6705 = vrot.slane %v1092, 7
      %v6706 = vsel %vm6514, %v6704, %v6705
      %v6707 = vrot.slane %v6705, 4
      %v6708 = vrot.slane %v4307, 7
      %v6709 = vsel %vm6514, %v6707, %v6708
      %v6710 = vrot.slane %v6632, 7
      %v6711 = vrot.slane %v6710, 4
      %v6712 = vrot.slane %v1095, 7
      %v6713 = vsel %vm6514, %v6711, %v6712
      %v6714 = vrot.slane %v6712, 4
      %v6715 = vrot.slane %v4308, 7
      %v6716 = vsel %vm6514, %v6714, %v6715
      %v6717 = vrot.slane %v6633, 7
      %v6718 = vrot.slane %v6717, 4
      %v6719 = vrot.slane %v1098, 7
      %v6720 = vsel %vm6514, %v6718, %v6719
      %v6721 = vrot.slane %v6719, 4
      %v6722 = vrot.slane %v4309, 7
      %v6723 = vsel %vm6514, %v6721, %v6722
      %v6724 = vrot.slane %v6634, 7
      %v6725 = vrot.slane %v6724, 4
      %v6726 = vrot.slane %v1101, 7
      %v6727 = vsel %vm6514, %v6725, %v6726
      %v6728 = vrot.slane %v6726, 4
      %v6729 = vrot.slane %v4310, 7
      %v6730 = vsel %vm6514, %v6728, %v6729
      %v6731 = vrot.slane %v6635, 7
      %v6732 = vrot.slane %v6731, 4
      %v6733 = vrot.slane %v1104, 7
      %v6734 = vsel %vm6514, %v6732, %v6733
      %v6735 = vrot.slane %v6733, 4
      %v6736 = vrot.slane %v4311, 7
      %v6737 = vsel %vm6514, %v6735, %v6736
      %v6738 = vrot.slane %v6636, 7
      %v6739 = vrot.slane %v6738, 4
      %v6740 = vrot.slane %v1107, 7
      %v6741 = vsel %vm6514, %v6739, %v6740
      %v6742 = vrot.slane %v6740, 4
      %v6743 = vrot.slane %v4312, 7
      %v6744 = vsel %vm6514, %v6742, %v6743
      %v6745 = vrot.slane %v6637, 7
      %v6746 = vrot.slane %v6745, 4
      %v6747 = vrot.slane %v1110, 7
      %v6748 = vsel %vm6514, %v6746, %v6747
      %v6749 = vrot.slane %v6747, 4
      %v6750 = vrot.slane %v4313, 7
      %v6751 = vsel %vm6514, %v6749, %v6750
      %v6752 = vrot.slane %v6638, 7
      %v6753 = vrot.slane %v6752, 4
      %v6754 = vrot.slane %v1113, 7
      %v6755 = vsel %vm6514, %v6753, %v6754
      %v6756 = vrot.slane %v6754, 4
      %v6757 = vrot.slane %v4314, 7
      %v6758 = vsel %vm6514, %v6756, %v6757
      %v6759 = vrot.slane %v6639, 7
      %v6760 = vrot.slane %v6759, 4
      %v6761 = vrot.slane %v1116, 7
      %v6762 = vsel %vm6514, %v6760, %v6761
      %v6763 = vrot.slane %v6761, 4
      %v6764 = vrot.slane %v4315, 7
      %v6765 = vsel %vm6514, %v6763, %v6764
      %v6766 = vrot.slane %v6640, 7
      %v6767 = vrot.slane %v6766, 4
      %v6768 = vrot.slane %v1119, 7
      %v6769 = vsel %vm6514, %v6767, %v6768
      %v6770 = vrot.slane %v6768, 4
      %v6771 = vrot.slane %v4316, 7
      %v6772 = vsel %vm6514, %v6770, %v6771
      %v6773 = vrot.slane %v6641, 7
      %v6774 = vrot.slane %v6773, 4
      %v6775 = vrot.slane %v1122, 7
      %v6776 = vsel %vm6514, %v6774, %v6775
      %v6777 = vrot.slane %v6775, 4
      %v6778 = vrot.slane %v4317, 7
      %v6779 = vsel %vm6514, %v6777, %v6778
      %v6780 = vrot.slane %v6642, 7
      %v6781 = vrot.slane %v6780, 4
      %v6782 = vrot.slane %v1125, 7
      %v6783 = vsel %vm6514, %v6781, %v6782
      %v6784 = vrot.slane %v6782, 4
      %v6785 = vrot.slane %v4318, 7
      %v6786 = vsel %vm6514, %v6784, %v6785
      %s6787 = scalar_lea.vmem %s226, 72
      %v6788 = vld [vmem:[%s6787] sm:$0xf]
      %v6789 = vld [vmem:[%s6787 + $0x4] sm:$0xf]
      %v6790 = vld [vmem:[%s6787 + $0xc] sm:$0xf]
      %v6791 = vld [vmem:[%s6787 + $0x10] sm:$0xf]
      %v6792 = vld [vmem:[%s6787 + $0x18] sm:$0xf]
      %v6793 = vld [vmem:[%s6787 + $0x1c] sm:$0xf]
      %v6794 = vld [vmem:[%s6787 + $0x24] sm:$0xf]
      %v6795 = vld [vmem:[%s6787 + $0x28] sm:$0xf]
      %v6796 = vld [vmem:[%s6787 + $0x30] sm:$0xf]
      %v6797 = vld [vmem:[%s6787 + $0x34] sm:$0xf]
      %v6798 = vld [vmem:[%s6787 + $0x3c] sm:$0xf]
      %v6799 = vld [vmem:[%s6787 + $0x40] sm:$0xf]
      %v6800 = vld [vmem:[%s6787 + $0x48] sm:$0xf]
      %v6801 = vld [vmem:[%s6787 + $0x4c] sm:$0xf]
      %v6802 = vld [vmem:[%s6787 + $0x54] sm:$0xf]
      %v6803 = vld [vmem:[%s6787 + $0x58] sm:$0xf]
      %v6804 = vld [vmem:[%s6787 + $0x60] sm:$0xf]
      %v6805 = vld [vmem:[%s6787 + $0x64] sm:$0xf]
      %v6806 = vld [vmem:[%s6787 + $0x6c] sm:$0xf]
      %v6807 = vld [vmem:[%s6787 + $0x70] sm:$0xf]
      %v6808 = vld [vmem:[%s6787 + $0x78] sm:$0xf]
      %v6809 = vld [vmem:[%s6787 + $0x7c] sm:$0xf]
      %v6810 = vld [vmem:[%s6787 + $0x84] sm:$0xf]
      %v6811 = vld [vmem:[%s6787 + $0x88] sm:$0xf]
      %v6812 = vld [vmem:[%s6787 + $0x90] sm:$0xf]
      %v6813 = vld [vmem:[%s6787 + $0x94] sm:$0xf]
      %v6814 = vld [vmem:[%s6787 + $0x9c] sm:$0xf]
      %v6815 = vld [vmem:[%s6787 + $0xa0] sm:$0xf]
      %v6816 = vld [vmem:[%s6787 + $0xa8] sm:$0xf]
      %v6817 = vld [vmem:[%s6787 + $0xac] sm:$0xf]
      %v6818 = vld [vmem:[%s6787 + $0xb4] sm:$0xf]
      %v6819 = vld [vmem:[%s6787 + $0xb8] sm:$0xf]
      %v6820 = vld [vmem:[%s6787] sm:$0xe]
      %v6821 = vld [vmem:[%s6787 + $0x8] sm:$0x3]
      %v6822 = vld [vmem:[%s6787 + $0xc] sm:$0xe]
      %v6823 = vld [vmem:[%s6787 + $0x14] sm:$0x3]
      %v6824 = vld [vmem:[%s6787 + $0x18] sm:$0xe]
      %v6825 = vld [vmem:[%s6787 + $0x20] sm:$0x3]
      %v6826 = vld [vmem:[%s6787 + $0x24] sm:$0xe]
      %v6827 = vld [vmem:[%s6787 + $0x2c] sm:$0x3]
      %v6828 = vld [vmem:[%s6787 + $0x30] sm:$0xe]
      %v6829 = vld [vmem:[%s6787 + $0x38] sm:$0x3]
      %v6830 = vld [vmem:[%s6787 + $0x3c] sm:$0xe]
      %v6831 = vld [vmem:[%s6787 + $0x44] sm:$0x3]
      %v6832 = vld [vmem:[%s6787 + $0x48] sm:$0xe]
      %v6833 = vld [vmem:[%s6787 + $0x50] sm:$0x3]
      %v6834 = vld [vmem:[%s6787 + $0x54] sm:$0xe]
      %v6835 = vld [vmem:[%s6787 + $0x5c] sm:$0x3]
      %v6836 = vld [vmem:[%s6787 + $0x60] sm:$0xe]
      %v6837 = vld [vmem:[%s6787 + $0x68] sm:$0x3]
      %v6838 = vld [vmem:[%s6787 + $0x6c] sm:$0xe]
      %v6839 = vld [vmem:[%s6787 + $0x74] sm:$0x3]
      %v6840 = vld [vmem:[%s6787 + $0x78] sm:$0xe]
      %v6841 = vld [vmem:[%s6787 + $0x80] sm:$0x3]
      %v6842 = vld [vmem:[%s6787 + $0x84] sm:$0xe]
      %v6843 = vld [vmem:[%s6787 + $0x8c] sm:$0x3]
      %v6844 = vld [vmem:[%s6787 + $0x90] sm:$0xe]
      %v6845 = vld [vmem:[%s6787 + $0x98] sm:$0x3]
      %v6846 = vld [vmem:[%s6787 + $0x9c] sm:$0xe]
      %v6847 = vld [vmem:[%s6787 + $0xa4] sm:$0x3]
      %v6848 = vld [vmem:[%s6787 + $0xa8] sm:$0xe]
      %v6849 = vld [vmem:[%s6787 + $0xb0] sm:$0x3]
      %v6850 = vld [vmem:[%s6787 + $0xb4] sm:$0xe]
      %v6851 = vld [vmem:[%s6787 + $0xbc] sm:$0x3]
      %v6853 = vshrl.u32 %v6820, 16
      %v6855 = vrot.slane %v6853, 5
      %v6856 = vshll.u32 %v6820, 16
      %v6858 = vrot.slane %v6856, 6
      %v6859 = vor.u32 %v6855, %v6858
      %v6860 = vrot.slane %v6859, 4
      %v6862 = vshrl.u32 %v6789, 16
      %v6864 = vrot.slane %v6862, 5
      %v6865 = vshll.u32 %v6789, 16
      %v6867 = vrot.slane %v6865, 6
      %v6868 = vor.u32 %v6864, %v6867
      %v6869 = vsel %vm466, %v6860, %v6868
      %v6870 = vrot.slane %v6868, 4
      %v6872 = vshrl.u32 %v6821, 16
      %v6874 = vrot.slane %v6872, 5
      %v6875 = vshll.u32 %v6821, 16
      %v6877 = vrot.slane %v6875, 6
      %v6878 = vor.u32 %v6874, %v6877
      %v6879 = vsel %vm466, %v6870, %v6878
      %v6881 = vshrl.u32 %v6822, 16
      %v6883 = vrot.slane %v6881, 5
      %v6884 = vshll.u32 %v6822, 16
      %v6886 = vrot.slane %v6884, 6
      %v6887 = vor.u32 %v6883, %v6886
      %v6888 = vrot.slane %v6887, 4
      %v6890 = vshrl.u32 %v6791, 16
      %v6892 = vrot.slane %v6890, 5
      %v6893 = vshll.u32 %v6791, 16
      %v6895 = vrot.slane %v6893, 6
      %v6896 = vor.u32 %v6892, %v6895
      %v6897 = vsel %vm466, %v6888, %v6896
      %v6898 = vrot.slane %v6896, 4
      %v6900 = vshrl.u32 %v6823, 16
      %v6902 = vrot.slane %v6900, 5
      %v6903 = vshll.u32 %v6823, 16
      %v6905 = vrot.slane %v6903, 6
      %v6906 = vor.u32 %v6902, %v6905
      %v6907 = vsel %vm466, %v6898, %v6906
      %v6909 = vshrl.u32 %v6824, 16
      %v6911 = vrot.slane %v6909, 5
      %v6912 = vshll.u32 %v6824, 16
      %v6914 = vrot.slane %v6912, 6
      %v6915 = vor.u32 %v6911, %v6914
      %v6916 = vrot.slane %v6915, 4
      %v6918 = vshrl.u32 %v6793, 16
      %v6920 = vrot.slane %v6918, 5
      %v6921 = vshll.u32 %v6793, 16
      %v6923 = vrot.slane %v6921, 6
      %v6924 = vor.u32 %v6920, %v6923
      %v6925 = vsel %vm466, %v6916, %v6924
      %v6926 = vrot.slane %v6924, 4
      %v6928 = vshrl.u32 %v6825, 16
      %v6930 = vrot.slane %v6928, 5
      %v6931 = vshll.u32 %v6825, 16
      %v6933 = vrot.slane %v6931, 6
      %v6934 = vor.u32 %v6930, %v6933
      %v6935 = vsel %vm466, %v6926, %v6934
      %v6937 = vshrl.u32 %v6826, 16
      %v6939 = vrot.slane %v6937, 5
      %v6940 = vshll.u32 %v6826, 16
      %v6942 = vrot.slane %v6940, 6
      %v6943 = vor.u32 %v6939, %v6942
      %v6944 = vrot.slane %v6943, 4
      %v6946 = vshrl.u32 %v6795, 16
      %v6948 = vrot.slane %v6946, 5
      %v6949 = vshll.u32 %v6795, 16
      %v6951 = vrot.slane %v6949, 6
      %v6952 = vor.u32 %v6948, %v6951
      %v6953 = vsel %vm466, %v6944, %v6952
      %v6954 = vrot.slane %v6952, 4
      %v6956 = vshrl.u32 %v6827, 16
      %v6958 = vrot.slane %v6956, 5
      %v6959 = vshll.u32 %v6827, 16
      %v6961 = vrot.slane %v6959, 6
      %v6962 = vor.u32 %v6958, %v6961
      %v6963 = vsel %vm466, %v6954, %v6962
      %v6965 = vshrl.u32 %v6828, 16
      %v6967 = vrot.slane %v6965, 5
      %v6968 = vshll.u32 %v6828, 16
      %v6970 = vrot.slane %v6968, 6
      %v6971 = vor.u32 %v6967, %v6970
      %v6972 = vrot.slane %v6971, 4
      %v6974 = vshrl.u32 %v6797, 16
      %v6976 = vrot.slane %v6974, 5
      %v6977 = vshll.u32 %v6797, 16
      %v6979 = vrot.slane %v6977, 6
      %v6980 = vor.u32 %v6976, %v6979
      %v6981 = vsel %vm466, %v6972, %v6980
      %v6982 = vrot.slane %v6980, 4
      %v6984 = vshrl.u32 %v6829, 16
      %v6986 = vrot.slane %v6984, 5
      %v6987 = vshll.u32 %v6829, 16
      %v6989 = vrot.slane %v6987, 6
      %v6990 = vor.u32 %v6986, %v6989
      %v6991 = vsel %vm466, %v6982, %v6990
      %v6993 = vshrl.u32 %v6830, 16
      %v6995 = vrot.slane %v6993, 5
      %v6996 = vshll.u32 %v6830, 16
      %v6998 = vrot.slane %v6996, 6
      %v6999 = vor.u32 %v6995, %v6998
      %v7000 = vrot.slane %v6999, 4
      %v7002 = vshrl.u32 %v6799, 16
      %v7004 = vrot.slane %v7002, 5
      %v7005 = vshll.u32 %v6799, 16
      %v7007 = vrot.slane %v7005, 6
      %v7008 = vor.u32 %v7004, %v7007
      %v7009 = vsel %vm466, %v7000, %v7008
      %v7010 = vrot.slane %v7008, 4
      %v7012 = vshrl.u32 %v6831, 16
      %v7014 = vrot.slane %v7012, 5
      %v7015 = vshll.u32 %v6831, 16
      %v7017 = vrot.slane %v7015, 6
      %v7018 = vor.u32 %v7014, %v7017
      %v7019 = vsel %vm466, %v7010, %v7018
      %v7021 = vshrl.u32 %v6832, 16
      %v7023 = vrot.slane %v7021, 5
      %v7024 = vshll.u32 %v6832, 16
      %v7026 = vrot.slane %v7024, 6
      %v7027 = vor.u32 %v7023, %v7026
      %v7028 = vrot.slane %v7027, 4
      %v7030 = vshrl.u32 %v6801, 16
      %v7032 = vrot.slane %v7030, 5
      %v7033 = vshll.u32 %v6801, 16
      %v7035 = vrot.slane %v7033, 6
      %v7036 = vor.u32 %v7032, %v7035
      %v7037 = vsel %vm466, %v7028, %v7036
      %v7038 = vrot.slane %v7036, 4
      %v7040 = vshrl.u32 %v6833, 16
      %v7042 = vrot.slane %v7040, 5
      %v7043 = vshll.u32 %v6833, 16
      %v7045 = vrot.slane %v7043, 6
      %v7046 = vor.u32 %v7042, %v7045
      %v7047 = vsel %vm466, %v7038, %v7046
      %v7049 = vshrl.u32 %v6834, 16
      %v7051 = vrot.slane %v7049, 5
      %v7052 = vshll.u32 %v6834, 16
      %v7054 = vrot.slane %v7052, 6
      %v7055 = vor.u32 %v7051, %v7054
      %v7056 = vrot.slane %v7055, 4
      %v7058 = vshrl.u32 %v6803, 16
      %v7060 = vrot.slane %v7058, 5
      %v7061 = vshll.u32 %v6803, 16
      %v7063 = vrot.slane %v7061, 6
      %v7064 = vor.u32 %v7060, %v7063
      %v7065 = vsel %vm466, %v7056, %v7064
      %v7066 = vrot.slane %v7064, 4
      %v7068 = vshrl.u32 %v6835, 16
      %v7070 = vrot.slane %v7068, 5
      %v7071 = vshll.u32 %v6835, 16
      %v7073 = vrot.slane %v7071, 6
      %v7074 = vor.u32 %v7070, %v7073
      %v7075 = vsel %vm466, %v7066, %v7074
      %v7077 = vshrl.u32 %v6836, 16
      %v7079 = vrot.slane %v7077, 5
      %v7080 = vshll.u32 %v6836, 16
      %v7082 = vrot.slane %v7080, 6
      %v7083 = vor.u32 %v7079, %v7082
      %v7084 = vrot.slane %v7083, 4
      %v7086 = vshrl.u32 %v6805, 16
      %v7088 = vrot.slane %v7086, 5
      %v7089 = vshll.u32 %v6805, 16
      %v7091 = vrot.slane %v7089, 6
      %v7092 = vor.u32 %v7088, %v7091
      %v7093 = vsel %vm466, %v7084, %v7092
      %v7094 = vrot.slane %v7092, 4
      %v7096 = vshrl.u32 %v6837, 16
      %v7098 = vrot.slane %v7096, 5
      %v7099 = vshll.u32 %v6837, 16
      %v7101 = vrot.slane %v7099, 6
      %v7102 = vor.u32 %v7098, %v7101
      %v7103 = vsel %vm466, %v7094, %v7102
      %v7105 = vshrl.u32 %v6838, 16
      %v7107 = vrot.slane %v7105, 5
      %v7108 = vshll.u32 %v6838, 16
      %v7110 = vrot.slane %v7108, 6
      %v7111 = vor.u32 %v7107, %v7110
      %v7112 = vrot.slane %v7111, 4
      %v7114 = vshrl.u32 %v6807, 16
      %v7116 = vrot.slane %v7114, 5
      %v7117 = vshll.u32 %v6807, 16
      %v7119 = vrot.slane %v7117, 6
      %v7120 = vor.u32 %v7116, %v7119
      %v7121 = vsel %vm466, %v7112, %v7120
      %v7122 = vrot.slane %v7120, 4
      %v7124 = vshrl.u32 %v6839, 16
      %v7126 = vrot.slane %v7124, 5
      %v7127 = vshll.u32 %v6839, 16
      %v7129 = vrot.slane %v7127, 6
      %v7130 = vor.u32 %v7126, %v7129
      %v7131 = vsel %vm466, %v7122, %v7130
      %v7133 = vshrl.u32 %v6840, 16
      %v7135 = vrot.slane %v7133, 5
      %v7136 = vshll.u32 %v6840, 16
      %v7138 = vrot.slane %v7136, 6
      %v7139 = vor.u32 %v7135, %v7138
      %v7140 = vrot.slane %v7139, 4
      %v7142 = vshrl.u32 %v6809, 16
      %v7144 = vrot.slane %v7142, 5
      %v7145 = vshll.u32 %v6809, 16
      %v7147 = vrot.slane %v7145, 6
      %v7148 = vor.u32 %v7144, %v7147
      %v7149 = vsel %vm466, %v7140, %v7148
      %v7150 = vrot.slane %v7148, 4
      %v7152 = vshrl.u32 %v6841, 16
      %v7154 = vrot.slane %v7152, 5
      %v7155 = vshll.u32 %v6841, 16
      %v7157 = vrot.slane %v7155, 6
      %v7158 = vor.u32 %v7154, %v7157
      %v7159 = vsel %vm466, %v7150, %v7158
      %v7161 = vshrl.u32 %v6842, 16
      %v7163 = vrot.slane %v7161, 5
      %v7164 = vshll.u32 %v6842, 16
      %v7166 = vrot.slane %v7164, 6
      %v7167 = vor.u32 %v7163, %v7166
      %v7168 = vrot.slane %v7167, 4
      %v7170 = vshrl.u32 %v6811, 16
      %v7172 = vrot.slane %v7170, 5
      %v7173 = vshll.u32 %v6811, 16
      %v7175 = vrot.slane %v7173, 6
      %v7176 = vor.u32 %v7172, %v7175
      %v7177 = vsel %vm466, %v7168, %v7176
      %v7178 = vrot.slane %v7176, 4
      %v7180 = vshrl.u32 %v6843, 16
      %v7182 = vrot.slane %v7180, 5
      %v7183 = vshll.u32 %v6843, 16
      %v7185 = vrot.slane %v7183, 6
      %v7186 = vor.u32 %v7182, %v7185
      %v7187 = vsel %vm466, %v7178, %v7186
      %v7189 = vshrl.u32 %v6844, 16
      %v7191 = vrot.slane %v7189, 5
      %v7192 = vshll.u32 %v6844, 16
      %v7194 = vrot.slane %v7192, 6
      %v7195 = vor.u32 %v7191, %v7194
      %v7196 = vrot.slane %v7195, 4
      %v7198 = vshrl.u32 %v6813, 16
      %v7200 = vrot.slane %v7198, 5
      %v7201 = vshll.u32 %v6813, 16
      %v7203 = vrot.slane %v7201, 6
      %v7204 = vor.u32 %v7200, %v7203
      %v7205 = vsel %vm466, %v7196, %v7204
      %v7206 = vrot.slane %v7204, 4
      %v7208 = vshrl.u32 %v6845, 16
      %v7210 = vrot.slane %v7208, 5
      %v7211 = vshll.u32 %v6845, 16
      %v7213 = vrot.slane %v7211, 6
      %v7214 = vor.u32 %v7210, %v7213
      %v7215 = vsel %vm466, %v7206, %v7214
      %v7217 = vshrl.u32 %v6846, 16
      %v7219 = vrot.slane %v7217, 5
      %v7220 = vshll.u32 %v6846, 16
      %v7222 = vrot.slane %v7220, 6
      %v7223 = vor.u32 %v7219, %v7222
      %v7224 = vrot.slane %v7223, 4
      %v7226 = vshrl.u32 %v6815, 16
      %v7228 = vrot.slane %v7226, 5
      %v7229 = vshll.u32 %v6815, 16
      %v7231 = vrot.slane %v7229, 6
      %v7232 = vor.u32 %v7228, %v7231
      %v7233 = vsel %vm466, %v7224, %v7232
      %v7234 = vrot.slane %v7232, 4
      %v7236 = vshrl.u32 %v6847, 16
      %v7238 = vrot.slane %v7236, 5
      %v7239 = vshll.u32 %v6847, 16
      %v7241 = vrot.slane %v7239, 6
      %v7242 = vor.u32 %v7238, %v7241
      %v7243 = vsel %vm466, %v7234, %v7242
      %v7245 = vshrl.u32 %v6848, 16
      %v7247 = vrot.slane %v7245, 5
      %v7248 = vshll.u32 %v6848, 16
      %v7250 = vrot.slane %v7248, 6
      %v7251 = vor.u32 %v7247, %v7250
      %v7252 = vrot.slane %v7251, 4
      %v7254 = vshrl.u32 %v6817, 16
      %v7256 = vrot.slane %v7254, 5
      %v7257 = vshll.u32 %v6817, 16
      %v7259 = vrot.slane %v7257, 6
      %v7260 = vor.u32 %v7256, %v7259
      %v7261 = vsel %vm466, %v7252, %v7260
      %v7262 = vrot.slane %v7260, 4
      %v7264 = vshrl.u32 %v6849, 16
      %v7266 = vrot.slane %v7264, 5
      %v7267 = vshll.u32 %v6849, 16
      %v7269 = vrot.slane %v7267, 6
      %v7270 = vor.u32 %v7266, %v7269
      %v7271 = vsel %vm466, %v7262, %v7270
      %v7273 = vshrl.u32 %v6850, 16
      %v7275 = vrot.slane %v7273, 5
      %v7276 = vshll.u32 %v6850, 16
      %v7278 = vrot.slane %v7276, 6
      %v7279 = vor.u32 %v7275, %v7278
      %v7280 = vrot.slane %v7279, 4
      %v7282 = vshrl.u32 %v6819, 16
      %v7284 = vrot.slane %v7282, 5
      %v7285 = vshll.u32 %v6819, 16
      %v7287 = vrot.slane %v7285, 6
      %v7288 = vor.u32 %v7284, %v7287
      %v7289 = vsel %vm466, %v7280, %v7288
      %v7290 = vrot.slane %v7288, 4
      %v7292 = vshrl.u32 %v6851, 16
      %v7294 = vrot.slane %v7292, 5
      %v7295 = vshll.u32 %v6851, 16
      %v7297 = vrot.slane %v7295, 6
      %v7298 = vor.u32 %v7294, %v7297
      %v7299 = vsel %vm466, %v7290, %v7298
      %v7300 = vld [vmem:[%s6787] sm:$0x8]
      %v7301 = vld [vmem:[%s6787 + $0x8] sm:$0x7]
      %v7302 = vld [vmem:[%s6787 + $0xc] sm:$0x8]
      %v7303 = vld [vmem:[%s6787 + $0x14] sm:$0x7]
      %v7304 = vld [vmem:[%s6787 + $0x18] sm:$0x8]
      %v7305 = vld [vmem:[%s6787 + $0x20] sm:$0x7]
      %v7306 = vld [vmem:[%s6787 + $0x24] sm:$0x8]
      %v7307 = vld [vmem:[%s6787 + $0x2c] sm:$0x7]
      %v7308 = vld [vmem:[%s6787 + $0x30] sm:$0x8]
      %v7309 = vld [vmem:[%s6787 + $0x38] sm:$0x7]
      %v7310 = vld [vmem:[%s6787 + $0x3c] sm:$0x8]
      %v7311 = vld [vmem:[%s6787 + $0x44] sm:$0x7]
      %v7312 = vld [vmem:[%s6787 + $0x48] sm:$0x8]
      %v7313 = vld [vmem:[%s6787 + $0x50] sm:$0x7]
      %v7314 = vld [vmem:[%s6787 + $0x54] sm:$0x8]
      %v7315 = vld [vmem:[%s6787 + $0x5c] sm:$0x7]
      %v7316 = vld [vmem:[%s6787 + $0x60] sm:$0x8]
      %v7317 = vld [vmem:[%s6787 + $0x68] sm:$0x7]
      %v7318 = vld [vmem:[%s6787 + $0x6c] sm:$0x8]
      %v7319 = vld [vmem:[%s6787 + $0x74] sm:$0x7]
      %v7320 = vld [vmem:[%s6787 + $0x78] sm:$0x8]
      %v7321 = vld [vmem:[%s6787 + $0x80] sm:$0x7]
      %v7322 = vld [vmem:[%s6787 + $0x84] sm:$0x8]
      %v7323 = vld [vmem:[%s6787 + $0x8c] sm:$0x7]
      %v7324 = vld [vmem:[%s6787 + $0x90] sm:$0x8]
      %v7325 = vld [vmem:[%s6787 + $0x98] sm:$0x7]
      %v7326 = vld [vmem:[%s6787 + $0x9c] sm:$0x8]
      %v7327 = vld [vmem:[%s6787 + $0xa4] sm:$0x7]
      %v7328 = vld [vmem:[%s6787 + $0xa8] sm:$0x8]
      %v7329 = vld [vmem:[%s6787 + $0xb0] sm:$0x7]
      %v7330 = vld [vmem:[%s6787 + $0xb4] sm:$0x8]
      %v7331 = vld [vmem:[%s6787 + $0xbc] sm:$0x7]
      %v7380 = vrot.slane %v7300, 7
      %v7381 = vrot.slane %v7380, 4
      %v7382 = vrot.slane %v6789, 7
      %v7383 = vsel %vm6514, %v7381, %v7382
      %v7384 = vrot.slane %v7382, 4
      %v7385 = vrot.slane %v7301, 7
      %v7386 = vsel %vm6514, %v7384, %v7385
      %v7387 = vrot.slane %v7302, 7
      %v7388 = vrot.slane %v7387, 4
      %v7389 = vrot.slane %v6791, 7
      %v7390 = vsel %vm6514, %v7388, %v7389
      %v7391 = vrot.slane %v7389, 4
      %v7392 = vrot.slane %v7303, 7
      %v7393 = vsel %vm6514, %v7391, %v7392
      %v7394 = vrot.slane %v7304, 7
      %v7395 = vrot.slane %v7394, 4
      %v7396 = vrot.slane %v6793, 7
      %v7397 = vsel %vm6514, %v7395, %v7396
      %v7398 = vrot.slane %v7396, 4
      %v7399 = vrot.slane %v7305, 7
      %v7400 = vsel %vm6514, %v7398, %v7399
      %v7401 = vrot.slane %v7306, 7
      %v7402 = vrot.slane %v7401, 4
      %v7403 = vrot.slane %v6795, 7
      %v7404 = vsel %vm6514, %v7402, %v7403
      %v7405 = vrot.slane %v7403, 4
      %v7406 = vrot.slane %v7307, 7
      %v7407 = vsel %vm6514, %v7405, %v7406
      %v7408 = vrot.slane %v7308, 7
      %v7409 = vrot.slane %v7408, 4
      %v7410 = vrot.slane %v6797, 7
      %v7411 = vsel %vm6514, %v7409, %v7410
      %v7412 = vrot.slane %v7410, 4
      %v7413 = vrot.slane %v7309, 7
      %v7414 = vsel %vm6514, %v7412, %v7413
      %v7415 = vrot.slane %v7310, 7
      %v7416 = vrot.slane %v7415, 4
      %v7417 = vrot.slane %v6799, 7
      %v7418 = vsel %vm6514, %v7416, %v7417
      %v7419 = vrot.slane %v7417, 4
      %v7420 = vrot.slane %v7311, 7
      %v7421 = vsel %vm6514, %v7419, %v7420
      %v7422 = vrot.slane %v7312, 7
      %v7423 = vrot.slane %v7422, 4
      %v7424 = vrot.slane %v6801, 7
      %v7425 = vsel %vm6514, %v7423, %v7424
      %v7426 = vrot.slane %v7424, 4
      %v7427 = vrot.slane %v7313, 7
      %v7428 = vsel %vm6514, %v7426, %v7427
      %v7429 = vrot.slane %v7314, 7
      %v7430 = vrot.slane %v7429, 4
      %v7431 = vrot.slane %v6803, 7
      %v7432 = vsel %vm6514, %v7430, %v7431
      %v7433 = vrot.slane %v7431, 4
      %v7434 = vrot.slane %v7315, 7
      %v7435 = vsel %vm6514, %v7433, %v7434
      %v7436 = vrot.slane %v7316, 7
      %v7437 = vrot.slane %v7436, 4
      %v7438 = vrot.slane %v6805, 7
      %v7439 = vsel %vm6514, %v7437, %v7438
      %v7440 = vrot.slane %v7438, 4
      %v7441 = vrot.slane %v7317, 7
      %v7442 = vsel %vm6514, %v7440, %v7441
      %v7443 = vrot.slane %v7318, 7
      %v7444 = vrot.slane %v7443, 4
      %v7445 = vrot.slane %v6807, 7
      %v7446 = vsel %vm6514, %v7444, %v7445
      %v7447 = vrot.slane %v7445, 4
      %v7448 = vrot.slane %v7319, 7
      %v7449 = vsel %vm6514, %v7447, %v7448
      %v7450 = vrot.slane %v7320, 7
      %v7451 = vrot.slane %v7450, 4
      %v7452 = vrot.slane %v6809, 7
      %v7453 = vsel %vm6514, %v7451, %v7452
      %v7454 = vrot.slane %v7452, 4
      %v7455 = vrot.slane %v7321, 7
      %v7456 = vsel %vm6514, %v7454, %v7455
      %v7457 = vrot.slane %v7322, 7
      %v7458 = vrot.slane %v7457, 4
      %v7459 = vrot.slane %v6811, 7
      %v7460 = vsel %vm6514, %v7458, %v7459
      %v7461 = vrot.slane %v7459, 4
      %v7462 = vrot.slane %v7323, 7
      %v7463 = vsel %vm6514, %v7461, %v7462
      %v7464 = vrot.slane %v7324, 7
      %v7465 = vrot.slane %v7464, 4
      %v7466 = vrot.slane %v6813, 7
      %v7467 = vsel %vm6514, %v7465, %v7466
      %v7468 = vrot.slane %v7466, 4
      %v7469 = vrot.slane %v7325, 7
      %v7470 = vsel %vm6514, %v7468, %v7469
      %v7471 = vrot.slane %v7326, 7
      %v7472 = vrot.slane %v7471, 4
      %v7473 = vrot.slane %v6815, 7
      %v7474 = vsel %vm6514, %v7472, %v7473
      %v7475 = vrot.slane %v7473, 4
      %v7476 = vrot.slane %v7327, 7
      %v7477 = vsel %vm6514, %v7475, %v7476
      %v7478 = vrot.slane %v7328, 7
      %v7479 = vrot.slane %v7478, 4
      %v7480 = vrot.slane %v6817, 7
      %v7481 = vsel %vm6514, %v7479, %v7480
      %v7482 = vrot.slane %v7480, 4
      %v7483 = vrot.slane %v7329, 7
      %v7484 = vsel %vm6514, %v7482, %v7483
      %v7485 = vrot.slane %v7330, 7
      %v7486 = vrot.slane %v7485, 4
      %v7487 = vrot.slane %v6819, 7
      %v7488 = vsel %vm6514, %v7486, %v7487
      %v7489 = vrot.slane %v7487, 4
      %v7490 = vrot.slane %v7331, 7
      %v7491 = vsel %vm6514, %v7489, %v7490
      %v7492 = vunpack.c.l.b16 %v339
      %v7493 = vunpack.c.l.b16 %v342
      %v7494 = vunpack.c.l.b16 %v346
      %v7495 = vunpack.c.l.b16 %v349
      %v7496 = vunpack.c.l.b16 %v353
      %v7497 = vunpack.c.l.b16 %v356
      %v7498 = vunpack.c.l.b16 %v360
      %v7499 = vunpack.c.l.b16 %v363
      %v7500 = vunpack.c.l.b16 %v367
      %v7501 = vunpack.c.l.b16 %v370
      %v7502 = vunpack.c.l.b16 %v374
      %v7503 = vunpack.c.l.b16 %v377
      %v7504 = vunpack.c.l.b16 %v381
      %v7505 = vunpack.c.l.b16 %v384
      %v7506 = vunpack.c.l.b16 %v388
      %v7507 = vunpack.c.l.b16 %v391
      %v7508 = vunpack.c.l.b16 %v395
      %v7509 = vunpack.c.l.b16 %v398
      %v7510 = vunpack.c.l.b16 %v402
      %v7511 = vunpack.c.l.b16 %v405
      %v7512 = vunpack.c.l.b16 %v409
      %v7513 = vunpack.c.l.b16 %v412
      %v7514 = vunpack.c.l.b16 %v416
      %v7515 = vunpack.c.l.b16 %v419
      %v7516 = vunpack.c.l.b16 %v423
      %v7517 = vunpack.c.l.b16 %v426
      %v7518 = vunpack.c.l.b16 %v430
      %v7519 = vunpack.c.l.b16 %v433
      %v7520 = vunpack.c.l.b16 %v437
      %v7521 = vunpack.c.l.b16 %v440
      %v7522 = vunpack.c.l.b16 %v444
      %v7523 = vunpack.c.l.b16 %v447
      %v7524 = vpack.c.b16 %v7493, %v7492
      %v7525 = vpack.c.b16 %v7495, %v7494
      %v7526 = vpack.c.b16 %v7497, %v7496
      %v7527 = vpack.c.b16 %v7499, %v7498
      %v7528 = vpack.c.b16 %v7501, %v7500
      %v7529 = vpack.c.b16 %v7503, %v7502
      %v7530 = vpack.c.b16 %v7505, %v7504
      %v7531 = vpack.c.b16 %v7507, %v7506
      %v7532 = vpack.c.b16 %v7509, %v7508
      %v7533 = vpack.c.b16 %v7511, %v7510
      %v7534 = vpack.c.b16 %v7513, %v7512
      %v7535 = vpack.c.b16 %v7515, %v7514
      %v7536 = vpack.c.b16 %v7517, %v7516
      %v7537 = vpack.c.b16 %v7519, %v7518
      %v7538 = vpack.c.b16 %v7521, %v7520
      %v7539 = vpack.c.b16 %v7523, %v7522
      %v7540 = vunpack.c.l.b16 %v484
      %v7541 = vunpack.c.l.b16 %v494
      %v7542 = vunpack.c.l.b16 %v512
      %v7543 = vunpack.c.l.b16 %v522
      %v7544 = vunpack.c.l.b16 %v540
      %v7545 = vunpack.c.l.b16 %v550
      %v7546 = vunpack.c.l.b16 %v568
      %v7547 = vunpack.c.l.b16 %v578
      %v7548 = vunpack.c.l.b16 %v596
      %v7549 = vunpack.c.l.b16 %v606
      %v7550 = vunpack.c.l.b16 %v624
      %v7551 = vunpack.c.l.b16 %v634
      %v7552 = vunpack.c.l.b16 %v652
      %v7553 = vunpack.c.l.b16 %v662
      %v7554 = vunpack.c.l.b16 %v680
      %v7555 = vunpack.c.l.b16 %v690
      %v7556 = vunpack.c.l.b16 %v708
      %v7557 = vunpack.c.l.b16 %v718
      %v7558 = vunpack.c.l.b16 %v736
      %v7559 = vunpack.c.l.b16 %v746
      %v7560 = vunpack.c.l.b16 %v764
      %v7561 = vunpack.c.l.b16 %v774
      %v7562 = vunpack.c.l.b16 %v792
      %v7563 = vunpack.c.l.b16 %v802
      %v7564 = vunpack.c.l.b16 %v820
      %v7565 = vunpack.c.l.b16 %v830
      %v7566 = vunpack.c.l.b16 %v848
      %v7567 = vunpack.c.l.b16 %v858
      %v7568 = vunpack.c.l.b16 %v876
      %v7569 = vunpack.c.l.b16 %v886
      %v7570 = vunpack.c.l.b16 %v904
      %v7571 = vunpack.c.l.b16 %v914
      %v7572 = vpack.c.b16 %v7541, %v7540
      %v7573 = vpack.c.b16 %v7543, %v7542
      %v7574 = vpack.c.b16 %v7545, %v7544
      %v7575 = vpack.c.b16 %v7547, %v7546
      %v7576 = vpack.c.b16 %v7549, %v7548
      %v7577 = vpack.c.b16 %v7551, %v7550
      %v7578 = vpack.c.b16 %v7553, %v7552
      %v7579 = vpack.c.b16 %v7555, %v7554
      %v7580 = vpack.c.b16 %v7557, %v7556
      %v7581 = vpack.c.b16 %v7559, %v7558
      %v7582 = vpack.c.b16 %v7561, %v7560
      %v7583 = vpack.c.b16 %v7563, %v7562
      %v7584 = vpack.c.b16 %v7565, %v7564
      %v7585 = vpack.c.b16 %v7567, %v7566
      %v7586 = vpack.c.b16 %v7569, %v7568
      %v7587 = vpack.c.b16 %v7571, %v7570
      %7588 = vrot.lane.b32.xlu0 %v7572, 4
      %v7589 = vpop.permute.xlu0 %7588
      %7590 = vrot.lane.b32.xlu0 %v7573, 4
      %v7591 = vpop.permute.xlu0 %7590
      %7592 = vrot.lane.b32.xlu0 %v7574, 4
      %v7593 = vpop.permute.xlu0 %7592
      %7594 = vrot.lane.b32.xlu0 %v7575, 4
      %v7595 = vpop.permute.xlu0 %7594
      %7596 = vrot.lane.b32.xlu0 %v7576, 4
      %v7597 = vpop.permute.xlu0 %7596
      %7598 = vrot.lane.b32.xlu0 %v7577, 4
      %v7599 = vpop.permute.xlu0 %7598
      %7600 = vrot.lane.b32.xlu0 %v7578, 4
      %v7601 = vpop.permute.xlu0 %7600
      %7602 = vrot.lane.b32.xlu0 %v7579, 4
      %v7603 = vpop.permute.xlu0 %7602
      %7604 = vrot.lane.b32.xlu0 %v7580, 4
      %v7605 = vpop.permute.xlu0 %7604
      %7606 = vrot.lane.b32.xlu0 %v7581, 4
      %v7607 = vpop.permute.xlu0 %7606
      %7608 = vrot.lane.b32.xlu0 %v7582, 4
      %v7609 = vpop.permute.xlu0 %7608
      %7610 = vrot.lane.b32.xlu0 %v7583, 4
      %v7611 = vpop.permute.xlu0 %7610
      %7612 = vrot.lane.b32.xlu0 %v7584, 4
      %v7613 = vpop.permute.xlu0 %7612
      %7614 = vrot.lane.b32.xlu0 %v7585, 4
      %v7615 = vpop.permute.xlu0 %7614
      %7616 = vrot.lane.b32.xlu0 %v7586, 4
      %v7617 = vpop.permute.xlu0 %7616
      %7618 = vrot.lane.b32.xlu0 %v7587, 4
      %v7619 = vpop.permute.xlu0 %7618
      %v7620 = vunpack.c.l.b16 %v969
      %v7621 = vunpack.c.l.b16 %v972
      %v7622 = vunpack.c.l.b16 %v976
      %v7623 = vunpack.c.l.b16 %v979
      %v7624 = vunpack.c.l.b16 %v983
      %v7625 = vunpack.c.l.b16 %v986
      %v7626 = vunpack.c.l.b16 %v990
      %v7627 = vunpack.c.l.b16 %v993
      %v7628 = vunpack.c.l.b16 %v997
      %v7629 = vunpack.c.l.b16 %v1000
      %v7630 = vunpack.c.l.b16 %v1004
      %v7631 = vunpack.c.l.b16 %v1007
      %v7632 = vunpack.c.l.b16 %v1011
      %v7633 = vunpack.c.l.b16 %v1014
      %v7634 = vunpack.c.l.b16 %v1018
      %v7635 = vunpack.c.l.b16 %v1021
      %v7636 = vunpack.c.l.b16 %v1025
      %v7637 = vunpack.c.l.b16 %v1028
      %v7638 = vunpack.c.l.b16 %v1032
      %v7639 = vunpack.c.l.b16 %v1035
      %v7640 = vunpack.c.l.b16 %v1039
      %v7641 = vunpack.c.l.b16 %v1042
      %v7642 = vunpack.c.l.b16 %v1046
      %v7643 = vunpack.c.l.b16 %v1049
      %v7644 = vunpack.c.l.b16 %v1053
      %v7645 = vunpack.c.l.b16 %v1056
      %v7646 = vunpack.c.l.b16 %v1060
      %v7647 = vunpack.c.l.b16 %v1063
      %v7648 = vunpack.c.l.b16 %v1067
      %v7649 = vunpack.c.l.b16 %v1070
      %v7650 = vunpack.c.l.b16 %v1074
      %v7651 = vunpack.c.l.b16 %v1077
      %v7652 = vpack.c.b16 %v7621, %v7620
      %v7653 = vpack.c.b16 %v7623, %v7622
      %v7654 = vpack.c.b16 %v7625, %v7624
      %v7655 = vpack.c.b16 %v7627, %v7626
      %v7656 = vpack.c.b16 %v7629, %v7628
      %v7657 = vpack.c.b16 %v7631, %v7630
      %v7658 = vpack.c.b16 %v7633, %v7632
      %v7659 = vpack.c.b16 %v7635, %v7634
      %v7660 = vpack.c.b16 %v7637, %v7636
      %v7661 = vpack.c.b16 %v7639, %v7638
      %v7662 = vpack.c.b16 %v7641, %v7640
      %v7663 = vpack.c.b16 %v7643, %v7642
      %v7664 = vpack.c.b16 %v7645, %v7644
      %v7665 = vpack.c.b16 %v7647, %v7646
      %v7666 = vpack.c.b16 %v7649, %v7648
      %v7667 = vpack.c.b16 %v7651, %v7650
      %7668 = vrot.lane.b32.xlu0 %v7652, 8
      %v7669 = vpop.permute.xlu0 %7668
      %7670 = vrot.lane.b32.xlu0 %v7653, 8
      %v7671 = vpop.permute.xlu0 %7670
      %7672 = vrot.lane.b32.xlu0 %v7654, 8
      %v7673 = vpop.permute.xlu0 %7672
      %7674 = vrot.lane.b32.xlu0 %v7655, 8
      %v7675 = vpop.permute.xlu0 %7674
      %7676 = vrot.lane.b32.xlu0 %v7656, 8
      %v7677 = vpop.permute.xlu0 %7676
      %7678 = vrot.lane.b32.xlu0 %v7657, 8
      %v7679 = vpop.permute.xlu0 %7678
      %7680 = vrot.lane.b32.xlu0 %v7658, 8
      %v7681 = vpop.permute.xlu0 %7680
      %7682 = vrot.lane.b32.xlu0 %v7659, 8
      %v7683 = vpop.permute.xlu0 %7682
      %7684 = vrot.lane.b32.xlu0 %v7660, 8
      %v7685 = vpop.permute.xlu0 %7684
      %7686 = vrot.lane.b32.xlu0 %v7661, 8
      %v7687 = vpop.permute.xlu0 %7686
      %7688 = vrot.lane.b32.xlu0 %v7662, 8
      %v7689 = vpop.permute.xlu0 %7688
      %7690 = vrot.lane.b32.xlu0 %v7663, 8
      %v7691 = vpop.permute.xlu0 %7690
      %7692 = vrot.lane.b32.xlu0 %v7664, 8
      %v7693 = vpop.permute.xlu0 %7692
      %7694 = vrot.lane.b32.xlu0 %v7665, 8
      %v7695 = vpop.permute.xlu0 %7694
      %7696 = vrot.lane.b32.xlu0 %v7666, 8
      %v7697 = vpop.permute.xlu0 %7696
      %7698 = vrot.lane.b32.xlu0 %v7667, 8
      %v7699 = vpop.permute.xlu0 %7698
      %v7700 = vunpack.c.l.b16 %v1178
      %v7701 = vunpack.c.l.b16 %v1181
      %v7702 = vunpack.c.l.b16 %v1185
      %v7703 = vunpack.c.l.b16 %v1188
      %v7704 = vunpack.c.l.b16 %v1192
      %v7705 = vunpack.c.l.b16 %v1195
      %v7706 = vunpack.c.l.b16 %v1199
      %v7707 = vunpack.c.l.b16 %v1202
      %v7708 = vunpack.c.l.b16 %v1206
      %v7709 = vunpack.c.l.b16 %v1209
      %v7710 = vunpack.c.l.b16 %v1213
      %v7711 = vunpack.c.l.b16 %v1216
      %v7712 = vunpack.c.l.b16 %v1220
      %v7713 = vunpack.c.l.b16 %v1223
      %v7714 = vunpack.c.l.b16 %v1227
      %v7715 = vunpack.c.l.b16 %v1230
      %v7716 = vunpack.c.l.b16 %v1234
      %v7717 = vunpack.c.l.b16 %v1237
      %v7718 = vunpack.c.l.b16 %v1241
      %v7719 = vunpack.c.l.b16 %v1244
      %v7720 = vunpack.c.l.b16 %v1248
      %v7721 = vunpack.c.l.b16 %v1251
      %v7722 = vunpack.c.l.b16 %v1255
      %v7723 = vunpack.c.l.b16 %v1258
      %v7724 = vunpack.c.l.b16 %v1262
      %v7725 = vunpack.c.l.b16 %v1265
      %v7726 = vunpack.c.l.b16 %v1269
      %v7727 = vunpack.c.l.b16 %v1272
      %v7728 = vunpack.c.l.b16 %v1276
      %v7729 = vunpack.c.l.b16 %v1279
      %v7730 = vunpack.c.l.b16 %v1283
      %v7731 = vunpack.c.l.b16 %v1286
      %v7732 = vpack.c.b16 %v7701, %v7700
      %v7733 = vpack.c.b16 %v7703, %v7702
      %v7734 = vpack.c.b16 %v7705, %v7704
      %v7735 = vpack.c.b16 %v7707, %v7706
      %v7736 = vpack.c.b16 %v7709, %v7708
      %v7737 = vpack.c.b16 %v7711, %v7710
      %v7738 = vpack.c.b16 %v7713, %v7712
      %v7739 = vpack.c.b16 %v7715, %v7714
      %v7740 = vpack.c.b16 %v7717, %v7716
      %v7741 = vpack.c.b16 %v7719, %v7718
      %v7742 = vpack.c.b16 %v7721, %v7720
      %v7743 = vpack.c.b16 %v7723, %v7722
      %v7744 = vpack.c.b16 %v7725, %v7724
      %v7745 = vpack.c.b16 %v7727, %v7726
      %v7746 = vpack.c.b16 %v7729, %v7728
      %v7747 = vpack.c.b16 %v7731, %v7730
      %7748 = vrot.lane.b32.xlu0 %v7732, 12
      %v7749 = vpop.permute.xlu0 %7748
      %7750 = vrot.lane.b32.xlu0 %v7733, 12
      %v7751 = vpop.permute.xlu0 %7750
      %7752 = vrot.lane.b32.xlu0 %v7734, 12
      %v7753 = vpop.permute.xlu0 %7752
      %7754 = vrot.lane.b32.xlu0 %v7735, 12
      %v7755 = vpop.permute.xlu0 %7754
      %7756 = vrot.lane.b32.xlu0 %v7736, 12
      %v7757 = vpop.permute.xlu0 %7756
      %7758 = vrot.lane.b32.xlu0 %v7737, 12
      %v7759 = vpop.permute.xlu0 %7758
      %7760 = vrot.lane.b32.xlu0 %v7738, 12
      %v7761 = vpop.permute.xlu0 %7760
      %7762 = vrot.lane.b32.xlu0 %v7739, 12
      %v7763 = vpop.permute.xlu0 %7762
      %7764 = vrot.lane.b32.xlu0 %v7740, 12
      %v7765 = vpop.permute.xlu0 %7764
      %7766 = vrot.lane.b32.xlu0 %v7741, 12
      %v7767 = vpop.permute.xlu0 %7766
      %7768 = vrot.lane.b32.xlu0 %v7742, 12
      %v7769 = vpop.permute.xlu0 %7768
      %7770 = vrot.lane.b32.xlu0 %v7743, 12
      %v7771 = vpop.permute.xlu0 %7770
      %7772 = vrot.lane.b32.xlu0 %v7744, 12
      %v7773 = vpop.permute.xlu0 %7772
      %7774 = vrot.lane.b32.xlu0 %v7745, 12
      %v7775 = vpop.permute.xlu0 %7774
      %7776 = vrot.lane.b32.xlu0 %v7746, 12
      %v7777 = vpop.permute.xlu0 %7776
      %7778 = vrot.lane.b32.xlu0 %v7747, 12
      %v7779 = vpop.permute.xlu0 %7778
      %v7780 = vunpack.c.l.b16 %v1320
      %v7781 = vunpack.c.l.b16 %v1330
      %v7782 = vunpack.c.l.b16 %v1348
      %v7783 = vunpack.c.l.b16 %v1358
      %v7784 = vunpack.c.l.b16 %v1376
      %v7785 = vunpack.c.l.b16 %v1386
      %v7786 = vunpack.c.l.b16 %v1404
      %v7787 = vunpack.c.l.b16 %v1414
      %v7788 = vunpack.c.l.b16 %v1432
      %v7789 = vunpack.c.l.b16 %v1442
      %v7790 = vunpack.c.l.b16 %v1460
      %v7791 = vunpack.c.l.b16 %v1470
      %v7792 = vunpack.c.l.b16 %v1488
      %v7793 = vunpack.c.l.b16 %v1498
      %v7794 = vunpack.c.l.b16 %v1516
      %v7795 = vunpack.c.l.b16 %v1526
      %v7796 = vunpack.c.l.b16 %v1544
      %v7797 = vunpack.c.l.b16 %v1554
      %v7798 = vunpack.c.l.b16 %v1572
      %v7799 = vunpack.c.l.b16 %v1582
      %v7800 = vunpack.c.l.b16 %v1600
      %v7801 = vunpack.c.l.b16 %v1610
      %v7802 = vunpack.c.l.b16 %v1628
      %v7803 = vunpack.c.l.b16 %v1638
      %v7804 = vunpack.c.l.b16 %v1656
      %v7805 = vunpack.c.l.b16 %v1666
      %v7806 = vunpack.c.l.b16 %v1684
      %v7807 = vunpack.c.l.b16 %v1694
      %v7808 = vunpack.c.l.b16 %v1712
      %v7809 = vunpack.c.l.b16 %v1722
      %v7810 = vunpack.c.l.b16 %v1740
      %v7811 = vunpack.c.l.b16 %v1750
      %v7812 = vpack.c.b16 %v7781, %v7780
      %v7813 = vpack.c.b16 %v7783, %v7782
      %v7814 = vpack.c.b16 %v7785, %v7784
      %v7815 = vpack.c.b16 %v7787, %v7786
      %v7816 = vpack.c.b16 %v7789, %v7788
      %v7817 = vpack.c.b16 %v7791, %v7790
      %v7818 = vpack.c.b16 %v7793, %v7792
      %v7819 = vpack.c.b16 %v7795, %v7794
      %v7820 = vpack.c.b16 %v7797, %v7796
      %v7821 = vpack.c.b16 %v7799, %v7798
      %v7822 = vpack.c.b16 %v7801, %v7800
      %v7823 = vpack.c.b16 %v7803, %v7802
      %v7824 = vpack.c.b16 %v7805, %v7804
      %v7825 = vpack.c.b16 %v7807, %v7806
      %v7826 = vpack.c.b16 %v7809, %v7808
      %v7827 = vpack.c.b16 %v7811, %v7810
      %7828 = vrot.lane.b32.xlu0 %v7812, 16
      %v7829 = vpop.permute.xlu0 %7828
      %7830 = vrot.lane.b32.xlu0 %v7813, 16
      %v7831 = vpop.permute.xlu0 %7830
      %7832 = vrot.lane.b32.xlu0 %v7814, 16
      %v7833 = vpop.permute.xlu0 %7832
      %7834 = vrot.lane.b32.xlu0 %v7815, 16
      %v7835 = vpop.permute.xlu0 %7834
      %7836 = vrot.lane.b32.xlu0 %v7816, 16
      %v7837 = vpop.permute.xlu0 %7836
      %7838 = vrot.lane.b32.xlu0 %v7817, 16
      %v7839 = vpop.permute.xlu0 %7838
      %7840 = vrot.lane.b32.xlu0 %v7818, 16
      %v7841 = vpop.permute.xlu0 %7840
      %7842 = vrot.lane.b32.xlu0 %v7819, 16
      %v7843 = vpop.permute.xlu0 %7842
      %7844 = vrot.lane.b32.xlu0 %v7820, 16
      %v7845 = vpop.permute.xlu0 %7844
      %7846 = vrot.lane.b32.xlu0 %v7821, 16
      %v7847 = vpop.permute.xlu0 %7846
      %7848 = vrot.lane.b32.xlu0 %v7822, 16
      %v7849 = vpop.permute.xlu0 %7848
      %7850 = vrot.lane.b32.xlu0 %v7823, 16
      %v7851 = vpop.permute.xlu0 %7850
      %7852 = vrot.lane.b32.xlu0 %v7824, 16
      %v7853 = vpop.permute.xlu0 %7852
      %7854 = vrot.lane.b32.xlu0 %v7825, 16
      %v7855 = vpop.permute.xlu0 %7854
      %7856 = vrot.lane.b32.xlu0 %v7826, 16
      %v7857 = vpop.permute.xlu0 %7856
      %7858 = vrot.lane.b32.xlu0 %v7827, 16
      %v7859 = vpop.permute.xlu0 %7858
      %v7860 = vunpack.c.l.b16 %v1802
      %v7861 = vunpack.c.l.b16 %v1805
      %v7862 = vunpack.c.l.b16 %v1809
      %v7863 = vunpack.c.l.b16 %v1812
      %v7864 = vunpack.c.l.b16 %v1816
      %v7865 = vunpack.c.l.b16 %v1819
      %v7866 = vunpack.c.l.b16 %v1823
      %v7867 = vunpack.c.l.b16 %v1826
      %v7868 = vunpack.c.l.b16 %v1830
      %v7869 = vunpack.c.l.b16 %v1833
      %v7870 = vunpack.c.l.b16 %v1837
      %v7871 = vunpack.c.l.b16 %v1840
      %v7872 = vunpack.c.l.b16 %v1844
      %v7873 = vunpack.c.l.b16 %v1847
      %v7874 = vunpack.c.l.b16 %v1851
      %v7875 = vunpack.c.l.b16 %v1854
      %v7876 = vunpack.c.l.b16 %v1858
      %v7877 = vunpack.c.l.b16 %v1861
      %v7878 = vunpack.c.l.b16 %v1865
      %v7879 = vunpack.c.l.b16 %v1868
      %v7880 = vunpack.c.l.b16 %v1872
      %v7881 = vunpack.c.l.b16 %v1875
      %v7882 = vunpack.c.l.b16 %v1879
      %v7883 = vunpack.c.l.b16 %v1882
      %v7884 = vunpack.c.l.b16 %v1886
      %v7885 = vunpack.c.l.b16 %v1889
      %v7886 = vunpack.c.l.b16 %v1893
      %v7887 = vunpack.c.l.b16 %v1896
      %v7888 = vunpack.c.l.b16 %v1900
      %v7889 = vunpack.c.l.b16 %v1903
      %v7890 = vunpack.c.l.b16 %v1907
      %v7891 = vunpack.c.l.b16 %v1910
      %v7892 = vpack.c.b16 %v7861, %v7860
      %v7893 = vpack.c.b16 %v7863, %v7862
      %v7894 = vpack.c.b16 %v7865, %v7864
      %v7895 = vpack.c.b16 %v7867, %v7866
      %v7896 = vpack.c.b16 %v7869, %v7868
      %v7897 = vpack.c.b16 %v7871, %v7870
      %v7898 = vpack.c.b16 %v7873, %v7872
      %v7899 = vpack.c.b16 %v7875, %v7874
      %v7900 = vpack.c.b16 %v7877, %v7876
      %v7901 = vpack.c.b16 %v7879, %v7878
      %v7902 = vpack.c.b16 %v7881, %v7880
      %v7903 = vpack.c.b16 %v7883, %v7882
      %v7904 = vpack.c.b16 %v7885, %v7884
      %v7905 = vpack.c.b16 %v7887, %v7886
      %v7906 = vpack.c.b16 %v7889, %v7888
      %v7907 = vpack.c.b16 %v7891, %v7890
      %7908 = vrot.lane.b32.xlu0 %v7892, 20
      %v7909 = vpop.permute.xlu0 %7908
      %7910 = vrot.lane.b32.xlu0 %v7893, 20
      %v7911 = vpop.permute.xlu0 %7910
      %7912 = vrot.lane.b32.xlu0 %v7894, 20
      %v7913 = vpop.permute.xlu0 %7912
      %7914 = vrot.lane.b32.xlu0 %v7895, 20
      %v7915 = vpop.permute.xlu0 %7914
      %7916 = vrot.lane.b32.xlu0 %v7896, 20
      %v7917 = vpop.permute.xlu0 %7916
      %7918 = vrot.lane.b32.xlu0 %v7897, 20
      %v7919 = vpop.permute.xlu0 %7918
      %7920 = vrot.lane.b32.xlu0 %v7898, 20
      %v7921 = vpop.permute.xlu0 %7920
      %7922 = vrot.lane.b32.xlu0 %v7899, 20
      %v7923 = vpop.permute.xlu0 %7922
      %7924 = vrot.lane.b32.xlu0 %v7900, 20
      %v7925 = vpop.permute.xlu0 %7924
      %7926 = vrot.lane.b32.xlu0 %v7901, 20
      %v7927 = vpop.permute.xlu0 %7926
      %7928 = vrot.lane.b32.xlu0 %v7902, 20
      %v7929 = vpop.permute.xlu0 %7928
      %7930 = vrot.lane.b32.xlu0 %v7903, 20
      %v7931 = vpop.permute.xlu0 %7930
      %7932 = vrot.lane.b32.xlu0 %v7904, 20
      %v7933 = vpop.permute.xlu0 %7932
      %7934 = vrot.lane.b32.xlu0 %v7905, 20
      %v7935 = vpop.permute.xlu0 %7934
      %7936 = vrot.lane.b32.xlu0 %v7906, 20
      %v7937 = vpop.permute.xlu0 %7936
      %7938 = vrot.lane.b32.xlu0 %v7907, 20
      %v7939 = vpop.permute.xlu0 %7938
      %v7940 = vunpack.c.l.b16 %v2011
      %v7941 = vunpack.c.l.b16 %v2014
      %v7942 = vunpack.c.l.b16 %v2018
      %v7943 = vunpack.c.l.b16 %v2021
      %v7944 = vunpack.c.l.b16 %v2025
      %v7945 = vunpack.c.l.b16 %v2028
      %v7946 = vunpack.c.l.b16 %v2032
      %v7947 = vunpack.c.l.b16 %v2035
      %v7948 = vunpack.c.l.b16 %v2039
      %v7949 = vunpack.c.l.b16 %v2042
      %v7950 = vunpack.c.l.b16 %v2046
      %v7951 = vunpack.c.l.b16 %v2049
      %v7952 = vunpack.c.l.b16 %v2053
      %v7953 = vunpack.c.l.b16 %v2056
      %v7954 = vunpack.c.l.b16 %v2060
      %v7955 = vunpack.c.l.b16 %v2063
      %v7956 = vunpack.c.l.b16 %v2067
      %v7957 = vunpack.c.l.b16 %v2070
      %v7958 = vunpack.c.l.b16 %v2074
      %v7959 = vunpack.c.l.b16 %v2077
      %v7960 = vunpack.c.l.b16 %v2081
      %v7961 = vunpack.c.l.b16 %v2084
      %v7962 = vunpack.c.l.b16 %v2088
      %v7963 = vunpack.c.l.b16 %v2091
      %v7964 = vunpack.c.l.b16 %v2095
      %v7965 = vunpack.c.l.b16 %v2098
      %v7966 = vunpack.c.l.b16 %v2102
      %v7967 = vunpack.c.l.b16 %v2105
      %v7968 = vunpack.c.l.b16 %v2109
      %v7969 = vunpack.c.l.b16 %v2112
      %v7970 = vunpack.c.l.b16 %v2116
      %v7971 = vunpack.c.l.b16 %v2119
      %v7972 = vpack.c.b16 %v7941, %v7940
      %v7973 = vpack.c.b16 %v7943, %v7942
      %v7974 = vpack.c.b16 %v7945, %v7944
      %v7975 = vpack.c.b16 %v7947, %v7946
      %v7976 = vpack.c.b16 %v7949, %v7948
      %v7977 = vpack.c.b16 %v7951, %v7950
      %v7978 = vpack.c.b16 %v7953, %v7952
      %v7979 = vpack.c.b16 %v7955, %v7954
      %v7980 = vpack.c.b16 %v7957, %v7956
      %v7981 = vpack.c.b16 %v7959, %v7958
      %v7982 = vpack.c.b16 %v7961, %v7960
      %v7983 = vpack.c.b16 %v7963, %v7962
      %v7984 = vpack.c.b16 %v7965, %v7964
      %v7985 = vpack.c.b16 %v7967, %v7966
      %v7986 = vpack.c.b16 %v7969, %v7968
      %v7987 = vpack.c.b16 %v7971, %v7970
      %7988 = vrot.lane.b32.xlu0 %v7972, 24
      %v7989 = vpop.permute.xlu0 %7988
      %7990 = vrot.lane.b32.xlu0 %v7973, 24
      %v7991 = vpop.permute.xlu0 %7990
      %7992 = vrot.lane.b32.xlu0 %v7974, 24
      %v7993 = vpop.permute.xlu0 %7992
      %7994 = vrot.lane.b32.xlu0 %v7975, 24
      %v7995 = vpop.permute.xlu0 %7994
      %7996 = vrot.lane.b32.xlu0 %v7976, 24
      %v7997 = vpop.permute.xlu0 %7996
      %7998 = vrot.lane.b32.xlu0 %v7977, 24
      %v7999 = vpop.permute.xlu0 %7998
      %8000 = vrot.lane.b32.xlu0 %v7978, 24
      %v8001 = vpop.permute.xlu0 %8000
      %8002 = vrot.lane.b32.xlu0 %v7979, 24
      %v8003 = vpop.permute.xlu0 %8002
      %8004 = vrot.lane.b32.xlu0 %v7980, 24
      %v8005 = vpop.permute.xlu0 %8004
      %8006 = vrot.lane.b32.xlu0 %v7981, 24
      %v8007 = vpop.permute.xlu0 %8006
      %8008 = vrot.lane.b32.xlu0 %v7982, 24
      %v8009 = vpop.permute.xlu0 %8008
      %8010 = vrot.lane.b32.xlu0 %v7983, 24
      %v8011 = vpop.permute.xlu0 %8010
      %8012 = vrot.lane.b32.xlu0 %v7984, 24
      %v8013 = vpop.permute.xlu0 %8012
      %8014 = vrot.lane.b32.xlu0 %v7985, 24
      %v8015 = vpop.permute.xlu0 %8014
      %8016 = vrot.lane.b32.xlu0 %v7986, 24
      %v8017 = vpop.permute.xlu0 %8016
      %8018 = vrot.lane.b32.xlu0 %v7987, 24
      %v8019 = vpop.permute.xlu0 %8018
      %v8020 = vunpack.c.l.b16 %v2153
      %v8021 = vunpack.c.l.b16 %v2163
      %v8022 = vunpack.c.l.b16 %v2181
      %v8023 = vunpack.c.l.b16 %v2191
      %v8024 = vunpack.c.l.b16 %v2209
      %v8025 = vunpack.c.l.b16 %v2219
      %v8026 = vunpack.c.l.b16 %v2237
      %v8027 = vunpack.c.l.b16 %v2247
      %v8028 = vunpack.c.l.b16 %v2265
      %v8029 = vunpack.c.l.b16 %v2275
      %v8030 = vunpack.c.l.b16 %v2293
      %v8031 = vunpack.c.l.b16 %v2303
      %v8032 = vunpack.c.l.b16 %v2321
      %v8033 = vunpack.c.l.b16 %v2331
      %v8034 = vunpack.c.l.b16 %v2349
      %v8035 = vunpack.c.l.b16 %v2359
      %v8036 = vunpack.c.l.b16 %v2377
      %v8037 = vunpack.c.l.b16 %v2387
      %v8038 = vunpack.c.l.b16 %v2405
      %v8039 = vunpack.c.l.b16 %v2415
      %v8040 = vunpack.c.l.b16 %v2433
      %v8041 = vunpack.c.l.b16 %v2443
      %v8042 = vunpack.c.l.b16 %v2461
      %v8043 = vunpack.c.l.b16 %v2471
      %v8044 = vunpack.c.l.b16 %v2489
      %v8045 = vunpack.c.l.b16 %v2499
      %v8046 = vunpack.c.l.b16 %v2517
      %v8047 = vunpack.c.l.b16 %v2527
      %v8048 = vunpack.c.l.b16 %v2545
      %v8049 = vunpack.c.l.b16 %v2555
      %v8050 = vunpack.c.l.b16 %v2573
      %v8051 = vunpack.c.l.b16 %v2583
      %v8052 = vpack.c.b16 %v8021, %v8020
      %v8053 = vpack.c.b16 %v8023, %v8022
      %v8054 = vpack.c.b16 %v8025, %v8024
      %v8055 = vpack.c.b16 %v8027, %v8026
      %v8056 = vpack.c.b16 %v8029, %v8028
      %v8057 = vpack.c.b16 %v8031, %v8030
      %v8058 = vpack.c.b16 %v8033, %v8032
      %v8059 = vpack.c.b16 %v8035, %v8034
      %v8060 = vpack.c.b16 %v8037, %v8036
      %v8061 = vpack.c.b16 %v8039, %v8038
      %v8062 = vpack.c.b16 %v8041, %v8040
      %v8063 = vpack.c.b16 %v8043, %v8042
      %v8064 = vpack.c.b16 %v8045, %v8044
      %v8065 = vpack.c.b16 %v8047, %v8046
      %v8066 = vpack.c.b16 %v8049, %v8048
      %v8067 = vpack.c.b16 %v8051, %v8050
      %8068 = vrot.lane.b32.xlu0 %v8052, 28
      %v8069 = vpop.permute.xlu0 %8068
      %8070 = vrot.lane.b32.xlu0 %v8053, 28
      %v8071 = vpop.permute.xlu0 %8070
      %8072 = vrot.lane.b32.xlu0 %v8054, 28
      %v8073 = vpop.permute.xlu0 %8072
      %8074 = vrot.lane.b32.xlu0 %v8055, 28
      %v8075 = vpop.permute.xlu0 %8074
      %8076 = vrot.lane.b32.xlu0 %v8056, 28
      %v8077 = vpop.permute.xlu0 %8076
      %8078 = vrot.lane.b32.xlu0 %v8057, 28
      %v8079 = vpop.permute.xlu0 %8078
      %8080 = vrot.lane.b32.xlu0 %v8058, 28
      %v8081 = vpop.permute.xlu0 %8080
      %8082 = vrot.lane.b32.xlu0 %v8059, 28
      %v8083 = vpop.permute.xlu0 %8082
      %8084 = vrot.lane.b32.xlu0 %v8060, 28
      %v8085 = vpop.permute.xlu0 %8084
      %8086 = vrot.lane.b32.xlu0 %v8061, 28
      %v8087 = vpop.permute.xlu0 %8086
      %8088 = vrot.lane.b32.xlu0 %v8062, 28
      %v8089 = vpop.permute.xlu0 %8088
      %8090 = vrot.lane.b32.xlu0 %v8063, 28
      %v8091 = vpop.permute.xlu0 %8090
      %8092 = vrot.lane.b32.xlu0 %v8064, 28
      %v8093 = vpop.permute.xlu0 %8092
      %8094 = vrot.lane.b32.xlu0 %v8065, 28
      %v8095 = vpop.permute.xlu0 %8094
      %8096 = vrot.lane.b32.xlu0 %v8066, 28
      %v8097 = vpop.permute.xlu0 %8096
      %8098 = vrot.lane.b32.xlu0 %v8067, 28
      %v8099 = vpop.permute.xlu0 %8098
      %v8100 = vunpack.c.l.b16 %v2635
      %v8101 = vunpack.c.l.b16 %v2638
      %v8102 = vunpack.c.l.b16 %v2642
      %v8103 = vunpack.c.l.b16 %v2645
      %v8104 = vunpack.c.l.b16 %v2649
      %v8105 = vunpack.c.l.b16 %v2652
      %v8106 = vunpack.c.l.b16 %v2656
      %v8107 = vunpack.c.l.b16 %v2659
      %v8108 = vunpack.c.l.b16 %v2663
      %v8109 = vunpack.c.l.b16 %v2666
      %v8110 = vunpack.c.l.b16 %v2670
      %v8111 = vunpack.c.l.b16 %v2673
      %v8112 = vunpack.c.l.b16 %v2677
      %v8113 = vunpack.c.l.b16 %v2680
      %v8114 = vunpack.c.l.b16 %v2684
      %v8115 = vunpack.c.l.b16 %v2687
      %v8116 = vunpack.c.l.b16 %v2691
      %v8117 = vunpack.c.l.b16 %v2694
      %v8118 = vunpack.c.l.b16 %v2698
      %v8119 = vunpack.c.l.b16 %v2701
      %v8120 = vunpack.c.l.b16 %v2705
      %v8121 = vunpack.c.l.b16 %v2708
      %v8122 = vunpack.c.l.b16 %v2712
      %v8123 = vunpack.c.l.b16 %v2715
      %v8124 = vunpack.c.l.b16 %v2719
      %v8125 = vunpack.c.l.b16 %v2722
      %v8126 = vunpack.c.l.b16 %v2726
      %v8127 = vunpack.c.l.b16 %v2729
      %v8128 = vunpack.c.l.b16 %v2733
      %v8129 = vunpack.c.l.b16 %v2736
      %v8130 = vunpack.c.l.b16 %v2740
      %v8131 = vunpack.c.l.b16 %v2743
      %v8132 = vpack.c.b16 %v8101, %v8100
      %v8133 = vpack.c.b16 %v8103, %v8102
      %v8134 = vpack.c.b16 %v8105, %v8104
      %v8135 = vpack.c.b16 %v8107, %v8106
      %v8136 = vpack.c.b16 %v8109, %v8108
      %v8137 = vpack.c.b16 %v8111, %v8110
      %v8138 = vpack.c.b16 %v8113, %v8112
      %v8139 = vpack.c.b16 %v8115, %v8114
      %v8140 = vpack.c.b16 %v8117, %v8116
      %v8141 = vpack.c.b16 %v8119, %v8118
      %v8142 = vpack.c.b16 %v8121, %v8120
      %v8143 = vpack.c.b16 %v8123, %v8122
      %v8144 = vpack.c.b16 %v8125, %v8124
      %v8145 = vpack.c.b16 %v8127, %v8126
      %v8146 = vpack.c.b16 %v8129, %v8128
      %v8147 = vpack.c.b16 %v8131, %v8130
      %8148 = vrot.lane.b32.xlu0 %v8132, 32
      %v8149 = vpop.permute.xlu0 %8148
      %8150 = vrot.lane.b32.xlu0 %v8133, 32
      %v8151 = vpop.permute.xlu0 %8150
      %8152 = vrot.lane.b32.xlu0 %v8134, 32
      %v8153 = vpop.permute.xlu0 %8152
      %8154 = vrot.lane.b32.xlu0 %v8135, 32
      %v8155 = vpop.permute.xlu0 %8154
      %8156 = vrot.lane.b32.xlu0 %v8136, 32
      %v8157 = vpop.permute.xlu0 %8156
      %8158 = vrot.lane.b32.xlu0 %v8137, 32
      %v8159 = vpop.permute.xlu0 %8158
      %8160 = vrot.lane.b32.xlu0 %v8138, 32
      %v8161 = vpop.permute.xlu0 %8160
      %8162 = vrot.lane.b32.xlu0 %v8139, 32
      %v8163 = vpop.permute.xlu0 %8162
      %8164 = vrot.lane.b32.xlu0 %v8140, 32
      %v8165 = vpop.permute.xlu0 %8164
      %8166 = vrot.lane.b32.xlu0 %v8141, 32
      %v8167 = vpop.permute.xlu0 %8166
      %8168 = vrot.lane.b32.xlu0 %v8142, 32
      %v8169 = vpop.permute.xlu0 %8168
      %8170 = vrot.lane.b32.xlu0 %v8143, 32
      %v8171 = vpop.permute.xlu0 %8170
      %8172 = vrot.lane.b32.xlu0 %v8144, 32
      %v8173 = vpop.permute.xlu0 %8172
      %8174 = vrot.lane.b32.xlu0 %v8145, 32
      %v8175 = vpop.permute.xlu0 %8174
      %8176 = vrot.lane.b32.xlu0 %v8146, 32
      %v8177 = vpop.permute.xlu0 %8176
      %8178 = vrot.lane.b32.xlu0 %v8147, 32
      %v8179 = vpop.permute.xlu0 %8178
      %v8180 = vunpack.c.l.b16 %v2809
      %v8181 = vunpack.c.l.b16 %v2819
      %v8182 = vunpack.c.l.b16 %v2833
      %v8183 = vunpack.c.l.b16 %v2843
      %v8184 = vunpack.c.l.b16 %v2857
      %v8185 = vunpack.c.l.b16 %v2867
      %v8186 = vunpack.c.l.b16 %v2881
      %v8187 = vunpack.c.l.b16 %v2891
      %v8188 = vunpack.c.l.b16 %v2905
      %v8189 = vunpack.c.l.b16 %v2915
      %v8190 = vunpack.c.l.b16 %v2929
      %v8191 = vunpack.c.l.b16 %v2939
      %v8192 = vunpack.c.l.b16 %v2953
      %v8193 = vunpack.c.l.b16 %v2963
      %v8194 = vunpack.c.l.b16 %v2977
      %v8195 = vunpack.c.l.b16 %v2987
      %v8196 = vunpack.c.l.b16 %v3001
      %v8197 = vunpack.c.l.b16 %v3011
      %v8198 = vunpack.c.l.b16 %v3025
      %v8199 = vunpack.c.l.b16 %v3035
      %v8200 = vunpack.c.l.b16 %v3049
      %v8201 = vunpack.c.l.b16 %v3059
      %v8202 = vunpack.c.l.b16 %v3073
      %v8203 = vunpack.c.l.b16 %v3083
      %v8204 = vunpack.c.l.b16 %v3097
      %v8205 = vunpack.c.l.b16 %v3107
      %v8206 = vunpack.c.l.b16 %v3121
      %v8207 = vunpack.c.l.b16 %v3131
      %v8208 = vunpack.c.l.b16 %v3145
      %v8209 = vunpack.c.l.b16 %v3155
      %v8210 = vunpack.c.l.b16 %v3169
      %v8211 = vunpack.c.l.b16 %v3179
      %v8212 = vpack.c.b16 %v8181, %v8180
      %v8213 = vpack.c.b16 %v8183, %v8182
      %v8214 = vpack.c.b16 %v8185, %v8184
      %v8215 = vpack.c.b16 %v8187, %v8186
      %v8216 = vpack.c.b16 %v8189, %v8188
      %v8217 = vpack.c.b16 %v8191, %v8190
      %v8218 = vpack.c.b16 %v8193, %v8192
      %v8219 = vpack.c.b16 %v8195, %v8194
      %v8220 = vpack.c.b16 %v8197, %v8196
      %v8221 = vpack.c.b16 %v8199, %v8198
      %v8222 = vpack.c.b16 %v8201, %v8200
      %v8223 = vpack.c.b16 %v8203, %v8202
      %v8224 = vpack.c.b16 %v8205, %v8204
      %v8225 = vpack.c.b16 %v8207, %v8206
      %v8226 = vpack.c.b16 %v8209, %v8208
      %v8227 = vpack.c.b16 %v8211, %v8210
      %8228 = vrot.lane.b32.xlu0 %v8212, 36
      %v8229 = vpop.permute.xlu0 %8228
      %8230 = vrot.lane.b32.xlu0 %v8213, 36
      %v8231 = vpop.permute.xlu0 %8230
      %8232 = vrot.lane.b32.xlu0 %v8214, 36
      %v8233 = vpop.permute.xlu0 %8232
      %8234 = vrot.lane.b32.xlu0 %v8215, 36
      %v8235 = vpop.permute.xlu0 %8234
      %8236 = vrot.lane.b32.xlu0 %v8216, 36
      %v8237 = vpop.permute.xlu0 %8236
      %8238 = vrot.lane.b32.xlu0 %v8217, 36
      %v8239 = vpop.permute.xlu0 %8238
      %8240 = vrot.lane.b32.xlu0 %v8218, 36
      %v8241 = vpop.permute.xlu0 %8240
      %8242 = vrot.lane.b32.xlu0 %v8219, 36
      %v8243 = vpop.permute.xlu0 %8242
      %8244 = vrot.lane.b32.xlu0 %v8220, 36
      %v8245 = vpop.permute.xlu0 %8244
      %8246 = vrot.lane.b32.xlu0 %v8221, 36
      %v8247 = vpop.permute.xlu0 %8246
      %8248 = vrot.lane.b32.xlu0 %v8222, 36
      %v8249 = vpop.permute.xlu0 %8248
      %8250 = vrot.lane.b32.xlu0 %v8223, 36
      %v8251 = vpop.permute.xlu0 %8250
      %8252 = vrot.lane.b32.xlu0 %v8224, 36
      %v8253 = vpop.permute.xlu0 %8252
      %8254 = vrot.lane.b32.xlu0 %v8225, 36
      %v8255 = vpop.permute.xlu0 %8254
      %8256 = vrot.lane.b32.xlu0 %v8226, 36
      %v8257 = vpop.permute.xlu0 %8256
      %8258 = vrot.lane.b32.xlu0 %v8227, 36
      %v8259 = vpop.permute.xlu0 %8258
      %v8260 = vunpack.c.l.b16 %v3224
      %v8261 = vunpack.c.l.b16 %v3234
      %v8262 = vunpack.c.l.b16 %v3247
      %v8263 = vunpack.c.l.b16 %v3257
      %v8264 = vunpack.c.l.b16 %v3270
      %v8265 = vunpack.c.l.b16 %v3280
      %v8266 = vunpack.c.l.b16 %v3293
      %v8267 = vunpack.c.l.b16 %v3303
      %v8268 = vunpack.c.l.b16 %v3316
      %v8269 = vunpack.c.l.b16 %v3326
      %v8270 = vunpack.c.l.b16 %v3339
      %v8271 = vunpack.c.l.b16 %v3349
      %v8272 = vunpack.c.l.b16 %v3362
      %v8273 = vunpack.c.l.b16 %v3372
      %v8274 = vunpack.c.l.b16 %v3385
      %v8275 = vunpack.c.l.b16 %v3395
      %v8276 = vunpack.c.l.b16 %v3408
      %v8277 = vunpack.c.l.b16 %v3418
      %v8278 = vunpack.c.l.b16 %v3431
      %v8279 = vunpack.c.l.b16 %v3441
      %v8280 = vunpack.c.l.b16 %v3454
      %v8281 = vunpack.c.l.b16 %v3464
      %v8282 = vunpack.c.l.b16 %v3477
      %v8283 = vunpack.c.l.b16 %v3487
      %v8284 = vunpack.c.l.b16 %v3500
      %v8285 = vunpack.c.l.b16 %v3510
      %v8286 = vunpack.c.l.b16 %v3523
      %v8287 = vunpack.c.l.b16 %v3533
      %v8288 = vunpack.c.l.b16 %v3546
      %v8289 = vunpack.c.l.b16 %v3556
      %v8290 = vunpack.c.l.b16 %v3569
      %v8291 = vunpack.c.l.b16 %v3579
      %v8292 = vpack.c.b16 %v8261, %v8260
      %v8293 = vpack.c.b16 %v8263, %v8262
      %v8294 = vpack.c.b16 %v8265, %v8264
      %v8295 = vpack.c.b16 %v8267, %v8266
      %v8296 = vpack.c.b16 %v8269, %v8268
      %v8297 = vpack.c.b16 %v8271, %v8270
      %v8298 = vpack.c.b16 %v8273, %v8272
      %v8299 = vpack.c.b16 %v8275, %v8274
      %v8300 = vpack.c.b16 %v8277, %v8276
      %v8301 = vpack.c.b16 %v8279, %v8278
      %v8302 = vpack.c.b16 %v8281, %v8280
      %v8303 = vpack.c.b16 %v8283, %v8282
      %v8304 = vpack.c.b16 %v8285, %v8284
      %v8305 = vpack.c.b16 %v8287, %v8286
      %v8306 = vpack.c.b16 %v8289, %v8288
      %v8307 = vpack.c.b16 %v8291, %v8290
      %8308 = vrot.lane.b32.xlu0 %v8292, 40
      %v8309 = vpop.permute.xlu0 %8308
      %8310 = vrot.lane.b32.xlu0 %v8293, 40
      %v8311 = vpop.permute.xlu0 %8310
      %8312 = vrot.lane.b32.xlu0 %v8294, 40
      %v8313 = vpop.permute.xlu0 %8312
      %8314 = vrot.lane.b32.xlu0 %v8295, 40
      %v8315 = vpop.permute.xlu0 %8314
      %8316 = vrot.lane.b32.xlu0 %v8296, 40
      %v8317 = vpop.permute.xlu0 %8316
      %8318 = vrot.lane.b32.xlu0 %v8297, 40
      %v8319 = vpop.permute.xlu0 %8318
      %8320 = vrot.lane.b32.xlu0 %v8298, 40
      %v8321 = vpop.permute.xlu0 %8320
      %8322 = vrot.lane.b32.xlu0 %v8299, 40
      %v8323 = vpop.permute.xlu0 %8322
      %8324 = vrot.lane.b32.xlu0 %v8300, 40
      %v8325 = vpop.permute.xlu0 %8324
      %8326 = vrot.lane.b32.xlu0 %v8301, 40
      %v8327 = vpop.permute.xlu0 %8326
      %8328 = vrot.lane.b32.xlu0 %v8302, 40
      %v8329 = vpop.permute.xlu0 %8328
      %8330 = vrot.lane.b32.xlu0 %v8303, 40
      %v8331 = vpop.permute.xlu0 %8330
      %8332 = vrot.lane.b32.xlu0 %v8304, 40
      %v8333 = vpop.permute.xlu0 %8332
      %8334 = vrot.lane.b32.xlu0 %v8305, 40
      %v8335 = vpop.permute.xlu0 %8334
      %8336 = vrot.lane.b32.xlu0 %v8306, 40
      %v8337 = vpop.permute.xlu0 %8336
      %8338 = vrot.lane.b32.xlu0 %v8307, 40
      %v8339 = vpop.permute.xlu0 %8338
      %v8340 = vunpack.c.l.b16 %v3627
      %v8341 = vunpack.c.l.b16 %v3637
      %v8342 = vunpack.c.l.b16 %v3650
      %v8343 = vunpack.c.l.b16 %v3660
      %v8344 = vunpack.c.l.b16 %v3673
      %v8345 = vunpack.c.l.b16 %v3683
      %v8346 = vunpack.c.l.b16 %v3696
      %v8347 = vunpack.c.l.b16 %v3706
      %v8348 = vunpack.c.l.b16 %v3719
      %v8349 = vunpack.c.l.b16 %v3729
      %v8350 = vunpack.c.l.b16 %v3742
      %v8351 = vunpack.c.l.b16 %v3752
      %v8352 = vunpack.c.l.b16 %v3765
      %v8353 = vunpack.c.l.b16 %v3775
      %v8354 = vunpack.c.l.b16 %v3788
      %v8355 = vunpack.c.l.b16 %v3798
      %v8356 = vunpack.c.l.b16 %v3811
      %v8357 = vunpack.c.l.b16 %v3821
      %v8358 = vunpack.c.l.b16 %v3834
      %v8359 = vunpack.c.l.b16 %v3844
      %v8360 = vunpack.c.l.b16 %v3857
      %v8361 = vunpack.c.l.b16 %v3867
      %v8362 = vunpack.c.l.b16 %v3880
      %v8363 = vunpack.c.l.b16 %v3890
      %v8364 = vunpack.c.l.b16 %v3903
      %v8365 = vunpack.c.l.b16 %v3913
      %v8366 = vunpack.c.l.b16 %v3926
      %v8367 = vunpack.c.l.b16 %v3936
      %v8368 = vunpack.c.l.b16 %v3949
      %v8369 = vunpack.c.l.b16 %v3959
      %v8370 = vunpack.c.l.b16 %v3972
      %v8371 = vunpack.c.l.b16 %v3982
      %v8372 = vpack.c.b16 %v8341, %v8340
      %v8373 = vpack.c.b16 %v8343, %v8342
      %v8374 = vpack.c.b16 %v8345, %v8344
      %v8375 = vpack.c.b16 %v8347, %v8346
      %v8376 = vpack.c.b16 %v8349, %v8348
      %v8377 = vpack.c.b16 %v8351, %v8350
      %v8378 = vpack.c.b16 %v8353, %v8352
      %v8379 = vpack.c.b16 %v8355, %v8354
      %v8380 = vpack.c.b16 %v8357, %v8356
      %v8381 = vpack.c.b16 %v8359, %v8358
      %v8382 = vpack.c.b16 %v8361, %v8360
      %v8383 = vpack.c.b16 %v8363, %v8362
      %v8384 = vpack.c.b16 %v8365, %v8364
      %v8385 = vpack.c.b16 %v8367, %v8366
      %v8386 = vpack.c.b16 %v8369, %v8368
      %v8387 = vpack.c.b16 %v8371, %v8370
      %8388 = vrot.lane.b32.xlu0 %v8372, 44
      %v8389 = vpop.permute.xlu0 %8388
      %8390 = vrot.lane.b32.xlu0 %v8373, 44
      %v8391 = vpop.permute.xlu0 %8390
      %8392 = vrot.lane.b32.xlu0 %v8374, 44
      %v8393 = vpop.permute.xlu0 %8392
      %8394 = vrot.lane.b32.xlu0 %v8375, 44
      %v8395 = vpop.permute.xlu0 %8394
      %8396 = vrot.lane.b32.xlu0 %v8376, 44
      %v8397 = vpop.permute.xlu0 %8396
      %8398 = vrot.lane.b32.xlu0 %v8377, 44
      %v8399 = vpop.permute.xlu0 %8398
      %8400 = vrot.lane.b32.xlu0 %v8378, 44
      %v8401 = vpop.permute.xlu0 %8400
      %8402 = vrot.lane.b32.xlu0 %v8379, 44
      %v8403 = vpop.permute.xlu0 %8402
      %8404 = vrot.lane.b32.xlu0 %v8380, 44
      %v8405 = vpop.permute.xlu0 %8404
      %8406 = vrot.lane.b32.xlu0 %v8381, 44
      %v8407 = vpop.permute.xlu0 %8406
      %8408 = vrot.lane.b32.xlu0 %v8382, 44
      %v8409 = vpop.permute.xlu0 %8408
      %8410 = vrot.lane.b32.xlu0 %v8383, 44
      %v8411 = vpop.permute.xlu0 %8410
      %8412 = vrot.lane.b32.xlu0 %v8384, 44
      %v8413 = vpop.permute.xlu0 %8412
      %8414 = vrot.lane.b32.xlu0 %v8385, 44
      %v8415 = vpop.permute.xlu0 %8414
      %8416 = vrot.lane.b32.xlu0 %v8386, 44
      %v8417 = vpop.permute.xlu0 %8416
      %8418 = vrot.lane.b32.xlu0 %v8387, 44
      %v8419 = vpop.permute.xlu0 %8418
      %v8420 = vunpack.c.l.b16 %v4009
      %v8421 = vunpack.c.l.b16 %v4017
      %v8422 = vunpack.c.l.b16 %v4028
      %v8423 = vunpack.c.l.b16 %v4036
      %v8424 = vunpack.c.l.b16 %v4047
      %v8425 = vunpack.c.l.b16 %v4055
      %v8426 = vunpack.c.l.b16 %v4066
      %v8427 = vunpack.c.l.b16 %v4074
      %v8428 = vunpack.c.l.b16 %v4085
      %v8429 = vunpack.c.l.b16 %v4093
      %v8430 = vunpack.c.l.b16 %v4104
      %v8431 = vunpack.c.l.b16 %v4112
      %v8432 = vunpack.c.l.b16 %v4123
      %v8433 = vunpack.c.l.b16 %v4131
      %v8434 = vunpack.c.l.b16 %v4142
      %v8435 = vunpack.c.l.b16 %v4150
      %v8436 = vunpack.c.l.b16 %v4161
      %v8437 = vunpack.c.l.b16 %v4169
      %v8438 = vunpack.c.l.b16 %v4180
      %v8439 = vunpack.c.l.b16 %v4188
      %v8440 = vunpack.c.l.b16 %v4199
      %v8441 = vunpack.c.l.b16 %v4207
      %v8442 = vunpack.c.l.b16 %v4218
      %v8443 = vunpack.c.l.b16 %v4226
      %v8444 = vunpack.c.l.b16 %v4237
      %v8445 = vunpack.c.l.b16 %v4245
      %v8446 = vunpack.c.l.b16 %v4256
      %v8447 = vunpack.c.l.b16 %v4264
      %v8448 = vunpack.c.l.b16 %v4275
      %v8449 = vunpack.c.l.b16 %v4283
      %v8450 = vunpack.c.l.b16 %v4294
      %v8451 = vunpack.c.l.b16 %v4302
      %v8452 = vpack.c.b16 %v8421, %v8420
      %v8453 = vpack.c.b16 %v8423, %v8422
      %v8454 = vpack.c.b16 %v8425, %v8424
      %v8455 = vpack.c.b16 %v8427, %v8426
      %v8456 = vpack.c.b16 %v8429, %v8428
      %v8457 = vpack.c.b16 %v8431, %v8430
      %v8458 = vpack.c.b16 %v8433, %v8432
      %v8459 = vpack.c.b16 %v8435, %v8434
      %v8460 = vpack.c.b16 %v8437, %v8436
      %v8461 = vpack.c.b16 %v8439, %v8438
      %v8462 = vpack.c.b16 %v8441, %v8440
      %v8463 = vpack.c.b16 %v8443, %v8442
      %v8464 = vpack.c.b16 %v8445, %v8444
      %v8465 = vpack.c.b16 %v8447, %v8446
      %v8466 = vpack.c.b16 %v8449, %v8448
      %v8467 = vpack.c.b16 %v8451, %v8450
      %8468 = vrot.lane.b32.xlu0 %v8452, 48
      %v8469 = vpop.permute.xlu0 %8468
      %8470 = vrot.lane.b32.xlu0 %v8453, 48
      %v8471 = vpop.permute.xlu0 %8470
      %8472 = vrot.lane.b32.xlu0 %v8454, 48
      %v8473 = vpop.permute.xlu0 %8472
      %8474 = vrot.lane.b32.xlu0 %v8455, 48
      %v8475 = vpop.permute.xlu0 %8474
      %8476 = vrot.lane.b32.xlu0 %v8456, 48
      %v8477 = vpop.permute.xlu0 %8476
      %8478 = vrot.lane.b32.xlu0 %v8457, 48
      %v8479 = vpop.permute.xlu0 %8478
      %8480 = vrot.lane.b32.xlu0 %v8458, 48
      %v8481 = vpop.permute.xlu0 %8480
      %8482 = vrot.lane.b32.xlu0 %v8459, 48
      %v8483 = vpop.permute.xlu0 %8482
      %8484 = vrot.lane.b32.xlu0 %v8460, 48
      %v8485 = vpop.permute.xlu0 %8484
      %8486 = vrot.lane.b32.xlu0 %v8461, 48
      %v8487 = vpop.permute.xlu0 %8486
      %8488 = vrot.lane.b32.xlu0 %v8462, 48
      %v8489 = vpop.permute.xlu0 %8488
      %8490 = vrot.lane.b32.xlu0 %v8463, 48
      %v8491 = vpop.permute.xlu0 %8490
      %8492 = vrot.lane.b32.xlu0 %v8464, 48
      %v8493 = vpop.permute.xlu0 %8492
      %8494 = vrot.lane.b32.xlu0 %v8465, 48
      %v8495 = vpop.permute.xlu0 %8494
      %8496 = vrot.lane.b32.xlu0 %v8466, 48
      %v8497 = vpop.permute.xlu0 %8496
      %8498 = vrot.lane.b32.xlu0 %v8467, 48
      %v8499 = vpop.permute.xlu0 %8498
      %8500 = vrot.lane.b32.xlu0 %v7812, 52
      %v8501 = vpop.permute.xlu0 %8500
      %8502 = vrot.lane.b32.xlu0 %v7813, 52
      %v8503 = vpop.permute.xlu0 %8502
      %8504 = vrot.lane.b32.xlu0 %v7814, 52
      %v8505 = vpop.permute.xlu0 %8504
      %8506 = vrot.lane.b32.xlu0 %v7815, 52
      %v8507 = vpop.permute.xlu0 %8506
      %8508 = vrot.lane.b32.xlu0 %v7816, 52
      %v8509 = vpop.permute.xlu0 %8508
      %8510 = vrot.lane.b32.xlu0 %v7817, 52
      %v8511 = vpop.permute.xlu0 %8510
      %8512 = vrot.lane.b32.xlu0 %v7818, 52
      %v8513 = vpop.permute.xlu0 %8512
      %8514 = vrot.lane.b32.xlu0 %v7819, 52
      %v8515 = vpop.permute.xlu0 %8514
      %8516 = vrot.lane.b32.xlu0 %v7820, 52
      %v8517 = vpop.permute.xlu0 %8516
      %8518 = vrot.lane.b32.xlu0 %v7821, 52
      %v8519 = vpop.permute.xlu0 %8518
      %8520 = vrot.lane.b32.xlu0 %v7822, 52
      %v8521 = vpop.permute.xlu0 %8520
      %8522 = vrot.lane.b32.xlu0 %v7823, 52
      %v8523 = vpop.permute.xlu0 %8522
      %8524 = vrot.lane.b32.xlu0 %v7824, 52
      %v8525 = vpop.permute.xlu0 %8524
      %8526 = vrot.lane.b32.xlu0 %v7825, 52
      %v8527 = vpop.permute.xlu0 %8526
      %8528 = vrot.lane.b32.xlu0 %v7826, 52
      %v8529 = vpop.permute.xlu0 %8528
      %8530 = vrot.lane.b32.xlu0 %v7827, 52
      %v8531 = vpop.permute.xlu0 %8530
      %v8532 = vunpack.c.l.b16 %v4331
      %v8533 = vunpack.c.l.b16 %v4341
      %v8534 = vunpack.c.l.b16 %v4354
      %v8535 = vunpack.c.l.b16 %v4364
      %v8536 = vunpack.c.l.b16 %v4377
      %v8537 = vunpack.c.l.b16 %v4387
      %v8538 = vunpack.c.l.b16 %v4400
      %v8539 = vunpack.c.l.b16 %v4410
      %v8540 = vunpack.c.l.b16 %v4423
      %v8541 = vunpack.c.l.b16 %v4433
      %v8542 = vunpack.c.l.b16 %v4446
      %v8543 = vunpack.c.l.b16 %v4456
      %v8544 = vunpack.c.l.b16 %v4469
      %v8545 = vunpack.c.l.b16 %v4479
      %v8546 = vunpack.c.l.b16 %v4492
      %v8547 = vunpack.c.l.b16 %v4502
      %v8548 = vunpack.c.l.b16 %v4515
      %v8549 = vunpack.c.l.b16 %v4525
      %v8550 = vunpack.c.l.b16 %v4538
      %v8551 = vunpack.c.l.b16 %v4548
      %v8552 = vunpack.c.l.b16 %v4561
      %v8553 = vunpack.c.l.b16 %v4571
      %v8554 = vunpack.c.l.b16 %v4584
      %v8555 = vunpack.c.l.b16 %v4594
      %v8556 = vunpack.c.l.b16 %v4607
      %v8557 = vunpack.c.l.b16 %v4617
      %v8558 = vunpack.c.l.b16 %v4630
      %v8559 = vunpack.c.l.b16 %v4640
      %v8560 = vunpack.c.l.b16 %v4653
      %v8561 = vunpack.c.l.b16 %v4663
      %v8562 = vunpack.c.l.b16 %v4676
      %v8563 = vunpack.c.l.b16 %v4686
      %v8564 = vpack.c.b16 %v8533, %v8532
      %v8565 = vpack.c.b16 %v8535, %v8534
      %v8566 = vpack.c.b16 %v8537, %v8536
      %v8567 = vpack.c.b16 %v8539, %v8538
      %v8568 = vpack.c.b16 %v8541, %v8540
      %v8569 = vpack.c.b16 %v8543, %v8542
      %v8570 = vpack.c.b16 %v8545, %v8544
      %v8571 = vpack.c.b16 %v8547, %v8546
      %v8572 = vpack.c.b16 %v8549, %v8548
      %v8573 = vpack.c.b16 %v8551, %v8550
      %v8574 = vpack.c.b16 %v8553, %v8552
      %v8575 = vpack.c.b16 %v8555, %v8554
      %v8576 = vpack.c.b16 %v8557, %v8556
      %v8577 = vpack.c.b16 %v8559, %v8558
      %v8578 = vpack.c.b16 %v8561, %v8560
      %v8579 = vpack.c.b16 %v8563, %v8562
      %8580 = vrot.lane.b32.xlu0 %v8564, 56
      %v8581 = vpop.permute.xlu0 %8580
      %8582 = vrot.lane.b32.xlu0 %v8565, 56
      %v8583 = vpop.permute.xlu0 %8582
      %8584 = vrot.lane.b32.xlu0 %v8566, 56
      %v8585 = vpop.permute.xlu0 %8584
      %8586 = vrot.lane.b32.xlu0 %v8567, 56
      %v8587 = vpop.permute.xlu0 %8586
      %8588 = vrot.lane.b32.xlu0 %v8568, 56
      %v8589 = vpop.permute.xlu0 %8588
      %8590 = vrot.lane.b32.xlu0 %v8569, 56
      %v8591 = vpop.permute.xlu0 %8590
      %8592 = vrot.lane.b32.xlu0 %v8570, 56
      %v8593 = vpop.permute.xlu0 %8592
      %8594 = vrot.lane.b32.xlu0 %v8571, 56
      %v8595 = vpop.permute.xlu0 %8594
      %8596 = vrot.lane.b32.xlu0 %v8572, 56
      %v8597 = vpop.permute.xlu0 %8596
      %8598 = vrot.lane.b32.xlu0 %v8573, 56
      %v8599 = vpop.permute.xlu0 %8598
      %8600 = vrot.lane.b32.xlu0 %v8574, 56
      %v8601 = vpop.permute.xlu0 %8600
      %8602 = vrot.lane.b32.xlu0 %v8575, 56
      %v8603 = vpop.permute.xlu0 %8602
      %8604 = vrot.lane.b32.xlu0 %v8576, 56
      %v8605 = vpop.permute.xlu0 %8604
      %8606 = vrot.lane.b32.xlu0 %v8577, 56
      %v8607 = vpop.permute.xlu0 %8606
      %8608 = vrot.lane.b32.xlu0 %v8578, 56
      %v8609 = vpop.permute.xlu0 %8608
      %8610 = vrot.lane.b32.xlu0 %v8579, 56
      %v8611 = vpop.permute.xlu0 %8610
      %v8612 = vunpack.c.l.b16 %v4749
      %v8613 = vunpack.c.l.b16 %v4759
      %v8614 = vunpack.c.l.b16 %v4773
      %v8615 = vunpack.c.l.b16 %v4783
      %v8616 = vunpack.c.l.b16 %v4797
      %v8617 = vunpack.c.l.b16 %v4807
      %v8618 = vunpack.c.l.b16 %v4821
      %v8619 = vunpack.c.l.b16 %v4831
      %v8620 = vunpack.c.l.b16 %v4845
      %v8621 = vunpack.c.l.b16 %v4855
      %v8622 = vunpack.c.l.b16 %v4869
      %v8623 = vunpack.c.l.b16 %v4879
      %v8624 = vunpack.c.l.b16 %v4893
      %v8625 = vunpack.c.l.b16 %v4903
      %v8626 = vunpack.c.l.b16 %v4917
      %v8627 = vunpack.c.l.b16 %v4927
      %v8628 = vunpack.c.l.b16 %v4941
      %v8629 = vunpack.c.l.b16 %v4951
      %v8630 = vunpack.c.l.b16 %v4965
      %v8631 = vunpack.c.l.b16 %v4975
      %v8632 = vunpack.c.l.b16 %v4989
      %v8633 = vunpack.c.l.b16 %v4999
      %v8634 = vunpack.c.l.b16 %v5013
      %v8635 = vunpack.c.l.b16 %v5023
      %v8636 = vunpack.c.l.b16 %v5037
      %v8637 = vunpack.c.l.b16 %v5047
      %v8638 = vunpack.c.l.b16 %v5061
      %v8639 = vunpack.c.l.b16 %v5071
      %v8640 = vunpack.c.l.b16 %v5085
      %v8641 = vunpack.c.l.b16 %v5095
      %v8642 = vunpack.c.l.b16 %v5109
      %v8643 = vunpack.c.l.b16 %v5119
      %v8644 = vpack.c.b16 %v8613, %v8612
      %v8645 = vpack.c.b16 %v8615, %v8614
      %v8646 = vpack.c.b16 %v8617, %v8616
      %v8647 = vpack.c.b16 %v8619, %v8618
      %v8648 = vpack.c.b16 %v8621, %v8620
      %v8649 = vpack.c.b16 %v8623, %v8622
      %v8650 = vpack.c.b16 %v8625, %v8624
      %v8651 = vpack.c.b16 %v8627, %v8626
      %v8652 = vpack.c.b16 %v8629, %v8628
      %v8653 = vpack.c.b16 %v8631, %v8630
      %v8654 = vpack.c.b16 %v8633, %v8632
      %v8655 = vpack.c.b16 %v8635, %v8634
      %v8656 = vpack.c.b16 %v8637, %v8636
      %v8657 = vpack.c.b16 %v8639, %v8638
      %v8658 = vpack.c.b16 %v8641, %v8640
      %v8659 = vpack.c.b16 %v8643, %v8642
      %8660 = vrot.lane.b32.xlu0 %v8644, 60
      %v8661 = vpop.permute.xlu0 %8660
      %8662 = vrot.lane.b32.xlu0 %v8645, 60
      %v8663 = vpop.permute.xlu0 %8662
      %8664 = vrot.lane.b32.xlu0 %v8646, 60
      %v8665 = vpop.permute.xlu0 %8664
      %8666 = vrot.lane.b32.xlu0 %v8647, 60
      %v8667 = vpop.permute.xlu0 %8666
      %8668 = vrot.lane.b32.xlu0 %v8648, 60
      %v8669 = vpop.permute.xlu0 %8668
      %8670 = vrot.lane.b32.xlu0 %v8649, 60
      %v8671 = vpop.permute.xlu0 %8670
      %8672 = vrot.lane.b32.xlu0 %v8650, 60
      %v8673 = vpop.permute.xlu0 %8672
      %8674 = vrot.lane.b32.xlu0 %v8651, 60
      %v8675 = vpop.permute.xlu0 %8674
      %8676 = vrot.lane.b32.xlu0 %v8652, 60
      %v8677 = vpop.permute.xlu0 %8676
      %8678 = vrot.lane.b32.xlu0 %v8653, 60
      %v8679 = vpop.permute.xlu0 %8678
      %8680 = vrot.lane.b32.xlu0 %v8654, 60
      %v8681 = vpop.permute.xlu0 %8680
      %8682 = vrot.lane.b32.xlu0 %v8655, 60
      %v8683 = vpop.permute.xlu0 %8682
      %8684 = vrot.lane.b32.xlu0 %v8656, 60
      %v8685 = vpop.permute.xlu0 %8684
      %8686 = vrot.lane.b32.xlu0 %v8657, 60
      %v8687 = vpop.permute.xlu0 %8686
      %8688 = vrot.lane.b32.xlu0 %v8658, 60
      %v8689 = vpop.permute.xlu0 %8688
      %8690 = vrot.lane.b32.xlu0 %v8659, 60
      %v8691 = vpop.permute.xlu0 %8690
      %vm8692 = vcmask 31744
      %v8695 = vsel %vm8692, %v7524, %v7589
      %v8698 = vsel %vm8692, %v7525, %v7591
      %v8701 = vsel %vm8692, %v7526, %v7593
      %v8704 = vsel %vm8692, %v7527, %v7595
      %v8707 = vsel %vm8692, %v7528, %v7597
      %v8710 = vsel %vm8692, %v7529, %v7599
      %v8713 = vsel %vm8692, %v7530, %v7601
      %v8716 = vsel %vm8692, %v7531, %v7603
      %v8719 = vsel %vm8692, %v7532, %v7605
      %v8722 = vsel %vm8692, %v7533, %v7607
      %v8725 = vsel %vm8692, %v7534, %v7609
      %v8728 = vsel %vm8692, %v7535, %v7611
      %v8731 = vsel %vm8692, %v7536, %v7613
      %v8734 = vsel %vm8692, %v7537, %v7615
      %v8737 = vsel %vm8692, %v7538, %v7617
      %v8740 = vsel %vm8692, %v7539, %v7619
      %vm8741 = vcmask 64512
      %v8743 = vsel %vm8741, %v8695, %v7669
      %v8745 = vsel %vm8741, %v8698, %v7671
      %v8747 = vsel %vm8741, %v8701, %v7673
      %v8749 = vsel %vm8741, %v8704, %v7675
      %v8751 = vsel %vm8741, %v8707, %v7677
      %v8753 = vsel %vm8741, %v8710, %v7679
      %v8755 = vsel %vm8741, %v8713, %v7681
      %v8757 = vsel %vm8741, %v8716, %v7683
      %v8759 = vsel %vm8741, %v8719, %v7685
      %v8761 = vsel %vm8741, %v8722, %v7687
      %v8763 = vsel %vm8741, %v8725, %v7689
      %v8765 = vsel %vm8741, %v8728, %v7691
      %v8767 = vsel %vm8741, %v8731, %v7693
      %v8769 = vsel %vm8741, %v8734, %v7695
      %v8771 = vsel %vm8741, %v8737, %v7697
      %v8773 = vsel %vm8741, %v8740, %v7699
      %vm8774 = vcmask 97280
      %v8776 = vsel %vm8774, %v8743, %v7749
      %v8778 = vsel %vm8774, %v8745, %v7751
      %v8780 = vsel %vm8774, %v8747, %v7753
      %v8782 = vsel %vm8774, %v8749, %v7755
      %v8784 = vsel %vm8774, %v8751, %v7757
      %v8786 = vsel %vm8774, %v8753, %v7759
      %v8788 = vsel %vm8774, %v8755, %v7761
      %v8790 = vsel %vm8774, %v8757, %v7763
      %v8792 = vsel %vm8774, %v8759, %v7765
      %v8794 = vsel %vm8774, %v8761, %v7767
      %v8796 = vsel %vm8774, %v8763, %v7769
      %v8798 = vsel %vm8774, %v8765, %v7771
      %v8800 = vsel %vm8774, %v8767, %v7773
      %v8802 = vsel %vm8774, %v8769, %v7775
      %v8804 = vsel %vm8774, %v8771, %v7777
      %v8806 = vsel %vm8774, %v8773, %v7779
      %vm8807 = vcmask 130048
      %v8809 = vsel %vm8807, %v8776, %v7829
      %v8811 = vsel %vm8807, %v8778, %v7831
      %v8813 = vsel %vm8807, %v8780, %v7833
      %v8815 = vsel %vm8807, %v8782, %v7835
      %v8817 = vsel %vm8807, %v8784, %v7837
      %v8819 = vsel %vm8807, %v8786, %v7839
      %v8821 = vsel %vm8807, %v8788, %v7841
      %v8823 = vsel %vm8807, %v8790, %v7843
      %v8825 = vsel %vm8807, %v8792, %v7845
      %v8827 = vsel %vm8807, %v8794, %v7847
      %v8829 = vsel %vm8807, %v8796, %v7849
      %v8831 = vsel %vm8807, %v8798, %v7851
      %v8833 = vsel %vm8807, %v8800, %v7853
      %v8835 = vsel %vm8807, %v8802, %v7855
      %v8837 = vsel %vm8807, %v8804, %v7857
      %v8839 = vsel %vm8807, %v8806, %v7859
      %vm8840 = vcmask 162816
      %v8842 = vsel %vm8840, %v8809, %v7909
      %v8844 = vsel %vm8840, %v8811, %v7911
      %v8846 = vsel %vm8840, %v8813, %v7913
      %v8848 = vsel %vm8840, %v8815, %v7915
      %v8850 = vsel %vm8840, %v8817, %v7917
      %v8852 = vsel %vm8840, %v8819, %v7919
      %v8854 = vsel %vm8840, %v8821, %v7921
      %v8856 = vsel %vm8840, %v8823, %v7923
      %v8858 = vsel %vm8840, %v8825, %v7925
      %v8860 = vsel %vm8840, %v8827, %v7927
      %v8862 = vsel %vm8840, %v8829, %v7929
      %v8864 = vsel %vm8840, %v8831, %v7931
      %v8866 = vsel %vm8840, %v8833, %v7933
      %v8868 = vsel %vm8840, %v8835, %v7935
      %v8870 = vsel %vm8840, %v8837, %v7937
      %v8872 = vsel %vm8840, %v8839, %v7939
      %vm8873 = vcmask 195584
      %v8875 = vsel %vm8873, %v8842, %v7989
      %v8877 = vsel %vm8873, %v8844, %v7991
      %v8879 = vsel %vm8873, %v8846, %v7993
      %v8881 = vsel %vm8873, %v8848, %v7995
      %v8883 = vsel %vm8873, %v8850, %v7997
      %v8885 = vsel %vm8873, %v8852, %v7999
      %v8887 = vsel %vm8873, %v8854, %v8001
      %v8889 = vsel %vm8873, %v8856, %v8003
      %v8891 = vsel %vm8873, %v8858, %v8005
      %v8893 = vsel %vm8873, %v8860, %v8007
      %v8895 = vsel %vm8873, %v8862, %v8009
      %v8897 = vsel %vm8873, %v8864, %v8011
      %v8899 = vsel %vm8873, %v8866, %v8013
      %v8901 = vsel %vm8873, %v8868, %v8015
      %v8903 = vsel %vm8873, %v8870, %v8017
      %v8905 = vsel %vm8873, %v8872, %v8019
      %vm8906 = vcmask 228352
      %v8908 = vsel %vm8906, %v8875, %v8069
      %v8910 = vsel %vm8906, %v8877, %v8071
      %v8912 = vsel %vm8906, %v8879, %v8073
      %v8914 = vsel %vm8906, %v8881, %v8075
      %v8916 = vsel %vm8906, %v8883, %v8077
      %v8918 = vsel %vm8906, %v8885, %v8079
      %v8920 = vsel %vm8906, %v8887, %v8081
      %v8922 = vsel %vm8906, %v8889, %v8083
      %v8924 = vsel %vm8906, %v8891, %v8085
      %v8926 = vsel %vm8906, %v8893, %v8087
      %v8928 = vsel %vm8906, %v8895, %v8089
      %v8930 = vsel %vm8906, %v8897, %v8091
      %v8932 = vsel %vm8906, %v8899, %v8093
      %v8934 = vsel %vm8906, %v8901, %v8095
      %v8936 = vsel %vm8906, %v8903, %v8097
      %v8938 = vsel %vm8906, %v8905, %v8099
      %vm8939 = vcmask 261120
      %v8941 = vsel %vm8939, %v8908, %v8149
      %v8943 = vsel %vm8939, %v8910, %v8151
      %v8945 = vsel %vm8939, %v8912, %v8153
      %v8947 = vsel %vm8939, %v8914, %v8155
      %v8949 = vsel %vm8939, %v8916, %v8157
      %v8951 = vsel %vm8939, %v8918, %v8159
      %v8953 = vsel %vm8939, %v8920, %v8161
      %v8955 = vsel %vm8939, %v8922, %v8163
      %v8957 = vsel %vm8939, %v8924, %v8165
      %v8959 = vsel %vm8939, %v8926, %v8167
      %v8961 = vsel %vm8939, %v8928, %v8169
      %v8963 = vsel %vm8939, %v8930, %v8171
      %v8965 = vsel %vm8939, %v8932, %v8173
      %v8967 = vsel %vm8939, %v8934, %v8175
      %v8969 = vsel %vm8939, %v8936, %v8177
      %v8971 = vsel %vm8939, %v8938, %v8179
      %vm8972 = vcmask 293888
      %v8974 = vsel %vm8972, %v8941, %v8229
      %v8976 = vsel %vm8972, %v8943, %v8231
      %v8978 = vsel %vm8972, %v8945, %v8233
      %v8980 = vsel %vm8972, %v8947, %v8235
      %v8982 = vsel %vm8972, %v8949, %v8237
      %v8984 = vsel %vm8972, %v8951, %v8239
      %v8986 = vsel %vm8972, %v8953, %v8241
      %v8988 = vsel %vm8972, %v8955, %v8243
      %v8990 = vsel %vm8972, %v8957, %v8245
      %v8992 = vsel %vm8972, %v8959, %v8247
      %v8994 = vsel %vm8972, %v8961, %v8249
      %v8996 = vsel %vm8972, %v8963, %v8251
      %v8998 = vsel %vm8972, %v8965, %v8253
      %v9000 = vsel %vm8972, %v8967, %v8255
      %v9002 = vsel %vm8972, %v8969, %v8257
      %v9004 = vsel %vm8972, %v8971, %v8259
      %vm9005 = vcmask 326656
      %v9007 = vsel %vm9005, %v8974, %v8309
      %v9009 = vsel %vm9005, %v8976, %v8311
      %v9011 = vsel %vm9005, %v8978, %v8313
      %v9013 = vsel %vm9005, %v8980, %v8315
      %v9015 = vsel %vm9005, %v8982, %v8317
      %v9017 = vsel %vm9005, %v8984, %v8319
      %v9019 = vsel %vm9005, %v8986, %v8321
      %v9021 = vsel %vm9005, %v8988, %v8323
      %v9023 = vsel %vm9005, %v8990, %v8325
      %v9025 = vsel %vm9005, %v8992, %v8327
      %v9027 = vsel %vm9005, %v8994, %v8329
      %v9029 = vsel %vm9005, %v8996, %v8331
      %v9031 = vsel %vm9005, %v8998, %v8333
      %v9033 = vsel %vm9005, %v9000, %v8335
      %v9035 = vsel %vm9005, %v9002, %v8337
      %v9037 = vsel %vm9005, %v9004, %v8339
      %vm9038 = vcmask 359424
      %v9040 = vsel %vm9038, %v9007, %v8389
      %v9042 = vsel %vm9038, %v9009, %v8391
      %v9044 = vsel %vm9038, %v9011, %v8393
      %v9046 = vsel %vm9038, %v9013, %v8395
      %v9048 = vsel %vm9038, %v9015, %v8397
      %v9050 = vsel %vm9038, %v9017, %v8399
      %v9052 = vsel %vm9038, %v9019, %v8401
      %v9054 = vsel %vm9038, %v9021, %v8403
      %v9056 = vsel %vm9038, %v9023, %v8405
      %v9058 = vsel %vm9038, %v9025, %v8407
      %v9060 = vsel %vm9038, %v9027, %v8409
      %v9062 = vsel %vm9038, %v9029, %v8411
      %v9064 = vsel %vm9038, %v9031, %v8413
      %v9066 = vsel %vm9038, %v9033, %v8415
      %v9068 = vsel %vm9038, %v9035, %v8417
      %v9070 = vsel %vm9038, %v9037, %v8419
      %vm9071 = vcmask 392192
      %v9073 = vsel %vm9071, %v9040, %v8469
      %v9075 = vsel %vm9071, %v9042, %v8471
      %v9077 = vsel %vm9071, %v9044, %v8473
      %v9079 = vsel %vm9071, %v9046, %v8475
      %v9081 = vsel %vm9071, %v9048, %v8477
      %v9083 = vsel %vm9071, %v9050, %v8479
      %v9085 = vsel %vm9071, %v9052, %v8481
      %v9087 = vsel %vm9071, %v9054, %v8483
      %v9089 = vsel %vm9071, %v9056, %v8485
      %v9091 = vsel %vm9071, %v9058, %v8487
      %v9093 = vsel %vm9071, %v9060, %v8489
      %v9095 = vsel %vm9071, %v9062, %v8491
      %v9097 = vsel %vm9071, %v9064, %v8493
      %v9099 = vsel %vm9071, %v9066, %v8495
      %v9101 = vsel %vm9071, %v9068, %v8497
      %v9103 = vsel %vm9071, %v9070, %v8499
      %vm9104 = vcmask 424960
      %v9106 = vsel %vm9104, %v9073, %v8501
      %v9108 = vsel %vm9104, %v9075, %v8503
      %v9110 = vsel %vm9104, %v9077, %v8505
      %v9112 = vsel %vm9104, %v9079, %v8507
      %v9114 = vsel %vm9104, %v9081, %v8509
      %v9116 = vsel %vm9104, %v9083, %v8511
      %v9118 = vsel %vm9104, %v9085, %v8513
      %v9120 = vsel %vm9104, %v9087, %v8515
      %v9122 = vsel %vm9104, %v9089, %v8517
      %v9124 = vsel %vm9104, %v9091, %v8519
      %v9126 = vsel %vm9104, %v9093, %v8521
      %v9128 = vsel %vm9104, %v9095, %v8523
      %v9130 = vsel %vm9104, %v9097, %v8525
      %v9132 = vsel %vm9104, %v9099, %v8527
      %v9134 = vsel %vm9104, %v9101, %v8529
      %v9136 = vsel %vm9104, %v9103, %v8531
      %vm9137 = vcmask 457728
      %v9139 = vsel %vm9137, %v9106, %v8581
      %v9141 = vsel %vm9137, %v9108, %v8583
      %v9143 = vsel %vm9137, %v9110, %v8585
      %v9145 = vsel %vm9137, %v9112, %v8587
      %v9147 = vsel %vm9137, %v9114, %v8589
      %v9149 = vsel %vm9137, %v9116, %v8591
      %v9151 = vsel %vm9137, %v9118, %v8593
      %v9153 = vsel %vm9137, %v9120, %v8595
      %v9155 = vsel %vm9137, %v9122, %v8597
      %v9157 = vsel %vm9137, %v9124, %v8599
      %v9159 = vsel %vm9137, %v9126, %v8601
      %v9161 = vsel %vm9137, %v9128, %v8603
      %v9163 = vsel %vm9137, %v9130, %v8605
      %v9165 = vsel %vm9137, %v9132, %v8607
      %v9167 = vsel %vm9137, %v9134, %v8609
      %v9169 = vsel %vm9137, %v9136, %v8611
      %vm9170 = vcmask 490496
      %v9172 = vsel %vm9170, %v9139, %v8661
      %v9174 = vsel %vm9170, %v9141, %v8663
      %v9176 = vsel %vm9170, %v9143, %v8665
      %v9178 = vsel %vm9170, %v9145, %v8667
      %v9180 = vsel %vm9170, %v9147, %v8669
      %v9182 = vsel %vm9170, %v9149, %v8671
      %v9184 = vsel %vm9170, %v9151, %v8673
      %v9186 = vsel %vm9170, %v9153, %v8675
      %v9188 = vsel %vm9170, %v9155, %v8677
      %v9190 = vsel %vm9170, %v9157, %v8679
      %v9192 = vsel %vm9170, %v9159, %v8681
      %v9194 = vsel %vm9170, %v9161, %v8683
      %v9196 = vsel %vm9170, %v9163, %v8685
      %v9198 = vsel %vm9170, %v9165, %v8687
      %v9200 = vsel %vm9170, %v9167, %v8689
      %v9202 = vsel %vm9170, %v9169, %v8691
      %v9203 = vunpack.c.l.b16 %v5164
      %v9204 = vunpack.c.l.b16 %v5174
      %v9205 = vunpack.c.l.b16 %v5187
      %v9206 = vunpack.c.l.b16 %v5197
      %v9207 = vunpack.c.l.b16 %v5210
      %v9208 = vunpack.c.l.b16 %v5220
      %v9209 = vunpack.c.l.b16 %v5233
      %v9210 = vunpack.c.l.b16 %v5243
      %v9211 = vunpack.c.l.b16 %v5256
      %v9212 = vunpack.c.l.b16 %v5266
      %v9213 = vunpack.c.l.b16 %v5279
      %v9214 = vunpack.c.l.b16 %v5289
      %v9215 = vunpack.c.l.b16 %v5302
      %v9216 = vunpack.c.l.b16 %v5312
      %v9217 = vunpack.c.l.b16 %v5325
      %v9218 = vunpack.c.l.b16 %v5335
      %v9219 = vunpack.c.l.b16 %v5348
      %v9220 = vunpack.c.l.b16 %v5358
      %v9221 = vunpack.c.l.b16 %v5371
      %v9222 = vunpack.c.l.b16 %v5381
      %v9223 = vunpack.c.l.b16 %v5394
      %v9224 = vunpack.c.l.b16 %v5404
      %v9225 = vunpack.c.l.b16 %v5417
      %v9226 = vunpack.c.l.b16 %v5427
      %v9227 = vunpack.c.l.b16 %v5440
      %v9228 = vunpack.c.l.b16 %v5450
      %v9229 = vunpack.c.l.b16 %v5463
      %v9230 = vunpack.c.l.b16 %v5473
      %v9231 = vunpack.c.l.b16 %v5486
      %v9232 = vunpack.c.l.b16 %v5496
      %v9233 = vunpack.c.l.b16 %v5509
      %v9234 = vunpack.c.l.b16 %v5519
      %v9235 = vpack.c.b16 %v9204, %v9203
      %v9236 = vpack.c.b16 %v9206, %v9205
      %v9237 = vpack.c.b16 %v9208, %v9207
      %v9238 = vpack.c.b16 %v9210, %v9209
      %v9239 = vpack.c.b16 %v9212, %v9211
      %v9240 = vpack.c.b16 %v9214, %v9213
      %v9241 = vpack.c.b16 %v9216, %v9215
      %v9242 = vpack.c.b16 %v9218, %v9217
      %v9243 = vpack.c.b16 %v9220, %v9219
      %v9244 = vpack.c.b16 %v9222, %v9221
      %v9245 = vpack.c.b16 %v9224, %v9223
      %v9246 = vpack.c.b16 %v9226, %v9225
      %v9247 = vpack.c.b16 %v9228, %v9227
      %v9248 = vpack.c.b16 %v9230, %v9229
      %v9249 = vpack.c.b16 %v9232, %v9231
      %v9250 = vpack.c.b16 %v9234, %v9233
      %v9251 = vunpack.c.l.b16 %v5564
      %v9252 = vunpack.c.l.b16 %v5574
      %v9253 = vunpack.c.l.b16 %v5587
      %v9254 = vunpack.c.l.b16 %v5597
      %v9255 = vunpack.c.l.b16 %v5610
      %v9256 = vunpack.c.l.b16 %v5620
      %v9257 = vunpack.c.l.b16 %v5633
      %v9258 = vunpack.c.l.b16 %v5643
      %v9259 = vunpack.c.l.b16 %v5656
      %v9260 = vunpack.c.l.b16 %v5666
      %v9261 = vunpack.c.l.b16 %v5679
      %v9262 = vunpack.c.l.b16 %v5689
      %v9263 = vunpack.c.l.b16 %v5702
      %v9264 = vunpack.c.l.b16 %v5712
      %v9265 = vunpack.c.l.b16 %v5725
      %v9266 = vunpack.c.l.b16 %v5735
      %v9267 = vunpack.c.l.b16 %v5748
      %v9268 = vunpack.c.l.b16 %v5758
      %v9269 = vunpack.c.l.b16 %v5771
      %v9270 = vunpack.c.l.b16 %v5781
      %v9271 = vunpack.c.l.b16 %v5794
      %v9272 = vunpack.c.l.b16 %v5804
      %v9273 = vunpack.c.l.b16 %v5817
      %v9274 = vunpack.c.l.b16 %v5827
      %v9275 = vunpack.c.l.b16 %v5840
      %v9276 = vunpack.c.l.b16 %v5850
      %v9277 = vunpack.c.l.b16 %v5863
      %v9278 = vunpack.c.l.b16 %v5873
      %v9279 = vunpack.c.l.b16 %v5886
      %v9280 = vunpack.c.l.b16 %v5896
      %v9281 = vunpack.c.l.b16 %v5909
      %v9282 = vunpack.c.l.b16 %v5919
      %v9283 = vpack.c.b16 %v9252, %v9251
      %v9284 = vpack.c.b16 %v9254, %v9253
      %v9285 = vpack.c.b16 %v9256, %v9255
      %v9286 = vpack.c.b16 %v9258, %v9257
      %v9287 = vpack.c.b16 %v9260, %v9259
      %v9288 = vpack.c.b16 %v9262, %v9261
      %v9289 = vpack.c.b16 %v9264, %v9263
      %v9290 = vpack.c.b16 %v9266, %v9265
      %v9291 = vpack.c.b16 %v9268, %v9267
      %v9292 = vpack.c.b16 %v9270, %v9269
      %v9293 = vpack.c.b16 %v9272, %v9271
      %v9294 = vpack.c.b16 %v9274, %v9273
      %v9295 = vpack.c.b16 %v9276, %v9275
      %v9296 = vpack.c.b16 %v9278, %v9277
      %v9297 = vpack.c.b16 %v9280, %v9279
      %v9298 = vpack.c.b16 %v9282, %v9281
      %9299 = vrot.lane.b32.xlu0 %v9283, 4
      %v9300 = vpop.permute.xlu0 %9299
      %9301 = vrot.lane.b32.xlu0 %v9284, 4
      %v9302 = vpop.permute.xlu0 %9301
      %9303 = vrot.lane.b32.xlu0 %v9285, 4
      %v9304 = vpop.permute.xlu0 %9303
      %9305 = vrot.lane.b32.xlu0 %v9286, 4
      %v9306 = vpop.permute.xlu0 %9305
      %9307 = vrot.lane.b32.xlu0 %v9287, 4
      %v9308 = vpop.permute.xlu0 %9307
      %9309 = vrot.lane.b32.xlu0 %v9288, 4
      %v9310 = vpop.permute.xlu0 %9309
      %9311 = vrot.lane.b32.xlu0 %v9289, 4
      %v9312 = vpop.permute.xlu0 %9311
      %9313 = vrot.lane.b32.xlu0 %v9290, 4
      %v9314 = vpop.permute.xlu0 %9313
      %9315 = vrot.lane.b32.xlu0 %v9291, 4
      %v9316 = vpop.permute.xlu0 %9315
      %9317 = vrot.lane.b32.xlu0 %v9292, 4
      %v9318 = vpop.permute.xlu0 %9317
      %9319 = vrot.lane.b32.xlu0 %v9293, 4
      %v9320 = vpop.permute.xlu0 %9319
      %9321 = vrot.lane.b32.xlu0 %v9294, 4
      %v9322 = vpop.permute.xlu0 %9321
      %9323 = vrot.lane.b32.xlu0 %v9295, 4
      %v9324 = vpop.permute.xlu0 %9323
      %9325 = vrot.lane.b32.xlu0 %v9296, 4
      %v9326 = vpop.permute.xlu0 %9325
      %9327 = vrot.lane.b32.xlu0 %v9297, 4
      %v9328 = vpop.permute.xlu0 %9327
      %9329 = vrot.lane.b32.xlu0 %v9298, 4
      %v9330 = vpop.permute.xlu0 %9329
      %v9347 = vunpack.c.l.b16 %v5920
      %v9348 = vunpack.c.l.b16 %v5921
      %v9349 = vunpack.c.l.b16 %v5922
      %v9350 = vunpack.c.l.b16 %v5923
      %v9351 = vunpack.c.l.b16 %v5924
      %v9352 = vunpack.c.l.b16 %v5925
      %v9353 = vunpack.c.l.b16 %v5926
      %v9354 = vunpack.c.l.b16 %v5927
      %v9355 = vunpack.c.l.b16 %v5928
      %v9356 = vunpack.c.l.b16 %v5929
      %v9357 = vunpack.c.l.b16 %v5930
      %v9358 = vunpack.c.l.b16 %v5931
      %v9359 = vunpack.c.l.b16 %v5932
      %v9360 = vunpack.c.l.b16 %v5933
      %v9361 = vunpack.c.l.b16 %v5934
      %v9362 = vunpack.c.l.b16 %v5935
      %v9363 = vunpack.c.l.b16 %v5936
      %v9364 = vunpack.c.l.b16 %v5937
      %v9365 = vunpack.c.l.b16 %v5938
      %v9366 = vunpack.c.l.b16 %v5939
      %v9367 = vunpack.c.l.b16 %v5940
      %v9368 = vunpack.c.l.b16 %v5941
      %v9369 = vunpack.c.l.b16 %v5942
      %v9370 = vunpack.c.l.b16 %v5943
      %v9371 = vunpack.c.l.b16 %v5944
      %v9372 = vunpack.c.l.b16 %v5945
      %v9373 = vunpack.c.l.b16 %v5946
      %v9374 = vunpack.c.l.b16 %v5947
      %v9375 = vunpack.c.l.b16 %v5948
      %v9376 = vunpack.c.l.b16 %v5949
      %v9377 = vunpack.c.l.b16 %v5950
      %v9378 = vunpack.c.l.b16 %v5951
      %v9379 = vpack.c.b16 %v9348, %v9347
      %v9380 = vpack.c.b16 %v9350, %v9349
      %v9381 = vpack.c.b16 %v9352, %v9351
      %v9382 = vpack.c.b16 %v9354, %v9353
      %v9383 = vpack.c.b16 %v9356, %v9355
      %v9384 = vpack.c.b16 %v9358, %v9357
      %v9385 = vpack.c.b16 %v9360, %v9359
      %v9386 = vpack.c.b16 %v9362, %v9361
      %v9387 = vpack.c.b16 %v9364, %v9363
      %v9388 = vpack.c.b16 %v9366, %v9365
      %v9389 = vpack.c.b16 %v9368, %v9367
      %v9390 = vpack.c.b16 %v9370, %v9369
      %v9391 = vpack.c.b16 %v9372, %v9371
      %v9392 = vpack.c.b16 %v9374, %v9373
      %v9393 = vpack.c.b16 %v9376, %v9375
      %v9394 = vpack.c.b16 %v9378, %v9377
      %9395 = vrot.lane.b32.xlu0 %v9379, 8
      %v9396 = vpop.permute.xlu0 %9395
      %9397 = vrot.lane.b32.xlu0 %v9380, 8
      %v9398 = vpop.permute.xlu0 %9397
      %9399 = vrot.lane.b32.xlu0 %v9381, 8
      %v9400 = vpop.permute.xlu0 %9399
      %9401 = vrot.lane.b32.xlu0 %v9382, 8
      %v9402 = vpop.permute.xlu0 %9401
      %9403 = vrot.lane.b32.xlu0 %v9383, 8
      %v9404 = vpop.permute.xlu0 %9403
      %9405 = vrot.lane.b32.xlu0 %v9384, 8
      %v9406 = vpop.permute.xlu0 %9405
      %9407 = vrot.lane.b32.xlu0 %v9385, 8
      %v9408 = vpop.permute.xlu0 %9407
      %9409 = vrot.lane.b32.xlu0 %v9386, 8
      %v9410 = vpop.permute.xlu0 %9409
      %9411 = vrot.lane.b32.xlu0 %v9387, 8
      %v9412 = vpop.permute.xlu0 %9411
      %9413 = vrot.lane.b32.xlu0 %v9388, 8
      %v9414 = vpop.permute.xlu0 %9413
      %9415 = vrot.lane.b32.xlu0 %v9389, 8
      %v9416 = vpop.permute.xlu0 %9415
      %9417 = vrot.lane.b32.xlu0 %v9390, 8
      %v9418 = vpop.permute.xlu0 %9417
      %9419 = vrot.lane.b32.xlu0 %v9391, 8
      %v9420 = vpop.permute.xlu0 %9419
      %9421 = vrot.lane.b32.xlu0 %v9392, 8
      %v9422 = vpop.permute.xlu0 %9421
      %9423 = vrot.lane.b32.xlu0 %v9393, 8
      %v9424 = vpop.permute.xlu0 %9423
      %9425 = vrot.lane.b32.xlu0 %v9394, 8
      %v9426 = vpop.permute.xlu0 %9425
      %v9427 = vunpack.c.l.b16 %v6001
      %v9428 = vunpack.c.l.b16 %v6011
      %v9429 = vunpack.c.l.b16 %v6029
      %v9430 = vunpack.c.l.b16 %v6039
      %v9431 = vunpack.c.l.b16 %v6057
      %v9432 = vunpack.c.l.b16 %v6067
      %v9433 = vunpack.c.l.b16 %v6085
      %v9434 = vunpack.c.l.b16 %v6095
      %v9435 = vunpack.c.l.b16 %v6113
      %v9436 = vunpack.c.l.b16 %v6123
      %v9437 = vunpack.c.l.b16 %v6141
      %v9438 = vunpack.c.l.b16 %v6151
      %v9439 = vunpack.c.l.b16 %v6169
      %v9440 = vunpack.c.l.b16 %v6179
      %v9441 = vunpack.c.l.b16 %v6197
      %v9442 = vunpack.c.l.b16 %v6207
      %v9443 = vunpack.c.l.b16 %v6225
      %v9444 = vunpack.c.l.b16 %v6235
      %v9445 = vunpack.c.l.b16 %v6253
      %v9446 = vunpack.c.l.b16 %v6263
      %v9447 = vunpack.c.l.b16 %v6281
      %v9448 = vunpack.c.l.b16 %v6291
      %v9449 = vunpack.c.l.b16 %v6309
      %v9450 = vunpack.c.l.b16 %v6319
      %v9451 = vunpack.c.l.b16 %v6337
      %v9452 = vunpack.c.l.b16 %v6347
      %v9453 = vunpack.c.l.b16 %v6365
      %v9454 = vunpack.c.l.b16 %v6375
      %v9455 = vunpack.c.l.b16 %v6393
      %v9456 = vunpack.c.l.b16 %v6403
      %v9457 = vunpack.c.l.b16 %v6421
      %v9458 = vunpack.c.l.b16 %v6431
      %v9459 = vpack.c.b16 %v9428, %v9427
      %v9460 = vpack.c.b16 %v9430, %v9429
      %v9461 = vpack.c.b16 %v9432, %v9431
      %v9462 = vpack.c.b16 %v9434, %v9433
      %v9463 = vpack.c.b16 %v9436, %v9435
      %v9464 = vpack.c.b16 %v9438, %v9437
      %v9465 = vpack.c.b16 %v9440, %v9439
      %v9466 = vpack.c.b16 %v9442, %v9441
      %v9467 = vpack.c.b16 %v9444, %v9443
      %v9468 = vpack.c.b16 %v9446, %v9445
      %v9469 = vpack.c.b16 %v9448, %v9447
      %v9470 = vpack.c.b16 %v9450, %v9449
      %v9471 = vpack.c.b16 %v9452, %v9451
      %v9472 = vpack.c.b16 %v9454, %v9453
      %v9473 = vpack.c.b16 %v9456, %v9455
      %v9474 = vpack.c.b16 %v9458, %v9457
      %9475 = vrot.lane.b32.xlu0 %v9459, 12
      %v9476 = vpop.permute.xlu0 %9475
      %9477 = vrot.lane.b32.xlu0 %v9460, 12
      %v9478 = vpop.permute.xlu0 %9477
      %9479 = vrot.lane.b32.xlu0 %v9461, 12
      %v9480 = vpop.permute.xlu0 %9479
      %9481 = vrot.lane.b32.xlu0 %v9462, 12
      %v9482 = vpop.permute.xlu0 %9481
      %9483 = vrot.lane.b32.xlu0 %v9463, 12
      %v9484 = vpop.permute.xlu0 %9483
      %9485 = vrot.lane.b32.xlu0 %v9464, 12
      %v9486 = vpop.permute.xlu0 %9485
      %9487 = vrot.lane.b32.xlu0 %v9465, 12
      %v9488 = vpop.permute.xlu0 %9487
      %9489 = vrot.lane.b32.xlu0 %v9466, 12
      %v9490 = vpop.permute.xlu0 %9489
      %9491 = vrot.lane.b32.xlu0 %v9467, 12
      %v9492 = vpop.permute.xlu0 %9491
      %9493 = vrot.lane.b32.xlu0 %v9468, 12
      %v9494 = vpop.permute.xlu0 %9493
      %9495 = vrot.lane.b32.xlu0 %v9469, 12
      %v9496 = vpop.permute.xlu0 %9495
      %9497 = vrot.lane.b32.xlu0 %v9470, 12
      %v9498 = vpop.permute.xlu0 %9497
      %9499 = vrot.lane.b32.xlu0 %v9471, 12
      %v9500 = vpop.permute.xlu0 %9499
      %9501 = vrot.lane.b32.xlu0 %v9472, 12
      %v9502 = vpop.permute.xlu0 %9501
      %9503 = vrot.lane.b32.xlu0 %v9473, 12
      %v9504 = vpop.permute.xlu0 %9503
      %9505 = vrot.lane.b32.xlu0 %v9474, 12
      %v9506 = vpop.permute.xlu0 %9505
      %v9507 = vunpack.c.l.b16 %v6518
      %v9508 = vunpack.c.l.b16 %v6521
      %v9509 = vunpack.c.l.b16 %v6525
      %v9510 = vunpack.c.l.b16 %v6528
      %v9511 = vunpack.c.l.b16 %v6532
      %v9512 = vunpack.c.l.b16 %v6535
      %v9513 = vunpack.c.l.b16 %v6539
      %v9514 = vunpack.c.l.b16 %v6542
      %v9515 = vunpack.c.l.b16 %v6546
      %v9516 = vunpack.c.l.b16 %v6549
      %v9517 = vunpack.c.l.b16 %v6553
      %v9518 = vunpack.c.l.b16 %v6556
      %v9519 = vunpack.c.l.b16 %v6560
      %v9520 = vunpack.c.l.b16 %v6563
      %v9521 = vunpack.c.l.b16 %v6567
      %v9522 = vunpack.c.l.b16 %v6570
      %v9523 = vunpack.c.l.b16 %v6574
      %v9524 = vunpack.c.l.b16 %v6577
      %v9525 = vunpack.c.l.b16 %v6581
      %v9526 = vunpack.c.l.b16 %v6584
      %v9527 = vunpack.c.l.b16 %v6588
      %v9528 = vunpack.c.l.b16 %v6591
      %v9529 = vunpack.c.l.b16 %v6595
      %v9530 = vunpack.c.l.b16 %v6598
      %v9531 = vunpack.c.l.b16 %v6602
      %v9532 = vunpack.c.l.b16 %v6605
      %v9533 = vunpack.c.l.b16 %v6609
      %v9534 = vunpack.c.l.b16 %v6612
      %v9535 = vunpack.c.l.b16 %v6616
      %v9536 = vunpack.c.l.b16 %v6619
      %v9537 = vunpack.c.l.b16 %v6623
      %v9538 = vunpack.c.l.b16 %v6626
      %v9539 = vpack.c.b16 %v9508, %v9507
      %v9540 = vpack.c.b16 %v9510, %v9509
      %v9541 = vpack.c.b16 %v9512, %v9511
      %v9542 = vpack.c.b16 %v9514, %v9513
      %v9543 = vpack.c.b16 %v9516, %v9515
      %v9544 = vpack.c.b16 %v9518, %v9517
      %v9545 = vpack.c.b16 %v9520, %v9519
      %v9546 = vpack.c.b16 %v9522, %v9521
      %v9547 = vpack.c.b16 %v9524, %v9523
      %v9548 = vpack.c.b16 %v9526, %v9525
      %v9549 = vpack.c.b16 %v9528, %v9527
      %v9550 = vpack.c.b16 %v9530, %v9529
      %v9551 = vpack.c.b16 %v9532, %v9531
      %v9552 = vpack.c.b16 %v9534, %v9533
      %v9553 = vpack.c.b16 %v9536, %v9535
      %v9554 = vpack.c.b16 %v9538, %v9537
      %9555 = vrot.lane.b32.xlu0 %v9539, 16
      %v9556 = vpop.permute.xlu0 %9555
      %9557 = vrot.lane.b32.xlu0 %v9540, 16
      %v9558 = vpop.permute.xlu0 %9557
      %9559 = vrot.lane.b32.xlu0 %v9541, 16
      %v9560 = vpop.permute.xlu0 %9559
      %9561 = vrot.lane.b32.xlu0 %v9542, 16
      %v9562 = vpop.permute.xlu0 %9561
      %9563 = vrot.lane.b32.xlu0 %v9543, 16
      %v9564 = vpop.permute.xlu0 %9563
      %9565 = vrot.lane.b32.xlu0 %v9544, 16
      %v9566 = vpop.permute.xlu0 %9565
      %9567 = vrot.lane.b32.xlu0 %v9545, 16
      %v9568 = vpop.permute.xlu0 %9567
      %9569 = vrot.lane.b32.xlu0 %v9546, 16
      %v9570 = vpop.permute.xlu0 %9569
      %9571 = vrot.lane.b32.xlu0 %v9547, 16
      %v9572 = vpop.permute.xlu0 %9571
      %9573 = vrot.lane.b32.xlu0 %v9548, 16
      %v9574 = vpop.permute.xlu0 %9573
      %9575 = vrot.lane.b32.xlu0 %v9549, 16
      %v9576 = vpop.permute.xlu0 %9575
      %9577 = vrot.lane.b32.xlu0 %v9550, 16
      %v9578 = vpop.permute.xlu0 %9577
      %9579 = vrot.lane.b32.xlu0 %v9551, 16
      %v9580 = vpop.permute.xlu0 %9579
      %9581 = vrot.lane.b32.xlu0 %v9552, 16
      %v9582 = vpop.permute.xlu0 %9581
      %9583 = vrot.lane.b32.xlu0 %v9553, 16
      %v9584 = vpop.permute.xlu0 %9583
      %9585 = vrot.lane.b32.xlu0 %v9554, 16
      %v9586 = vpop.permute.xlu0 %9585
      %v9603 = vunpack.c.l.b16 %v3983
      %v9604 = vunpack.c.l.b16 %v1080
      %v9605 = vunpack.c.l.b16 %v3984
      %v9606 = vunpack.c.l.b16 %v1083
      %v9607 = vunpack.c.l.b16 %v3985
      %v9608 = vunpack.c.l.b16 %v1086
      %v9609 = vunpack.c.l.b16 %v3986
      %v9610 = vunpack.c.l.b16 %v1089
      %v9611 = vunpack.c.l.b16 %v3987
      %v9612 = vunpack.c.l.b16 %v1092
      %v9613 = vunpack.c.l.b16 %v3988
      %v9614 = vunpack.c.l.b16 %v1095
      %v9615 = vunpack.c.l.b16 %v3989
      %v9616 = vunpack.c.l.b16 %v1098
      %v9617 = vunpack.c.l.b16 %v3990
      %v9618 = vunpack.c.l.b16 %v1101
      %v9619 = vunpack.c.l.b16 %v3991
      %v9620 = vunpack.c.l.b16 %v1104
      %v9621 = vunpack.c.l.b16 %v3992
      %v9622 = vunpack.c.l.b16 %v1107
      %v9623 = vunpack.c.l.b16 %v3993
      %v9624 = vunpack.c.l.b16 %v1110
      %v9625 = vunpack.c.l.b16 %v3994
      %v9626 = vunpack.c.l.b16 %v1113
      %v9627 = vunpack.c.l.b16 %v3995
      %v9628 = vunpack.c.l.b16 %v1116
      %v9629 = vunpack.c.l.b16 %v3996
      %v9630 = vunpack.c.l.b16 %v1119
      %v9631 = vunpack.c.l.b16 %v3997
      %v9632 = vunpack.c.l.b16 %v1122
      %v9633 = vunpack.c.l.b16 %v3998
      %v9634 = vunpack.c.l.b16 %v1125
      %v9635 = vpack.c.b16 %v9604, %v9603
      %v9636 = vpack.c.b16 %v9606, %v9605
      %v9637 = vpack.c.b16 %v9608, %v9607
      %v9638 = vpack.c.b16 %v9610, %v9609
      %v9639 = vpack.c.b16 %v9612, %v9611
      %v9640 = vpack.c.b16 %v9614, %v9613
      %v9641 = vpack.c.b16 %v9616, %v9615
      %v9642 = vpack.c.b16 %v9618, %v9617
      %v9643 = vpack.c.b16 %v9620, %v9619
      %v9644 = vpack.c.b16 %v9622, %v9621
      %v9645 = vpack.c.b16 %v9624, %v9623
      %v9646 = vpack.c.b16 %v9626, %v9625
      %v9647 = vpack.c.b16 %v9628, %v9627
      %v9648 = vpack.c.b16 %v9630, %v9629
      %v9649 = vpack.c.b16 %v9632, %v9631
      %v9650 = vpack.c.b16 %v9634, %v9633
      %9651 = vrot.lane.b32.xlu0 %v9635, 20
      %v9652 = vpop.permute.xlu0 %9651
      %9653 = vrot.lane.b32.xlu0 %v9636, 20
      %v9654 = vpop.permute.xlu0 %9653
      %9655 = vrot.lane.b32.xlu0 %v9637, 20
      %v9656 = vpop.permute.xlu0 %9655
      %9657 = vrot.lane.b32.xlu0 %v9638, 20
      %v9658 = vpop.permute.xlu0 %9657
      %9659 = vrot.lane.b32.xlu0 %v9639, 20
      %v9660 = vpop.permute.xlu0 %9659
      %9661 = vrot.lane.b32.xlu0 %v9640, 20
      %v9662 = vpop.permute.xlu0 %9661
      %9663 = vrot.lane.b32.xlu0 %v9641, 20
      %v9664 = vpop.permute.xlu0 %9663
      %9665 = vrot.lane.b32.xlu0 %v9642, 20
      %v9666 = vpop.permute.xlu0 %9665
      %9667 = vrot.lane.b32.xlu0 %v9643, 20
      %v9668 = vpop.permute.xlu0 %9667
      %9669 = vrot.lane.b32.xlu0 %v9644, 20
      %v9670 = vpop.permute.xlu0 %9669
      %9671 = vrot.lane.b32.xlu0 %v9645, 20
      %v9672 = vpop.permute.xlu0 %9671
      %9673 = vrot.lane.b32.xlu0 %v9646, 20
      %v9674 = vpop.permute.xlu0 %9673
      %9675 = vrot.lane.b32.xlu0 %v9647, 20
      %v9676 = vpop.permute.xlu0 %9675
      %9677 = vrot.lane.b32.xlu0 %v9648, 20
      %v9678 = vpop.permute.xlu0 %9677
      %9679 = vrot.lane.b32.xlu0 %v9649, 20
      %v9680 = vpop.permute.xlu0 %9679
      %9681 = vrot.lane.b32.xlu0 %v9650, 20
      %v9682 = vpop.permute.xlu0 %9681
      %9683 = vrot.lane.b32.xlu0 %v7812, 24
      %v9684 = vpop.permute.xlu0 %9683
      %9685 = vrot.lane.b32.xlu0 %v7813, 24
      %v9686 = vpop.permute.xlu0 %9685
      %9687 = vrot.lane.b32.xlu0 %v7814, 24
      %v9688 = vpop.permute.xlu0 %9687
      %9689 = vrot.lane.b32.xlu0 %v7815, 24
      %v9690 = vpop.permute.xlu0 %9689
      %9691 = vrot.lane.b32.xlu0 %v7816, 24
      %v9692 = vpop.permute.xlu0 %9691
      %9693 = vrot.lane.b32.xlu0 %v7817, 24
      %v9694 = vpop.permute.xlu0 %9693
      %9695 = vrot.lane.b32.xlu0 %v7818, 24
      %v9696 = vpop.permute.xlu0 %9695
      %9697 = vrot.lane.b32.xlu0 %v7819, 24
      %v9698 = vpop.permute.xlu0 %9697
      %9699 = vrot.lane.b32.xlu0 %v7820, 24
      %v9700 = vpop.permute.xlu0 %9699
      %9701 = vrot.lane.b32.xlu0 %v7821, 24
      %v9702 = vpop.permute.xlu0 %9701
      %9703 = vrot.lane.b32.xlu0 %v7822, 24
      %v9704 = vpop.permute.xlu0 %9703
      %9705 = vrot.lane.b32.xlu0 %v7823, 24
      %v9706 = vpop.permute.xlu0 %9705
      %9707 = vrot.lane.b32.xlu0 %v7824, 24
      %v9708 = vpop.permute.xlu0 %9707
      %9709 = vrot.lane.b32.xlu0 %v7825, 24
      %v9710 = vpop.permute.xlu0 %9709
      %9711 = vrot.lane.b32.xlu0 %v7826, 24
      %v9712 = vpop.permute.xlu0 %9711
      %9713 = vrot.lane.b32.xlu0 %v7827, 24
      %v9714 = vpop.permute.xlu0 %9713
      %v9715 = vunpack.c.l.b16 %v6678
      %v9716 = vunpack.c.l.b16 %v6681
      %v9717 = vunpack.c.l.b16 %v6685
      %v9718 = vunpack.c.l.b16 %v6688
      %v9719 = vunpack.c.l.b16 %v6692
      %v9720 = vunpack.c.l.b16 %v6695
      %v9721 = vunpack.c.l.b16 %v6699
      %v9722 = vunpack.c.l.b16 %v6702
      %v9723 = vunpack.c.l.b16 %v6706
      %v9724 = vunpack.c.l.b16 %v6709
      %v9725 = vunpack.c.l.b16 %v6713
      %v9726 = vunpack.c.l.b16 %v6716
      %v9727 = vunpack.c.l.b16 %v6720
      %v9728 = vunpack.c.l.b16 %v6723
      %v9729 = vunpack.c.l.b16 %v6727
      %v9730 = vunpack.c.l.b16 %v6730
      %v9731 = vunpack.c.l.b16 %v6734
      %v9732 = vunpack.c.l.b16 %v6737
      %v9733 = vunpack.c.l.b16 %v6741
      %v9734 = vunpack.c.l.b16 %v6744
      %v9735 = vunpack.c.l.b16 %v6748
      %v9736 = vunpack.c.l.b16 %v6751
      %v9737 = vunpack.c.l.b16 %v6755
      %v9738 = vunpack.c.l.b16 %v6758
      %v9739 = vunpack.c.l.b16 %v6762
      %v9740 = vunpack.c.l.b16 %v6765
      %v9741 = vunpack.c.l.b16 %v6769
      %v9742 = vunpack.c.l.b16 %v6772
      %v9743 = vunpack.c.l.b16 %v6776
      %v9744 = vunpack.c.l.b16 %v6779
      %v9745 = vunpack.c.l.b16 %v6783
      %v9746 = vunpack.c.l.b16 %v6786
      %v9747 = vpack.c.b16 %v9716, %v9715
      %v9748 = vpack.c.b16 %v9718, %v9717
      %v9749 = vpack.c.b16 %v9720, %v9719
      %v9750 = vpack.c.b16 %v9722, %v9721
      %v9751 = vpack.c.b16 %v9724, %v9723
      %v9752 = vpack.c.b16 %v9726, %v9725
      %v9753 = vpack.c.b16 %v9728, %v9727
      %v9754 = vpack.c.b16 %v9730, %v9729
      %v9755 = vpack.c.b16 %v9732, %v9731
      %v9756 = vpack.c.b16 %v9734, %v9733
      %v9757 = vpack.c.b16 %v9736, %v9735
      %v9758 = vpack.c.b16 %v9738, %v9737
      %v9759 = vpack.c.b16 %v9740, %v9739
      %v9760 = vpack.c.b16 %v9742, %v9741
      %v9761 = vpack.c.b16 %v9744, %v9743
      %v9762 = vpack.c.b16 %v9746, %v9745
      %9763 = vrot.lane.b32.xlu0 %v9747, 28
      %v9764 = vpop.permute.xlu0 %9763
      %9765 = vrot.lane.b32.xlu0 %v9748, 28
      %v9766 = vpop.permute.xlu0 %9765
      %9767 = vrot.lane.b32.xlu0 %v9749, 28
      %v9768 = vpop.permute.xlu0 %9767
      %9769 = vrot.lane.b32.xlu0 %v9750, 28
      %v9770 = vpop.permute.xlu0 %9769
      %9771 = vrot.lane.b32.xlu0 %v9751, 28
      %v9772 = vpop.permute.xlu0 %9771
      %9773 = vrot.lane.b32.xlu0 %v9752, 28
      %v9774 = vpop.permute.xlu0 %9773
      %9775 = vrot.lane.b32.xlu0 %v9753, 28
      %v9776 = vpop.permute.xlu0 %9775
      %9777 = vrot.lane.b32.xlu0 %v9754, 28
      %v9778 = vpop.permute.xlu0 %9777
      %9779 = vrot.lane.b32.xlu0 %v9755, 28
      %v9780 = vpop.permute.xlu0 %9779
      %9781 = vrot.lane.b32.xlu0 %v9756, 28
      %v9782 = vpop.permute.xlu0 %9781
      %9783 = vrot.lane.b32.xlu0 %v9757, 28
      %v9784 = vpop.permute.xlu0 %9783
      %9785 = vrot.lane.b32.xlu0 %v9758, 28
      %v9786 = vpop.permute.xlu0 %9785
      %9787 = vrot.lane.b32.xlu0 %v9759, 28
      %v9788 = vpop.permute.xlu0 %9787
      %9789 = vrot.lane.b32.xlu0 %v9760, 28
      %v9790 = vpop.permute.xlu0 %9789
      %9791 = vrot.lane.b32.xlu0 %v9761, 28
      %v9792 = vpop.permute.xlu0 %9791
      %9793 = vrot.lane.b32.xlu0 %v9762, 28
      %v9794 = vpop.permute.xlu0 %9793
      %v9811 = vunpack.c.l.b16 %v6788
      %v9812 = vunpack.c.l.b16 %v6789
      %v9813 = vunpack.c.l.b16 %v6790
      %v9814 = vunpack.c.l.b16 %v6791
      %v9815 = vunpack.c.l.b16 %v6792
      %v9816 = vunpack.c.l.b16 %v6793
      %v9817 = vunpack.c.l.b16 %v6794
      %v9818 = vunpack.c.l.b16 %v6795
      %v9819 = vunpack.c.l.b16 %v6796
      %v9820 = vunpack.c.l.b16 %v6797
      %v9821 = vunpack.c.l.b16 %v6798
      %v9822 = vunpack.c.l.b16 %v6799
      %v9823 = vunpack.c.l.b16 %v6800
      %v9824 = vunpack.c.l.b16 %v6801
      %v9825 = vunpack.c.l.b16 %v6802
      %v9826 = vunpack.c.l.b16 %v6803
      %v9827 = vunpack.c.l.b16 %v6804
      %v9828 = vunpack.c.l.b16 %v6805
      %v9829 = vunpack.c.l.b16 %v6806
      %v9830 = vunpack.c.l.b16 %v6807
      %v9831 = vunpack.c.l.b16 %v6808
      %v9832 = vunpack.c.l.b16 %v6809
      %v9833 = vunpack.c.l.b16 %v6810
      %v9834 = vunpack.c.l.b16 %v6811
      %v9835 = vunpack.c.l.b16 %v6812
      %v9836 = vunpack.c.l.b16 %v6813
      %v9837 = vunpack.c.l.b16 %v6814
      %v9838 = vunpack.c.l.b16 %v6815
      %v9839 = vunpack.c.l.b16 %v6816
      %v9840 = vunpack.c.l.b16 %v6817
      %v9841 = vunpack.c.l.b16 %v6818
      %v9842 = vunpack.c.l.b16 %v6819
      %v9843 = vpack.c.b16 %v9812, %v9811
      %v9844 = vpack.c.b16 %v9814, %v9813
      %v9845 = vpack.c.b16 %v9816, %v9815
      %v9846 = vpack.c.b16 %v9818, %v9817
      %v9847 = vpack.c.b16 %v9820, %v9819
      %v9848 = vpack.c.b16 %v9822, %v9821
      %v9849 = vpack.c.b16 %v9824, %v9823
      %v9850 = vpack.c.b16 %v9826, %v9825
      %v9851 = vpack.c.b16 %v9828, %v9827
      %v9852 = vpack.c.b16 %v9830, %v9829
      %v9853 = vpack.c.b16 %v9832, %v9831
      %v9854 = vpack.c.b16 %v9834, %v9833
      %v9855 = vpack.c.b16 %v9836, %v9835
      %v9856 = vpack.c.b16 %v9838, %v9837
      %v9857 = vpack.c.b16 %v9840, %v9839
      %v9858 = vpack.c.b16 %v9842, %v9841
      %9859 = vrot.lane.b32.xlu0 %v9843, 32
      %v9860 = vpop.permute.xlu0 %9859
      %9861 = vrot.lane.b32.xlu0 %v9844, 32
      %v9862 = vpop.permute.xlu0 %9861
      %9863 = vrot.lane.b32.xlu0 %v9845, 32
      %v9864 = vpop.permute.xlu0 %9863
      %9865 = vrot.lane.b32.xlu0 %v9846, 32
      %v9866 = vpop.permute.xlu0 %9865
      %9867 = vrot.lane.b32.xlu0 %v9847, 32
      %v9868 = vpop.permute.xlu0 %9867
      %9869 = vrot.lane.b32.xlu0 %v9848, 32
      %v9870 = vpop.permute.xlu0 %9869
      %9871 = vrot.lane.b32.xlu0 %v9849, 32
      %v9872 = vpop.permute.xlu0 %9871
      %9873 = vrot.lane.b32.xlu0 %v9850, 32
      %v9874 = vpop.permute.xlu0 %9873
      %9875 = vrot.lane.b32.xlu0 %v9851, 32
      %v9876 = vpop.permute.xlu0 %9875
      %9877 = vrot.lane.b32.xlu0 %v9852, 32
      %v9878 = vpop.permute.xlu0 %9877
      %9879 = vrot.lane.b32.xlu0 %v9853, 32
      %v9880 = vpop.permute.xlu0 %9879
      %9881 = vrot.lane.b32.xlu0 %v9854, 32
      %v9882 = vpop.permute.xlu0 %9881
      %9883 = vrot.lane.b32.xlu0 %v9855, 32
      %v9884 = vpop.permute.xlu0 %9883
      %9885 = vrot.lane.b32.xlu0 %v9856, 32
      %v9886 = vpop.permute.xlu0 %9885
      %9887 = vrot.lane.b32.xlu0 %v9857, 32
      %v9888 = vpop.permute.xlu0 %9887
      %9889 = vrot.lane.b32.xlu0 %v9858, 32
      %v9890 = vpop.permute.xlu0 %9889
      %v9891 = vunpack.c.l.b16 %v6869
      %v9892 = vunpack.c.l.b16 %v6879
      %v9893 = vunpack.c.l.b16 %v6897
      %v9894 = vunpack.c.l.b16 %v6907
      %v9895 = vunpack.c.l.b16 %v6925
      %v9896 = vunpack.c.l.b16 %v6935
      %v9897 = vunpack.c.l.b16 %v6953
      %v9898 = vunpack.c.l.b16 %v6963
      %v9899 = vunpack.c.l.b16 %v6981
      %v9900 = vunpack.c.l.b16 %v6991
      %v9901 = vunpack.c.l.b16 %v7009
      %v9902 = vunpack.c.l.b16 %v7019
      %v9903 = vunpack.c.l.b16 %v7037
      %v9904 = vunpack.c.l.b16 %v7047
      %v9905 = vunpack.c.l.b16 %v7065
      %v9906 = vunpack.c.l.b16 %v7075
      %v9907 = vunpack.c.l.b16 %v7093
      %v9908 = vunpack.c.l.b16 %v7103
      %v9909 = vunpack.c.l.b16 %v7121
      %v9910 = vunpack.c.l.b16 %v7131
      %v9911 = vunpack.c.l.b16 %v7149
      %v9912 = vunpack.c.l.b16 %v7159
      %v9913 = vunpack.c.l.b16 %v7177
      %v9914 = vunpack.c.l.b16 %v7187
      %v9915 = vunpack.c.l.b16 %v7205
      %v9916 = vunpack.c.l.b16 %v7215
      %v9917 = vunpack.c.l.b16 %v7233
      %v9918 = vunpack.c.l.b16 %v7243
      %v9919 = vunpack.c.l.b16 %v7261
      %v9920 = vunpack.c.l.b16 %v7271
      %v9921 = vunpack.c.l.b16 %v7289
      %v9922 = vunpack.c.l.b16 %v7299
      %v9923 = vpack.c.b16 %v9892, %v9891
      %v9924 = vpack.c.b16 %v9894, %v9893
      %v9925 = vpack.c.b16 %v9896, %v9895
      %v9926 = vpack.c.b16 %v9898, %v9897
      %v9927 = vpack.c.b16 %v9900, %v9899
      %v9928 = vpack.c.b16 %v9902, %v9901
      %v9929 = vpack.c.b16 %v9904, %v9903
      %v9930 = vpack.c.b16 %v9906, %v9905
      %v9931 = vpack.c.b16 %v9908, %v9907
      %v9932 = vpack.c.b16 %v9910, %v9909
      %v9933 = vpack.c.b16 %v9912, %v9911
      %v9934 = vpack.c.b16 %v9914, %v9913
      %v9935 = vpack.c.b16 %v9916, %v9915
      %v9936 = vpack.c.b16 %v9918, %v9917
      %v9937 = vpack.c.b16 %v9920, %v9919
      %v9938 = vpack.c.b16 %v9922, %v9921
      %9939 = vrot.lane.b32.xlu0 %v9923, 36
      %v9940 = vpop.permute.xlu0 %9939
      %9941 = vrot.lane.b32.xlu0 %v9924, 36
      %v9942 = vpop.permute.xlu0 %9941
      %9943 = vrot.lane.b32.xlu0 %v9925, 36
      %v9944 = vpop.permute.xlu0 %9943
      %9945 = vrot.lane.b32.xlu0 %v9926, 36
      %v9946 = vpop.permute.xlu0 %9945
      %9947 = vrot.lane.b32.xlu0 %v9927, 36
      %v9948 = vpop.permute.xlu0 %9947
      %9949 = vrot.lane.b32.xlu0 %v9928, 36
      %v9950 = vpop.permute.xlu0 %9949
      %9951 = vrot.lane.b32.xlu0 %v9929, 36
      %v9952 = vpop.permute.xlu0 %9951
      %9953 = vrot.lane.b32.xlu0 %v9930, 36
      %v9954 = vpop.permute.xlu0 %9953
      %9955 = vrot.lane.b32.xlu0 %v9931, 36
      %v9956 = vpop.permute.xlu0 %9955
      %9957 = vrot.lane.b32.xlu0 %v9932, 36
      %v9958 = vpop.permute.xlu0 %9957
      %9959 = vrot.lane.b32.xlu0 %v9933, 36
      %v9960 = vpop.permute.xlu0 %9959
      %9961 = vrot.lane.b32.xlu0 %v9934, 36
      %v9962 = vpop.permute.xlu0 %9961
      %9963 = vrot.lane.b32.xlu0 %v9935, 36
      %v9964 = vpop.permute.xlu0 %9963
      %9965 = vrot.lane.b32.xlu0 %v9936, 36
      %v9966 = vpop.permute.xlu0 %9965
      %9967 = vrot.lane.b32.xlu0 %v9937, 36
      %v9968 = vpop.permute.xlu0 %9967
      %9969 = vrot.lane.b32.xlu0 %v9938, 36
      %v9970 = vpop.permute.xlu0 %9969
      %v9971 = vunpack.c.l.b16 %v7383
      %v9972 = vunpack.c.l.b16 %v7386
      %v9973 = vunpack.c.l.b16 %v7390
      %v9974 = vunpack.c.l.b16 %v7393
      %v9975 = vunpack.c.l.b16 %v7397
      %v9976 = vunpack.c.l.b16 %v7400
      %v9977 = vunpack.c.l.b16 %v7404
      %v9978 = vunpack.c.l.b16 %v7407
      %v9979 = vunpack.c.l.b16 %v7411
      %v9980 = vunpack.c.l.b16 %v7414
      %v9981 = vunpack.c.l.b16 %v7418
      %v9982 = vunpack.c.l.b16 %v7421
      %v9983 = vunpack.c.l.b16 %v7425
      %v9984 = vunpack.c.l.b16 %v7428
      %v9985 = vunpack.c.l.b16 %v7432
      %v9986 = vunpack.c.l.b16 %v7435
      %v9987 = vunpack.c.l.b16 %v7439
      %v9988 = vunpack.c.l.b16 %v7442
      %v9989 = vunpack.c.l.b16 %v7446
      %v9990 = vunpack.c.l.b16 %v7449
      %v9991 = vunpack.c.l.b16 %v7453
      %v9992 = vunpack.c.l.b16 %v7456
      %v9993 = vunpack.c.l.b16 %v7460
      %v9994 = vunpack.c.l.b16 %v7463
      %v9995 = vunpack.c.l.b16 %v7467
      %v9996 = vunpack.c.l.b16 %v7470
      %v9997 = vunpack.c.l.b16 %v7474
      %v9998 = vunpack.c.l.b16 %v7477
      %v9999 = vunpack.c.l.b16 %v7481
      %v10000 = vunpack.c.l.b16 %v7484
      %v10001 = vunpack.c.l.b16 %v7488
      %v10002 = vunpack.c.l.b16 %v7491
      %v10003 = vpack.c.b16 %v9972, %v9971
      %v10004 = vpack.c.b16 %v9974, %v9973
      %v10005 = vpack.c.b16 %v9976, %v9975
      %v10006 = vpack.c.b16 %v9978, %v9977
      %v10007 = vpack.c.b16 %v9980, %v9979
      %v10008 = vpack.c.b16 %v9982, %v9981
      %v10009 = vpack.c.b16 %v9984, %v9983
      %v10010 = vpack.c.b16 %v9986, %v9985
      %v10011 = vpack.c.b16 %v9988, %v9987
      %v10012 = vpack.c.b16 %v9990, %v9989
      %v10013 = vpack.c.b16 %v9992, %v9991
      %v10014 = vpack.c.b16 %v9994, %v9993
      %v10015 = vpack.c.b16 %v9996, %v9995
      %v10016 = vpack.c.b16 %v9998, %v9997
      %v10017 = vpack.c.b16 %v10000, %v9999
      %v10018 = vpack.c.b16 %v10002, %v10001
      %10019 = vrot.lane.b32.xlu0 %v10003, 40
      %v10020 = vpop.permute.xlu0 %10019
      %10021 = vrot.lane.b32.xlu0 %v10004, 40
      %v10022 = vpop.permute.xlu0 %10021
      %10023 = vrot.lane.b32.xlu0 %v10005, 40
      %v10024 = vpop.permute.xlu0 %10023
      %10025 = vrot.lane.b32.xlu0 %v10006, 40
      %v10026 = vpop.permute.xlu0 %10025
      %10027 = vrot.lane.b32.xlu0 %v10007, 40
      %v10028 = vpop.permute.xlu0 %10027
      %10029 = vrot.lane.b32.xlu0 %v10008, 40
      %v10030 = vpop.permute.xlu0 %10029
      %10031 = vrot.lane.b32.xlu0 %v10009, 40
      %v10032 = vpop.permute.xlu0 %10031
      %10033 = vrot.lane.b32.xlu0 %v10010, 40
      %v10034 = vpop.permute.xlu0 %10033
      %10035 = vrot.lane.b32.xlu0 %v10011, 40
      %v10036 = vpop.permute.xlu0 %10035
      %10037 = vrot.lane.b32.xlu0 %v10012, 40
      %v10038 = vpop.permute.xlu0 %10037
      %10039 = vrot.lane.b32.xlu0 %v10013, 40
      %v10040 = vpop.permute.xlu0 %10039
      %10041 = vrot.lane.b32.xlu0 %v10014, 40
      %v10042 = vpop.permute.xlu0 %10041
      %10043 = vrot.lane.b32.xlu0 %v10015, 40
      %v10044 = vpop.permute.xlu0 %10043
      %10045 = vrot.lane.b32.xlu0 %v10016, 40
      %v10046 = vpop.permute.xlu0 %10045
      %10047 = vrot.lane.b32.xlu0 %v10017, 40
      %v10048 = vpop.permute.xlu0 %10047
      %10049 = vrot.lane.b32.xlu0 %v10018, 40
      %v10050 = vpop.permute.xlu0 %10049
      %v10053 = vsel %vm8692, %v9235, %v9300
      %v10056 = vsel %vm8692, %v9236, %v9302
      %v10059 = vsel %vm8692, %v9237, %v9304
      %v10062 = vsel %vm8692, %v9238, %v9306
      %v10065 = vsel %vm8692, %v9239, %v9308
      %v10068 = vsel %vm8692, %v9240, %v9310
      %v10071 = vsel %vm8692, %v9241, %v9312
      %v10074 = vsel %vm8692, %v9242, %v9314
      %v10077 = vsel %vm8692, %v9243, %v9316
      %v10080 = vsel %vm8692, %v9244, %v9318
      %v10083 = vsel %vm8692, %v9245, %v9320
      %v10086 = vsel %vm8692, %v9246, %v9322
      %v10089 = vsel %vm8692, %v9247, %v9324
      %v10092 = vsel %vm8692, %v9248, %v9326
      %v10095 = vsel %vm8692, %v9249, %v9328
      %v10098 = vsel %vm8692, %v9250, %v9330
      %v10100 = vsel %vm8741, %v10053, %v9396
      %v10102 = vsel %vm8741, %v10056, %v9398
      %v10104 = vsel %vm8741, %v10059, %v9400
      %v10106 = vsel %vm8741, %v10062, %v9402
      %v10108 = vsel %vm8741, %v10065, %v9404
      %v10110 = vsel %vm8741, %v10068, %v9406
      %v10112 = vsel %vm8741, %v10071, %v9408
      %v10114 = vsel %vm8741, %v10074, %v9410
      %v10116 = vsel %vm8741, %v10077, %v9412
      %v10118 = vsel %vm8741, %v10080, %v9414
      %v10120 = vsel %vm8741, %v10083, %v9416
      %v10122 = vsel %vm8741, %v10086, %v9418
      %v10124 = vsel %vm8741, %v10089, %v9420
      %v10126 = vsel %vm8741, %v10092, %v9422
      %v10128 = vsel %vm8741, %v10095, %v9424
      %v10130 = vsel %vm8741, %v10098, %v9426
      %v10132 = vsel %vm8774, %v10100, %v9476
      %v10134 = vsel %vm8774, %v10102, %v9478
      %v10136 = vsel %vm8774, %v10104, %v9480
      %v10138 = vsel %vm8774, %v10106, %v9482
      %v10140 = vsel %vm8774, %v10108, %v9484
      %v10142 = vsel %vm8774, %v10110, %v9486
      %v10144 = vsel %vm8774, %v10112, %v9488
      %v10146 = vsel %vm8774, %v10114, %v9490
      %v10148 = vsel %vm8774, %v10116, %v9492
      %v10150 = vsel %vm8774, %v10118, %v9494
      %v10152 = vsel %vm8774, %v10120, %v9496
      %v10154 = vsel %vm8774, %v10122, %v9498
      %v10156 = vsel %vm8774, %v10124, %v9500
      %v10158 = vsel %vm8774, %v10126, %v9502
      %v10160 = vsel %vm8774, %v10128, %v9504
      %v10162 = vsel %vm8774, %v10130, %v9506
      %v10164 = vsel %vm8807, %v10132, %v9556
      %v10166 = vsel %vm8807, %v10134, %v9558
      %v10168 = vsel %vm8807, %v10136, %v9560
      %v10170 = vsel %vm8807, %v10138, %v9562
      %v10172 = vsel %vm8807, %v10140, %v9564
      %v10174 = vsel %vm8807, %v10142, %v9566
      %v10176 = vsel %vm8807, %v10144, %v9568
      %v10178 = vsel %vm8807, %v10146, %v9570
      %v10180 = vsel %vm8807, %v10148, %v9572
      %v10182 = vsel %vm8807, %v10150, %v9574
      %v10184 = vsel %vm8807, %v10152, %v9576
      %v10186 = vsel %vm8807, %v10154, %v9578
      %v10188 = vsel %vm8807, %v10156, %v9580
      %v10190 = vsel %vm8807, %v10158, %v9582
      %v10192 = vsel %vm8807, %v10160, %v9584
      %v10194 = vsel %vm8807, %v10162, %v9586
      %v10196 = vsel %vm8840, %v10164, %v9652
      %v10198 = vsel %vm8840, %v10166, %v9654
      %v10200 = vsel %vm8840, %v10168, %v9656
      %v10202 = vsel %vm8840, %v10170, %v9658
      %v10204 = vsel %vm8840, %v10172, %v9660
      %v10206 = vsel %vm8840, %v10174, %v9662
      %v10208 = vsel %vm8840, %v10176, %v9664
      %v10210 = vsel %vm8840, %v10178, %v9666
      %v10212 = vsel %vm8840, %v10180, %v9668
      %v10214 = vsel %vm8840, %v10182, %v9670
      %v10216 = vsel %vm8840, %v10184, %v9672
      %v10218 = vsel %vm8840, %v10186, %v9674
      %v10220 = vsel %vm8840, %v10188, %v9676
      %v10222 = vsel %vm8840, %v10190, %v9678
      %v10224 = vsel %vm8840, %v10192, %v9680
      %v10226 = vsel %vm8840, %v10194, %v9682
      %v10228 = vsel %vm8873, %v10196, %v9684
      %v10230 = vsel %vm8873, %v10198, %v9686
      %v10232 = vsel %vm8873, %v10200, %v9688
      %v10234 = vsel %vm8873, %v10202, %v9690
      %v10236 = vsel %vm8873, %v10204, %v9692
      %v10238 = vsel %vm8873, %v10206, %v9694
      %v10240 = vsel %vm8873, %v10208, %v9696
      %v10242 = vsel %vm8873, %v10210, %v9698
      %v10244 = vsel %vm8873, %v10212, %v9700
      %v10246 = vsel %vm8873, %v10214, %v9702
      %v10248 = vsel %vm8873, %v10216, %v9704
      %v10250 = vsel %vm8873, %v10218, %v9706
      %v10252 = vsel %vm8873, %v10220, %v9708
      %v10254 = vsel %vm8873, %v10222, %v9710
      %v10256 = vsel %vm8873, %v10224, %v9712
      %v10258 = vsel %vm8873, %v10226, %v9714
      %v10260 = vsel %vm8906, %v10228, %v9764
      %v10262 = vsel %vm8906, %v10230, %v9766
      %v10264 = vsel %vm8906, %v10232, %v9768
      %v10266 = vsel %vm8906, %v10234, %v9770
      %v10268 = vsel %vm8906, %v10236, %v9772
      %v10270 = vsel %vm8906, %v10238, %v9774
      %v10272 = vsel %vm8906, %v10240, %v9776
      %v10274 = vsel %vm8906, %v10242, %v9778
      %v10276 = vsel %vm8906, %v10244, %v9780
      %v10278 = vsel %vm8906, %v10246, %v9782
      %v10280 = vsel %vm8906, %v10248, %v9784
      %v10282 = vsel %vm8906, %v10250, %v9786
      %v10284 = vsel %vm8906, %v10252, %v9788
      %v10286 = vsel %vm8906, %v10254, %v9790
      %v10288 = vsel %vm8906, %v10256, %v9792
      %v10290 = vsel %vm8906, %v10258, %v9794
      %v10292 = vsel %vm8939, %v10260, %v9860
      %v10294 = vsel %vm8939, %v10262, %v9862
      %v10296 = vsel %vm8939, %v10264, %v9864
      %v10298 = vsel %vm8939, %v10266, %v9866
      %v10300 = vsel %vm8939, %v10268, %v9868
      %v10302 = vsel %vm8939, %v10270, %v9870
      %v10304 = vsel %vm8939, %v10272, %v9872
      %v10306 = vsel %vm8939, %v10274, %v9874
      %v10308 = vsel %vm8939, %v10276, %v9876
      %v10310 = vsel %vm8939, %v10278, %v9878
      %v10312 = vsel %vm8939, %v10280, %v9880
      %v10314 = vsel %vm8939, %v10282, %v9882
      %v10316 = vsel %vm8939, %v10284, %v9884
      %v10318 = vsel %vm8939, %v10286, %v9886
      %v10320 = vsel %vm8939, %v10288, %v9888
      %v10322 = vsel %vm8939, %v10290, %v9890
      %v10324 = vsel %vm8972, %v10292, %v9940
      %v10326 = vsel %vm8972, %v10294, %v9942
      %v10328 = vsel %vm8972, %v10296, %v9944
      %v10330 = vsel %vm8972, %v10298, %v9946
      %v10332 = vsel %vm8972, %v10300, %v9948
      %v10334 = vsel %vm8972, %v10302, %v9950
      %v10336 = vsel %vm8972, %v10304, %v9952
      %v10338 = vsel %vm8972, %v10306, %v9954
      %v10340 = vsel %vm8972, %v10308, %v9956
      %v10342 = vsel %vm8972, %v10310, %v9958
      %v10344 = vsel %vm8972, %v10312, %v9960
      %v10346 = vsel %vm8972, %v10314, %v9962
      %v10348 = vsel %vm8972, %v10316, %v9964
      %v10350 = vsel %vm8972, %v10318, %v9966
      %v10352 = vsel %vm8972, %v10320, %v9968
      %v10354 = vsel %vm8972, %v10322, %v9970
      %v10356 = vsel %vm9005, %v10324, %v10020
      %v10358 = vsel %vm9005, %v10326, %v10022
      %v10360 = vsel %vm9005, %v10328, %v10024
      %v10362 = vsel %vm9005, %v10330, %v10026
      %v10364 = vsel %vm9005, %v10332, %v10028
      %v10366 = vsel %vm9005, %v10334, %v10030
      %v10368 = vsel %vm9005, %v10336, %v10032
      %v10370 = vsel %vm9005, %v10338, %v10034
      %v10372 = vsel %vm9005, %v10340, %v10036
      %v10374 = vsel %vm9005, %v10342, %v10038
      %v10376 = vsel %vm9005, %v10344, %v10040
      %v10378 = vsel %vm9005, %v10346, %v10042
      %v10380 = vsel %vm9005, %v10348, %v10044
      %v10382 = vsel %vm9005, %v10350, %v10046
      %v10384 = vsel %vm9005, %v10352, %v10048
      %v10386 = vsel %vm9005, %v10354, %v10050
      %10403 = vrot.lane.b32.xlu0 %v10356, 64
      %v10404 = vpop.permute.xlu0 %10403
      %10405 = vrot.lane.b32.xlu0 %v10358, 64
      %v10406 = vpop.permute.xlu0 %10405
      %10407 = vrot.lane.b32.xlu0 %v10360, 64
      %v10408 = vpop.permute.xlu0 %10407
      %10409 = vrot.lane.b32.xlu0 %v10362, 64
      %v10410 = vpop.permute.xlu0 %10409
      %10411 = vrot.lane.b32.xlu0 %v10364, 64
      %v10412 = vpop.permute.xlu0 %10411
      %10413 = vrot.lane.b32.xlu0 %v10366, 64
      %v10414 = vpop.permute.xlu0 %10413
      %10415 = vrot.lane.b32.xlu0 %v10368, 64
      %v10416 = vpop.permute.xlu0 %10415
      %10417 = vrot.lane.b32.xlu0 %v10370, 64
      %v10418 = vpop.permute.xlu0 %10417
      %10419 = vrot.lane.b32.xlu0 %v10372, 64
      %v10420 = vpop.permute.xlu0 %10419
      %10421 = vrot.lane.b32.xlu0 %v10374, 64
      %v10422 = vpop.permute.xlu0 %10421
      %10423 = vrot.lane.b32.xlu0 %v10376, 64
      %v10424 = vpop.permute.xlu0 %10423
      %10425 = vrot.lane.b32.xlu0 %v10378, 64
      %v10426 = vpop.permute.xlu0 %10425
      %10427 = vrot.lane.b32.xlu0 %v10380, 64
      %v10428 = vpop.permute.xlu0 %10427
      %10429 = vrot.lane.b32.xlu0 %v10382, 64
      %v10430 = vpop.permute.xlu0 %10429
      %10431 = vrot.lane.b32.xlu0 %v10384, 64
      %v10432 = vpop.permute.xlu0 %10431
      %10433 = vrot.lane.b32.xlu0 %v10386, 64
      %v10434 = vpop.permute.xlu0 %10433
      %vm10435 = vcmask 523264
      %v10437 = vsel %vm10435, %v9172, %v10404
      %v10439 = vsel %vm10435, %v9174, %v10406
      %v10441 = vsel %vm10435, %v9176, %v10408
      %v10443 = vsel %vm10435, %v9178, %v10410
      %v10445 = vsel %vm10435, %v9180, %v10412
      %v10447 = vsel %vm10435, %v9182, %v10414
      %v10449 = vsel %vm10435, %v9184, %v10416
      %v10451 = vsel %vm10435, %v9186, %v10418
      %v10453 = vsel %vm10435, %v9188, %v10420
      %v10455 = vsel %vm10435, %v9190, %v10422
      %v10457 = vsel %vm10435, %v9192, %v10424
      %v10459 = vsel %vm10435, %v9194, %v10426
      %v10461 = vsel %vm10435, %v9196, %v10428
      %v10463 = vsel %vm10435, %v9198, %v10430
      %v10465 = vsel %vm10435, %v9200, %v10432
      %v10467 = vsel %vm10435, %v9202, %v10434
      %v10468 = vld [vmem:[%s1] sm:$0xf]
      %v10469 = vld [vmem:[%s1 + $0x4] sm:$0xf]
      %v10470 = vld [vmem:[%s1 + $0x8] sm:$0xf]
      %v10471 = vld [vmem:[%s2] sm:$0xff]
      %v10472 = vld [vmem:[%s2 + $0x8] sm:$0xff]
      %v10473 = vld [vmem:[%s2 + $0x10] sm:$0xff]
      %10475 = vset.pattern.permute.xlu0 0
      %10476 = vperm.xlu0 %10475, %v10471
      %v10477 = vpop.permute.xlu0 %10476
      %10480 = vset.pattern.permute.xlu0 0
      %10481 = vperm.xlu0 %10480, %v10472
      %v10482 = vpop.permute.xlu0 %10481
      %10485 = vset.pattern.permute.xlu0 0
      %10486 = vperm.xlu0 %10485, %v10473
      %v10487 = vpop.permute.xlu0 %10486
      %v10492 = vunpack.c.l.b16 %v10468
      %v10493 = vunpack.c.l.b16 %v10469
      %v10494 = vunpack.c.l.b16 %v10470
      %v10495 = vpack.c.b16 %v10493, %v10492
      %v10496 = vpack.c.b16 %v10494, %v10494
      %vm10497 = vcmask 883712
      %v10499 = vsel %vm10497, %v10495, 0
      %v10502 = vsel %vm10497, %v10496, 0
      %v10504 = vsel %vm10497, %v10437, 0
      %v10506 = vsel %vm10497, %v10439, 0
      %v10508 = vsel %vm10497, %v10441, 0
      %v10510 = vsel %vm10497, %v10443, 0
      %v10512 = vsel %vm10497, %v10445, 0
      %v10514 = vsel %vm10497, %v10447, 0
      %v10516 = vsel %vm10497, %v10449, 0
      %v10518 = vsel %vm10497, %v10451, 0
      %v10520 = vsel %vm10497, %v10453, 0
      %v10522 = vsel %vm10497, %v10455, 0
      %v10524 = vsel %vm10497, %v10457, 0
      %v10526 = vsel %vm10497, %v10459, 0
      %v10528 = vsel %vm10497, %v10461, 0
      %v10530 = vsel %vm10497, %v10463, 0
      %v10532 = vsel %vm10497, %v10465, 0
      %v10534 = vsel %vm10497, %v10467, 0
      %10536 = vmatpush.bf16.xpose.msra.mxu0 %v10518
      %10537 = vmatpush.bf16.xpose.msra.mxu0 %v10516
      %10538 = vmatpush.bf16.xpose.msra.mxu0 %v10514
      %10539 = vmatpush.bf16.xpose.msra.mxu0 %v10512
      %10540 = vmatpush.bf16.xpose.msra.mxu0 %v10510
      %10541 = vmatpush.bf16.xpose.msra.mxu0 %v10508
      %10542 = vmatpush.bf16.xpose.msra.mxu0 %v10506
      %10543 = vmatpush.bf16.xpose.msra.mxu0 %v10504
      %10544 = vmatmul.bf16.gmra.mxu0 %v10499
      %v10545 = vpop.f32.mrf.mxu0
      %v10546 = vadd.f32 %v10477, %v10545
      %v10547 = vpop.f32.mrf.mxu0
      %v10548 = vadd.f32 %v10482, %v10547
      %10549 = vmatmul.bf16.gmra.mxu0 %v10502
      %v10550 = vpop.f32.mrf.mxu0
      %v10551 = vadd.f32 %v10487, %v10550
      %v10552 = vpop.f32.mrf.mxu0
      %10553 = vdwg.mxu0
      %10554 = vmatpush.bf16.xpose.msra.mxu0 %v10534
      %10555 = vmatpush.bf16.xpose.msra.mxu0 %v10532
      %10556 = vmatpush.bf16.xpose.msra.mxu0 %v10530
      %10557 = vmatpush.bf16.xpose.msra.mxu0 %v10528
      %10558 = vmatpush.bf16.xpose.msra.mxu0 %v10526
      %10559 = vmatpush.bf16.xpose.msra.mxu0 %v10524
      %10560 = vmatpush.bf16.xpose.msra.mxu0 %v10522
      %10561 = vmatpush.bf16.xpose.msra.mxu0 %v10520
      %10562 = vmatmul.bf16.gmra.mxu0 %v10499
      %v10563 = vpop.f32.mrf.mxu0
      %v10564 = vadd.f32 %v10477, %v10563
      %v10565 = vpop.f32.mrf.mxu0
      %v10566 = vadd.f32 %v10482, %v10565
      %10567 = vmatmul.bf16.gmra.mxu0 %v10502
      %v10568 = vpop.f32.mrf.mxu0
      %v10569 = vadd.f32 %v10487, %v10568
      %v10570 = vpop.f32.mrf.mxu0
      %10571 = vdwg.mxu0
      %v10572 = vld [vmem:[%s3] sm:$0xff]
      %v10573 = vld [vmem:[%s3 + $0x8] sm:$0xff]
      %v10574 = vld [vmem:[%s3 + $0x10] sm:$0xff]
      %v10576 = vsel %vm8873, %v10572, 0
      %v10579 = vsel %vm8873, %v10573, 0
      %v10582 = vsel %vm8873, %v10574, 0
      %10584 = vmatpush.msra.mxu0 0.0
      %10585 = vmatpush.msra.mxu0 0.0
      %10586 = vmatpush.msra.mxu0 0.0
      %10587 = vmatpush.msra.mxu0 0.0
      %10588 = vmatpush.msra.mxu0 0.0
      %10589 = vmatpush.msra.mxu0 0.0
      %10590 = vmatpush.msra.mxu0 0.0
      %10591 = vmatpush.msra.mxu0 0.0
      %10592 = vmatpush.msra.mxu0 0.0
      %10593 = vmatpush.msra.mxu0 0.0
      %10594 = vmatpush.msra.mxu0 0.0
      %10595 = vmatpush.msra.mxu0 0.0
      %10596 = vmatpush.msra.mxu0 0.0
      %10597 = vmatpush.msra.mxu0 %v10551
      %10598 = vmatpush.msra.mxu0 %v10548
      %10599 = vmatpush.msra.mxu0 %v10546
      %10600 = vmatmul.f32.gmra.mxu0 %v10576
      %v10601 = vpop.f32.mrf.mxu0
      %v10602 = vadd.f32 0.0, %v10601
      %10603 = vmatmul.f32.gmra.mxu0 %v10579
      %v10604 = vpop.f32.mrf.mxu0
      %v10605 = vadd.f32 0.0, %v10604
      %10606 = vmatmul.f32.gmra.mxu0 %v10582
      %v10607 = vpop.f32.mrf.mxu0
      %v10608 = vadd.f32 0.0, %v10607
      %10609 = vdwg.mxu0
      %10610 = vmatpush.msra.mxu0 0.0
      %10611 = vmatpush.msra.mxu0 0.0
      %10612 = vmatpush.msra.mxu0 0.0
      %10613 = vmatpush.msra.mxu0 0.0
      %10614 = vmatpush.msra.mxu0 0.0
      %10615 = vmatpush.msra.mxu0 0.0
      %10616 = vmatpush.msra.mxu0 0.0
      %10617 = vmatpush.msra.mxu0 0.0
      %10618 = vmatpush.msra.mxu0 0.0
      %10619 = vmatpush.msra.mxu0 0.0
      %10620 = vmatpush.msra.mxu0 0.0
      %10621 = vmatpush.msra.mxu0 0.0
      %10622 = vmatpush.msra.mxu0 0.0
      %10623 = vmatpush.msra.mxu0 %v10569
      %10624 = vmatpush.msra.mxu0 %v10566
      %10625 = vmatpush.msra.mxu0 %v10564
      %10626 = vmatmul.f32.gmra.mxu0 %v10576
      %v10627 = vpop.f32.mrf.mxu0
      %v10628 = vadd.f32 0.0, %v10627
      %10629 = vmatmul.f32.gmra.mxu0 %v10579
      %v10630 = vpop.f32.mrf.mxu0
      %v10631 = vadd.f32 0.0, %v10630
      %10632 = vmatmul.f32.gmra.mxu0 %v10582
      %v10633 = vpop.f32.mrf.mxu0
      %v10634 = vadd.f32 0.0, %v10633
      %10635 = vdwg.mxu0
      %v10636 = vadd.f32 %v10602, %v10628
      %10637 = vadd.xlane.f32.xlu0 %v10636
      %v10638 = vpop.xlane.xlu0 %10637
      %v10639 = vadd.f32 %v10605, %v10631
      %10640 = vadd.xlane.f32.xlu0 %v10639
      %v10641 = vpop.xlane.xlu0 %10640
      %v10642 = vadd.f32 %v10608, %v10634
      %10643 = vadd.xlane.f32.xlu0 %v10642
      %v10644 = vpop.xlane.xlu0 %10643
      %v10645 = vsub.f32 0.0, %v10638
      %v10646 = vsub.f32 0.0, %v10641
      %v10647 = vsub.f32 0.0, %v10644
      %v10648 = vmul.f32 %v10645, 1.442695
      %v10649 = vpow.pop %v10648
      %v10650 = vmul.f32 %v10646, 1.442695
      %v10651 = vpow.pop %v10650
      %v10652 = vmul.f32 %v10647, 1.442695
      %v10653 = vpow.pop %v10652
      %v10654 = vadd.f32 %v10649, 1.0
      %v10655 = vadd.f32 %v10651, 1.0
      %v10656 = vadd.f32 %v10653, 1.0
      %v10657 = vrcp.pop %v10654
      %v10658 = vmul.f32 %v10654, %v10657
      %v10659 = vsub.f32 1.0, %v10658
      %v10660 = vmul.f32 %v10657, %v10659
      %v10661 = vadd.f32 %v10657, %v10660
      %vm10662 = vweird.f32 %v10654
      %vm10663 = vweird.f32 %v10657
      %vm10664 = vmor %vm10662, %vm10663
      %v10665 = vsel %vm10664, %v10657, %v10661
      %v10666 = vand.u32 2147483647, %v10654
      %vm10667 = vcmp.eq.f32.partialorder %v10666, 8.507059e+37
      %v10668 = vand.u32 %v10654, 2147483648
      %v10669 = vor.u32 1.1754944e-38, %v10668
      %v10670 = vsel %vm10667, %v10669, %v10665
      %v10671 = vmul.f32 1.0, %v10670
      %v10672 = vrcp.pop %v10655
      %v10673 = vmul.f32 %v10655, %v10672
      %v10674 = vsub.f32 1.0, %v10673
      %v10675 = vmul.f32 %v10672, %v10674
      %v10676 = vadd.f32 %v10672, %v10675
      %vm10677 = vweird.f32 %v10655
      %vm10678 = vweird.f32 %v10672
      %vm10679 = vmor %vm10677, %vm10678
      %v10680 = vsel %vm10679, %v10672, %v10676
      %v10681 = vand.u32 2147483647, %v10655
      %vm10682 = vcmp.eq.f32.partialorder %v10681, 8.507059e+37
      %v10683 = vand.u32 %v10655, 2147483648
      %v10684 = vor.u32 1.1754944e-38, %v10683
      %v10685 = vsel %vm10682, %v10684, %v10680
      %v10686 = vmul.f32 1.0, %v10685
      %v10687 = vrcp.pop %v10656
      %v10688 = vmul.f32 %v10656, %v10687
      %v10689 = vsub.f32 1.0, %v10688
      %v10690 = vmul.f32 %v10687, %v10689
      %v10691 = vadd.f32 %v10687, %v10690
      %vm10692 = vweird.f32 %v10656
      %vm10693 = vweird.f32 %v10687
      %vm10694 = vmor %vm10692, %vm10693
      %v10695 = vsel %vm10694, %v10687, %v10691
      %v10696 = vand.u32 2147483647, %v10656
      %vm10697 = vcmp.eq.f32.partialorder %v10696, 8.507059e+37
      %v10698 = vand.u32 %v10656, 2147483648
      %v10699 = vor.u32 1.1754944e-38, %v10698
      %v10700 = vsel %vm10697, %v10699, %v10695
      %v10701 = vmul.f32 1.0, %v10700
      %v10702 = vmul.f32 %v10546, %v10671
      %v10703 = vmul.f32 %v10564, %v10671
      %v10704 = vmul.f32 %v10548, %v10686
      %v10705 = vmul.f32 %v10566, %v10686
      %v10706 = vmul.f32 %v10551, %v10701
      %v10707 = vmul.f32 %v10569, %v10701
      %v10708 = vadd.f32 %v10702, %v10704
      %v10709 = vadd.f32 %v10703, %v10705
      %v10710 = vadd.f32 %v10708, %v10706
      %v10711 = vadd.f32 %v10709, %v10707
      %v10712 = vmul.f32 %v10710, 0.33333334
      %v10713 = vmul.f32 %v10711, 0.33333334
      %v10714 = vadd.f32 %v10712, %v10713
      %10715 = vadd.xlane.f32.xlu0 %v10714
      %v10716 = vpop.xlane.xlu0 %10715
      %v10717 = vmul.f32 %v10712, %v10712
      %v10718 = vmul.f32 %v10713, %v10713
      %v10719 = vadd.f32 %v10717, %v10718
      %10720 = vadd.xlane.f32.xlu0 %v10719
      %v10721 = vpop.xlane.xlu0 %10720
      %vm10722 = vcmask 7168
      %v10723 = vsel %vm10722, %v10716, %v10721
      %vm10724 = vcmask 15360
      %10725 = vst.msk [vmem:[%s235] sm:$0xff] %vm10724, %v10723
      %v10726 = vpack.c.bf16 %v10713, %v10712
      %10727 = vst [vmem:[%s231] sm:$0xff] %v10726
      %p10728 = scmp.lt.s32.totalorder %s17, 1
      %s10729 = scalar_select %p10728, %s17, 1
      %s10730 = smul.addr %s10729, 2
      %s10731 = smul.addr %s10730, 4
      %s10732 = scalar_lea.vmem %s4, %s10731
      %p10733 = scmp.lt.s32.totalorder %s17, 1
      %s10734 = scalar_select %p10733, %s17, 1
      %s10735 = smul.addr %s10734, 8
      %s10736 = scalar_lea.vmem %s5, %s10735
      // Predicated region
      $region37: #{atrous_conv_forward.2} parent=35 // pred_check
        %p10737 = pneg %p124
      $region38: #{atrous_conv_forward.2} parent=35 // pred_check_branch
        %10739 = sbr.rel (%p10737) target = $region40
      $region39: #{atrous_conv_forward.2} parent=35 // pred_region
        _
      $region40: #{atrous_conv_forward.2} parent=35 // pred_fallthru
        _
      // Predicated region
      $region41: #{atrous_conv_forward.2} parent=35 // pred_check
        %p10740 = pneg %p150
      $region42: #{atrous_conv_forward.2} parent=35 // pred_check_branch
        %10742 = sbr.rel (%p10740) target = $region44
      $region43: #{atrous_conv_forward.2} parent=35 // pred_region
        _
      $region44: #{atrous_conv_forward.2} parent=35 // pred_fallthru
        _
    $region36: #{atrous_conv_forward.2} parent=5 // pred_fallthru
      _
    %p10743 = scmp.le.s32.totalorder 2, %s12
    // Predicated region
    $region45: #{atrous_conv_forward.2} parent=5 // pred_check
      %p10744 = pneg %p10743
    $region46: #{atrous_conv_forward.2} parent=5 // pred_check_branch
      %10746 = sbr.rel (%p10744) target = $region48
    $region47: #{atrous_conv_forward.2} parent=5 // pred_region
      %s10747 = ssub.s32 %s12, 2
      // Predicated region
      $region49: #{atrous_conv_forward.2} parent=47 // pred_check
        %p10748 = pneg %p130
      $region50: #{atrous_conv_forward.2} parent=47 // pred_check_branch
        %10750 = sbr.rel (%p10748) target = $region52
      $region51: #{atrous_conv_forward.2} parent=47 // pred_region
        %p10751 = scmp.lt.s32.totalorder %s18, 1
        %s10752 = scalar_select %p10751, %s18, 1
        %s10753 = smul.addr %s10752, 2
        %s10754 = smul.addr %s10753, 4
        %s10755 = scalar_lea.vmem %s4, %s10754
      $region52: #{atrous_conv_forward.2} parent=47 // pred_fallthru
        _
      // Predicated region
      $region53: #{atrous_conv_forward.2} parent=47 // pred_check
        %p10756 = pneg %p156
      $region54: #{atrous_conv_forward.2} parent=47 // pred_check_branch
        %10758 = sbr.rel (%p10756) target = $region56
      $region55: #{atrous_conv_forward.2} parent=47 // pred_region
        %p10759 = scmp.lt.s32.totalorder %s18, 1
        %s10760 = scalar_select %p10759, %s18, 1
        %s10761 = smul.addr %s10760, 8
        %s10762 = scalar_lea.vmem %s5, %s10761
      $region56: #{atrous_conv_forward.2} parent=47 // pred_fallthru
        _
    $region48: #{atrous_conv_forward.2} parent=5 // pred_fallthru
      _
  $region6: #{atrous_conv_forward.2} parent=0 // loop_footer
    %s16 = sadd.s32 1, %s12
  $region7: #{atrous_conv_forward.2} parent=0 // loop_footer_branch
    %11 = sbr.rel target = $region3
  $region8: #{atrous_conv_forward.2} parent=0 // loop_exit
    _

</llo_original>
